<compile_context>
chip_gen: v7x
topology: tpu7x:2x2x1
jax: 0.10.0
libtpu: 0.0.40
codegen_flags: <defaults>
</compile_context>

<pallas_src>
import functools

import jax
import jax.numpy as jnp
from jax.experimental import pallas as pl
from jax.experimental.pallas import tpu as pltpu

NC = 3           # input image channels (PyTorch `nc`)
NDF = 8          # base discriminator feature maps (PyTorch `ndf`), small demo size
IMAGE_SIZE = 128
LRELU_SLOPE = 0.2
BN_EPS = 1e-5
LANE = 128
TM_MAX = 512     # row-tile size for the large-M layers


def _round_up(x, m):
    return (x + m - 1) // m * m


def _apply_act(y, act):
    if act == "lrelu":
        return jnp.where(y > 0, y, LRELU_SLOPE * y)
    elif act == "sigmoid":
        return 1.0 / (1.0 + jnp.exp(-y))
    return y


# ------------------------- Pallas kernels -------------------------

def _conv_act_kernel(a_ref, b_ref, o_ref, *, cout, act):
    """No-BatchNorm conv tile: o = act(a @ b)[:, :cout].
    Tiles are independent -> grid can be 'parallel'."""
    y = jnp.dot(a_ref[...], b_ref[...], preferred_element_type=jnp.float32)
    o_ref[...] = _apply_act(y, act)[:, :cout]


def _conv_bn_act_single_kernel(a_ref, b_ref, g_ref, bt_ref, o_ref, *,
                               m_true, cout, act):
    """Whole layer in one grid step: matmul + batch stats + BN affine + act."""
    y = jnp.dot(a_ref[...], b_ref[...], preferred_element_type=jnp.float32)
    inv_m = 1.0 / m_true
    mean = jnp.sum(y, axis=0, keepdims=True) * inv_m
    var = jnp.maximum(
        jnp.sum(y * y, axis=0, keepdims=True) * inv_m - mean * mean, 0.0)
    scale = g_ref[...] * jax.lax.rsqrt(var + BN_EPS)
    bias = bt_ref[...] - mean * scale
    o_ref[...] = _apply_act(y * scale + bias, act)[:, :cout]


def _conv_bn_act_tiled_kernel(a_ref, b_ref, g_ref, bt_ref, o_ref,
                              y_scr, sum_scr, sq_scr, *,
                              nm, tm, m_true, cout, act):
    """Fused multi-tile conv + BatchNorm + act.

    Step s (0..nm-1): matmul tile s into a resident VMEM y-slab and accumulate
    per-channel sum / sum-of-squares. On the last step, fold the batch stats
    into scale/bias and apply affine+act over the slab, writing the (resident)
    output. The pre-activation y never touches HBM."""
    s = pl.program_id(0)

    y = jnp.dot(a_ref[...], b_ref[...], preferred_element_type=jnp.float32)
    r0 = pl.multiple_of(s * tm, tm)
    y_scr[pl.ds(r0, tm), :] = y

    @pl.when(s == 0)
    def _():
        sum_scr[...] = jnp.zeros_like(sum_scr)
        sq_scr[...] = jnp.zeros_like(sq_scr)

    sum_scr[...] += jnp.sum(y, axis=0, keepdims=True)
    sq_scr[...] += jnp.sum(y * y, axis=0, keepdims=True)

    @pl.when(s == nm - 1)
    def _finalize():
        inv_m = 1.0 / m_true
        mean = sum_scr[...] * inv_m
        var = jnp.maximum(sq_scr[...] * inv_m - mean * mean, 0.0)
        scale = g_ref[...] * jax.lax.rsqrt(var + BN_EPS)
        bias = bt_ref[...] - mean * scale

        def body(t, carry):
            q0 = pl.multiple_of(t * tm, tm)
            z = y_scr[pl.ds(q0, tm), :] * scale + bias
            o_ref[pl.ds(q0, tm), :] = _apply_act(z, act)[:, :cout]
            return carry

        jax.lax.fori_loop(0, nm, body, 0, unroll=(nm <= 8))


# ------------------------- glue (im2col, layer driver) -------------------------

def im2col(x, k, stride, pad):
    """x: [N, H, W, C] -> patches [N*OH*OW, k*k*C] flattened as (kh, kw, c)."""
    n, h, w, c = x.shape
    if pad:
        x = jnp.pad(x, ((0, 0), (pad, pad), (pad, pad), (0, 0)))
    oh = (h + 2 * pad - k) // stride + 1
    ow = (w + 2 * pad - k) // stride + 1
    cols = []
    for kh in range(k):
        for kw in range(k):
            cols.append(x[:, kh:kh + stride * oh:stride,
                          kw:kw + stride * ow:stride, :])
    p = jnp.stack(cols, axis=3)              # [N, OH, OW, k*k, C]
    return p.reshape(n * oh * ow, k * k * c), (n, oh, ow)


def conv_block(x_nhwc, w_oihw, *, stride, pad, bn, act, gamma=None, beta=None):
    cout, cin, k, _ = w_oihw.shape

    # Lane-align K = k*k*C by padding the input channels to a multiple of 8
    # (only layer 0: C = 3 -> 8). Zero channels are a conv no-op.
    c = x_nhwc.shape[-1]
    c_pad = _round_up(c, 8)
    if c_pad != c:
        x_nhwc = jnp.pad(x_nhwc, ((0, 0), (0, 0), (0, 0), (0, c_pad - c)))
        w_oihw = jnp.pad(w_oihw, ((0, 0), (0, c_pad - c), (0, 0), (0, 0)))

    # bf16 MXU operands (accumulation inside the kernel stays f32).
    # TODO(synk): fuse the im2col patch extraction into the kernel via manual
    # DMA gather so the patches array never materializes in HBM.
    patches, (n, oh, ow) = im2col(x_nhwc.astype(jnp.bfloat16), k, stride, pad)
    m_true, kdim = patches.shape                   # kdim % 128 == 0 by c_pad
    tm = min(TM_MAX, _round_up(m_true, 8))
    m_pad = _round_up(m_true, tm)
    nm = m_pad // tm
    if m_pad != m_true:
        patches = jnp.pad(patches, ((0, m_pad - m_true), (0, 0)))

    n_pad = _round_up(cout, LANE)                  # MXU lane pad (VMEM only)
    w_mat = jnp.transpose(w_oihw, (2, 3, 1, 0)).reshape(kdim, cout)
    b = jnp.zeros((kdim, n_pad), jnp.bfloat16).at[:, :cout].set(
        w_mat.astype(jnp.bfloat16))

    a_spec = pl.BlockSpec((tm, kdim), lambda s: (s, 0))
    b_spec = pl.BlockSpec((kdim, n_pad), lambda s: (0, 0))
    vec_spec = pl.BlockSpec((1, n_pad), lambda s: (0, 0))
    out_shape = jax.ShapeDtypeStruct((m_pad, cout), jnp.float32)

    if not bn:
        out = pl.pallas_call(
            functools.partial(_conv_act_kernel, cout=cout, act=act),
            out_shape=out_shape,
            grid_spec=pltpu.PrefetchScalarGridSpec(
                num_scalar_prefetch=0,
                grid=(nm,),
                in_specs=[a_spec, b_spec],
                out_specs=pl.BlockSpec((tm, cout), lambda s: (s, 0)),
            ),
            compiler_params=pltpu.CompilerParams(
                dimension_semantics=("parallel",)),
        )(patches, b)
    else:
        g = jnp.zeros((1, n_pad), jnp.float32).at[0, :cout].set(gamma)
        bt = jnp.zeros((1, n_pad), jnp.float32).at[0, :cout].set(beta)
        if nm == 1:
            out = pl.pallas_call(
                functools.partial(_conv_bn_act_single_kernel,
                                  m_true=m_true, cout=cout, act=act),
                out_shape=out_shape,
                grid_spec=pltpu.PrefetchScalarGridSpec(
                    num_scalar_prefetch=0,
                    grid=(1,),
                    in_specs=[a_spec, b_spec, vec_spec, vec_spec],
                    out_specs=pl.BlockSpec((m_pad, cout), lambda s: (0, 0)),
                ),
                compiler_params=pltpu.CompilerParams(
                    dimension_semantics=("arbitrary",)),
            )(patches, b, g, bt)
        else:
            out = pl.pallas_call(
                functools.partial(_conv_bn_act_tiled_kernel, nm=nm, tm=tm,
                                  m_true=m_true, cout=cout, act=act),
                out_shape=out_shape,
                grid_spec=pltpu.PrefetchScalarGridSpec(
                    num_scalar_prefetch=0,
                    grid=(nm,),
                    in_specs=[a_spec, b_spec, vec_spec, vec_spec],
                    out_specs=pl.BlockSpec((m_pad, cout), lambda s: (0, 0)),
                    scratch_shapes=[
                        pltpu.VMEM((m_pad, n_pad), jnp.float32),  # y slab
                        pltpu.VMEM((1, n_pad), jnp.float32),      # sum
                        pltpu.VMEM((1, n_pad), jnp.float32),      # sum of sq
                    ],
                ),
                compiler_params=pltpu.CompilerParams(
                    dimension_semantics=("arbitrary",)),
            )(patches, b, g, bt)

    return out[:m_true].reshape(n, oh, ow, cout)


def init_params(key):
    layer_cfg = [
        (NC,       NDF,      2, 1, False),
        (NDF,      NDF * 2,  2, 1, True),
        (NDF * 2,  NDF * 4,  2, 1, True),
        (NDF * 4,  NDF * 8,  2, 1, True),
        (NDF * 8,  NDF * 16, 2, 1, True),
        (NDF * 16, 1,        1, 0, False),
    ]
    params = []
    for cin, cout, stride, pad, bn in layer_cfg:
        key, wk = jax.random.split(key)
        layer = {
            "w": 0.02 * jax.random.normal(wk, (cout, cin, 4, 4), jnp.float32),
            "stride": stride, "pad": pad, "bn": bn,
        }
        if bn:
            layer["gamma"] = jnp.ones((cout,), jnp.float32)
            layer["beta"] = jnp.zeros((cout,), jnp.float32)
        params.append(layer)
    return params


def discriminator128(x_nchw, params):
    x = jnp.transpose(x_nchw, (0, 2, 3, 1)).astype(jnp.float32)  # NCHW -> NHWC
    last = len(params) - 1
    for idx, p in enumerate(params):
        act = "sigmoid" if idx == last else "lrelu"
        x = conv_block(x, p["w"], stride=p["stride"], pad=p["pad"],
                       bn=p["bn"], act=act,
                       gamma=p.get("gamma"), beta=p.get("beta"))
    # final feature map is [N, 1, 1, 1]; return in NCHW like PyTorch
    return jnp.transpose(x, (0, 3, 1, 2))


# ------------------------- pure-JAX reference -------------------------

def reference_forward(x_nchw, params):
    """Mirrors the module math; matmul operands in bf16 (f32 accumulation) to
    match the kernels' MXU dtype."""
    x = jnp.transpose(x_nchw, (0, 2, 3, 1)).astype(jnp.float32)
    last = len(params) - 1
    for idx, p in enumerate(params):
        patches, (n, oh, ow) = im2col(x, 4, p["stride"], p["pad"])
        cout = p["w"].shape[0]
        w_mat = jnp.transpose(p["w"], (2, 3, 1, 0)).reshape(-1, cout)
        y = jnp.dot(patches.astype(jnp.bfloat16), w_mat.astype(jnp.bfloat16),
                    preferred_element_type=jnp.float32)
        if p["bn"]:
            mean = jnp.mean(y, axis=0)
            var = jnp.maximum(jnp.mean(y * y, axis=0) - mean * mean, 0.0)
            y = (y - mean) * jax.lax.rsqrt(var + BN_EPS) * p["gamma"] + p["beta"]
        if idx == last:
            y = 1.0 / (1.0 + jnp.exp(-y))
        else:
            y = jnp.where(y > 0, y, LRELU_SLOPE * y)
        x = y.reshape(n, oh, ow, cout)
    return jnp.transpose(x, (0, 3, 1, 2))


if __name__ == "__main__":
    key = jax.random.PRNGKey(0)
    key, xk = jax.random.split(key)
    # The architecture asserts IMAGE_SIZE == 128; keep batch/channels small.
    x = jax.random.normal(xk, (2, NC, IMAGE_SIZE, IMAGE_SIZE), jnp.float32)
    params = init_params(key)

    fwd = jax.jit(lambda inp: discriminator128(inp, params))
    out = jax.block_until_ready(fwd(x))

    ref_fwd = jax.jit(lambda inp: reference_forward(inp, params))
    ref = jax.block_until_ready(ref_fwd(x))

    assert out.shape == (2, 1, 1, 1), out.shape
    assert bool(jnp.all(jnp.isfinite(out)))
    assert bool(jnp.allclose(out, ref, atol=2e-3, rtol=2e-3)), (out, ref)
    print("KERNEL_OK")
</pallas_src>

<mosaic_0001>
module attributes {stable_mosaic.version = 11 : i64} {
  func.func @_conv_act_kernel(%arg0: i32, %arg1: memref<512x128xbf16, #tpu.memory_space<vmem>>, %arg2: memref<128x128xbf16, #tpu.memory_space<vmem>>, %arg3: memref<512x8xf32, #tpu.memory_space<vmem>>) attributes {dimension_semantics = [#tpu.dimension_semantics<parallel>], iteration_bounds = array<i64: 16>, scalar_prefetch = 0 : i64, scratch_operands = 0 : i64, tpu.core_type = #tpu.core_type<tc>, window_params = [{transform_indices = @transform_0, window_bounds = array<i64: 512, 128>}, {pipeline_mode = #tpu.pipeline_mode<synchronous>, transform_indices = @transform_1, window_bounds = array<i64: 128, 128>}, {transform_indices = @transform_2, window_bounds = array<i64: 512, 8>}]} {
    %c0 = arith.constant 0 : index
    %c0_0 = arith.constant 0 : index
    %0 = vector.load %arg1[%c0, %c0_0] : memref<512x128xbf16, #tpu.memory_space<vmem>>, vector<512x128xbf16>
    %c0_1 = arith.constant 0 : index
    %c0_2 = arith.constant 0 : index
    %1 = vector.load %arg2[%c0_1, %c0_2] : memref<128x128xbf16, #tpu.memory_space<vmem>>, vector<128x128xbf16>
    %cst = arith.constant dense<0.000000e+00> : vector<512x128xf32>
    %2 = tpu.matmul %0, %1, %cst {dimension_numbers = #tpu.dot_dimension_numbers<[1], [0], [0], [1], [0, 0, 1, 1], [], []>} : vector<512x128xbf16>, vector<128x128xbf16>, vector<512x128xf32> -> vector<512x128xf32>
    %cst_3 = arith.constant 0.000000e+00 : f32
    %3 = vector.broadcast %cst_3 : f32 to vector<512x128xf32>
    %4 = arith.cmpf ogt, %2, %3 : vector<512x128xf32>
    %cst_4 = arith.constant 2.000000e-01 : f32
    %5 = vector.broadcast %cst_4 : f32 to vector<512x128xf32>
    %6 = arith.mulf %5, %2 : vector<512x128xf32>
    %7 = arith.select %4, %2, %6 : vector<512x128xi1>, vector<512x128xf32>
    %8 = vector.extract_strided_slice %7 {offsets = [0, 0], sizes = [512, 8], strides = [1, 1]} : vector<512x128xf32> to vector<512x8xf32>
    %c0_5 = arith.constant 0 : index
    %c0_6 = arith.constant 0 : index
    %9 = vector.load %arg3[%c0_5, %c0_6] : memref<512x8xf32, #tpu.memory_space<vmem>>, vector<512x8xf32>
    tpu.vector_store %arg3[%c0_5, %c0_6], %8 {strides = array<i32>} : memref<512x8xf32, #tpu.memory_space<vmem>>, vector<512x8xf32>,
    return
  }
  func.func @transform_0(%arg0: i32) -> (i32, i32) {
    %c0_i32 = arith.constant 0 : i32
    %c0_i32_0 = arith.constant 0 : i32
    return %arg0, %c0_i32 : i32, i32
  }
  func.func @transform_1(%arg0: i32) -> (i32, i32) {
    %c0_i32 = arith.constant 0 : i32
    %c0_i32_0 = arith.constant 0 : i32
    %c0_i32_1 = arith.constant 0 : i32
    return %c0_i32, %c0_i32_0 : i32, i32
  }
  func.func @transform_2(%arg0: i32) -> (i32, i32) {
    %c0_i32 = arith.constant 0 : i32
    %c0_i32_0 = arith.constant 0 : i32
    return %arg0, %c0_i32 : i32, i32
  }
}

module attributes {stable_mosaic.version = 11 : i64} {
  func.func @_conv_bn_act_tiled_kernel(%arg0: i32, %arg1: memref<512x128xbf16, #tpu.memory_space<vmem>>, %arg2: memref<128x128xbf16, #tpu.memory_space<vmem>>, %arg3: memref<1x128xf32, #tpu.memory_space<vmem>>, %arg4: memref<1x128xf32, #tpu.memory_space<vmem>>, %arg5: memref<2048x16xf32, #tpu.memory_space<vmem>>, %arg6: memref<2048x128xf32, #tpu.memory_space<vmem>>, %arg7: memref<1x128xf32, #tpu.memory_space<vmem>>, %arg8: memref<1x128xf32, #tpu.memory_space<vmem>>) attributes {dimension_semantics = [#tpu.dimension_semantics<arbitrary>], iteration_bounds = array<i64: 4>, scalar_prefetch = 0 : i64, scratch_operands = 3 : i64, tpu.core_type = #tpu.core_type<tc>, window_params = [{transform_indices = @transform_0, window_bounds = array<i64: 512, 128>}, {pipeline_mode = #tpu.pipeline_mode<synchronous>, transform_indices = @transform_1, window_bounds = array<i64: 128, 128>}, {pipeline_mode = #tpu.pipeline_mode<synchronous>, transform_indices = @transform_2, window_bounds = array<i64: 1, 128>}, {pipeline_mode = #tpu.pipeline_mode<synchronous>, transform_indices = @transform_3, window_bounds = array<i64: 1, 128>}, {pipeline_mode = #tpu.pipeline_mode<synchronous>, transform_indices = @transform_4, window_bounds = array<i64: 2048, 16>}]} {
    %c0 = arith.constant 0 : index
    %c0_0 = arith.constant 0 : index
    %0 = vector.load %arg1[%c0, %c0_0] : memref<512x128xbf16, #tpu.memory_space<vmem>>, vector<512x128xbf16>
    %c0_1 = arith.constant 0 : index
    %c0_2 = arith.constant 0 : index
    %1 = vector.load %arg2[%c0_1, %c0_2] : memref<128x128xbf16, #tpu.memory_space<vmem>>, vector<128x128xbf16>
    %cst = arith.constant dense<0.000000e+00> : vector<512x128xf32>
    %2 = tpu.matmul %0, %1, %cst {dimension_numbers = #tpu.dot_dimension_numbers<[1], [0], [0], [1], [0, 0, 1, 1], [], []>} : vector<512x128xbf16>, vector<128x128xbf16>, vector<512x128xf32> -> vector<512x128xf32>
    %c512_i32 = arith.constant 512 : i32
    %3 = arith.muli %arg0, %c512_i32 : i32
    %4 = tpu.assume_multiple %3, 512 : i32
    %5 = arith.index_cast %4 : i32 to index
    %c0_3 = arith.constant 0 : index
    %6 = vector.load %arg6[%5, %c0_3] : memref<2048x128xf32, #tpu.memory_space<vmem>>, vector<512x128xf32>
    tpu.vector_store %arg6[%5, %c0_3], %2 {strides = array<i32>} : memref<2048x128xf32, #tpu.memory_space<vmem>>, vector<512x128xf32>,
    %c0_i32 = arith.constant 0 : i32
    %7 = arith.cmpi eq, %arg0, %c0_i32 : i32
    %8 = arith.extui %7 : i1 to i32
    %c0_i32_4 = arith.constant 0 : i32
    %9 = arith.cmpi ne, %8, %c0_i32_4 : i32
    scf.if %9 {
      %cst_16 = arith.constant 0.000000e+00 : f32
      %24 = vector.broadcast %cst_16 : f32 to vector<1x128xf32>
      %c0_17 = arith.constant 0 : index
      %c0_18 = arith.constant 0 : index
      %25 = vector.load %arg7[%c0_17, %c0_18] : memref<1x128xf32, #tpu.memory_space<vmem>>, vector<1x128xf32>
      tpu.vector_store %arg7[%c0_17, %c0_18], %24 {strides = array<i32>} : memref<1x128xf32, #tpu.memory_space<vmem>>, vector<1x128xf32>,
      %cst_19 = arith.constant 0.000000e+00 : f32
      %26 = vector.broadcast %cst_19 : f32 to vector<1x128xf32>
      %c0_20 = arith.constant 0 : index
      %c0_21 = arith.constant 0 : index
      %27 = vector.load %arg8[%c0_20, %c0_21] : memref<1x128xf32, #tpu.memory_space<vmem>>, vector<1x128xf32>
      tpu.vector_store %arg8[%c0_20, %c0_21], %26 {strides = array<i32>} : memref<1x128xf32, #tpu.memory_space<vmem>>, vector<1x128xf32>,
    } else {
    }
    %c0_5 = arith.constant 0 : index
    %c0_6 = arith.constant 0 : index
    %10 = vector.load %arg7[%c0_5, %c0_6] : memref<1x128xf32, #tpu.memory_space<vmem>>, vector<1x128xf32>
    %cst_7 = arith.constant dense<0.000000e+00> : vector<128xf32>
    %11 = vector.multi_reduction <add>, %2, %cst_7 [0] : vector<512x128xf32> to vector<128xf32>
    %12 = vector.shape_cast %11 : vector<128xf32> to vector<1x128xf32>
    %13 = arith.addf %10, %12 : vector<1x128xf32>
    %c0_8 = arith.constant 0 : index
    %c0_9 = arith.constant 0 : index
    %14 = vector.load %arg7[%c0_8, %c0_9] : memref<1x128xf32, #tpu.memory_space<vmem>>, vector<1x128xf32>
    tpu.vector_store %arg7[%c0_8, %c0_9], %13 {strides = array<i32>} : memref<1x128xf32, #tpu.memory_space<vmem>>, vector<1x128xf32>,
    %c0_10 = arith.constant 0 : index
    %c0_11 = arith.constant 0 : index
    %15 = vector.load %arg8[%c0_10, %c0_11] : memref<1x128xf32, #tpu.memory_space<vmem>>, vector<1x128xf32>
    %16 = arith.mulf %2, %2 : vector<512x128xf32>
    %cst_12 = arith.constant dense<0.000000e+00> : vector<128xf32>
    %17 = vector.multi_reduction <add>, %16, %cst_12 [0] : vector<512x128xf32> to vector<128xf32>
    %18 = vector.shape_cast %17 : vector<128xf32> to vector<1x128xf32>
    %19 = arith.addf %15, %18 : vector<1x128xf32>
    %c0_13 = arith.constant 0 : index
    %c0_14 = arith.constant 0 : index
    %20 = vector.load %arg8[%c0_13, %c0_14] : memref<1x128xf32, #tpu.memory_space<vmem>>, vector<1x128xf32>
    tpu.vector_store %arg8[%c0_13, %c0_14], %19 {strides = array<i32>} : memref<1x128xf32, #tpu.memory_space<vmem>>, vector<1x128xf32>,
    %c3_i32 = arith.constant 3 : i32
    %21 = arith.cmpi eq, %arg0, %c3_i32 : i32
    %22 = arith.extui %21 : i1 to i32
    %c0_i32_15 = arith.constant 0 : i32
    %23 = arith.cmpi ne, %22, %c0_i32_15 : i32
    scf.if %23 {
      %c0_16 = arith.constant 0 : index
      %c0_17 = arith.constant 0 : index
      %24 = vector.load %arg7[%c0_16, %c0_17] : memref<1x128xf32, #tpu.memory_space<vmem>>, vector<1x128xf32>
      %cst_18 = arith.constant 4.8828125E-4 : f32
      %25 = vector.broadcast %cst_18 : f32 to vector<1x128xf32>
      %26 = arith.mulf %24, %25 : vector<1x128xf32>
      %c0_19 = arith.constant 0 : index
      %c0_20 = arith.constant 0 : index
      %27 = vector.load %arg8[%c0_19, %c0_20] : memref<1x128xf32, #tpu.memory_space<vmem>>, vector<1x128xf32>
      %cst_21 = arith.constant 4.8828125E-4 : f32
      %28 = vector.broadcast %cst_21 : f32 to vector<1x128xf32>
      %29 = arith.mulf %27, %28 : vector<1x128xf32>
      %30 = arith.mulf %26, %26 : vector<1x128xf32>
      %31 = arith.subf %29, %30 : vector<1x128xf32>
      %cst_22 = arith.constant 0.000000e+00 : f32
      %32 = vector.broadcast %cst_22 : f32 to vector<1x128xf32>
      %33 = arith.maximumf %31, %32 : vector<1x128xf32>
      %c0_23 = arith.constant 0 : index
      %c0_24 = arith.constant 0 : index
      %34 = vector.load %arg3[%c0_23, %c0_24] : memref<1x128xf32, #tpu.memory_space<vmem>>, vector<1x128xf32>
      %cst_25 = arith.constant 9.99999974E-6 : f32
      %35 = vector.broadcast %cst_25 : f32 to vector<1x128xf32>
      %36 = arith.addf %33, %35 : vector<1x128xf32>
      %37 = math.rsqrt %36 : vector<1x128xf32>
      %38 = arith.mulf %34, %37 : vector<1x128xf32>
      %c0_26 = arith.constant 0 : index
      %c0_27 = arith.constant 0 : index
      %39 = vector.load %arg4[%c0_26, %c0_27] : memref<1x128xf32, #tpu.memory_space<vmem>>, vector<1x128xf32>
      %40 = arith.mulf %26, %38 : vector<1x128xf32>
      %41 = arith.subf %39, %40 : vector<1x128xf32>
      %c0_i32_28 = arith.constant 0 : i32
      %c512_i32_29 = arith.constant 512 : i32
      %42 = arith.muli %c0_i32_28, %c512_i32_29 : i32
      %43 = tpu.assume_multiple %42, 512 : i32
      %44 = arith.index_cast %43 : i32 to index
      %c0_30 = arith.constant 0 : index
      %45 = vector.load %arg6[%44, %c0_30] : memref<2048x128xf32, #tpu.memory_space<vmem>>, vector<512x128xf32>
      %46 = vector.broadcast %38 : vector<1x128xf32> to vector<512x128xf32>
      %47 = arith.mulf %45, %46 : vector<512x128xf32>
      %48 = vector.broadcast %41 : vector<1x128xf32> to vector<512x128xf32>
      %49 = arith.addf %47, %48 : vector<512x128xf32>
      %cst_31 = arith.constant 0.000000e+00 : f32
      %50 = vector.broadcast %cst_31 : f32 to vector<512x128xf32>
      %51 = arith.cmpf ogt, %49, %50 : vector<512x128xf32>
      %cst_32 = arith.constant 2.000000e-01 : f32
      %52 = vector.broadcast %cst_32 : f32 to vector<512x128xf32>
      %53 = arith.mulf %52, %49 : vector<512x128xf32>
      %54 = arith.select %51, %49, %53 : vector<512x128xi1>, vector<512x128xf32>
      %55 = vector.extract_strided_slice %54 {offsets = [0, 0], sizes = [512, 16], strides = [1, 1]} : vector<512x128xf32> to vector<512x16xf32>
      %56 = arith.index_cast %43 : i32 to index
      %c0_33 = arith.constant 0 : index
      %57 = vector.load %arg5[%56, %c0_33] : memref<2048x16xf32, #tpu.memory_space<vmem>>, vector<512x16xf32>
      tpu.vector_store %arg5[%56, %c0_33], %55 {strides = array<i32>} : memref<2048x16xf32, #tpu.memory_space<vmem>>, vector<512x16xf32>,
      %c1_i32 = arith.constant 1 : i32
      %c512_i32_34 = arith.constant 512 : i32
      %58 = arith.muli %c1_i32, %c512_i32_34 : i32
      %59 = tpu.assume_multiple %58, 512 : i32
      %60 = arith.index_cast %59 : i32 to index
      %c0_35 = arith.constant 0 : index
      %61 = vector.load %arg6[%60, %c0_35] : memref<2048x128xf32, #tpu.memory_space<vmem>>, vector<512x128xf32>
      %62 = vector.broadcast %38 : vector<1x128xf32> to vector<512x128xf32>
      %63 = arith.mulf %61, %62 : vector<512x128xf32>
      %64 = vector.broadcast %41 : vector<1x128xf32> to vector<512x128xf32>
      %65 = arith.addf %63, %64 : vector<512x128xf32>
      %cst_36 = arith.constant 0.000000e+00 : f32
      %66 = vector.broadcast %cst_36 : f32 to vector<512x128xf32>
      %67 = arith.cmpf ogt, %65, %66 : vector<512x128xf32>
      %cst_37 = arith.constant 2.000000e-01 : f32
      %68 = vector.broadcast %cst_37 : f32 to vector<512x128xf32>
      %69 = arith.mulf %68, %65 : vector<512x128xf32>
      %70 = arith.select %67, %65, %69 : vector<512x128xi1>, vector<512x128xf32>
      %71 = vector.extract_strided_slice %70 {offsets = [0, 0], sizes = [512, 16], strides = [1, 1]} : vector<512x128xf32> to vector<512x16xf32>
      %72 = arith.index_cast %59 : i32 to index
      %c0_38 = arith.constant 0 : index
      %73 = vector.load %arg5[%72, %c0_38] : memref<2048x16xf32, #tpu.memory_space<vmem>>, vector<512x16xf32>
      tpu.vector_store %arg5[%72, %c0_38], %71 {strides = array<i32>} : memref<2048x16xf32, #tpu.memory_space<vmem>>, vector<512x16xf32>,
      %c2_i32 = arith.constant 2 : i32
      %c512_i32_39 = arith.constant 512 : i32
      %74 = arith.muli %c2_i32, %c512_i32_39 : i32
      %75 = tpu.assume_multiple %74, 512 : i32
      %76 = arith.index_cast %75 : i32 to index
      %c0_40 = arith.constant 0 : index
      %77 = vector.load %arg6[%76, %c0_40] : memref<2048x128xf32, #tpu.memory_space<vmem>>, vector<512x128xf32>
      %78 = vector.broadcast %38 : vector<1x128xf32> to vector<512x128xf32>
      %79 = arith.mulf %77, %78 : vector<512x128xf32>
      %80 = vector.broadcast %41 : vector<1x128xf32> to vector<512x128xf32>
      %81 = arith.addf %79, %80 : vector<512x128xf32>
      %cst_41 = arith.constant 0.000000e+00 : f32
      %82 = vector.broadcast %cst_41 : f32 to vector<512x128xf32>
      %83 = arith.cmpf ogt, %81, %82 : vector<512x128xf32>
      %cst_42 = arith.constant 2.000000e-01 : f32
      %84 = vector.broadcast %cst_42 : f32 to vector<512x128xf32>
      %85 = arith.mulf %84, %81 : vector<512x128xf32>
      %86 = arith.select %83, %81, %85 : vector<512x128xi1>, vector<512x128xf32>
      %87 = vector.extract_strided_slice %86 {offsets = [0, 0], sizes = [512, 16], strides = [1, 1]} : vector<512x128xf32> to vector<512x16xf32>
      %88 = arith.index_cast %75 : i32 to index
      %c0_43 = arith.constant 0 : index
      %89 = vector.load %arg5[%88, %c0_43] : memref<2048x16xf32, #tpu.memory_space<vmem>>, vector<512x16xf32>
      tpu.vector_store %arg5[%88, %c0_43], %87 {strides = array<i32>} : memref<2048x16xf32, #tpu.memory_space<vmem>>, vector<512x16xf32>,
      %c3_i32_44 = arith.constant 3 : i32
      %c512_i32_45 = arith.constant 512 : i32
      %90 = arith.muli %c3_i32_44, %c512_i32_45 : i32
      %91 = tpu.assume_multiple %90, 512 : i32
      %92 = arith.index_cast %91 : i32 to index
      %c0_46 = arith.constant 0 : index
      %93 = vector.load %arg6[%92, %c0_46] : memref<2048x128xf32, #tpu.memory_space<vmem>>, vector<512x128xf32>
      %94 = vector.broadcast %38 : vector<1x128xf32> to vector<512x128xf32>
      %95 = arith.mulf %93, %94 : vector<512x128xf32>
      %96 = vector.broadcast %41 : vector<1x128xf32> to vector<512x128xf32>
      %97 = arith.addf %95, %96 : vector<512x128xf32>
      %cst_47 = arith.constant 0.000000e+00 : f32
      %98 = vector.broadcast %cst_47 : f32 to vector<512x128xf32>
      %99 = arith.cmpf ogt, %97, %98 : vector<512x128xf32>
      %cst_48 = arith.constant 2.000000e-01 : f32
      %100 = vector.broadcast %cst_48 : f32 to vector<512x128xf32>
      %101 = arith.mulf %100, %97 : vector<512x128xf32>
      %102 = arith.select %99, %97, %101 : vector<512x128xi1>, vector<512x128xf32>
      %103 = vector.extract_strided_slice %102 {offsets = [0, 0], sizes = [512, 16], strides = [1, 1]} : vector<512x128xf32> to vector<512x16xf32>
      %104 = arith.index_cast %91 : i32 to index
      %c0_49 = arith.constant 0 : index
      %105 = vector.load %arg5[%104, %c0_49] : memref<2048x16xf32, #tpu.memory_space<vmem>>, vector<512x16xf32>
      tpu.vector_store %arg5[%104, %c0_49], %103 {strides = array<i32>} : memref<2048x16xf32, #tpu.memory_space<vmem>>, vector<512x16xf32>,
      %c4_i32 = arith.constant 4 : i32
    } else {
    }
    return
  }
  func.func @transform_0(%arg0: i32) -> (i32, i32) {
    %c0_i32 = arith.constant 0 : i32
    %c0_i32_0 = arith.constant 0 : i32
    return %arg0, %c0_i32 : i32, i32
  }
  func.func @transform_1(%arg0: i32) -> (i32, i32) {
    %c0_i32 = arith.constant 0 : i32
    %c0_i32_0 = arith.constant 0 : i32
    %c0_i32_1 = arith.constant 0 : i32
    return %c0_i32, %c0_i32_0 : i32, i32
  }
  func.func @transform_2(%arg0: i32) -> (i32, i32) {
    %c0_i32 = arith.constant 0 : i32
    %c0_i32_0 = arith.constant 0 : i32
    %c0_i32_1 = arith.constant 0 : i32
    return %c0_i32, %c0_i32_0 : i32, i32
  }
  func.func @transform_3(%arg0: i32) -> (i32, i32) {
    %c0_i32 = arith.constant 0 : i32
    %c0_i32_0 = arith.constant 0 : i32
    %c0_i32_1 = arith.constant 0 : i32
    return %c0_i32, %c0_i32_0 : i32, i32
  }
  func.func @transform_4(%arg0: i32) -> (i32, i32) {
    %c0_i32 = arith.constant 0 : i32
    %c0_i32_0 = arith.constant 0 : i32
    %c0_i32_1 = arith.constant 0 : i32
    return %c0_i32, %c0_i32_0 : i32, i32
  }
}

module attributes {stable_mosaic.version = 11 : i64} {
  func.func @_conv_bn_act_single_kernel(%arg0: i32, %arg1: memref<512x256xbf16, #tpu.memory_space<vmem>>, %arg2: memref<256x128xbf16, #tpu.memory_space<vmem>>, %arg3: memref<1x128xf32, #tpu.memory_space<vmem>>, %arg4: memref<1x128xf32, #tpu.memory_space<vmem>>, %arg5: memref<512x32xf32, #tpu.memory_space<vmem>>) attributes {dimension_semantics = [#tpu.dimension_semantics<arbitrary>], iteration_bounds = array<i64: 1>, scalar_prefetch = 0 : i64, scratch_operands = 0 : i64, tpu.core_type = #tpu.core_type<tc>, window_params = [{transform_indices = @transform_0, window_bounds = array<i64: 512, 256>}, {pipeline_mode = #tpu.pipeline_mode<synchronous>, transform_indices = @transform_1, window_bounds = array<i64: 256, 128>}, {pipeline_mode = #tpu.pipeline_mode<synchronous>, transform_indices = @transform_2, window_bounds = array<i64: 1, 128>}, {pipeline_mode = #tpu.pipeline_mode<synchronous>, transform_indices = @transform_3, window_bounds = array<i64: 1, 128>}, {pipeline_mode = #tpu.pipeline_mode<synchronous>, transform_indices = @transform_4, window_bounds = array<i64: 512, 32>}]} {
    %c0 = arith.constant 0 : index
    %c0_0 = arith.constant 0 : index
    %0 = vector.load %arg1[%c0, %c0_0] : memref<512x256xbf16, #tpu.memory_space<vmem>>, vector<512x256xbf16>
    %c0_1 = arith.constant 0 : index
    %c0_2 = arith.constant 0 : index
    %1 = vector.load %arg2[%c0_1, %c0_2] : memref<256x128xbf16, #tpu.memory_space<vmem>>, vector<256x128xbf16>
    %cst = arith.constant dense<0.000000e+00> : vector<512x128xf32>
    %2 = tpu.matmul %0, %1, %cst {dimension_numbers = #tpu.dot_dimension_numbers<[1], [0], [0], [1], [0, 0, 1, 1], [], []>} : vector<512x256xbf16>, vector<256x128xbf16>, vector<512x128xf32> -> vector<512x128xf32>
    %cst_3 = arith.constant dense<0.000000e+00> : vector<128xf32>
    %3 = vector.multi_reduction <add>, %2, %cst_3 [0] : vector<512x128xf32> to vector<128xf32>
    %4 = vector.shape_cast %3 : vector<128xf32> to vector<1x128xf32>
    %cst_4 = arith.constant 0.001953125 : f32
    %5 = vector.broadcast %cst_4 : f32 to vector<1x128xf32>
    %6 = arith.mulf %4, %5 : vector<1x128xf32>
    %7 = arith.mulf %2, %2 : vector<512x128xf32>
    %cst_5 = arith.constant dense<0.000000e+00> : vector<128xf32>
    %8 = vector.multi_reduction <add>, %7, %cst_5 [0] : vector<512x128xf32> to vector<128xf32>
    %9 = vector.shape_cast %8 : vector<128xf32> to vector<1x128xf32>
    %cst_6 = arith.constant 0.001953125 : f32
    %10 = vector.broadcast %cst_6 : f32 to vector<1x128xf32>
    %11 = arith.mulf %9, %10 : vector<1x128xf32>
    %12 = arith.mulf %6, %6 : vector<1x128xf32>
    %13 = arith.subf %11, %12 : vector<1x128xf32>
    %cst_7 = arith.constant 0.000000e+00 : f32
    %14 = vector.broadcast %cst_7 : f32 to vector<1x128xf32>
    %15 = arith.maximumf %13, %14 : vector<1x128xf32>
    %c0_8 = arith.constant 0 : index
    %c0_9 = arith.constant 0 : index
    %16 = vector.load %arg3[%c0_8, %c0_9] : memref<1x128xf32, #tpu.memory_space<vmem>>, vector<1x128xf32>
    %cst_10 = arith.constant 9.99999974E-6 : f32
    %17 = vector.broadcast %cst_10 : f32 to vector<1x128xf32>
    %18 = arith.addf %15, %17 : vector<1x128xf32>
    %19 = math.rsqrt %18 : vector<1x128xf32>
    %20 = arith.mulf %16, %19 : vector<1x128xf32>
    %c0_11 = arith.constant 0 : index
    %c0_12 = arith.constant 0 : index
    %21 = vector.load %arg4[%c0_11, %c0_12] : memref<1x128xf32, #tpu.memory_space<vmem>>, vector<1x128xf32>
    %22 = arith.mulf %6, %20 : vector<1x128xf32>
    %23 = arith.subf %21, %22 : vector<1x128xf32>
    %24 = vector.broadcast %20 : vector<1x128xf32> to vector<512x128xf32>
    %25 = arith.mulf %2, %24 : vector<512x128xf32>
    %26 = vector.broadcast %23 : vector<1x128xf32> to vector<512x128xf32>
    %27 = arith.addf %25, %26 : vector<512x128xf32>
    %cst_13 = arith.constant 0.000000e+00 : f32
    %28 = vector.broadcast %cst_13 : f32 to vector<512x128xf32>
    %29 = arith.cmpf ogt, %27, %28 : vector<512x128xf32>
    %cst_14 = arith.constant 2.000000e-01 : f32
    %30 = vector.broadcast %cst_14 : f32 to vector<512x128xf32>
    %31 = arith.mulf %30, %27 : vector<512x128xf32>
    %32 = arith.select %29, %27, %31 : vector<512x128xi1>, vector<512x128xf32>
    %33 = vector.extract_strided_slice %32 {offsets = [0, 0], sizes = [512, 32], strides = [1, 1]} : vector<512x128xf32> to vector<512x32xf32>
    %c0_15 = arith.constant 0 : index
    %c0_16 = arith.constant 0 : index
    %34 = vector.load %arg5[%c0_15, %c0_16] : memref<512x32xf32, #tpu.memory_space<vmem>>, vector<512x32xf32>
    tpu.vector_store %arg5[%c0_15, %c0_16], %33 {strides = array<i32>} : memref<512x32xf32, #tpu.memory_space<vmem>>, vector<512x32xf32>,
    return
  }
  func.func @transform_0(%arg0: i32) -> (i32, i32) {
    %c0_i32 = arith.constant 0 : i32
    %c0_i32_0 = arith.constant 0 : i32
    return %arg0, %c0_i32 : i32, i32
  }
  func.func @transform_1(%arg0: i32) -> (i32, i32) {
    %c0_i32 = arith.constant 0 : i32
    %c0_i32_0 = arith.constant 0 : i32
    %c0_i32_1 = arith.constant 0 : i32
    return %c0_i32, %c0_i32_0 : i32, i32
  }
  func.func @transform_2(%arg0: i32) -> (i32, i32) {
    %c0_i32 = arith.constant 0 : i32
    %c0_i32_0 = arith.constant 0 : i32
    %c0_i32_1 = arith.constant 0 : i32
    return %c0_i32, %c0_i32_0 : i32, i32
  }
  func.func @transform_3(%arg0: i32) -> (i32, i32) {
    %c0_i32 = arith.constant 0 : i32
    %c0_i32_0 = arith.constant 0 : i32
    %c0_i32_1 = arith.constant 0 : i32
    return %c0_i32, %c0_i32_0 : i32, i32
  }
  func.func @transform_4(%arg0: i32) -> (i32, i32) {
    %c0_i32 = arith.constant 0 : i32
    %c0_i32_0 = arith.constant 0 : i32
    %c0_i32_1 = arith.constant 0 : i32
    return %c0_i32, %c0_i32_0 : i32, i32
  }
}

module attributes {stable_mosaic.version = 11 : i64} {
  func.func @_conv_bn_act_single_kernel(%arg0: i32, %arg1: memref<128x512xbf16, #tpu.memory_space<vmem>>, %arg2: memref<512x128xbf16, #tpu.memory_space<vmem>>, %arg3: memref<1x128xf32, #tpu.memory_space<vmem>>, %arg4: memref<1x128xf32, #tpu.memory_space<vmem>>, %arg5: memref<128x64xf32, #tpu.memory_space<vmem>>) attributes {dimension_semantics = [#tpu.dimension_semantics<arbitrary>], iteration_bounds = array<i64: 1>, scalar_prefetch = 0 : i64, scratch_operands = 0 : i64, tpu.core_type = #tpu.core_type<tc>, window_params = [{transform_indices = @transform_0, window_bounds = array<i64: 128, 512>}, {pipeline_mode = #tpu.pipeline_mode<synchronous>, transform_indices = @transform_1, window_bounds = array<i64: 512, 128>}, {pipeline_mode = #tpu.pipeline_mode<synchronous>, transform_indices = @transform_2, window_bounds = array<i64: 1, 128>}, {pipeline_mode = #tpu.pipeline_mode<synchronous>, transform_indices = @transform_3, window_bounds = array<i64: 1, 128>}, {pipeline_mode = #tpu.pipeline_mode<synchronous>, transform_indices = @transform_4, window_bounds = array<i64: 128, 64>}]} {
    %c0 = arith.constant 0 : index
    %c0_0 = arith.constant 0 : index
    %0 = vector.load %arg1[%c0, %c0_0] : memref<128x512xbf16, #tpu.memory_space<vmem>>, vector<128x512xbf16>
    %c0_1 = arith.constant 0 : index
    %c0_2 = arith.constant 0 : index
    %1 = vector.load %arg2[%c0_1, %c0_2] : memref<512x128xbf16, #tpu.memory_space<vmem>>, vector<512x128xbf16>
    %cst = arith.constant dense<0.000000e+00> : vector<128x128xf32>
    %2 = tpu.matmul %0, %1, %cst {dimension_numbers = #tpu.dot_dimension_numbers<[1], [0], [0], [1], [0, 0, 1, 1], [], []>} : vector<128x512xbf16>, vector<512x128xbf16>, vector<128x128xf32> -> vector<128x128xf32>
    %cst_3 = arith.constant dense<0.000000e+00> : vector<128xf32>
    %3 = vector.multi_reduction <add>, %2, %cst_3 [0] : vector<128x128xf32> to vector<128xf32>
    %4 = vector.shape_cast %3 : vector<128xf32> to vector<1x128xf32>
    %cst_4 = arith.constant 7.812500e-03 : f32
    %5 = vector.broadcast %cst_4 : f32 to vector<1x128xf32>
    %6 = arith.mulf %4, %5 : vector<1x128xf32>
    %7 = arith.mulf %2, %2 : vector<128x128xf32>
    %cst_5 = arith.constant dense<0.000000e+00> : vector<128xf32>
    %8 = vector.multi_reduction <add>, %7, %cst_5 [0] : vector<128x128xf32> to vector<128xf32>
    %9 = vector.shape_cast %8 : vector<128xf32> to vector<1x128xf32>
    %cst_6 = arith.constant 7.812500e-03 : f32
    %10 = vector.broadcast %cst_6 : f32 to vector<1x128xf32>
    %11 = arith.mulf %9, %10 : vector<1x128xf32>
    %12 = arith.mulf %6, %6 : vector<1x128xf32>
    %13 = arith.subf %11, %12 : vector<1x128xf32>
    %cst_7 = arith.constant 0.000000e+00 : f32
    %14 = vector.broadcast %cst_7 : f32 to vector<1x128xf32>
    %15 = arith.maximumf %13, %14 : vector<1x128xf32>
    %c0_8 = arith.constant 0 : index
    %c0_9 = arith.constant 0 : index
    %16 = vector.load %arg3[%c0_8, %c0_9] : memref<1x128xf32, #tpu.memory_space<vmem>>, vector<1x128xf32>
    %cst_10 = arith.constant 9.99999974E-6 : f32
    %17 = vector.broadcast %cst_10 : f32 to vector<1x128xf32>
    %18 = arith.addf %15, %17 : vector<1x128xf32>
    %19 = math.rsqrt %18 : vector<1x128xf32>
    %20 = arith.mulf %16, %19 : vector<1x128xf32>
    %c0_11 = arith.constant 0 : index
    %c0_12 = arith.constant 0 : index
    %21 = vector.load %arg4[%c0_11, %c0_12] : memref<1x128xf32, #tpu.memory_space<vmem>>, vector<1x128xf32>
    %22 = arith.mulf %6, %20 : vector<1x128xf32>
    %23 = arith.subf %21, %22 : vector<1x128xf32>
    %24 = vector.broadcast %20 : vector<1x128xf32> to vector<128x128xf32>
    %25 = arith.mulf %2, %24 : vector<128x128xf32>
    %26 = vector.broadcast %23 : vector<1x128xf32> to vector<128x128xf32>
    %27 = arith.addf %25, %26 : vector<128x128xf32>
    %cst_13 = arith.constant 0.000000e+00 : f32
    %28 = vector.broadcast %cst_13 : f32 to vector<128x128xf32>
    %29 = arith.cmpf ogt, %27, %28 : vector<128x128xf32>
    %cst_14 = arith.constant 2.000000e-01 : f32
    %30 = vector.broadcast %cst_14 : f32 to vector<128x128xf32>
    %31 = arith.mulf %30, %27 : vector<128x128xf32>
    %32 = arith.select %29, %27, %31 : vector<128x128xi1>, vector<128x128xf32>
    %33 = vector.extract_strided_slice %32 {offsets = [0, 0], sizes = [128, 64], strides = [1, 1]} : vector<128x128xf32> to vector<128x64xf32>
    %c0_15 = arith.constant 0 : index
    %c0_16 = arith.constant 0 : index
    %34 = vector.load %arg5[%c0_15, %c0_16] : memref<128x64xf32, #tpu.memory_space<vmem>>, vector<128x64xf32>
    tpu.vector_store %arg5[%c0_15, %c0_16], %33 {strides = array<i32>} : memref<128x64xf32, #tpu.memory_space<vmem>>, vector<128x64xf32>,
    return
  }
  func.func @transform_0(%arg0: i32) -> (i32, i32) {
    %c0_i32 = arith.constant 0 : i32
    %c0_i32_0 = arith.constant 0 : i32
    return %arg0, %c0_i32 : i32, i32
  }
  func.func @transform_1(%arg0: i32) -> (i32, i32) {
    %c0_i32 = arith.constant 0 : i32
    %c0_i32_0 = arith.constant 0 : i32
    %c0_i32_1 = arith.constant 0 : i32
    return %c0_i32, %c0_i32_0 : i32, i32
  }
  func.func @transform_2(%arg0: i32) -> (i32, i32) {
    %c0_i32 = arith.constant 0 : i32
    %c0_i32_0 = arith.constant 0 : i32
    %c0_i32_1 = arith.constant 0 : i32
    return %c0_i32, %c0_i32_0 : i32, i32
  }
  func.func @transform_3(%arg0: i32) -> (i32, i32) {
    %c0_i32 = arith.constant 0 : i32
    %c0_i32_0 = arith.constant 0 : i32
    %c0_i32_1 = arith.constant 0 : i32
    return %c0_i32, %c0_i32_0 : i32, i32
  }
  func.func @transform_4(%arg0: i32) -> (i32, i32) {
    %c0_i32 = arith.constant 0 : i32
    %c0_i32_0 = arith.constant 0 : i32
    %c0_i32_1 = arith.constant 0 : i32
    return %c0_i32, %c0_i32_0 : i32, i32
  }
}

module attributes {stable_mosaic.version = 11 : i64} {
  func.func @_conv_bn_act_single_kernel(%arg0: i32, %arg1: memref<32x1024xbf16, #tpu.memory_space<vmem>>, %arg2: memref<1024x128xbf16, #tpu.memory_space<vmem>>, %arg3: memref<1x128xf32, #tpu.memory_space<vmem>>, %arg4: memref<1x128xf32, #tpu.memory_space<vmem>>, %arg5: memref<32x128xf32, #tpu.memory_space<vmem>>) attributes {dimension_semantics = [#tpu.dimension_semantics<arbitrary>], iteration_bounds = array<i64: 1>, scalar_prefetch = 0 : i64, scratch_operands = 0 : i64, tpu.core_type = #tpu.core_type<tc>, window_params = [{transform_indices = @transform_0, window_bounds = array<i64: 32, 1024>}, {pipeline_mode = #tpu.pipeline_mode<synchronous>, transform_indices = @transform_1, window_bounds = array<i64: 1024, 128>}, {pipeline_mode = #tpu.pipeline_mode<synchronous>, transform_indices = @transform_2, window_bounds = array<i64: 1, 128>}, {pipeline_mode = #tpu.pipeline_mode<synchronous>, transform_indices = @transform_3, window_bounds = array<i64: 1, 128>}, {pipeline_mode = #tpu.pipeline_mode<synchronous>, transform_indices = @transform_4, window_bounds = array<i64: 32, 128>}]} {
    %c0 = arith.constant 0 : index
    %c0_0 = arith.constant 0 : index
    %0 = vector.load %arg1[%c0, %c0_0] : memref<32x1024xbf16, #tpu.memory_space<vmem>>, vector<32x1024xbf16>
    %c0_1 = arith.constant 0 : index
    %c0_2 = arith.constant 0 : index
    %1 = vector.load %arg2[%c0_1, %c0_2] : memref<1024x128xbf16, #tpu.memory_space<vmem>>, vector<1024x128xbf16>
    %cst = arith.constant dense<0.000000e+00> : vector<32x128xf32>
    %2 = tpu.matmul %0, %1, %cst {dimension_numbers = #tpu.dot_dimension_numbers<[1], [0], [0], [1], [0, 0, 1, 1], [], []>} : vector<32x1024xbf16>, vector<1024x128xbf16>, vector<32x128xf32> -> vector<32x128xf32>
    %cst_3 = arith.constant dense<0.000000e+00> : vector<128xf32>
    %3 = vector.multi_reduction <add>, %2, %cst_3 [0] : vector<32x128xf32> to vector<128xf32>
    %4 = vector.shape_cast %3 : vector<128xf32> to vector<1x128xf32>
    %cst_4 = arith.constant 3.125000e-02 : f32
    %5 = vector.broadcast %cst_4 : f32 to vector<1x128xf32>
    %6 = arith.mulf %4, %5 : vector<1x128xf32>
    %7 = arith.mulf %2, %2 : vector<32x128xf32>
    %cst_5 = arith.constant dense<0.000000e+00> : vector<128xf32>
    %8 = vector.multi_reduction <add>, %7, %cst_5 [0] : vector<32x128xf32> to vector<128xf32>
    %9 = vector.shape_cast %8 : vector<128xf32> to vector<1x128xf32>
    %cst_6 = arith.constant 3.125000e-02 : f32
    %10 = vector.broadcast %cst_6 : f32 to vector<1x128xf32>
    %11 = arith.mulf %9, %10 : vector<1x128xf32>
    %12 = arith.mulf %6, %6 : vector<1x128xf32>
    %13 = arith.subf %11, %12 : vector<1x128xf32>
    %cst_7 = arith.constant 0.000000e+00 : f32
    %14 = vector.broadcast %cst_7 : f32 to vector<1x128xf32>
    %15 = arith.maximumf %13, %14 : vector<1x128xf32>
    %c0_8 = arith.constant 0 : index
    %c0_9 = arith.constant 0 : index
    %16 = vector.load %arg3[%c0_8, %c0_9] : memref<1x128xf32, #tpu.memory_space<vmem>>, vector<1x128xf32>
    %cst_10 = arith.constant 9.99999974E-6 : f32
    %17 = vector.broadcast %cst_10 : f32 to vector<1x128xf32>
    %18 = arith.addf %15, %17 : vector<1x128xf32>
    %19 = math.rsqrt %18 : vector<1x128xf32>
    %20 = arith.mulf %16, %19 : vector<1x128xf32>
    %c0_11 = arith.constant 0 : index
    %c0_12 = arith.constant 0 : index
    %21 = vector.load %arg4[%c0_11, %c0_12] : memref<1x128xf32, #tpu.memory_space<vmem>>, vector<1x128xf32>
    %22 = arith.mulf %6, %20 : vector<1x128xf32>
    %23 = arith.subf %21, %22 : vector<1x128xf32>
    %24 = vector.broadcast %20 : vector<1x128xf32> to vector<32x128xf32>
    %25 = arith.mulf %2, %24 : vector<32x128xf32>
    %26 = vector.broadcast %23 : vector<1x128xf32> to vector<32x128xf32>
    %27 = arith.addf %25, %26 : vector<32x128xf32>
    %cst_13 = arith.constant 0.000000e+00 : f32
    %28 = vector.broadcast %cst_13 : f32 to vector<32x128xf32>
    %29 = arith.cmpf ogt, %27, %28 : vector<32x128xf32>
    %cst_14 = arith.constant 2.000000e-01 : f32
    %30 = vector.broadcast %cst_14 : f32 to vector<32x128xf32>
    %31 = arith.mulf %30, %27 : vector<32x128xf32>
    %32 = arith.select %29, %27, %31 : vector<32x128xi1>, vector<32x128xf32>
    %c0_15 = arith.constant 0 : index
    %c0_16 = arith.constant 0 : index
    %33 = vector.load %arg5[%c0_15, %c0_16] : memref<32x128xf32, #tpu.memory_space<vmem>>, vector<32x128xf32>
    tpu.vector_store %arg5[%c0_15, %c0_16], %32 {strides = array<i32>} : memref<32x128xf32, #tpu.memory_space<vmem>>, vector<32x128xf32>,
    return
  }
  func.func @transform_0(%arg0: i32) -> (i32, i32) {
    %c0_i32 = arith.constant 0 : i32
    %c0_i32_0 = arith.constant 0 : i32
    return %arg0, %c0_i32 : i32, i32
  }
  func.func @transform_1(%arg0: i32) -> (i32, i32) {
    %c0_i32 = arith.constant 0 : i32
    %c0_i32_0 = arith.constant 0 : i32
    %c0_i32_1 = arith.constant 0 : i32
    return %c0_i32, %c0_i32_0 : i32, i32
  }
  func.func @transform_2(%arg0: i32) -> (i32, i32) {
    %c0_i32 = arith.constant 0 : i32
    %c0_i32_0 = arith.constant 0 : i32
    %c0_i32_1 = arith.constant 0 : i32
    return %c0_i32, %c0_i32_0 : i32, i32
  }
  func.func @transform_3(%arg0: i32) -> (i32, i32) {
    %c0_i32 = arith.constant 0 : i32
    %c0_i32_0 = arith.constant 0 : i32
    %c0_i32_1 = arith.constant 0 : i32
    return %c0_i32, %c0_i32_0 : i32, i32
  }
  func.func @transform_4(%arg0: i32) -> (i32, i32) {
    %c0_i32 = arith.constant 0 : i32
    %c0_i32_0 = arith.constant 0 : i32
    %c0_i32_1 = arith.constant 0 : i32
    return %c0_i32, %c0_i32_0 : i32, i32
  }
}

module attributes {stable_mosaic.version = 11 : i64} {
  func.func @_conv_act_kernel(%arg0: i32, %arg1: memref<8x2048xbf16, #tpu.memory_space<vmem>>, %arg2: memref<2048x128xbf16, #tpu.memory_space<vmem>>, %arg3: memref<8x1xf32, #tpu.memory_space<vmem>>) attributes {dimension_semantics = [#tpu.dimension_semantics<parallel>], iteration_bounds = array<i64: 1>, scalar_prefetch = 0 : i64, scratch_operands = 0 : i64, tpu.core_type = #tpu.core_type<tc>, window_params = [{transform_indices = @transform_0, window_bounds = array<i64: 8, 2048>}, {pipeline_mode = #tpu.pipeline_mode<synchronous>, transform_indices = @transform_1, window_bounds = array<i64: 2048, 128>}, {transform_indices = @transform_2, window_bounds = array<i64: 8, 1>}]} {
    %c0 = arith.constant 0 : index
    %c0_0 = arith.constant 0 : index
    %0 = vector.load %arg1[%c0, %c0_0] : memref<8x2048xbf16, #tpu.memory_space<vmem>>, vector<8x2048xbf16>
    %c0_1 = arith.constant 0 : index
    %c0_2 = arith.constant 0 : index
    %1 = vector.load %arg2[%c0_1, %c0_2] : memref<2048x128xbf16, #tpu.memory_space<vmem>>, vector<2048x128xbf16>
    %cst = arith.constant dense<0.000000e+00> : vector<8x128xf32>
    %2 = tpu.matmul %0, %1, %cst {dimension_numbers = #tpu.dot_dimension_numbers<[1], [0], [0], [1], [0, 0, 1, 1], [], []>} : vector<8x2048xbf16>, vector<2048x128xbf16>, vector<8x128xf32> -> vector<8x128xf32>
    %cst_3 = arith.constant 0.000000e+00 : f32
    %3 = vector.broadcast %cst_3 : f32 to vector<8x128xf32>
    %4 = arith.subf %3, %2 : vector<8x128xf32>
    %5 = math.exp %4 : vector<8x128xf32>
    %cst_4 = arith.constant 1.000000e+00 : f32
    %6 = vector.broadcast %cst_4 : f32 to vector<8x128xf32>
    %7 = arith.addf %6, %5 : vector<8x128xf32>
    %cst_5 = arith.constant 1.000000e+00 : f32
    %8 = vector.broadcast %cst_5 : f32 to vector<8x128xf32>
    %9 = arith.divf %8, %7 : vector<8x128xf32>
    %10 = vector.extract_strided_slice %9 {offsets = [0, 0], sizes = [8, 1], strides = [1, 1]} : vector<8x128xf32> to vector<8x1xf32>
    %c0_6 = arith.constant 0 : index
    %c0_7 = arith.constant 0 : index
    %11 = vector.load %arg3[%c0_6, %c0_7] : memref<8x1xf32, #tpu.memory_space<vmem>>, vector<8x1xf32>
    tpu.vector_store %arg3[%c0_6, %c0_7], %10 {strides = array<i32>} : memref<8x1xf32, #tpu.memory_space<vmem>>, vector<8x1xf32>,
    return
  }
  func.func @transform_0(%arg0: i32) -> (i32, i32) {
    %c0_i32 = arith.constant 0 : i32
    %c0_i32_0 = arith.constant 0 : i32
    return %arg0, %c0_i32 : i32, i32
  }
  func.func @transform_1(%arg0: i32) -> (i32, i32) {
    %c0_i32 = arith.constant 0 : i32
    %c0_i32_0 = arith.constant 0 : i32
    %c0_i32_1 = arith.constant 0 : i32
    return %c0_i32, %c0_i32_0 : i32, i32
  }
  func.func @transform_2(%arg0: i32) -> (i32, i32) {
    %c0_i32 = arith.constant 0 : i32
    %c0_i32_0 = arith.constant 0 : i32
    return %arg0, %c0_i32 : i32, i32
  }
}

</mosaic_0001>

<llo_original>
// kernel: _lambda_.6
$region0: #{_lambda_.6}
  #allocation0 [shape = 'u32[]', space=smem, size = 0x4, offset = 0x4, fixed_abs, tag = 'smem constant byte address 0x4 - core index']
  #allocation1 [shape = 'u32[144,128]{1,0:T(1,128)}', space=vmem, size = 0x12000, scoped, tag = 'internal scratch']
  %s0 = inlined_call_operand.vmem [shape: bf16[8192,128], index: 0, kind: input, shape index: {}]
  %s1 = inlined_call_operand.vmem [shape: bf16[128,128], index: 1, kind: input, shape index: {}]
  %s2 = inlined_call_operand.vmem [shape: f32[8192,8], index: 2, kind: output, shape index: {}]
  %s3 = sld [smem:[#allocation0]]
  $region41: #{_lambda_.6} parent=0
    _
  %s5 = ssub.s32 1, %s3
  %s6 = scalar_select 0, %s5, %s3
  loop: start=0, step=1, limit=18
  $region2: #{_lambda_.6} parent=0 // loop_pre_header
    _
  $region3: #{_lambda_.6} parent=0 // loop_header
    %s8 = sphi 0, %s12
    %p9 = scmp.ge.s32.totalorder %s8, 18
    %s18 = sphi 0, %s20
    %s21 = sphi 0, %s18
    %s22 = sphi 0, %s21
    %s38 = sphi 0, %s22
    %s42 = sphi 0, %s42
    %s44 = sphi 0, %s42
    %s45 = sphi 0, %s44
    %s59 = sphi 0, %s45
    %s65 = sphi 0, %s67
    %s68 = sphi 0, %s65
    %s69 = sphi 0, %s68
    %s85 = sphi 0, %s69
  $region4: #{_lambda_.6} parent=0 // loop_header_branch
    %11 = sbr.rel (%p9) target = $region8
  $region5: #{_lambda_.6} parent=0 // loop_body
    %s13 = ssub.s32 %s8, 1
    %s14 = ssub.s32 %s8, 2
    %s15 = sadd.s32 %s8, 1
    %s16 = ssub.s32 %s8, %s15
    %p17 = scmp.eq.s32.totalorder %s16, 0
    %s19 = sadd.s32 %s18, 1
    %s20 = scalar_select %p17, %s18, %s19
    %p23 = pneg %p17
    %p24 = scmp.eq.s32.totalorder %s8, 15
    %p25 = por %p23, %p24
    %p26 = scmp.ne.s32.totalorder %s18, %s21
    %p27 = scmp.eq.s32.totalorder %s8, 0
    %p28 = por %p26, %p27
    %p29 = scmp.ne.s32.totalorder %s18, %s21
    %p30 = scmp.eq.s32.totalorder %s13, 15
    %p31 = por %p29, %p30
    %p32 = scmp.ne.s32.totalorder %s21, %s22
    %p33 = scmp.eq.s32.totalorder %s13, 0
    %p34 = por %p32, %p33
    %p35 = scmp.ne.s32.totalorder %s21, %s22
    %p36 = scmp.eq.s32.totalorder %s14, 15
    %p37 = por %p35, %p36
    %p39 = scmp.ne.s32.totalorder %s22, %s38
    %p40 = scmp.eq.s32.totalorder %s14, 0
    %p41 = por %p39, %p40
    %s43 = sadd.s32 %s42, 1
    %p46 = scmp.eq.s32.totalorder %s8, 15
    %p47 = scmp.ne.s32.totalorder %s42, %s44
    %p48 = scmp.eq.s32.totalorder %s8, 0
    %p49 = por %p47, %p48
    %p50 = scmp.ne.s32.totalorder %s42, %s44
    %p51 = scmp.eq.s32.totalorder %s13, 15
    %p52 = por %p50, %p51
    %p53 = scmp.ne.s32.totalorder %s44, %s45
    %p54 = scmp.eq.s32.totalorder %s13, 0
    %p55 = por %p53, %p54
    %p56 = scmp.ne.s32.totalorder %s44, %s45
    %p57 = scmp.eq.s32.totalorder %s14, 15
    %p58 = por %p56, %p57
    %p60 = scmp.ne.s32.totalorder %s45, %s59
    %p61 = scmp.eq.s32.totalorder %s14, 0
    %p62 = por %p60, %p61
    %s63 = ssub.s32 %s8, %s15
    %p64 = scmp.eq.s32.totalorder %s63, 0
    %s66 = sadd.s32 %s65, 1
    %s67 = scalar_select %p64, %s65, %s66
    %p70 = pneg %p64
    %p71 = scmp.eq.s32.totalorder %s8, 15
    %p72 = por %p70, %p71
    %p73 = scmp.ne.s32.totalorder %s65, %s68
    %p74 = scmp.eq.s32.totalorder %s8, 0
    %p75 = por %p73, %p74
    %p76 = scmp.ne.s32.totalorder %s65, %s68
    %p77 = scmp.eq.s32.totalorder %s13, 15
    %p78 = por %p76, %p77
    %p79 = scmp.ne.s32.totalorder %s68, %s69
    %p80 = scmp.eq.s32.totalorder %s13, 0
    %p81 = por %p79, %p80
    %p82 = scmp.ne.s32.totalorder %s68, %s69
    %p83 = scmp.eq.s32.totalorder %s14, 15
    %p84 = por %p82, %p83
    %p86 = scmp.ne.s32.totalorder %s69, %s85
    %p87 = scmp.eq.s32.totalorder %s14, 0
    %p88 = por %p86, %p87
    %p89 = scmp.le.s32.totalorder 1, %s8
    %p90 = scmp.lt.s32.totalorder %s8, 17
    %p91 = pnand %p89, %p90
    %p92 = pneg %p91
    // Predicated region
    $region9: #{_lambda_.6} parent=5 // pred_check
      _
    $region10: #{_lambda_.6} parent=5 // pred_check_branch
      %94 = sbr.rel (%p91) target = $region12
    $region11: #{_lambda_.6} parent=5 // pred_region
      %s95 = ssub.s32 %s8, 1
      // Predicated region
      $region13: #{_lambda_.6} parent=11 // pred_check
        %p96 = pneg %p55
      $region14: #{_lambda_.6} parent=11 // pred_check_branch
        %98 = sbr.rel (%p96) target = $region16
      $region15: #{_lambda_.6} parent=11 // pred_region
        _
      $region16: #{_lambda_.6} parent=11 // pred_fallthru
        _
    $region12: #{_lambda_.6} parent=5 // pred_fallthru
      _
    %p99 = scmp.lt.s32.totalorder %s8, 16
    // Predicated region
    $region17: #{_lambda_.6} parent=5 // pred_check
      %p100 = pneg %p99
    $region18: #{_lambda_.6} parent=5 // pred_check_branch
      %102 = sbr.rel (%p100) target = $region20
    $region19: #{_lambda_.6} parent=5 // pred_region
      // Predicated region
      $region21: #{_lambda_.6} parent=19 // pred_check
        %p103 = pneg %p28
      $region22: #{_lambda_.6} parent=19 // pred_check_branch
        %105 = sbr.rel (%p103) target = $region24
      $region23: #{_lambda_.6} parent=19 // pred_region
        %s106 = smul.u32 64, %s8
        %p107 = scmp.lt.s32.totalorder %s106, 1023
        %s108 = scalar_select %p107, %s106, 1023
        %s109 = smul.addr %s108, 4
        %s110 = scalar_lea.vmem %s0, %s109
        %s111 = smul.u32 64, %s8
      $region24: #{_lambda_.6} parent=19 // pred_fallthru
        _
    $region20: #{_lambda_.6} parent=5 // pred_fallthru
      _
    %p112 = scmp.le.s32.totalorder 1, %s8
    %p113 = scmp.lt.s32.totalorder %s8, 17
    %p114 = pnand %p112, %p113
    %p115 = pneg %p114
    // Predicated region
    $region25: #{_lambda_.6} parent=5 // pred_check
      _
    $region26: #{_lambda_.6} parent=5 // pred_check_branch
      %117 = sbr.rel (%p114) target = $region28
    $region27: #{_lambda_.6} parent=5 // pred_region
      %s118 = ssub.s32 %s8, 1
      %s119 = smul.u32 64, %s13
      %p120 = scmp.lt.s32.totalorder %s119, 1023
      %s121 = scalar_select %p120, %s119, 1023
      %s122 = smul.addr %s121, 4
      %s123 = scalar_lea.vmem %s0, %s122
      %p124 = pneg %p34
      %p125 = pneg %p31
      %p126 = pneg %p55
      %p127 = pneg %p52
      %p128 = pneg %p81
      %p129 = pneg %p78
      %s130 = smul.u32 64, %s13
      %p131 = scmp.lt.s32.totalorder %s130, 1023
      %s132 = scalar_select %p131, %s130, 1023
      %s133 = smul.addr %s132, 8
      %s134 = scalar_lea.vmem %s2, %s133
      %s135 = smul.u32 64, %s13
      %p136 = scmp.lt.s32.totalorder %s135, 1023
      %s137 = scalar_select %p136, %s135, 1023
      %s138 = smul.addr %s137, 4
      %s139 = scalar_lea.vmem %s0, %s138
      %s140 = smul.u32 64, %s13
      %s141 = smul.u32 64, %s13
      %p142 = scmp.lt.s32.totalorder %s141, 1023
      %s143 = scalar_select %p142, %s141, 1023
      %s144 = smul.addr %s143, 8
      %s145 = scalar_lea.vmem %s2, %s144
      %s146 = smul.u32 64, %s13
      %v148 = vld [vmem:[%s139] sm:$0xf]
      %v149 = vld [vmem:[%s139 + $0x4] sm:$0xf]
      %v150 = vld [vmem:[%s139 + $0x8] sm:$0xf]
      %v151 = vld [vmem:[%s139 + $0xc] sm:$0xf]
      %v152 = vld [vmem:[%s139 + $0x10] sm:$0xf]
      %v153 = vld [vmem:[%s139 + $0x14] sm:$0xf]
      %v154 = vld [vmem:[%s139 + $0x18] sm:$0xf]
      %v155 = vld [vmem:[%s139 + $0x1c] sm:$0xf]
      %v156 = vld [vmem:[%s139 + $0x20] sm:$0xf]
      %v157 = vld [vmem:[%s139 + $0x24] sm:$0xf]
      %v158 = vld [vmem:[%s139 + $0x28] sm:$0xf]
      %v159 = vld [vmem:[%s139 + $0x2c] sm:$0xf]
      %v160 = vld [vmem:[%s139 + $0x30] sm:$0xf]
      %v161 = vld [vmem:[%s139 + $0x34] sm:$0xf]
      %v162 = vld [vmem:[%s139 + $0x38] sm:$0xf]
      %v163 = vld [vmem:[%s139 + $0x3c] sm:$0xf]
      %v164 = vld [vmem:[%s139 + $0x40] sm:$0xf]
      %v165 = vld [vmem:[%s139 + $0x44] sm:$0xf]
      %v166 = vld [vmem:[%s139 + $0x48] sm:$0xf]
      %v167 = vld [vmem:[%s139 + $0x4c] sm:$0xf]
      %v168 = vld [vmem:[%s139 + $0x50] sm:$0xf]
      %v169 = vld [vmem:[%s139 + $0x54] sm:$0xf]
      %v170 = vld [vmem:[%s139 + $0x58] sm:$0xf]
      %v171 = vld [vmem:[%s139 + $0x5c] sm:$0xf]
      %v172 = vld [vmem:[%s139 + $0x60] sm:$0xf]
      %v173 = vld [vmem:[%s139 + $0x64] sm:$0xf]
      %v174 = vld [vmem:[%s139 + $0x68] sm:$0xf]
      %v175 = vld [vmem:[%s139 + $0x6c] sm:$0xf]
      %v176 = vld [vmem:[%s139 + $0x70] sm:$0xf]
      %v177 = vld [vmem:[%s139 + $0x74] sm:$0xf]
      %v178 = vld [vmem:[%s139 + $0x78] sm:$0xf]
      %v179 = vld [vmem:[%s139 + $0x7c] sm:$0xf]
      %v180 = vld [vmem:[%s139 + $0x80] sm:$0xf]
      %v181 = vld [vmem:[%s139 + $0x84] sm:$0xf]
      %v182 = vld [vmem:[%s139 + $0x88] sm:$0xf]
      %v183 = vld [vmem:[%s139 + $0x8c] sm:$0xf]
      %v184 = vld [vmem:[%s139 + $0x90] sm:$0xf]
      %v185 = vld [vmem:[%s139 + $0x94] sm:$0xf]
      %v186 = vld [vmem:[%s139 + $0x98] sm:$0xf]
      %v187 = vld [vmem:[%s139 + $0x9c] sm:$0xf]
      %v188 = vld [vmem:[%s139 + $0xa0] sm:$0xf]
      %v189 = vld [vmem:[%s139 + $0xa4] sm:$0xf]
      %v190 = vld [vmem:[%s139 + $0xa8] sm:$0xf]
      %v191 = vld [vmem:[%s139 + $0xac] sm:$0xf]
      %v192 = vld [vmem:[%s139 + $0xb0] sm:$0xf]
      %v193 = vld [vmem:[%s139 + $0xb4] sm:$0xf]
      %v194 = vld [vmem:[%s139 + $0xb8] sm:$0xf]
      %v195 = vld [vmem:[%s139 + $0xbc] sm:$0xf]
      %v196 = vld [vmem:[%s139 + $0xc0] sm:$0xf]
      %v197 = vld [vmem:[%s139 + $0xc4] sm:$0xf]
      %v198 = vld [vmem:[%s139 + $0xc8] sm:$0xf]
      %v199 = vld [vmem:[%s139 + $0xcc] sm:$0xf]
      %v200 = vld [vmem:[%s139 + $0xd0] sm:$0xf]
      %v201 = vld [vmem:[%s139 + $0xd4] sm:$0xf]
      %v202 = vld [vmem:[%s139 + $0xd8] sm:$0xf]
      %v203 = vld [vmem:[%s139 + $0xdc] sm:$0xf]
      %v204 = vld [vmem:[%s139 + $0xe0] sm:$0xf]
      %v205 = vld [vmem:[%s139 + $0xe4] sm:$0xf]
      %v206 = vld [vmem:[%s139 + $0xe8] sm:$0xf]
      %v207 = vld [vmem:[%s139 + $0xec] sm:$0xf]
      %v208 = vld [vmem:[%s139 + $0xf0] sm:$0xf]
      %v209 = vld [vmem:[%s139 + $0xf4] sm:$0xf]
      %v210 = vld [vmem:[%s139 + $0xf8] sm:$0xf]
      %v211 = vld [vmem:[%s139 + $0xfc] sm:$0xf]
      %v212 = vld [vmem:[%s1] sm:$0xf]
      %v213 = vld [vmem:[%s1 + $0x4] sm:$0xf]
      %v214 = vld [vmem:[%s1 + $0x8] sm:$0xf]
      %v215 = vld [vmem:[%s1 + $0xc] sm:$0xf]
      %v216 = vld [vmem:[%s1 + $0x10] sm:$0xf]
      %v217 = vld [vmem:[%s1 + $0x14] sm:$0xf]
      %v218 = vld [vmem:[%s1 + $0x18] sm:$0xf]
      %v219 = vld [vmem:[%s1 + $0x1c] sm:$0xf]
      %v220 = vld [vmem:[%s1 + $0x20] sm:$0xf]
      %v221 = vld [vmem:[%s1 + $0x24] sm:$0xf]
      %v222 = vld [vmem:[%s1 + $0x28] sm:$0xf]
      %v223 = vld [vmem:[%s1 + $0x2c] sm:$0xf]
      %v224 = vld [vmem:[%s1 + $0x30] sm:$0xf]
      %v225 = vld [vmem:[%s1 + $0x34] sm:$0xf]
      %v226 = vld [vmem:[%s1 + $0x38] sm:$0xf]
      %v227 = vld [vmem:[%s1 + $0x3c] sm:$0xf]
      %v292 = vunpack.c.l.b16 %v148
      %v293 = vunpack.c.l.b16 %v149
      %v294 = vunpack.c.l.b16 %v150
      %v295 = vunpack.c.l.b16 %v151
      %v296 = vunpack.c.l.b16 %v152
      %v297 = vunpack.c.l.b16 %v153
      %v298 = vunpack.c.l.b16 %v154
      %v299 = vunpack.c.l.b16 %v155
      %v300 = vunpack.c.l.b16 %v156
      %v301 = vunpack.c.l.b16 %v157
      %v302 = vunpack.c.l.b16 %v158
      %v303 = vunpack.c.l.b16 %v159
      %v304 = vunpack.c.l.b16 %v160
      %v305 = vunpack.c.l.b16 %v161
      %v306 = vunpack.c.l.b16 %v162
      %v307 = vunpack.c.l.b16 %v163
      %v308 = vunpack.c.l.b16 %v164
      %v309 = vunpack.c.l.b16 %v165
      %v310 = vunpack.c.l.b16 %v166
      %v311 = vunpack.c.l.b16 %v167
      %v312 = vunpack.c.l.b16 %v168
      %v313 = vunpack.c.l.b16 %v169
      %v314 = vunpack.c.l.b16 %v170
      %v315 = vunpack.c.l.b16 %v171
      %v316 = vunpack.c.l.b16 %v172
      %v317 = vunpack.c.l.b16 %v173
      %v318 = vunpack.c.l.b16 %v174
      %v319 = vunpack.c.l.b16 %v175
      %v320 = vunpack.c.l.b16 %v176
      %v321 = vunpack.c.l.b16 %v177
      %v322 = vunpack.c.l.b16 %v178
      %v323 = vunpack.c.l.b16 %v179
      %v324 = vunpack.c.l.b16 %v180
      %v325 = vunpack.c.l.b16 %v181
      %v326 = vunpack.c.l.b16 %v182
      %v327 = vunpack.c.l.b16 %v183
      %v328 = vunpack.c.l.b16 %v184
      %v329 = vunpack.c.l.b16 %v185
      %v330 = vunpack.c.l.b16 %v186
      %v331 = vunpack.c.l.b16 %v187
      %v332 = vunpack.c.l.b16 %v188
      %v333 = vunpack.c.l.b16 %v189
      %v334 = vunpack.c.l.b16 %v190
      %v335 = vunpack.c.l.b16 %v191
      %v336 = vunpack.c.l.b16 %v192
      %v337 = vunpack.c.l.b16 %v193
      %v338 = vunpack.c.l.b16 %v194
      %v339 = vunpack.c.l.b16 %v195
      %v340 = vunpack.c.l.b16 %v196
      %v341 = vunpack.c.l.b16 %v197
      %v342 = vunpack.c.l.b16 %v198
      %v343 = vunpack.c.l.b16 %v199
      %v344 = vunpack.c.l.b16 %v200
      %v345 = vunpack.c.l.b16 %v201
      %v346 = vunpack.c.l.b16 %v202
      %v347 = vunpack.c.l.b16 %v203
      %v348 = vunpack.c.l.b16 %v204
      %v349 = vunpack.c.l.b16 %v205
      %v350 = vunpack.c.l.b16 %v206
      %v351 = vunpack.c.l.b16 %v207
      %v352 = vunpack.c.l.b16 %v208
      %v353 = vunpack.c.l.b16 %v209
      %v354 = vunpack.c.l.b16 %v210
      %v355 = vunpack.c.l.b16 %v211
      %v356 = vpack.c.b16 %v293, %v292
      %v357 = vpack.c.b16 %v295, %v294
      %v358 = vpack.c.b16 %v297, %v296
      %v359 = vpack.c.b16 %v299, %v298
      %v360 = vpack.c.b16 %v301, %v300
      %v361 = vpack.c.b16 %v303, %v302
      %v362 = vpack.c.b16 %v305, %v304
      %v363 = vpack.c.b16 %v307, %v306
      %v364 = vpack.c.b16 %v309, %v308
      %v365 = vpack.c.b16 %v311, %v310
      %v366 = vpack.c.b16 %v313, %v312
      %v367 = vpack.c.b16 %v315, %v314
      %v368 = vpack.c.b16 %v317, %v316
      %v369 = vpack.c.b16 %v319, %v318
      %v370 = vpack.c.b16 %v321, %v320
      %v371 = vpack.c.b16 %v323, %v322
      %v372 = vpack.c.b16 %v325, %v324
      %v373 = vpack.c.b16 %v327, %v326
      %v374 = vpack.c.b16 %v329, %v328
      %v375 = vpack.c.b16 %v331, %v330
      %v376 = vpack.c.b16 %v333, %v332
      %v377 = vpack.c.b16 %v335, %v334
      %v378 = vpack.c.b16 %v337, %v336
      %v379 = vpack.c.b16 %v339, %v338
      %v380 = vpack.c.b16 %v341, %v340
      %v381 = vpack.c.b16 %v343, %v342
      %v382 = vpack.c.b16 %v345, %v344
      %v383 = vpack.c.b16 %v347, %v346
      %v384 = vpack.c.b16 %v349, %v348
      %v385 = vpack.c.b16 %v351, %v350
      %v386 = vpack.c.b16 %v353, %v352
      %v387 = vpack.c.b16 %v355, %v354
      %v436 = vunpack.c.l.b16 %v212
      %v437 = vunpack.c.l.b16 %v213
      %v438 = vunpack.c.l.b16 %v214
      %v439 = vunpack.c.l.b16 %v215
      %v440 = vunpack.c.l.b16 %v216
      %v441 = vunpack.c.l.b16 %v217
      %v442 = vunpack.c.l.b16 %v218
      %v443 = vunpack.c.l.b16 %v219
      %v444 = vunpack.c.l.b16 %v220
      %v445 = vunpack.c.l.b16 %v221
      %v446 = vunpack.c.l.b16 %v222
      %v447 = vunpack.c.l.b16 %v223
      %v448 = vunpack.c.l.b16 %v224
      %v449 = vunpack.c.l.b16 %v225
      %v450 = vunpack.c.l.b16 %v226
      %v451 = vunpack.c.l.b16 %v227
      %v452 = vpack.c.b16 %v437, %v436
      %v453 = vpack.c.b16 %v439, %v438
      %v454 = vpack.c.b16 %v441, %v440
      %v455 = vpack.c.b16 %v443, %v442
      %v456 = vpack.c.b16 %v445, %v444
      %v457 = vpack.c.b16 %v447, %v446
      %v458 = vpack.c.b16 %v449, %v448
      %v459 = vpack.c.b16 %v451, %v450
      %468 = vmatprep.subr.bf16.mxu0 0
      %469 = vmatpush1.bf16.msra.mxu0 %v452
      %470 = vmatprep.subr.bf16.mxu0 0
      %471 = vmatpush1.bf16.msra.mxu0 %v453
      %472 = vmatprep.subr.bf16.mxu0 0
      %473 = vmatpush1.bf16.msra.mxu0 %v454
      %474 = vmatprep.subr.bf16.mxu0 0
      %475 = vmatpush1.bf16.msra.mxu0 %v455
      %476 = vmatprep.subr.bf16.mxu0 0
      %477 = vmatpush1.bf16.msra.mxu0 %v456
      %478 = vmatprep.subr.bf16.mxu0 0
      %479 = vmatpush1.bf16.msra.mxu0 %v457
      %480 = vmatprep.subr.bf16.mxu0 0
      %481 = vmatpush1.bf16.msra.mxu0 %v458
      %482 = vmatprep.subr.bf16.mxu0 0
      %483 = vmatpush1.bf16.msra.mxu0 %v459
      %484 = vmatprep.subr.bf16.mxu0 0
      %485 = vmatpush1.bf16.msra.mxu0 0
      %486 = vmatprep.subr.bf16.mxu0 0
      %487 = vmatpush1.bf16.msra.mxu0 0
      %488 = vmatprep.subr.bf16.mxu0 0
      %489 = vmatpush1.bf16.msra.mxu0 0
      %490 = vmatprep.subr.bf16.mxu0 0
      %491 = vmatpush1.bf16.msra.mxu0 0
      %492 = vmatprep.subr.bf16.mxu0 0
      %493 = vmatpush1.bf16.msra.mxu0 0
      %494 = vmatprep.subr.bf16.mxu0 0
      %495 = vmatpush1.bf16.msra.mxu0 0
      %496 = vmatprep.subr.bf16.mxu0 0
      %497 = vmatpush1.bf16.msra.mxu0 0
      %498 = vmatprep.subr.bf16.mxu0 0
      %499 = vmatpush1.bf16.msra.mxu0 0
      %500 = vmatprep.mubr.bf16.mxu0 0
      %501 = vmatmul.mubr.bf16.gmra.mrb[0].mxu0 %v356
      %v502 = vpop.f32.mrb[0].mxu0
      %v503 = vadd.f32 0.0, %v502
      %v504 = vpop.f32.mrb[0].mxu0
      %v505 = vpop.f32.mrb[0].mxu0
      %v506 = vadd.f32 0.0, %v505
      %v507 = vpop.f32.mrb[0].mxu0
      %508 = vmatprep.mubr.bf16.mxu0 0
      %509 = vmatmul.mubr.bf16.gmra.mrb[0].mxu0 %v357
      %v510 = vpop.f32.mrb[0].mxu0
      %v511 = vadd.f32 0.0, %v510
      %v512 = vpop.f32.mrb[0].mxu0
      %v513 = vpop.f32.mrb[0].mxu0
      %v514 = vadd.f32 0.0, %v513
      %v515 = vpop.f32.mrb[0].mxu0
      %516 = vmatprep.mubr.bf16.mxu0 0
      %517 = vmatmul.mubr.bf16.gmra.mrb[0].mxu0 %v358
      %v518 = vpop.f32.mrb[0].mxu0
      %v519 = vadd.f32 0.0, %v518
      %v520 = vpop.f32.mrb[0].mxu0
      %v521 = vpop.f32.mrb[0].mxu0
      %v522 = vadd.f32 0.0, %v521
      %v523 = vpop.f32.mrb[0].mxu0
      %524 = vmatprep.mubr.bf16.mxu0 0
      %525 = vmatmul.mubr.bf16.gmra.mrb[0].mxu0 %v359
      %v526 = vpop.f32.mrb[0].mxu0
      %v527 = vadd.f32 0.0, %v526
      %v528 = vpop.f32.mrb[0].mxu0
      %v529 = vpop.f32.mrb[0].mxu0
      %v530 = vadd.f32 0.0, %v529
      %v531 = vpop.f32.mrb[0].mxu0
      %532 = vmatprep.mubr.bf16.mxu0 0
      %533 = vmatmul.mubr.bf16.gmra.mrb[0].mxu0 %v360
      %v534 = vpop.f32.mrb[0].mxu0
      %v535 = vadd.f32 0.0, %v534
      %v536 = vpop.f32.mrb[0].mxu0
      %v537 = vpop.f32.mrb[0].mxu0
      %v538 = vadd.f32 0.0, %v537
      %v539 = vpop.f32.mrb[0].mxu0
      %540 = vmatprep.mubr.bf16.mxu0 0
      %541 = vmatmul.mubr.bf16.gmra.mrb[0].mxu0 %v361
      %v542 = vpop.f32.mrb[0].mxu0
      %v543 = vadd.f32 0.0, %v542
      %v544 = vpop.f32.mrb[0].mxu0
      %v545 = vpop.f32.mrb[0].mxu0
      %v546 = vadd.f32 0.0, %v545
      %v547 = vpop.f32.mrb[0].mxu0
      %548 = vmatprep.mubr.bf16.mxu0 0
      %549 = vmatmul.mubr.bf16.gmra.mrb[0].mxu0 %v362
      %v550 = vpop.f32.mrb[0].mxu0
      %v551 = vadd.f32 0.0, %v550
      %v552 = vpop.f32.mrb[0].mxu0
      %v553 = vpop.f32.mrb[0].mxu0
      %v554 = vadd.f32 0.0, %v553
      %v555 = vpop.f32.mrb[0].mxu0
      %556 = vmatprep.mubr.bf16.mxu0 0
      %557 = vmatmul.mubr.bf16.gmra.mrb[0].mxu0 %v363
      %v558 = vpop.f32.mrb[0].mxu0
      %v559 = vadd.f32 0.0, %v558
      %v560 = vpop.f32.mrb[0].mxu0
      %v561 = vpop.f32.mrb[0].mxu0
      %v562 = vadd.f32 0.0, %v561
      %v563 = vpop.f32.mrb[0].mxu0
      %564 = vmatprep.mubr.bf16.mxu0 0
      %565 = vmatmul.mubr.bf16.gmra.mrb[0].mxu0 %v364
      %v566 = vpop.f32.mrb[0].mxu0
      %v567 = vadd.f32 0.0, %v566
      %v568 = vpop.f32.mrb[0].mxu0
      %v569 = vpop.f32.mrb[0].mxu0
      %v570 = vadd.f32 0.0, %v569
      %v571 = vpop.f32.mrb[0].mxu0
      %572 = vmatprep.mubr.bf16.mxu0 0
      %573 = vmatmul.mubr.bf16.gmra.mrb[0].mxu0 %v365
      %v574 = vpop.f32.mrb[0].mxu0
      %v575 = vadd.f32 0.0, %v574
      %v576 = vpop.f32.mrb[0].mxu0
      %v577 = vpop.f32.mrb[0].mxu0
      %v578 = vadd.f32 0.0, %v577
      %v579 = vpop.f32.mrb[0].mxu0
      %580 = vmatprep.mubr.bf16.mxu0 0
      %581 = vmatmul.mubr.bf16.gmra.mrb[0].mxu0 %v366
      %v582 = vpop.f32.mrb[0].mxu0
      %v583 = vadd.f32 0.0, %v582
      %v584 = vpop.f32.mrb[0].mxu0
      %v585 = vpop.f32.mrb[0].mxu0
      %v586 = vadd.f32 0.0, %v585
      %v587 = vpop.f32.mrb[0].mxu0
      %588 = vmatprep.mubr.bf16.mxu0 0
      %589 = vmatmul.mubr.bf16.gmra.mrb[0].mxu0 %v367
      %v590 = vpop.f32.mrb[0].mxu0
      %v591 = vadd.f32 0.0, %v590
      %v592 = vpop.f32.mrb[0].mxu0
      %v593 = vpop.f32.mrb[0].mxu0
      %v594 = vadd.f32 0.0, %v593
      %v595 = vpop.f32.mrb[0].mxu0
      %596 = vmatprep.mubr.bf16.mxu0 0
      %597 = vmatmul.mubr.bf16.gmra.mrb[0].mxu0 %v368
      %v598 = vpop.f32.mrb[0].mxu0
      %v599 = vadd.f32 0.0, %v598
      %v600 = vpop.f32.mrb[0].mxu0
      %v601 = vpop.f32.mrb[0].mxu0
      %v602 = vadd.f32 0.0, %v601
      %v603 = vpop.f32.mrb[0].mxu0
      %604 = vmatprep.mubr.bf16.mxu0 0
      %605 = vmatmul.mubr.bf16.gmra.mrb[0].mxu0 %v369
      %v606 = vpop.f32.mrb[0].mxu0
      %v607 = vadd.f32 0.0, %v606
      %v608 = vpop.f32.mrb[0].mxu0
      %v609 = vpop.f32.mrb[0].mxu0
      %v610 = vadd.f32 0.0, %v609
      %v611 = vpop.f32.mrb[0].mxu0
      %612 = vmatprep.mubr.bf16.mxu0 0
      %613 = vmatmul.mubr.bf16.gmra.mrb[0].mxu0 %v370
      %v614 = vpop.f32.mrb[0].mxu0
      %v615 = vadd.f32 0.0, %v614
      %v616 = vpop.f32.mrb[0].mxu0
      %v617 = vpop.f32.mrb[0].mxu0
      %v618 = vadd.f32 0.0, %v617
      %v619 = vpop.f32.mrb[0].mxu0
      %620 = vmatprep.mubr.bf16.mxu0 0
      %621 = vmatmul.mubr.bf16.gmra.mrb[0].mxu0 %v371
      %v622 = vpop.f32.mrb[0].mxu0
      %v623 = vadd.f32 0.0, %v622
      %v624 = vpop.f32.mrb[0].mxu0
      %v625 = vpop.f32.mrb[0].mxu0
      %v626 = vadd.f32 0.0, %v625
      %v627 = vpop.f32.mrb[0].mxu0
      %628 = vmatprep.mubr.bf16.mxu0 0
      %629 = vmatmul.mubr.bf16.gmra.mrb[0].mxu0 %v372
      %v630 = vpop.f32.mrb[0].mxu0
      %v631 = vadd.f32 0.0, %v630
      %v632 = vpop.f32.mrb[0].mxu0
      %v633 = vpop.f32.mrb[0].mxu0
      %v634 = vadd.f32 0.0, %v633
      %v635 = vpop.f32.mrb[0].mxu0
      %636 = vmatprep.mubr.bf16.mxu0 0
      %637 = vmatmul.mubr.bf16.gmra.mrb[0].mxu0 %v373
      %v638 = vpop.f32.mrb[0].mxu0
      %v639 = vadd.f32 0.0, %v638
      %v640 = vpop.f32.mrb[0].mxu0
      %v641 = vpop.f32.mrb[0].mxu0
      %v642 = vadd.f32 0.0, %v641
      %v643 = vpop.f32.mrb[0].mxu0
      %644 = vmatprep.mubr.bf16.mxu0 0
      %645 = vmatmul.mubr.bf16.gmra.mrb[0].mxu0 %v374
      %v646 = vpop.f32.mrb[0].mxu0
      %v647 = vadd.f32 0.0, %v646
      %v648 = vpop.f32.mrb[0].mxu0
      %v649 = vpop.f32.mrb[0].mxu0
      %v650 = vadd.f32 0.0, %v649
      %v651 = vpop.f32.mrb[0].mxu0
      %652 = vmatprep.mubr.bf16.mxu0 0
      %653 = vmatmul.mubr.bf16.gmra.mrb[0].mxu0 %v375
      %v654 = vpop.f32.mrb[0].mxu0
      %v655 = vadd.f32 0.0, %v654
      %v656 = vpop.f32.mrb[0].mxu0
      %v657 = vpop.f32.mrb[0].mxu0
      %v658 = vadd.f32 0.0, %v657
      %v659 = vpop.f32.mrb[0].mxu0
      %660 = vmatprep.mubr.bf16.mxu0 0
      %661 = vmatmul.mubr.bf16.gmra.mrb[0].mxu0 %v376
      %v662 = vpop.f32.mrb[0].mxu0
      %v663 = vadd.f32 0.0, %v662
      %v664 = vpop.f32.mrb[0].mxu0
      %v665 = vpop.f32.mrb[0].mxu0
      %v666 = vadd.f32 0.0, %v665
      %v667 = vpop.f32.mrb[0].mxu0
      %668 = vmatprep.mubr.bf16.mxu0 0
      %669 = vmatmul.mubr.bf16.gmra.mrb[0].mxu0 %v377
      %v670 = vpop.f32.mrb[0].mxu0
      %v671 = vadd.f32 0.0, %v670
      %v672 = vpop.f32.mrb[0].mxu0
      %v673 = vpop.f32.mrb[0].mxu0
      %v674 = vadd.f32 0.0, %v673
      %v675 = vpop.f32.mrb[0].mxu0
      %676 = vmatprep.mubr.bf16.mxu0 0
      %677 = vmatmul.mubr.bf16.gmra.mrb[0].mxu0 %v378
      %v678 = vpop.f32.mrb[0].mxu0
      %v679 = vadd.f32 0.0, %v678
      %v680 = vpop.f32.mrb[0].mxu0
      %v681 = vpop.f32.mrb[0].mxu0
      %v682 = vadd.f32 0.0, %v681
      %v683 = vpop.f32.mrb[0].mxu0
      %684 = vmatprep.mubr.bf16.mxu0 0
      %685 = vmatmul.mubr.bf16.gmra.mrb[0].mxu0 %v379
      %v686 = vpop.f32.mrb[0].mxu0
      %v687 = vadd.f32 0.0, %v686
      %v688 = vpop.f32.mrb[0].mxu0
      %v689 = vpop.f32.mrb[0].mxu0
      %v690 = vadd.f32 0.0, %v689
      %v691 = vpop.f32.mrb[0].mxu0
      %692 = vmatprep.mubr.bf16.mxu0 0
      %693 = vmatmul.mubr.bf16.gmra.mrb[0].mxu0 %v380
      %v694 = vpop.f32.mrb[0].mxu0
      %v695 = vadd.f32 0.0, %v694
      %v696 = vpop.f32.mrb[0].mxu0
      %v697 = vpop.f32.mrb[0].mxu0
      %v698 = vadd.f32 0.0, %v697
      %v699 = vpop.f32.mrb[0].mxu0
      %700 = vmatprep.mubr.bf16.mxu0 0
      %701 = vmatmul.mubr.bf16.gmra.mrb[0].mxu0 %v381
      %v702 = vpop.f32.mrb[0].mxu0
      %v703 = vadd.f32 0.0, %v702
      %v704 = vpop.f32.mrb[0].mxu0
      %v705 = vpop.f32.mrb[0].mxu0
      %v706 = vadd.f32 0.0, %v705
      %v707 = vpop.f32.mrb[0].mxu0
      %708 = vmatprep.mubr.bf16.mxu0 0
      %709 = vmatmul.mubr.bf16.gmra.mrb[0].mxu0 %v382
      %v710 = vpop.f32.mrb[0].mxu0
      %v711 = vadd.f32 0.0, %v710
      %v712 = vpop.f32.mrb[0].mxu0
      %v713 = vpop.f32.mrb[0].mxu0
      %v714 = vadd.f32 0.0, %v713
      %v715 = vpop.f32.mrb[0].mxu0
      %716 = vmatprep.mubr.bf16.mxu0 0
      %717 = vmatmul.mubr.bf16.gmra.mrb[0].mxu0 %v383
      %v718 = vpop.f32.mrb[0].mxu0
      %v719 = vadd.f32 0.0, %v718
      %v720 = vpop.f32.mrb[0].mxu0
      %v721 = vpop.f32.mrb[0].mxu0
      %v722 = vadd.f32 0.0, %v721
      %v723 = vpop.f32.mrb[0].mxu0
      %724 = vmatprep.mubr.bf16.mxu0 0
      %725 = vmatmul.mubr.bf16.gmra.mrb[0].mxu0 %v384
      %v726 = vpop.f32.mrb[0].mxu0
      %v727 = vadd.f32 0.0, %v726
      %v728 = vpop.f32.mrb[0].mxu0
      %v729 = vpop.f32.mrb[0].mxu0
      %v730 = vadd.f32 0.0, %v729
      %v731 = vpop.f32.mrb[0].mxu0
      %732 = vmatprep.mubr.bf16.mxu0 0
      %733 = vmatmul.mubr.bf16.gmra.mrb[0].mxu0 %v385
      %v734 = vpop.f32.mrb[0].mxu0
      %v735 = vadd.f32 0.0, %v734
      %v736 = vpop.f32.mrb[0].mxu0
      %v737 = vpop.f32.mrb[0].mxu0
      %v738 = vadd.f32 0.0, %v737
      %v739 = vpop.f32.mrb[0].mxu0
      %740 = vmatprep.mubr.bf16.mxu0 0
      %741 = vmatmul.mubr.bf16.gmra.mrb[0].mxu0 %v386
      %v742 = vpop.f32.mrb[0].mxu0
      %v743 = vadd.f32 0.0, %v742
      %v744 = vpop.f32.mrb[0].mxu0
      %v745 = vpop.f32.mrb[0].mxu0
      %v746 = vadd.f32 0.0, %v745
      %v747 = vpop.f32.mrb[0].mxu0
      %748 = vmatprep.mubr.bf16.mxu0 0
      %749 = vmatmul.mubr.bf16.gmra.mrb[0].mxu0 %v387
      %v750 = vpop.f32.mrb[0].mxu0
      %v751 = vadd.f32 0.0, %v750
      %v752 = vpop.f32.mrb[0].mxu0
      %v753 = vpop.f32.mrb[0].mxu0
      %v754 = vadd.f32 0.0, %v753
      %v755 = vpop.f32.mrb[0].mxu0
      %756 = vdwg.mxu0
      %vm757 = vcmp.gt.f32.partialorder %v503, 0.0
      %vm758 = vcmp.gt.f32.partialorder %v506, 0.0
      %vm759 = vcmp.gt.f32.partialorder %v511, 0.0
      %vm760 = vcmp.gt.f32.partialorder %v514, 0.0
      %vm761 = vcmp.gt.f32.partialorder %v519, 0.0
      %vm762 = vcmp.gt.f32.partialorder %v522, 0.0
      %vm763 = vcmp.gt.f32.partialorder %v527, 0.0
      %vm764 = vcmp.gt.f32.partialorder %v530, 0.0
      %vm765 = vcmp.gt.f32.partialorder %v535, 0.0
      %vm766 = vcmp.gt.f32.partialorder %v538, 0.0
      %vm767 = vcmp.gt.f32.partialorder %v543, 0.0
      %vm768 = vcmp.gt.f32.partialorder %v546, 0.0
      %vm769 = vcmp.gt.f32.partialorder %v551, 0.0
      %vm770 = vcmp.gt.f32.partialorder %v554, 0.0
      %vm771 = vcmp.gt.f32.partialorder %v559, 0.0
      %vm772 = vcmp.gt.f32.partialorder %v562, 0.0
      %vm773 = vcmp.gt.f32.partialorder %v567, 0.0
      %vm774 = vcmp.gt.f32.partialorder %v570, 0.0
      %vm775 = vcmp.gt.f32.partialorder %v575, 0.0
      %vm776 = vcmp.gt.f32.partialorder %v578, 0.0
      %vm777 = vcmp.gt.f32.partialorder %v583, 0.0
      %vm778 = vcmp.gt.f32.partialorder %v586, 0.0
      %vm779 = vcmp.gt.f32.partialorder %v591, 0.0
      %vm780 = vcmp.gt.f32.partialorder %v594, 0.0
      %vm781 = vcmp.gt.f32.partialorder %v599, 0.0
      %vm782 = vcmp.gt.f32.partialorder %v602, 0.0
      %vm783 = vcmp.gt.f32.partialorder %v607, 0.0
      %vm784 = vcmp.gt.f32.partialorder %v610, 0.0
      %vm785 = vcmp.gt.f32.partialorder %v615, 0.0
      %vm786 = vcmp.gt.f32.partialorder %v618, 0.0
      %vm787 = vcmp.gt.f32.partialorder %v623, 0.0
      %vm788 = vcmp.gt.f32.partialorder %v626, 0.0
      %vm789 = vcmp.gt.f32.partialorder %v631, 0.0
      %vm790 = vcmp.gt.f32.partialorder %v634, 0.0
      %vm791 = vcmp.gt.f32.partialorder %v639, 0.0
      %vm792 = vcmp.gt.f32.partialorder %v642, 0.0
      %vm793 = vcmp.gt.f32.partialorder %v647, 0.0
      %vm794 = vcmp.gt.f32.partialorder %v650, 0.0
      %vm795 = vcmp.gt.f32.partialorder %v655, 0.0
      %vm796 = vcmp.gt.f32.partialorder %v658, 0.0
      %vm797 = vcmp.gt.f32.partialorder %v663, 0.0
      %vm798 = vcmp.gt.f32.partialorder %v666, 0.0
      %vm799 = vcmp.gt.f32.partialorder %v671, 0.0
      %vm800 = vcmp.gt.f32.partialorder %v674, 0.0
      %vm801 = vcmp.gt.f32.partialorder %v679, 0.0
      %vm802 = vcmp.gt.f32.partialorder %v682, 0.0
      %vm803 = vcmp.gt.f32.partialorder %v687, 0.0
      %vm804 = vcmp.gt.f32.partialorder %v690, 0.0
      %vm805 = vcmp.gt.f32.partialorder %v695, 0.0
      %vm806 = vcmp.gt.f32.partialorder %v698, 0.0
      %vm807 = vcmp.gt.f32.partialorder %v703, 0.0
      %vm808 = vcmp.gt.f32.partialorder %v706, 0.0
      %vm809 = vcmp.gt.f32.partialorder %v711, 0.0
      %vm810 = vcmp.gt.f32.partialorder %v714, 0.0
      %vm811 = vcmp.gt.f32.partialorder %v719, 0.0
      %vm812 = vcmp.gt.f32.partialorder %v722, 0.0
      %vm813 = vcmp.gt.f32.partialorder %v727, 0.0
      %vm814 = vcmp.gt.f32.partialorder %v730, 0.0
      %vm815 = vcmp.gt.f32.partialorder %v735, 0.0
      %vm816 = vcmp.gt.f32.partialorder %v738, 0.0
      %vm817 = vcmp.gt.f32.partialorder %v743, 0.0
      %vm818 = vcmp.gt.f32.partialorder %v746, 0.0
      %vm819 = vcmp.gt.f32.partialorder %v751, 0.0
      %vm820 = vcmp.gt.f32.partialorder %v754, 0.0
      %v821 = vmul.f32 %v503, 0.2
      %v822 = vmul.f32 %v506, 0.2
      %v823 = vmul.f32 %v511, 0.2
      %v824 = vmul.f32 %v514, 0.2
      %v825 = vmul.f32 %v519, 0.2
      %v826 = vmul.f32 %v522, 0.2
      %v827 = vmul.f32 %v527, 0.2
      %v828 = vmul.f32 %v530, 0.2
      %v829 = vmul.f32 %v535, 0.2
      %v830 = vmul.f32 %v538, 0.2
      %v831 = vmul.f32 %v543, 0.2
      %v832 = vmul.f32 %v546, 0.2
      %v833 = vmul.f32 %v551, 0.2
      %v834 = vmul.f32 %v554, 0.2
      %v835 = vmul.f32 %v559, 0.2
      %v836 = vmul.f32 %v562, 0.2
      %v837 = vmul.f32 %v567, 0.2
      %v838 = vmul.f32 %v570, 0.2
      %v839 = vmul.f32 %v575, 0.2
      %v840 = vmul.f32 %v578, 0.2
      %v841 = vmul.f32 %v583, 0.2
      %v842 = vmul.f32 %v586, 0.2
      %v843 = vmul.f32 %v591, 0.2
      %v844 = vmul.f32 %v594, 0.2
      %v845 = vmul.f32 %v599, 0.2
      %v846 = vmul.f32 %v602, 0.2
      %v847 = vmul.f32 %v607, 0.2
      %v848 = vmul.f32 %v610, 0.2
      %v849 = vmul.f32 %v615, 0.2
      %v850 = vmul.f32 %v618, 0.2
      %v851 = vmul.f32 %v623, 0.2
      %v852 = vmul.f32 %v626, 0.2
      %v853 = vmul.f32 %v631, 0.2
      %v854 = vmul.f32 %v634, 0.2
      %v855 = vmul.f32 %v639, 0.2
      %v856 = vmul.f32 %v642, 0.2
      %v857 = vmul.f32 %v647, 0.2
      %v858 = vmul.f32 %v650, 0.2
      %v859 = vmul.f32 %v655, 0.2
      %v860 = vmul.f32 %v658, 0.2
      %v861 = vmul.f32 %v663, 0.2
      %v862 = vmul.f32 %v666, 0.2
      %v863 = vmul.f32 %v671, 0.2
      %v864 = vmul.f32 %v674, 0.2
      %v865 = vmul.f32 %v679, 0.2
      %v866 = vmul.f32 %v682, 0.2
      %v867 = vmul.f32 %v687, 0.2
      %v868 = vmul.f32 %v690, 0.2
      %v869 = vmul.f32 %v695, 0.2
      %v870 = vmul.f32 %v698, 0.2
      %v871 = vmul.f32 %v703, 0.2
      %v872 = vmul.f32 %v706, 0.2
      %v873 = vmul.f32 %v711, 0.2
      %v874 = vmul.f32 %v714, 0.2
      %v875 = vmul.f32 %v719, 0.2
      %v876 = vmul.f32 %v722, 0.2
      %v877 = vmul.f32 %v727, 0.2
      %v878 = vmul.f32 %v730, 0.2
      %v879 = vmul.f32 %v735, 0.2
      %v880 = vmul.f32 %v738, 0.2
      %v881 = vmul.f32 %v743, 0.2
      %v882 = vmul.f32 %v746, 0.2
      %v883 = vmul.f32 %v751, 0.2
      %v884 = vmul.f32 %v754, 0.2
      %v885 = vsel %vm757, %v503, %v821
      %v886 = vsel %vm758, %v506, %v822
      %v887 = vsel %vm759, %v511, %v823
      %v888 = vsel %vm760, %v514, %v824
      %v889 = vsel %vm761, %v519, %v825
      %v890 = vsel %vm762, %v522, %v826
      %v891 = vsel %vm763, %v527, %v827
      %v892 = vsel %vm764, %v530, %v828
      %v893 = vsel %vm765, %v535, %v829
      %v894 = vsel %vm766, %v538, %v830
      %v895 = vsel %vm767, %v543, %v831
      %v896 = vsel %vm768, %v546, %v832
      %v897 = vsel %vm769, %v551, %v833
      %v898 = vsel %vm770, %v554, %v834
      %v899 = vsel %vm771, %v559, %v835
      %v900 = vsel %vm772, %v562, %v836
      %v901 = vsel %vm773, %v567, %v837
      %v902 = vsel %vm774, %v570, %v838
      %v903 = vsel %vm775, %v575, %v839
      %v904 = vsel %vm776, %v578, %v840
      %v905 = vsel %vm777, %v583, %v841
      %v906 = vsel %vm778, %v586, %v842
      %v907 = vsel %vm779, %v591, %v843
      %v908 = vsel %vm780, %v594, %v844
      %v909 = vsel %vm781, %v599, %v845
      %v910 = vsel %vm782, %v602, %v846
      %v911 = vsel %vm783, %v607, %v847
      %v912 = vsel %vm784, %v610, %v848
      %v913 = vsel %vm785, %v615, %v849
      %v914 = vsel %vm786, %v618, %v850
      %v915 = vsel %vm787, %v623, %v851
      %v916 = vsel %vm788, %v626, %v852
      %v917 = vsel %vm789, %v631, %v853
      %v918 = vsel %vm790, %v634, %v854
      %v919 = vsel %vm791, %v639, %v855
      %v920 = vsel %vm792, %v642, %v856
      %v921 = vsel %vm793, %v647, %v857
      %v922 = vsel %vm794, %v650, %v858
      %v923 = vsel %vm795, %v655, %v859
      %v924 = vsel %vm796, %v658, %v860
      %v925 = vsel %vm797, %v663, %v861
      %v926 = vsel %vm798, %v666, %v862
      %v927 = vsel %vm799, %v671, %v863
      %v928 = vsel %vm800, %v674, %v864
      %v929 = vsel %vm801, %v679, %v865
      %v930 = vsel %vm802, %v682, %v866
      %v931 = vsel %vm803, %v687, %v867
      %v932 = vsel %vm804, %v690, %v868
      %v933 = vsel %vm805, %v695, %v869
      %v934 = vsel %vm806, %v698, %v870
      %v935 = vsel %vm807, %v703, %v871
      %v936 = vsel %vm808, %v706, %v872
      %v937 = vsel %vm809, %v711, %v873
      %v938 = vsel %vm810, %v714, %v874
      %v939 = vsel %vm811, %v719, %v875
      %v940 = vsel %vm812, %v722, %v876
      %v941 = vsel %vm813, %v727, %v877
      %v942 = vsel %vm814, %v730, %v878
      %v943 = vsel %vm815, %v735, %v879
      %v944 = vsel %vm816, %v738, %v880
      %v945 = vsel %vm817, %v743, %v881
      %v946 = vsel %vm818, %v746, %v882
      %v947 = vsel %vm819, %v751, %v883
      %v948 = vsel %vm820, %v754, %v884
      %vm949 = vcmask 64512
      %950 = vst.msk [vmem:[%s145] sm:$0xff] %vm949, %v885
      %951 = vst.msk [vmem:[%s145 + $0x8] sm:$0xff] %vm949, %v886
      %952 = vst.msk [vmem:[%s145 + $0x10] sm:$0xff] %vm949, %v887
      %953 = vst.msk [vmem:[%s145 + $0x18] sm:$0xff] %vm949, %v888
      %954 = vst.msk [vmem:[%s145 + $0x20] sm:$0xff] %vm949, %v889
      %955 = vst.msk [vmem:[%s145 + $0x28] sm:$0xff] %vm949, %v890
      %956 = vst.msk [vmem:[%s145 + $0x30] sm:$0xff] %vm949, %v891
      %957 = vst.msk [vmem:[%s145 + $0x38] sm:$0xff] %vm949, %v892
      %958 = vst.msk [vmem:[%s145 + $0x40] sm:$0xff] %vm949, %v893
      %959 = vst.msk [vmem:[%s145 + $0x48] sm:$0xff] %vm949, %v894
      %960 = vst.msk [vmem:[%s145 + $0x50] sm:$0xff] %vm949, %v895
      %961 = vst.msk [vmem:[%s145 + $0x58] sm:$0xff] %vm949, %v896
      %962 = vst.msk [vmem:[%s145 + $0x60] sm:$0xff] %vm949, %v897
      %963 = vst.msk [vmem:[%s145 + $0x68] sm:$0xff] %vm949, %v898
      %964 = vst.msk [vmem:[%s145 + $0x70] sm:$0xff] %vm949, %v899
      %965 = vst.msk [vmem:[%s145 + $0x78] sm:$0xff] %vm949, %v900
      %966 = vst.msk [vmem:[%s145 + $0x80] sm:$0xff] %vm949, %v901
      %967 = vst.msk [vmem:[%s145 + $0x88] sm:$0xff] %vm949, %v902
      %968 = vst.msk [vmem:[%s145 + $0x90] sm:$0xff] %vm949, %v903
      %969 = vst.msk [vmem:[%s145 + $0x98] sm:$0xff] %vm949, %v904
      %970 = vst.msk [vmem:[%s145 + $0xa0] sm:$0xff] %vm949, %v905
      %971 = vst.msk [vmem:[%s145 + $0xa8] sm:$0xff] %vm949, %v906
      %972 = vst.msk [vmem:[%s145 + $0xb0] sm:$0xff] %vm949, %v907
      %973 = vst.msk [vmem:[%s145 + $0xb8] sm:$0xff] %vm949, %v908
      %974 = vst.msk [vmem:[%s145 + $0xc0] sm:$0xff] %vm949, %v909
      %975 = vst.msk [vmem:[%s145 + $0xc8] sm:$0xff] %vm949, %v910
      %976 = vst.msk [vmem:[%s145 + $0xd0] sm:$0xff] %vm949, %v911
      %977 = vst.msk [vmem:[%s145 + $0xd8] sm:$0xff] %vm949, %v912
      %978 = vst.msk [vmem:[%s145 + $0xe0] sm:$0xff] %vm949, %v913
      %979 = vst.msk [vmem:[%s145 + $0xe8] sm:$0xff] %vm949, %v914
      %980 = vst.msk [vmem:[%s145 + $0xf0] sm:$0xff] %vm949, %v915
      %981 = vst.msk [vmem:[%s145 + $0xf8] sm:$0xff] %vm949, %v916
      %982 = vst.msk [vmem:[%s145 + $0x100] sm:$0xff] %vm949, %v917
      %983 = vst.msk [vmem:[%s145 + $0x108] sm:$0xff] %vm949, %v918
      %984 = vst.msk [vmem:[%s145 + $0x110] sm:$0xff] %vm949, %v919
      %985 = vst.msk [vmem:[%s145 + $0x118] sm:$0xff] %vm949, %v920
      %986 = vst.msk [vmem:[%s145 + $0x120] sm:$0xff] %vm949, %v921
      %987 = vst.msk [vmem:[%s145 + $0x128] sm:$0xff] %vm949, %v922
      %988 = vst.msk [vmem:[%s145 + $0x130] sm:$0xff] %vm949, %v923
      %989 = vst.msk [vmem:[%s145 + $0x138] sm:$0xff] %vm949, %v924
      %990 = vst.msk [vmem:[%s145 + $0x140] sm:$0xff] %vm949, %v925
      %991 = vst.msk [vmem:[%s145 + $0x148] sm:$0xff] %vm949, %v926
      %992 = vst.msk [vmem:[%s145 + $0x150] sm:$0xff] %vm949, %v927
      %993 = vst.msk [vmem:[%s145 + $0x158] sm:$0xff] %vm949, %v928
      %994 = vst.msk [vmem:[%s145 + $0x160] sm:$0xff] %vm949, %v929
      %995 = vst.msk [vmem:[%s145 + $0x168] sm:$0xff] %vm949, %v930
      %996 = vst.msk [vmem:[%s145 + $0x170] sm:$0xff] %vm949, %v931
      %997 = vst.msk [vmem:[%s145 + $0x178] sm:$0xff] %vm949, %v932
      %998 = vst.msk [vmem:[%s145 + $0x180] sm:$0xff] %vm949, %v933
      %999 = vst.msk [vmem:[%s145 + $0x188] sm:$0xff] %vm949, %v934
      %1000 = vst.msk [vmem:[%s145 + $0x190] sm:$0xff] %vm949, %v935
      %1001 = vst.msk [vmem:[%s145 + $0x198] sm:$0xff] %vm949, %v936
      %1002 = vst.msk [vmem:[%s145 + $0x1a0] sm:$0xff] %vm949, %v937
      %1003 = vst.msk [vmem:[%s145 + $0x1a8] sm:$0xff] %vm949, %v938
      %1004 = vst.msk [vmem:[%s145 + $0x1b0] sm:$0xff] %vm949, %v939
      %1005 = vst.msk [vmem:[%s145 + $0x1b8] sm:$0xff] %vm949, %v940
      %1006 = vst.msk [vmem:[%s145 + $0x1c0] sm:$0xff] %vm949, %v941
      %1007 = vst.msk [vmem:[%s145 + $0x1c8] sm:$0xff] %vm949, %v942
      %1008 = vst.msk [vmem:[%s145 + $0x1d0] sm:$0xff] %vm949, %v943
      %1009 = vst.msk [vmem:[%s145 + $0x1d8] sm:$0xff] %vm949, %v944
      %1010 = vst.msk [vmem:[%s145 + $0x1e0] sm:$0xff] %vm949, %v945
      %1011 = vst.msk [vmem:[%s145 + $0x1e8] sm:$0xff] %vm949, %v946
      %1012 = vst.msk [vmem:[%s145 + $0x1f0] sm:$0xff] %vm949, %v947
      %1013 = vst.msk [vmem:[%s145 + $0x1f8] sm:$0xff] %vm949, %v948
      %s1014 = smul.u32 64, %s13
      %p1015 = scmp.lt.s32.totalorder %s1014, 1023
      %s1016 = scalar_select %p1015, %s1014, 1023
      %s1017 = smul.addr %s1016, 8
      %s1018 = scalar_lea.vmem %s2, %s1017
      // Predicated region
      $region29: #{_lambda_.6} parent=27 // pred_check
        %p1019 = pneg %p78
      $region30: #{_lambda_.6} parent=27 // pred_check_branch
        %1021 = sbr.rel (%p1019) target = $region32
      $region31: #{_lambda_.6} parent=27 // pred_region
        %s1022 = smul.u32 64, %s13
      $region32: #{_lambda_.6} parent=27 // pred_fallthru
        _
    $region28: #{_lambda_.6} parent=5 // pred_fallthru
      _
    %p1023 = scmp.le.s32.totalorder 2, %s8
    // Predicated region
    $region33: #{_lambda_.6} parent=5 // pred_check
      %p1024 = pneg %p1023
    $region34: #{_lambda_.6} parent=5 // pred_check_branch
      %1026 = sbr.rel (%p1024) target = $region36
    $region35: #{_lambda_.6} parent=5 // pred_region
      %s1027 = ssub.s32 %s8, 2
      // Predicated region
      $region37: #{_lambda_.6} parent=35 // pred_check
        %p1028 = pneg %p84
      $region38: #{_lambda_.6} parent=35 // pred_check_branch
        %1030 = sbr.rel (%p1028) target = $region40
      $region39: #{_lambda_.6} parent=35 // pred_region
        %s1031 = smul.u32 64, %s14
        %p1032 = scmp.lt.s32.totalorder %s1031, 1023
        %s1033 = scalar_select %p1032, %s1031, 1023
        %s1034 = smul.addr %s1033, 8
        %s1035 = scalar_lea.vmem %s2, %s1034
      $region40: #{_lambda_.6} parent=35 // pred_fallthru
        _
    $region36: #{_lambda_.6} parent=5 // pred_fallthru
      _
  $region6: #{_lambda_.6} parent=0 // loop_footer
    %s12 = sadd.s32 1, %s8
  $region7: #{_lambda_.6} parent=0 // loop_footer_branch
    %7 = sbr.rel target = $region3
  $region8: #{_lambda_.6} parent=0 // loop_exit
    _

// kernel: _lambda_.7
$region0: #{_lambda_.7}
  #allocation0 [shape = 'u32[]', space=smem, size = 0x4, offset = 0x4, fixed_abs, tag = 'smem constant byte address 0x4 - core index']
  #allocation1 [shape = 'u32[144,128]{1,0:T(1,128)}', space=vmem, size = 0x12000, scoped, tag = 'internal scratch']
  #allocation2 [shape = 'f32[2048,128]{1,0:T(8,128)}', space=vmem, size = 0x100000, scoped, tag = 'scratch operand']
  #allocation3 [shape = 'f32[1,128]{1,0:T(1,128)}', space=vmem, size = 0x200, scoped, tag = 'scratch operand']
  #allocation4 [shape = 'f32[1,128]{1,0:T(1,128)}', space=vmem, size = 0x200, scoped, tag = 'scratch operand']
  %s0 = inlined_call_operand.vmem [shape: bf16[2048,128], index: 0, kind: input, shape index: {}]
  %s1 = inlined_call_operand.vmem [shape: bf16[128,128], index: 1, kind: input, shape index: {}]
  %s2 = inlined_call_operand.vmem [shape: f32[1,128], index: 2, kind: input, shape index: {}]
  %s3 = inlined_call_operand.vmem [shape: f32[1,128], index: 3, kind: input, shape index: {}]
  %s4 = inlined_call_operand.vmem [shape: f32[2048,16], index: 4, kind: output, shape index: {}]
  %s5 = sld [smem:[#allocation0]]
  $region57: #{_lambda_.7} parent=0
    _
  %s7 = ssub.s32 1, %s5
  %s8 = scalar_select 0, %s7, %s5
  loop: start=0, step=1, limit=6
  $region2: #{_lambda_.7} parent=0 // loop_pre_header
    _
  $region3: #{_lambda_.7} parent=0 // loop_header
    %s10 = sphi 0, %s14
    %p11 = scmp.ge.s32.totalorder %s10, 6
    %s20 = sphi 0, %s22
    %s23 = sphi 0, %s20
    %s24 = sphi 0, %s23
    %s40 = sphi 0, %s24
    %s44 = sphi 0, %s44
    %s46 = sphi 0, %s44
    %s47 = sphi 0, %s46
    %s61 = sphi 0, %s47
    %s65 = sphi 0, %s65
    %s67 = sphi 0, %s65
    %s68 = sphi 0, %s67
    %s82 = sphi 0, %s68
    %s86 = sphi 0, %s86
    %s88 = sphi 0, %s86
    %s89 = sphi 0, %s88
    %s103 = sphi 0, %s89
    %s107 = sphi 0, %s107
    %s109 = sphi 0, %s107
    %s110 = sphi 0, %s109
    %s124 = sphi 0, %s110
  $region4: #{_lambda_.7} parent=0 // loop_header_branch
    %13 = sbr.rel (%p11) target = $region8
  $region5: #{_lambda_.7} parent=0 // loop_body
    %s15 = ssub.s32 %s10, 1
    %s16 = ssub.s32 %s10, 2
    %s17 = sadd.s32 %s10, 1
    %s18 = ssub.s32 %s10, %s17
    %p19 = scmp.eq.s32.totalorder %s18, 0
    %s21 = sadd.s32 %s20, 1
    %s22 = scalar_select %p19, %s20, %s21
    %p25 = pneg %p19
    %p26 = scmp.eq.s32.totalorder %s10, 3
    %p27 = por %p25, %p26
    %p28 = scmp.ne.s32.totalorder %s20, %s23
    %p29 = scmp.eq.s32.totalorder %s10, 0
    %p30 = por %p28, %p29
    %p31 = scmp.ne.s32.totalorder %s20, %s23
    %p32 = scmp.eq.s32.totalorder %s15, 3
    %p33 = por %p31, %p32
    %p34 = scmp.ne.s32.totalorder %s23, %s24
    %p35 = scmp.eq.s32.totalorder %s15, 0
    %p36 = por %p34, %p35
    %p37 = scmp.ne.s32.totalorder %s23, %s24
    %p38 = scmp.eq.s32.totalorder %s16, 3
    %p39 = por %p37, %p38
    %p41 = scmp.ne.s32.totalorder %s24, %s40
    %p42 = scmp.eq.s32.totalorder %s16, 0
    %p43 = por %p41, %p42
    %s45 = sadd.s32 %s44, 1
    %p48 = scmp.eq.s32.totalorder %s10, 3
    %p49 = scmp.ne.s32.totalorder %s44, %s46
    %p50 = scmp.eq.s32.totalorder %s10, 0
    %p51 = por %p49, %p50
    %p52 = scmp.ne.s32.totalorder %s44, %s46
    %p53 = scmp.eq.s32.totalorder %s15, 3
    %p54 = por %p52, %p53
    %p55 = scmp.ne.s32.totalorder %s46, %s47
    %p56 = scmp.eq.s32.totalorder %s15, 0
    %p57 = por %p55, %p56
    %p58 = scmp.ne.s32.totalorder %s46, %s47
    %p59 = scmp.eq.s32.totalorder %s16, 3
    %p60 = por %p58, %p59
    %p62 = scmp.ne.s32.totalorder %s47, %s61
    %p63 = scmp.eq.s32.totalorder %s16, 0
    %p64 = por %p62, %p63
    %s66 = sadd.s32 %s65, 1
    %p69 = scmp.eq.s32.totalorder %s10, 3
    %p70 = scmp.ne.s32.totalorder %s65, %s67
    %p71 = scmp.eq.s32.totalorder %s10, 0
    %p72 = por %p70, %p71
    %p73 = scmp.ne.s32.totalorder %s65, %s67
    %p74 = scmp.eq.s32.totalorder %s15, 3
    %p75 = por %p73, %p74
    %p76 = scmp.ne.s32.totalorder %s67, %s68
    %p77 = scmp.eq.s32.totalorder %s15, 0
    %p78 = por %p76, %p77
    %p79 = scmp.ne.s32.totalorder %s67, %s68
    %p80 = scmp.eq.s32.totalorder %s16, 3
    %p81 = por %p79, %p80
    %p83 = scmp.ne.s32.totalorder %s68, %s82
    %p84 = scmp.eq.s32.totalorder %s16, 0
    %p85 = por %p83, %p84
    %s87 = sadd.s32 %s86, 1
    %p90 = scmp.eq.s32.totalorder %s10, 3
    %p91 = scmp.ne.s32.totalorder %s86, %s88
    %p92 = scmp.eq.s32.totalorder %s10, 0
    %p93 = por %p91, %p92
    %p94 = scmp.ne.s32.totalorder %s86, %s88
    %p95 = scmp.eq.s32.totalorder %s15, 3
    %p96 = por %p94, %p95
    %p97 = scmp.ne.s32.totalorder %s88, %s89
    %p98 = scmp.eq.s32.totalorder %s15, 0
    %p99 = por %p97, %p98
    %p100 = scmp.ne.s32.totalorder %s88, %s89
    %p101 = scmp.eq.s32.totalorder %s16, 3
    %p102 = por %p100, %p101
    %p104 = scmp.ne.s32.totalorder %s89, %s103
    %p105 = scmp.eq.s32.totalorder %s16, 0
    %p106 = por %p104, %p105
    %s108 = sadd.s32 %s107, 1
    %p111 = scmp.eq.s32.totalorder %s10, 3
    %p112 = scmp.ne.s32.totalorder %s107, %s109
    %p113 = scmp.eq.s32.totalorder %s10, 0
    %p114 = por %p112, %p113
    %p115 = scmp.ne.s32.totalorder %s107, %s109
    %p116 = scmp.eq.s32.totalorder %s15, 3
    %p117 = por %p115, %p116
    %p118 = scmp.ne.s32.totalorder %s109, %s110
    %p119 = scmp.eq.s32.totalorder %s15, 0
    %p120 = por %p118, %p119
    %p121 = scmp.ne.s32.totalorder %s109, %s110
    %p122 = scmp.eq.s32.totalorder %s16, 3
    %p123 = por %p121, %p122
    %p125 = scmp.ne.s32.totalorder %s110, %s124
    %p126 = scmp.eq.s32.totalorder %s16, 0
    %p127 = por %p125, %p126
    %p128 = scmp.le.s32.totalorder 1, %s10
    %p129 = scmp.lt.s32.totalorder %s10, 5
    %p130 = pnand %p128, %p129
    %p131 = pneg %p130
    // Predicated region
    $region9: #{_lambda_.7} parent=5 // pred_check
      _
    $region10: #{_lambda_.7} parent=5 // pred_check_branch
      %133 = sbr.rel (%p130) target = $region12
    $region11: #{_lambda_.7} parent=5 // pred_region
      %s134 = ssub.s32 %s10, 1
      // Predicated region
      $region13: #{_lambda_.7} parent=11 // pred_check
        %p135 = pneg %p57
      $region14: #{_lambda_.7} parent=11 // pred_check_branch
        %137 = sbr.rel (%p135) target = $region16
      $region15: #{_lambda_.7} parent=11 // pred_region
        _
      $region16: #{_lambda_.7} parent=11 // pred_fallthru
        _
      // Predicated region
      $region17: #{_lambda_.7} parent=11 // pred_check
        %p138 = pneg %p78
      $region18: #{_lambda_.7} parent=11 // pred_check_branch
        %140 = sbr.rel (%p138) target = $region20
      $region19: #{_lambda_.7} parent=11 // pred_region
        _
      $region20: #{_lambda_.7} parent=11 // pred_fallthru
        _
      // Predicated region
      $region21: #{_lambda_.7} parent=11 // pred_check
        %p141 = pneg %p99
      $region22: #{_lambda_.7} parent=11 // pred_check_branch
        %143 = sbr.rel (%p141) target = $region24
      $region23: #{_lambda_.7} parent=11 // pred_region
        _
      $region24: #{_lambda_.7} parent=11 // pred_fallthru
        _
    $region12: #{_lambda_.7} parent=5 // pred_fallthru
      _
    %p144 = scmp.lt.s32.totalorder %s10, 4
    // Predicated region
    $region25: #{_lambda_.7} parent=5 // pred_check
      %p145 = pneg %p144
    $region26: #{_lambda_.7} parent=5 // pred_check_branch
      %147 = sbr.rel (%p145) target = $region28
    $region27: #{_lambda_.7} parent=5 // pred_region
      // Predicated region
      $region29: #{_lambda_.7} parent=27 // pred_check
        %p148 = pneg %p30
      $region30: #{_lambda_.7} parent=27 // pred_check_branch
        %150 = sbr.rel (%p148) target = $region32
      $region31: #{_lambda_.7} parent=27 // pred_region
        %s151 = smul.u32 64, %s10
        %p152 = scmp.lt.s32.totalorder %s151, 255
        %s153 = scalar_select %p152, %s151, 255
        %s154 = smul.addr %s153, 4
        %s155 = scalar_lea.vmem %s0, %s154
        %s156 = smul.u32 64, %s10
      $region32: #{_lambda_.7} parent=27 // pred_fallthru
        _
    $region28: #{_lambda_.7} parent=5 // pred_fallthru
      _
    %p157 = scmp.le.s32.totalorder 1, %s10
    %p158 = scmp.lt.s32.totalorder %s10, 5
    %p159 = pnand %p157, %p158
    %p160 = pneg %p159
    // Predicated region
    $region33: #{_lambda_.7} parent=5 // pred_check
      _
    $region34: #{_lambda_.7} parent=5 // pred_check_branch
      %162 = sbr.rel (%p159) target = $region36
    $region35: #{_lambda_.7} parent=5 // pred_region
      %s163 = ssub.s32 %s10, 1
      %s164 = smul.u32 64, %s15
      %p165 = scmp.lt.s32.totalorder %s164, 255
      %s166 = scalar_select %p165, %s164, 255
      %s167 = smul.addr %s166, 4
      %s168 = scalar_lea.vmem %s0, %s167
      %p169 = pneg %p36
      %p170 = pneg %p33
      %p171 = pneg %p57
      %p172 = pneg %p54
      %p173 = pneg %p78
      %p174 = pneg %p75
      %p175 = pneg %p99
      %p176 = pneg %p96
      %p177 = pneg %p120
      %p178 = pneg %p117
      %s179 = smul.u32 64, %s15
      %p180 = scmp.lt.s32.totalorder %s179, 255
      %s181 = scalar_select %p180, %s179, 255
      %s182 = smul.addr %s181, 4
      %s183 = scalar_lea.vmem %s0, %s182
      %s184 = smul.u32 64, %s15
      %v186 = vld [vmem:[%s183] sm:$0xf]
      %v187 = vld [vmem:[%s183 + $0x4] sm:$0xf]
      %v188 = vld [vmem:[%s183 + $0x8] sm:$0xf]
      %v189 = vld [vmem:[%s183 + $0xc] sm:$0xf]
      %v190 = vld [vmem:[%s183 + $0x10] sm:$0xf]
      %v191 = vld [vmem:[%s183 + $0x14] sm:$0xf]
      %v192 = vld [vmem:[%s183 + $0x18] sm:$0xf]
      %v193 = vld [vmem:[%s183 + $0x1c] sm:$0xf]
      %v194 = vld [vmem:[%s183 + $0x20] sm:$0xf]
      %v195 = vld [vmem:[%s183 + $0x24] sm:$0xf]
      %v196 = vld [vmem:[%s183 + $0x28] sm:$0xf]
      %v197 = vld [vmem:[%s183 + $0x2c] sm:$0xf]
      %v198 = vld [vmem:[%s183 + $0x30] sm:$0xf]
      %v199 = vld [vmem:[%s183 + $0x34] sm:$0xf]
      %v200 = vld [vmem:[%s183 + $0x38] sm:$0xf]
      %v201 = vld [vmem:[%s183 + $0x3c] sm:$0xf]
      %v202 = vld [vmem:[%s183 + $0x40] sm:$0xf]
      %v203 = vld [vmem:[%s183 + $0x44] sm:$0xf]
      %v204 = vld [vmem:[%s183 + $0x48] sm:$0xf]
      %v205 = vld [vmem:[%s183 + $0x4c] sm:$0xf]
      %v206 = vld [vmem:[%s183 + $0x50] sm:$0xf]
      %v207 = vld [vmem:[%s183 + $0x54] sm:$0xf]
      %v208 = vld [vmem:[%s183 + $0x58] sm:$0xf]
      %v209 = vld [vmem:[%s183 + $0x5c] sm:$0xf]
      %v210 = vld [vmem:[%s183 + $0x60] sm:$0xf]
      %v211 = vld [vmem:[%s183 + $0x64] sm:$0xf]
      %v212 = vld [vmem:[%s183 + $0x68] sm:$0xf]
      %v213 = vld [vmem:[%s183 + $0x6c] sm:$0xf]
      %v214 = vld [vmem:[%s183 + $0x70] sm:$0xf]
      %v215 = vld [vmem:[%s183 + $0x74] sm:$0xf]
      %v216 = vld [vmem:[%s183 + $0x78] sm:$0xf]
      %v217 = vld [vmem:[%s183 + $0x7c] sm:$0xf]
      %v218 = vld [vmem:[%s183 + $0x80] sm:$0xf]
      %v219 = vld [vmem:[%s183 + $0x84] sm:$0xf]
      %v220 = vld [vmem:[%s183 + $0x88] sm:$0xf]
      %v221 = vld [vmem:[%s183 + $0x8c] sm:$0xf]
      %v222 = vld [vmem:[%s183 + $0x90] sm:$0xf]
      %v223 = vld [vmem:[%s183 + $0x94] sm:$0xf]
      %v224 = vld [vmem:[%s183 + $0x98] sm:$0xf]
      %v225 = vld [vmem:[%s183 + $0x9c] sm:$0xf]
      %v226 = vld [vmem:[%s183 + $0xa0] sm:$0xf]
      %v227 = vld [vmem:[%s183 + $0xa4] sm:$0xf]
      %v228 = vld [vmem:[%s183 + $0xa8] sm:$0xf]
      %v229 = vld [vmem:[%s183 + $0xac] sm:$0xf]
      %v230 = vld [vmem:[%s183 + $0xb0] sm:$0xf]
      %v231 = vld [vmem:[%s183 + $0xb4] sm:$0xf]
      %v232 = vld [vmem:[%s183 + $0xb8] sm:$0xf]
      %v233 = vld [vmem:[%s183 + $0xbc] sm:$0xf]
      %v234 = vld [vmem:[%s183 + $0xc0] sm:$0xf]
      %v235 = vld [vmem:[%s183 + $0xc4] sm:$0xf]
      %v236 = vld [vmem:[%s183 + $0xc8] sm:$0xf]
      %v237 = vld [vmem:[%s183 + $0xcc] sm:$0xf]
      %v238 = vld [vmem:[%s183 + $0xd0] sm:$0xf]
      %v239 = vld [vmem:[%s183 + $0xd4] sm:$0xf]
      %v240 = vld [vmem:[%s183 + $0xd8] sm:$0xf]
      %v241 = vld [vmem:[%s183 + $0xdc] sm:$0xf]
      %v242 = vld [vmem:[%s183 + $0xe0] sm:$0xf]
      %v243 = vld [vmem:[%s183 + $0xe4] sm:$0xf]
      %v244 = vld [vmem:[%s183 + $0xe8] sm:$0xf]
      %v245 = vld [vmem:[%s183 + $0xec] sm:$0xf]
      %v246 = vld [vmem:[%s183 + $0xf0] sm:$0xf]
      %v247 = vld [vmem:[%s183 + $0xf4] sm:$0xf]
      %v248 = vld [vmem:[%s183 + $0xf8] sm:$0xf]
      %v249 = vld [vmem:[%s183 + $0xfc] sm:$0xf]
      %v250 = vld [vmem:[%s1] sm:$0xf]
      %v251 = vld [vmem:[%s1 + $0x4] sm:$0xf]
      %v252 = vld [vmem:[%s1 + $0x8] sm:$0xf]
      %v253 = vld [vmem:[%s1 + $0xc] sm:$0xf]
      %v254 = vld [vmem:[%s1 + $0x10] sm:$0xf]
      %v255 = vld [vmem:[%s1 + $0x14] sm:$0xf]
      %v256 = vld [vmem:[%s1 + $0x18] sm:$0xf]
      %v257 = vld [vmem:[%s1 + $0x1c] sm:$0xf]
      %v258 = vld [vmem:[%s1 + $0x20] sm:$0xf]
      %v259 = vld [vmem:[%s1 + $0x24] sm:$0xf]
      %v260 = vld [vmem:[%s1 + $0x28] sm:$0xf]
      %v261 = vld [vmem:[%s1 + $0x2c] sm:$0xf]
      %v262 = vld [vmem:[%s1 + $0x30] sm:$0xf]
      %v263 = vld [vmem:[%s1 + $0x34] sm:$0xf]
      %v264 = vld [vmem:[%s1 + $0x38] sm:$0xf]
      %v265 = vld [vmem:[%s1 + $0x3c] sm:$0xf]
      %v330 = vunpack.c.l.b16 %v186
      %v331 = vunpack.c.l.b16 %v187
      %v332 = vunpack.c.l.b16 %v188
      %v333 = vunpack.c.l.b16 %v189
      %v334 = vunpack.c.l.b16 %v190
      %v335 = vunpack.c.l.b16 %v191
      %v336 = vunpack.c.l.b16 %v192
      %v337 = vunpack.c.l.b16 %v193
      %v338 = vunpack.c.l.b16 %v194
      %v339 = vunpack.c.l.b16 %v195
      %v340 = vunpack.c.l.b16 %v196
      %v341 = vunpack.c.l.b16 %v197
      %v342 = vunpack.c.l.b16 %v198
      %v343 = vunpack.c.l.b16 %v199
      %v344 = vunpack.c.l.b16 %v200
      %v345 = vunpack.c.l.b16 %v201
      %v346 = vunpack.c.l.b16 %v202
      %v347 = vunpack.c.l.b16 %v203
      %v348 = vunpack.c.l.b16 %v204
      %v349 = vunpack.c.l.b16 %v205
      %v350 = vunpack.c.l.b16 %v206
      %v351 = vunpack.c.l.b16 %v207
      %v352 = vunpack.c.l.b16 %v208
      %v353 = vunpack.c.l.b16 %v209
      %v354 = vunpack.c.l.b16 %v210
      %v355 = vunpack.c.l.b16 %v211
      %v356 = vunpack.c.l.b16 %v212
      %v357 = vunpack.c.l.b16 %v213
      %v358 = vunpack.c.l.b16 %v214
      %v359 = vunpack.c.l.b16 %v215
      %v360 = vunpack.c.l.b16 %v216
      %v361 = vunpack.c.l.b16 %v217
      %v362 = vunpack.c.l.b16 %v218
      %v363 = vunpack.c.l.b16 %v219
      %v364 = vunpack.c.l.b16 %v220
      %v365 = vunpack.c.l.b16 %v221
      %v366 = vunpack.c.l.b16 %v222
      %v367 = vunpack.c.l.b16 %v223
      %v368 = vunpack.c.l.b16 %v224
      %v369 = vunpack.c.l.b16 %v225
      %v370 = vunpack.c.l.b16 %v226
      %v371 = vunpack.c.l.b16 %v227
      %v372 = vunpack.c.l.b16 %v228
      %v373 = vunpack.c.l.b16 %v229
      %v374 = vunpack.c.l.b16 %v230
      %v375 = vunpack.c.l.b16 %v231
      %v376 = vunpack.c.l.b16 %v232
      %v377 = vunpack.c.l.b16 %v233
      %v378 = vunpack.c.l.b16 %v234
      %v379 = vunpack.c.l.b16 %v235
      %v380 = vunpack.c.l.b16 %v236
      %v381 = vunpack.c.l.b16 %v237
      %v382 = vunpack.c.l.b16 %v238
      %v383 = vunpack.c.l.b16 %v239
      %v384 = vunpack.c.l.b16 %v240
      %v385 = vunpack.c.l.b16 %v241
      %v386 = vunpack.c.l.b16 %v242
      %v387 = vunpack.c.l.b16 %v243
      %v388 = vunpack.c.l.b16 %v244
      %v389 = vunpack.c.l.b16 %v245
      %v390 = vunpack.c.l.b16 %v246
      %v391 = vunpack.c.l.b16 %v247
      %v392 = vunpack.c.l.b16 %v248
      %v393 = vunpack.c.l.b16 %v249
      %v394 = vpack.c.b16 %v331, %v330
      %v395 = vpack.c.b16 %v333, %v332
      %v396 = vpack.c.b16 %v335, %v334
      %v397 = vpack.c.b16 %v337, %v336
      %v398 = vpack.c.b16 %v339, %v338
      %v399 = vpack.c.b16 %v341, %v340
      %v400 = vpack.c.b16 %v343, %v342
      %v401 = vpack.c.b16 %v345, %v344
      %v402 = vpack.c.b16 %v347, %v346
      %v403 = vpack.c.b16 %v349, %v348
      %v404 = vpack.c.b16 %v351, %v350
      %v405 = vpack.c.b16 %v353, %v352
      %v406 = vpack.c.b16 %v355, %v354
      %v407 = vpack.c.b16 %v357, %v356
      %v408 = vpack.c.b16 %v359, %v358
      %v409 = vpack.c.b16 %v361, %v360
      %v410 = vpack.c.b16 %v363, %v362
      %v411 = vpack.c.b16 %v365, %v364
      %v412 = vpack.c.b16 %v367, %v366
      %v413 = vpack.c.b16 %v369, %v368
      %v414 = vpack.c.b16 %v371, %v370
      %v415 = vpack.c.b16 %v373, %v372
      %v416 = vpack.c.b16 %v375, %v374
      %v417 = vpack.c.b16 %v377, %v376
      %v418 = vpack.c.b16 %v379, %v378
      %v419 = vpack.c.b16 %v381, %v380
      %v420 = vpack.c.b16 %v383, %v382
      %v421 = vpack.c.b16 %v385, %v384
      %v422 = vpack.c.b16 %v387, %v386
      %v423 = vpack.c.b16 %v389, %v388
      %v424 = vpack.c.b16 %v391, %v390
      %v425 = vpack.c.b16 %v393, %v392
      %v474 = vunpack.c.l.b16 %v250
      %v475 = vunpack.c.l.b16 %v251
      %v476 = vunpack.c.l.b16 %v252
      %v477 = vunpack.c.l.b16 %v253
      %v478 = vunpack.c.l.b16 %v254
      %v479 = vunpack.c.l.b16 %v255
      %v480 = vunpack.c.l.b16 %v256
      %v481 = vunpack.c.l.b16 %v257
      %v482 = vunpack.c.l.b16 %v258
      %v483 = vunpack.c.l.b16 %v259
      %v484 = vunpack.c.l.b16 %v260
      %v485 = vunpack.c.l.b16 %v261
      %v486 = vunpack.c.l.b16 %v262
      %v487 = vunpack.c.l.b16 %v263
      %v488 = vunpack.c.l.b16 %v264
      %v489 = vunpack.c.l.b16 %v265
      %v490 = vpack.c.b16 %v475, %v474
      %v491 = vpack.c.b16 %v477, %v476
      %v492 = vpack.c.b16 %v479, %v478
      %v493 = vpack.c.b16 %v481, %v480
      %v494 = vpack.c.b16 %v483, %v482
      %v495 = vpack.c.b16 %v485, %v484
      %v496 = vpack.c.b16 %v487, %v486
      %v497 = vpack.c.b16 %v489, %v488
      %506 = vmatprep.subr.bf16.mxu0 0
      %507 = vmatpush1.bf16.msra.mxu0 %v490
      %508 = vmatprep.subr.bf16.mxu0 0
      %509 = vmatpush1.bf16.msra.mxu0 %v491
      %510 = vmatprep.subr.bf16.mxu0 0
      %511 = vmatpush1.bf16.msra.mxu0 %v492
      %512 = vmatprep.subr.bf16.mxu0 0
      %513 = vmatpush1.bf16.msra.mxu0 %v493
      %514 = vmatprep.subr.bf16.mxu0 0
      %515 = vmatpush1.bf16.msra.mxu0 %v494
      %516 = vmatprep.subr.bf16.mxu0 0
      %517 = vmatpush1.bf16.msra.mxu0 %v495
      %518 = vmatprep.subr.bf16.mxu0 0
      %519 = vmatpush1.bf16.msra.mxu0 %v496
      %520 = vmatprep.subr.bf16.mxu0 0
      %521 = vmatpush1.bf16.msra.mxu0 %v497
      %522 = vmatprep.subr.bf16.mxu0 0
      %523 = vmatpush1.bf16.msra.mxu0 0
      %524 = vmatprep.subr.bf16.mxu0 0
      %525 = vmatpush1.bf16.msra.mxu0 0
      %526 = vmatprep.subr.bf16.mxu0 0
      %527 = vmatpush1.bf16.msra.mxu0 0
      %528 = vmatprep.subr.bf16.mxu0 0
      %529 = vmatpush1.bf16.msra.mxu0 0
      %530 = vmatprep.subr.bf16.mxu0 0
      %531 = vmatpush1.bf16.msra.mxu0 0
      %532 = vmatprep.subr.bf16.mxu0 0
      %533 = vmatpush1.bf16.msra.mxu0 0
      %534 = vmatprep.subr.bf16.mxu0 0
      %535 = vmatpush1.bf16.msra.mxu0 0
      %536 = vmatprep.subr.bf16.mxu0 0
      %537 = vmatpush1.bf16.msra.mxu0 0
      %538 = vmatprep.mubr.bf16.mxu0 0
      %539 = vmatmul.mubr.bf16.gmra.mrb[0].mxu0 %v394
      %v540 = vpop.f32.mrb[0].mxu0
      %v541 = vadd.f32 0.0, %v540
      %v542 = vpop.f32.mrb[0].mxu0
      %v543 = vpop.f32.mrb[0].mxu0
      %v544 = vadd.f32 0.0, %v543
      %v545 = vpop.f32.mrb[0].mxu0
      %546 = vmatprep.mubr.bf16.mxu0 0
      %547 = vmatmul.mubr.bf16.gmra.mrb[0].mxu0 %v395
      %v548 = vpop.f32.mrb[0].mxu0
      %v549 = vadd.f32 0.0, %v548
      %v550 = vpop.f32.mrb[0].mxu0
      %v551 = vpop.f32.mrb[0].mxu0
      %v552 = vadd.f32 0.0, %v551
      %v553 = vpop.f32.mrb[0].mxu0
      %554 = vmatprep.mubr.bf16.mxu0 0
      %555 = vmatmul.mubr.bf16.gmra.mrb[0].mxu0 %v396
      %v556 = vpop.f32.mrb[0].mxu0
      %v557 = vadd.f32 0.0, %v556
      %v558 = vpop.f32.mrb[0].mxu0
      %v559 = vpop.f32.mrb[0].mxu0
      %v560 = vadd.f32 0.0, %v559
      %v561 = vpop.f32.mrb[0].mxu0
      %562 = vmatprep.mubr.bf16.mxu0 0
      %563 = vmatmul.mubr.bf16.gmra.mrb[0].mxu0 %v397
      %v564 = vpop.f32.mrb[0].mxu0
      %v565 = vadd.f32 0.0, %v564
      %v566 = vpop.f32.mrb[0].mxu0
      %v567 = vpop.f32.mrb[0].mxu0
      %v568 = vadd.f32 0.0, %v567
      %v569 = vpop.f32.mrb[0].mxu0
      %570 = vmatprep.mubr.bf16.mxu0 0
      %571 = vmatmul.mubr.bf16.gmra.mrb[0].mxu0 %v398
      %v572 = vpop.f32.mrb[0].mxu0
      %v573 = vadd.f32 0.0, %v572
      %v574 = vpop.f32.mrb[0].mxu0
      %v575 = vpop.f32.mrb[0].mxu0
      %v576 = vadd.f32 0.0, %v575
      %v577 = vpop.f32.mrb[0].mxu0
      %578 = vmatprep.mubr.bf16.mxu0 0
      %579 = vmatmul.mubr.bf16.gmra.mrb[0].mxu0 %v399
      %v580 = vpop.f32.mrb[0].mxu0
      %v581 = vadd.f32 0.0, %v580
      %v582 = vpop.f32.mrb[0].mxu0
      %v583 = vpop.f32.mrb[0].mxu0
      %v584 = vadd.f32 0.0, %v583
      %v585 = vpop.f32.mrb[0].mxu0
      %586 = vmatprep.mubr.bf16.mxu0 0
      %587 = vmatmul.mubr.bf16.gmra.mrb[0].mxu0 %v400
      %v588 = vpop.f32.mrb[0].mxu0
      %v589 = vadd.f32 0.0, %v588
      %v590 = vpop.f32.mrb[0].mxu0
      %v591 = vpop.f32.mrb[0].mxu0
      %v592 = vadd.f32 0.0, %v591
      %v593 = vpop.f32.mrb[0].mxu0
      %594 = vmatprep.mubr.bf16.mxu0 0
      %595 = vmatmul.mubr.bf16.gmra.mrb[0].mxu0 %v401
      %v596 = vpop.f32.mrb[0].mxu0
      %v597 = vadd.f32 0.0, %v596
      %v598 = vpop.f32.mrb[0].mxu0
      %v599 = vpop.f32.mrb[0].mxu0
      %v600 = vadd.f32 0.0, %v599
      %v601 = vpop.f32.mrb[0].mxu0
      %602 = vmatprep.mubr.bf16.mxu0 0
      %603 = vmatmul.mubr.bf16.gmra.mrb[0].mxu0 %v402
      %v604 = vpop.f32.mrb[0].mxu0
      %v605 = vadd.f32 0.0, %v604
      %v606 = vpop.f32.mrb[0].mxu0
      %v607 = vpop.f32.mrb[0].mxu0
      %v608 = vadd.f32 0.0, %v607
      %v609 = vpop.f32.mrb[0].mxu0
      %610 = vmatprep.mubr.bf16.mxu0 0
      %611 = vmatmul.mubr.bf16.gmra.mrb[0].mxu0 %v403
      %v612 = vpop.f32.mrb[0].mxu0
      %v613 = vadd.f32 0.0, %v612
      %v614 = vpop.f32.mrb[0].mxu0
      %v615 = vpop.f32.mrb[0].mxu0
      %v616 = vadd.f32 0.0, %v615
      %v617 = vpop.f32.mrb[0].mxu0
      %618 = vmatprep.mubr.bf16.mxu0 0
      %619 = vmatmul.mubr.bf16.gmra.mrb[0].mxu0 %v404
      %v620 = vpop.f32.mrb[0].mxu0
      %v621 = vadd.f32 0.0, %v620
      %v622 = vpop.f32.mrb[0].mxu0
      %v623 = vpop.f32.mrb[0].mxu0
      %v624 = vadd.f32 0.0, %v623
      %v625 = vpop.f32.mrb[0].mxu0
      %626 = vmatprep.mubr.bf16.mxu0 0
      %627 = vmatmul.mubr.bf16.gmra.mrb[0].mxu0 %v405
      %v628 = vpop.f32.mrb[0].mxu0
      %v629 = vadd.f32 0.0, %v628
      %v630 = vpop.f32.mrb[0].mxu0
      %v631 = vpop.f32.mrb[0].mxu0
      %v632 = vadd.f32 0.0, %v631
      %v633 = vpop.f32.mrb[0].mxu0
      %634 = vmatprep.mubr.bf16.mxu0 0
      %635 = vmatmul.mubr.bf16.gmra.mrb[0].mxu0 %v406
      %v636 = vpop.f32.mrb[0].mxu0
      %v637 = vadd.f32 0.0, %v636
      %v638 = vpop.f32.mrb[0].mxu0
      %v639 = vpop.f32.mrb[0].mxu0
      %v640 = vadd.f32 0.0, %v639
      %v641 = vpop.f32.mrb[0].mxu0
      %642 = vmatprep.mubr.bf16.mxu0 0
      %643 = vmatmul.mubr.bf16.gmra.mrb[0].mxu0 %v407
      %v644 = vpop.f32.mrb[0].mxu0
      %v645 = vadd.f32 0.0, %v644
      %v646 = vpop.f32.mrb[0].mxu0
      %v647 = vpop.f32.mrb[0].mxu0
      %v648 = vadd.f32 0.0, %v647
      %v649 = vpop.f32.mrb[0].mxu0
      %650 = vmatprep.mubr.bf16.mxu0 0
      %651 = vmatmul.mubr.bf16.gmra.mrb[0].mxu0 %v408
      %v652 = vpop.f32.mrb[0].mxu0
      %v653 = vadd.f32 0.0, %v652
      %v654 = vpop.f32.mrb[0].mxu0
      %v655 = vpop.f32.mrb[0].mxu0
      %v656 = vadd.f32 0.0, %v655
      %v657 = vpop.f32.mrb[0].mxu0
      %658 = vmatprep.mubr.bf16.mxu0 0
      %659 = vmatmul.mubr.bf16.gmra.mrb[0].mxu0 %v409
      %v660 = vpop.f32.mrb[0].mxu0
      %v661 = vadd.f32 0.0, %v660
      %v662 = vpop.f32.mrb[0].mxu0
      %v663 = vpop.f32.mrb[0].mxu0
      %v664 = vadd.f32 0.0, %v663
      %v665 = vpop.f32.mrb[0].mxu0
      %666 = vmatprep.mubr.bf16.mxu0 0
      %667 = vmatmul.mubr.bf16.gmra.mrb[0].mxu0 %v410
      %v668 = vpop.f32.mrb[0].mxu0
      %v669 = vadd.f32 0.0, %v668
      %v670 = vpop.f32.mrb[0].mxu0
      %v671 = vpop.f32.mrb[0].mxu0
      %v672 = vadd.f32 0.0, %v671
      %v673 = vpop.f32.mrb[0].mxu0
      %674 = vmatprep.mubr.bf16.mxu0 0
      %675 = vmatmul.mubr.bf16.gmra.mrb[0].mxu0 %v411
      %v676 = vpop.f32.mrb[0].mxu0
      %v677 = vadd.f32 0.0, %v676
      %v678 = vpop.f32.mrb[0].mxu0
      %v679 = vpop.f32.mrb[0].mxu0
      %v680 = vadd.f32 0.0, %v679
      %v681 = vpop.f32.mrb[0].mxu0
      %682 = vmatprep.mubr.bf16.mxu0 0
      %683 = vmatmul.mubr.bf16.gmra.mrb[0].mxu0 %v412
      %v684 = vpop.f32.mrb[0].mxu0
      %v685 = vadd.f32 0.0, %v684
      %v686 = vpop.f32.mrb[0].mxu0
      %v687 = vpop.f32.mrb[0].mxu0
      %v688 = vadd.f32 0.0, %v687
      %v689 = vpop.f32.mrb[0].mxu0
      %690 = vmatprep.mubr.bf16.mxu0 0
      %691 = vmatmul.mubr.bf16.gmra.mrb[0].mxu0 %v413
      %v692 = vpop.f32.mrb[0].mxu0
      %v693 = vadd.f32 0.0, %v692
      %v694 = vpop.f32.mrb[0].mxu0
      %v695 = vpop.f32.mrb[0].mxu0
      %v696 = vadd.f32 0.0, %v695
      %v697 = vpop.f32.mrb[0].mxu0
      %698 = vmatprep.mubr.bf16.mxu0 0
      %699 = vmatmul.mubr.bf16.gmra.mrb[0].mxu0 %v414
      %v700 = vpop.f32.mrb[0].mxu0
      %v701 = vadd.f32 0.0, %v700
      %v702 = vpop.f32.mrb[0].mxu0
      %v703 = vpop.f32.mrb[0].mxu0
      %v704 = vadd.f32 0.0, %v703
      %v705 = vpop.f32.mrb[0].mxu0
      %706 = vmatprep.mubr.bf16.mxu0 0
      %707 = vmatmul.mubr.bf16.gmra.mrb[0].mxu0 %v415
      %v708 = vpop.f32.mrb[0].mxu0
      %v709 = vadd.f32 0.0, %v708
      %v710 = vpop.f32.mrb[0].mxu0
      %v711 = vpop.f32.mrb[0].mxu0
      %v712 = vadd.f32 0.0, %v711
      %v713 = vpop.f32.mrb[0].mxu0
      %714 = vmatprep.mubr.bf16.mxu0 0
      %715 = vmatmul.mubr.bf16.gmra.mrb[0].mxu0 %v416
      %v716 = vpop.f32.mrb[0].mxu0
      %v717 = vadd.f32 0.0, %v716
      %v718 = vpop.f32.mrb[0].mxu0
      %v719 = vpop.f32.mrb[0].mxu0
      %v720 = vadd.f32 0.0, %v719
      %v721 = vpop.f32.mrb[0].mxu0
      %722 = vmatprep.mubr.bf16.mxu0 0
      %723 = vmatmul.mubr.bf16.gmra.mrb[0].mxu0 %v417
      %v724 = vpop.f32.mrb[0].mxu0
      %v725 = vadd.f32 0.0, %v724
      %v726 = vpop.f32.mrb[0].mxu0
      %v727 = vpop.f32.mrb[0].mxu0
      %v728 = vadd.f32 0.0, %v727
      %v729 = vpop.f32.mrb[0].mxu0
      %730 = vmatprep.mubr.bf16.mxu0 0
      %731 = vmatmul.mubr.bf16.gmra.mrb[0].mxu0 %v418
      %v732 = vpop.f32.mrb[0].mxu0
      %v733 = vadd.f32 0.0, %v732
      %v734 = vpop.f32.mrb[0].mxu0
      %v735 = vpop.f32.mrb[0].mxu0
      %v736 = vadd.f32 0.0, %v735
      %v737 = vpop.f32.mrb[0].mxu0
      %738 = vmatprep.mubr.bf16.mxu0 0
      %739 = vmatmul.mubr.bf16.gmra.mrb[0].mxu0 %v419
      %v740 = vpop.f32.mrb[0].mxu0
      %v741 = vadd.f32 0.0, %v740
      %v742 = vpop.f32.mrb[0].mxu0
      %v743 = vpop.f32.mrb[0].mxu0
      %v744 = vadd.f32 0.0, %v743
      %v745 = vpop.f32.mrb[0].mxu0
      %746 = vmatprep.mubr.bf16.mxu0 0
      %747 = vmatmul.mubr.bf16.gmra.mrb[0].mxu0 %v420
      %v748 = vpop.f32.mrb[0].mxu0
      %v749 = vadd.f32 0.0, %v748
      %v750 = vpop.f32.mrb[0].mxu0
      %v751 = vpop.f32.mrb[0].mxu0
      %v752 = vadd.f32 0.0, %v751
      %v753 = vpop.f32.mrb[0].mxu0
      %754 = vmatprep.mubr.bf16.mxu0 0
      %755 = vmatmul.mubr.bf16.gmra.mrb[0].mxu0 %v421
      %v756 = vpop.f32.mrb[0].mxu0
      %v757 = vadd.f32 0.0, %v756
      %v758 = vpop.f32.mrb[0].mxu0
      %v759 = vpop.f32.mrb[0].mxu0
      %v760 = vadd.f32 0.0, %v759
      %v761 = vpop.f32.mrb[0].mxu0
      %762 = vmatprep.mubr.bf16.mxu0 0
      %763 = vmatmul.mubr.bf16.gmra.mrb[0].mxu0 %v422
      %v764 = vpop.f32.mrb[0].mxu0
      %v765 = vadd.f32 0.0, %v764
      %v766 = vpop.f32.mrb[0].mxu0
      %v767 = vpop.f32.mrb[0].mxu0
      %v768 = vadd.f32 0.0, %v767
      %v769 = vpop.f32.mrb[0].mxu0
      %770 = vmatprep.mubr.bf16.mxu0 0
      %771 = vmatmul.mubr.bf16.gmra.mrb[0].mxu0 %v423
      %v772 = vpop.f32.mrb[0].mxu0
      %v773 = vadd.f32 0.0, %v772
      %v774 = vpop.f32.mrb[0].mxu0
      %v775 = vpop.f32.mrb[0].mxu0
      %v776 = vadd.f32 0.0, %v775
      %v777 = vpop.f32.mrb[0].mxu0
      %778 = vmatprep.mubr.bf16.mxu0 0
      %779 = vmatmul.mubr.bf16.gmra.mrb[0].mxu0 %v424
      %v780 = vpop.f32.mrb[0].mxu0
      %v781 = vadd.f32 0.0, %v780
      %v782 = vpop.f32.mrb[0].mxu0
      %v783 = vpop.f32.mrb[0].mxu0
      %v784 = vadd.f32 0.0, %v783
      %v785 = vpop.f32.mrb[0].mxu0
      %786 = vmatprep.mubr.bf16.mxu0 0
      %787 = vmatmul.mubr.bf16.gmra.mrb[0].mxu0 %v425
      %v788 = vpop.f32.mrb[0].mxu0
      %v789 = vadd.f32 0.0, %v788
      %v790 = vpop.f32.mrb[0].mxu0
      %v791 = vpop.f32.mrb[0].mxu0
      %v792 = vadd.f32 0.0, %v791
      %v793 = vpop.f32.mrb[0].mxu0
      %794 = vdwg.mxu0
      %s795 = smul.u32 %s15, 512
      %s796 = scalar_lea.vmem [#allocation2], %s795
      %797 = vst [vmem:[%s796] sm:$0xff] %v541
      %798 = vst [vmem:[%s796 + $0x8] sm:$0xff] %v544
      %799 = vst [vmem:[%s796 + $0x10] sm:$0xff] %v549
      %800 = vst [vmem:[%s796 + $0x18] sm:$0xff] %v552
      %801 = vst [vmem:[%s796 + $0x20] sm:$0xff] %v557
      %802 = vst [vmem:[%s796 + $0x28] sm:$0xff] %v560
      %803 = vst [vmem:[%s796 + $0x30] sm:$0xff] %v565
      %804 = vst [vmem:[%s796 + $0x38] sm:$0xff] %v568
      %805 = vst [vmem:[%s796 + $0x40] sm:$0xff] %v573
      %806 = vst [vmem:[%s796 + $0x48] sm:$0xff] %v576
      %807 = vst [vmem:[%s796 + $0x50] sm:$0xff] %v581
      %808 = vst [vmem:[%s796 + $0x58] sm:$0xff] %v584
      %809 = vst [vmem:[%s796 + $0x60] sm:$0xff] %v589
      %810 = vst [vmem:[%s796 + $0x68] sm:$0xff] %v592
      %811 = vst [vmem:[%s796 + $0x70] sm:$0xff] %v597
      %812 = vst [vmem:[%s796 + $0x78] sm:$0xff] %v600
      %813 = vst [vmem:[%s796 + $0x80] sm:$0xff] %v605
      %814 = vst [vmem:[%s796 + $0x88] sm:$0xff] %v608
      %815 = vst [vmem:[%s796 + $0x90] sm:$0xff] %v613
      %816 = vst [vmem:[%s796 + $0x98] sm:$0xff] %v616
      %817 = vst [vmem:[%s796 + $0xa0] sm:$0xff] %v621
      %818 = vst [vmem:[%s796 + $0xa8] sm:$0xff] %v624
      %819 = vst [vmem:[%s796 + $0xb0] sm:$0xff] %v629
      %820 = vst [vmem:[%s796 + $0xb8] sm:$0xff] %v632
      %821 = vst [vmem:[%s796 + $0xc0] sm:$0xff] %v637
      %822 = vst [vmem:[%s796 + $0xc8] sm:$0xff] %v640
      %823 = vst [vmem:[%s796 + $0xd0] sm:$0xff] %v645
      %824 = vst [vmem:[%s796 + $0xd8] sm:$0xff] %v648
      %825 = vst [vmem:[%s796 + $0xe0] sm:$0xff] %v653
      %826 = vst [vmem:[%s796 + $0xe8] sm:$0xff] %v656
      %827 = vst [vmem:[%s796 + $0xf0] sm:$0xff] %v661
      %828 = vst [vmem:[%s796 + $0xf8] sm:$0xff] %v664
      %829 = vst [vmem:[%s796 + $0x100] sm:$0xff] %v669
      %830 = vst [vmem:[%s796 + $0x108] sm:$0xff] %v672
      %831 = vst [vmem:[%s796 + $0x110] sm:$0xff] %v677
      %832 = vst [vmem:[%s796 + $0x118] sm:$0xff] %v680
      %833 = vst [vmem:[%s796 + $0x120] sm:$0xff] %v685
      %834 = vst [vmem:[%s796 + $0x128] sm:$0xff] %v688
      %835 = vst [vmem:[%s796 + $0x130] sm:$0xff] %v693
      %836 = vst [vmem:[%s796 + $0x138] sm:$0xff] %v696
      %837 = vst [vmem:[%s796 + $0x140] sm:$0xff] %v701
      %838 = vst [vmem:[%s796 + $0x148] sm:$0xff] %v704
      %839 = vst [vmem:[%s796 + $0x150] sm:$0xff] %v709
      %840 = vst [vmem:[%s796 + $0x158] sm:$0xff] %v712
      %841 = vst [vmem:[%s796 + $0x160] sm:$0xff] %v717
      %842 = vst [vmem:[%s796 + $0x168] sm:$0xff] %v720
      %843 = vst [vmem:[%s796 + $0x170] sm:$0xff] %v725
      %844 = vst [vmem:[%s796 + $0x178] sm:$0xff] %v728
      %845 = vst [vmem:[%s796 + $0x180] sm:$0xff] %v733
      %846 = vst [vmem:[%s796 + $0x188] sm:$0xff] %v736
      %847 = vst [vmem:[%s796 + $0x190] sm:$0xff] %v741
      %848 = vst [vmem:[%s796 + $0x198] sm:$0xff] %v744
      %849 = vst [vmem:[%s796 + $0x1a0] sm:$0xff] %v749
      %850 = vst [vmem:[%s796 + $0x1a8] sm:$0xff] %v752
      %851 = vst [vmem:[%s796 + $0x1b0] sm:$0xff] %v757
      %852 = vst [vmem:[%s796 + $0x1b8] sm:$0xff] %v760
      %853 = vst [vmem:[%s796 + $0x1c0] sm:$0xff] %v765
      %854 = vst [vmem:[%s796 + $0x1c8] sm:$0xff] %v768
      %855 = vst [vmem:[%s796 + $0x1d0] sm:$0xff] %v773
      %856 = vst [vmem:[%s796 + $0x1d8] sm:$0xff] %v776
      %857 = vst [vmem:[%s796 + $0x1e0] sm:$0xff] %v781
      %858 = vst [vmem:[%s796 + $0x1e8] sm:$0xff] %v784
      %859 = vst [vmem:[%s796 + $0x1f0] sm:$0xff] %v789
      %860 = vst [vmem:[%s796 + $0x1f8] sm:$0xff] %v792
      %p861 = scmp.eq.s32.totalorder %s15, 0
      // Predicated region
      $region37: #{_lambda_.7} parent=35 // pred_check
        %p862 = pneg %p861
      $region38: #{_lambda_.7} parent=35 // pred_check_branch
        %864 = sbr.rel (%p862) target = $region40
      $region39: #{_lambda_.7} parent=35 // pred_region
        %865 = vst [vmem:[#allocation3] sm:$0x1] 0.0
        %866 = vst [vmem:[#allocation4] sm:$0x1] 0.0
      $region40: #{_lambda_.7} parent=35 // pred_fallthru
        _
      %v867 = vld [vmem:[#allocation3] sm:$0x1]
      %v868 = vadd.f32 %v541, %v544
      %v869 = vadd.f32 %v868, %v549
      %v870 = vadd.f32 %v869, %v552
      %v871 = vadd.f32 %v870, %v557
      %v872 = vadd.f32 %v871, %v560
      %v873 = vadd.f32 %v872, %v565
      %v874 = vadd.f32 %v873, %v568
      %v875 = vadd.f32 %v874, %v573
      %v876 = vadd.f32 %v875, %v576
      %v877 = vadd.f32 %v876, %v581
      %v878 = vadd.f32 %v877, %v584
      %v879 = vadd.f32 %v878, %v589
      %v880 = vadd.f32 %v879, %v592
      %v881 = vadd.f32 %v880, %v597
      %v882 = vadd.f32 %v881, %v600
      %v883 = vadd.f32 %v882, %v605
      %v884 = vadd.f32 %v883, %v608
      %v885 = vadd.f32 %v884, %v613
      %v886 = vadd.f32 %v885, %v616
      %v887 = vadd.f32 %v886, %v621
      %v888 = vadd.f32 %v887, %v624
      %v889 = vadd.f32 %v888, %v629
      %v890 = vadd.f32 %v889, %v632
      %v891 = vadd.f32 %v890, %v637
      %v892 = vadd.f32 %v891, %v640
      %v893 = vadd.f32 %v892, %v645
      %v894 = vadd.f32 %v893, %v648
      %v895 = vadd.f32 %v894, %v653
      %v896 = vadd.f32 %v895, %v656
      %v897 = vadd.f32 %v896, %v661
      %v898 = vadd.f32 %v897, %v664
      %v899 = vadd.f32 %v898, %v669
      %v900 = vadd.f32 %v899, %v672
      %v901 = vadd.f32 %v900, %v677
      %v902 = vadd.f32 %v901, %v680
      %v903 = vadd.f32 %v902, %v685
      %v904 = vadd.f32 %v903, %v688
      %v905 = vadd.f32 %v904, %v693
      %v906 = vadd.f32 %v905, %v696
      %v907 = vadd.f32 %v906, %v701
      %v908 = vadd.f32 %v907, %v704
      %v909 = vadd.f32 %v908, %v709
      %v910 = vadd.f32 %v909, %v712
      %v911 = vadd.f32 %v910, %v717
      %v912 = vadd.f32 %v911, %v720
      %v913 = vadd.f32 %v912, %v725
      %v914 = vadd.f32 %v913, %v728
      %v915 = vadd.f32 %v914, %v733
      %v916 = vadd.f32 %v915, %v736
      %v917 = vadd.f32 %v916, %v741
      %v918 = vadd.f32 %v917, %v744
      %v919 = vadd.f32 %v918, %v749
      %v920 = vadd.f32 %v919, %v752
      %v921 = vadd.f32 %v920, %v757
      %v922 = vadd.f32 %v921, %v760
      %v923 = vadd.f32 %v922, %v765
      %v924 = vadd.f32 %v923, %v768
      %v925 = vadd.f32 %v924, %v773
      %v926 = vadd.f32 %v925, %v776
      %v927 = vadd.f32 %v926, %v781
      %v928 = vadd.f32 %v927, %v784
      %v929 = vadd.f32 %v928, %v789
      %v930 = vadd.f32 %v929, %v792
      %v931 = vrot.slane %v930, 4
      %v932 = vadd.f32 %v930, %v931
      %v933 = vrot.slane %v932, 2
      %v934 = vadd.f32 %v932, %v933
      %v935 = vrot.slane %v934, 1
      %v936 = vadd.f32 %v934, %v935
      %v937 = vadd.f32 %v867, %v936
      %938 = vst [vmem:[#allocation3] sm:$0x1] %v937
      %v939 = vld [vmem:[#allocation4] sm:$0x1]
      %v940 = vmul.f32 %v541, %v541
      %v941 = vmul.f32 %v544, %v544
      %v942 = vmul.f32 %v549, %v549
      %v943 = vmul.f32 %v552, %v552
      %v944 = vmul.f32 %v557, %v557
      %v945 = vmul.f32 %v560, %v560
      %v946 = vmul.f32 %v565, %v565
      %v947 = vmul.f32 %v568, %v568
      %v948 = vmul.f32 %v573, %v573
      %v949 = vmul.f32 %v576, %v576
      %v950 = vmul.f32 %v581, %v581
      %v951 = vmul.f32 %v584, %v584
      %v952 = vmul.f32 %v589, %v589
      %v953 = vmul.f32 %v592, %v592
      %v954 = vmul.f32 %v597, %v597
      %v955 = vmul.f32 %v600, %v600
      %v956 = vmul.f32 %v605, %v605
      %v957 = vmul.f32 %v608, %v608
      %v958 = vmul.f32 %v613, %v613
      %v959 = vmul.f32 %v616, %v616
      %v960 = vmul.f32 %v621, %v621
      %v961 = vmul.f32 %v624, %v624
      %v962 = vmul.f32 %v629, %v629
      %v963 = vmul.f32 %v632, %v632
      %v964 = vmul.f32 %v637, %v637
      %v965 = vmul.f32 %v640, %v640
      %v966 = vmul.f32 %v645, %v645
      %v967 = vmul.f32 %v648, %v648
      %v968 = vmul.f32 %v653, %v653
      %v969 = vmul.f32 %v656, %v656
      %v970 = vmul.f32 %v661, %v661
      %v971 = vmul.f32 %v664, %v664
      %v972 = vmul.f32 %v669, %v669
      %v973 = vmul.f32 %v672, %v672
      %v974 = vmul.f32 %v677, %v677
      %v975 = vmul.f32 %v680, %v680
      %v976 = vmul.f32 %v685, %v685
      %v977 = vmul.f32 %v688, %v688
      %v978 = vmul.f32 %v693, %v693
      %v979 = vmul.f32 %v696, %v696
      %v980 = vmul.f32 %v701, %v701
      %v981 = vmul.f32 %v704, %v704
      %v982 = vmul.f32 %v709, %v709
      %v983 = vmul.f32 %v712, %v712
      %v984 = vmul.f32 %v717, %v717
      %v985 = vmul.f32 %v720, %v720
      %v986 = vmul.f32 %v725, %v725
      %v987 = vmul.f32 %v728, %v728
      %v988 = vmul.f32 %v733, %v733
      %v989 = vmul.f32 %v736, %v736
      %v990 = vmul.f32 %v741, %v741
      %v991 = vmul.f32 %v744, %v744
      %v992 = vmul.f32 %v749, %v749
      %v993 = vmul.f32 %v752, %v752
      %v994 = vmul.f32 %v757, %v757
      %v995 = vmul.f32 %v760, %v760
      %v996 = vmul.f32 %v765, %v765
      %v997 = vmul.f32 %v768, %v768
      %v998 = vmul.f32 %v773, %v773
      %v999 = vmul.f32 %v776, %v776
      %v1000 = vmul.f32 %v781, %v781
      %v1001 = vmul.f32 %v784, %v784
      %v1002 = vmul.f32 %v789, %v789
      %v1003 = vmul.f32 %v792, %v792
      %v1004 = vadd.f32 %v940, %v941
      %v1005 = vadd.f32 %v1004, %v942
      %v1006 = vadd.f32 %v1005, %v943
      %v1007 = vadd.f32 %v1006, %v944
      %v1008 = vadd.f32 %v1007, %v945
      %v1009 = vadd.f32 %v1008, %v946
      %v1010 = vadd.f32 %v1009, %v947
      %v1011 = vadd.f32 %v1010, %v948
      %v1012 = vadd.f32 %v1011, %v949
      %v1013 = vadd.f32 %v1012, %v950
      %v1014 = vadd.f32 %v1013, %v951
      %v1015 = vadd.f32 %v1014, %v952
      %v1016 = vadd.f32 %v1015, %v953
      %v1017 = vadd.f32 %v1016, %v954
      %v1018 = vadd.f32 %v1017, %v955
      %v1019 = vadd.f32 %v1018, %v956
      %v1020 = vadd.f32 %v1019, %v957
      %v1021 = vadd.f32 %v1020, %v958
      %v1022 = vadd.f32 %v1021, %v959
      %v1023 = vadd.f32 %v1022, %v960
      %v1024 = vadd.f32 %v1023, %v961
      %v1025 = vadd.f32 %v1024, %v962
      %v1026 = vadd.f32 %v1025, %v963
      %v1027 = vadd.f32 %v1026, %v964
      %v1028 = vadd.f32 %v1027, %v965
      %v1029 = vadd.f32 %v1028, %v966
      %v1030 = vadd.f32 %v1029, %v967
      %v1031 = vadd.f32 %v1030, %v968
      %v1032 = vadd.f32 %v1031, %v969
      %v1033 = vadd.f32 %v1032, %v970
      %v1034 = vadd.f32 %v1033, %v971
      %v1035 = vadd.f32 %v1034, %v972
      %v1036 = vadd.f32 %v1035, %v973
      %v1037 = vadd.f32 %v1036, %v974
      %v1038 = vadd.f32 %v1037, %v975
      %v1039 = vadd.f32 %v1038, %v976
      %v1040 = vadd.f32 %v1039, %v977
      %v1041 = vadd.f32 %v1040, %v978
      %v1042 = vadd.f32 %v1041, %v979
      %v1043 = vadd.f32 %v1042, %v980
      %v1044 = vadd.f32 %v1043, %v981
      %v1045 = vadd.f32 %v1044, %v982
      %v1046 = vadd.f32 %v1045, %v983
      %v1047 = vadd.f32 %v1046, %v984
      %v1048 = vadd.f32 %v1047, %v985
      %v1049 = vadd.f32 %v1048, %v986
      %v1050 = vadd.f32 %v1049, %v987
      %v1051 = vadd.f32 %v1050, %v988
      %v1052 = vadd.f32 %v1051, %v989
      %v1053 = vadd.f32 %v1052, %v990
      %v1054 = vadd.f32 %v1053, %v991
      %v1055 = vadd.f32 %v1054, %v992
      %v1056 = vadd.f32 %v1055, %v993
      %v1057 = vadd.f32 %v1056, %v994
      %v1058 = vadd.f32 %v1057, %v995
      %v1059 = vadd.f32 %v1058, %v996
      %v1060 = vadd.f32 %v1059, %v997
      %v1061 = vadd.f32 %v1060, %v998
      %v1062 = vadd.f32 %v1061, %v999
      %v1063 = vadd.f32 %v1062, %v1000
      %v1064 = vadd.f32 %v1063, %v1001
      %v1065 = vadd.f32 %v1064, %v1002
      %v1066 = vadd.f32 %v1065, %v1003
      %v1067 = vrot.slane %v1066, 4
      %v1068 = vadd.f32 %v1066, %v1067
      %v1069 = vrot.slane %v1068, 2
      %v1070 = vadd.f32 %v1068, %v1069
      %v1071 = vrot.slane %v1070, 1
      %v1072 = vadd.f32 %v1070, %v1071
      %v1073 = vadd.f32 %v939, %v1072
      %1074 = vst [vmem:[#allocation4] sm:$0x1] %v1073
      %p1075 = scmp.eq.s32.totalorder %s15, 3
      // Predicated region
      $region41: #{_lambda_.7} parent=35 // pred_check
        %p1076 = pneg %p1075
      $region42: #{_lambda_.7} parent=35 // pred_check_branch
        %1078 = sbr.rel (%p1076) target = $region44
      $region43: #{_lambda_.7} parent=35 // pred_region
        %v1079 = vld [vmem:[#allocation3] sm:$0x1]
        %v1080 = vmul.f32 %v1079, 0.00048828125
        %v1081 = vld [vmem:[#allocation4] sm:$0x1]
        %v1082 = vmul.f32 %v1081, 0.00048828125
        %v1083 = vmul.f32 %v1080, %v1080
        %v1084 = vsub.f32 %v1082, %v1083
        %v1085 = vmax.f32 %v1084, 0.0
        %v1086 = vld [vmem:[%s2] sm:$0x1]
        %v1087 = vadd.f32 %v1085, 1e-05
        %v1088 = vrsqrt.pop %v1087
        %v1089 = vmul.f32 %v1086, %v1088
        %v1090 = vld [vmem:[%s3] sm:$0x1]
        %v1091 = vmul.f32 %v1080, %v1089
        %v1092 = vsub.f32 %v1090, %v1091
        %v1093 = vld [vmem:[#allocation2] sm:$0xff]
        %v1094 = vld [vmem:[#allocation2 + $0x8] sm:$0xff]
        %v1095 = vld [vmem:[#allocation2 + $0x10] sm:$0xff]
        %v1096 = vld [vmem:[#allocation2 + $0x18] sm:$0xff]
        %v1097 = vld [vmem:[#allocation2 + $0x20] sm:$0xff]
        %v1098 = vld [vmem:[#allocation2 + $0x28] sm:$0xff]
        %v1099 = vld [vmem:[#allocation2 + $0x30] sm:$0xff]
        %v1100 = vld [vmem:[#allocation2 + $0x38] sm:$0xff]
        %v1101 = vld [vmem:[#allocation2 + $0x40] sm:$0xff]
        %v1102 = vld [vmem:[#allocation2 + $0x48] sm:$0xff]
        %v1103 = vld [vmem:[#allocation2 + $0x50] sm:$0xff]
        %v1104 = vld [vmem:[#allocation2 + $0x58] sm:$0xff]
        %v1105 = vld [vmem:[#allocation2 + $0x60] sm:$0xff]
        %v1106 = vld [vmem:[#allocation2 + $0x68] sm:$0xff]
        %v1107 = vld [vmem:[#allocation2 + $0x70] sm:$0xff]
        %v1108 = vld [vmem:[#allocation2 + $0x78] sm:$0xff]
        %v1109 = vld [vmem:[#allocation2 + $0x80] sm:$0xff]
        %v1110 = vld [vmem:[#allocation2 + $0x88] sm:$0xff]
        %v1111 = vld [vmem:[#allocation2 + $0x90] sm:$0xff]
        %v1112 = vld [vmem:[#allocation2 + $0x98] sm:$0xff]
        %v1113 = vld [vmem:[#allocation2 + $0xa0] sm:$0xff]
        %v1114 = vld [vmem:[#allocation2 + $0xa8] sm:$0xff]
        %v1115 = vld [vmem:[#allocation2 + $0xb0] sm:$0xff]
        %v1116 = vld [vmem:[#allocation2 + $0xb8] sm:$0xff]
        %v1117 = vld [vmem:[#allocation2 + $0xc0] sm:$0xff]
        %v1118 = vld [vmem:[#allocation2 + $0xc8] sm:$0xff]
        %v1119 = vld [vmem:[#allocation2 + $0xd0] sm:$0xff]
        %v1120 = vld [vmem:[#allocation2 + $0xd8] sm:$0xff]
        %v1121 = vld [vmem:[#allocation2 + $0xe0] sm:$0xff]
        %v1122 = vld [vmem:[#allocation2 + $0xe8] sm:$0xff]
        %v1123 = vld [vmem:[#allocation2 + $0xf0] sm:$0xff]
        %v1124 = vld [vmem:[#allocation2 + $0xf8] sm:$0xff]
        %v1125 = vld [vmem:[#allocation2 + $0x100] sm:$0xff]
        %v1126 = vld [vmem:[#allocation2 + $0x108] sm:$0xff]
        %v1127 = vld [vmem:[#allocation2 + $0x110] sm:$0xff]
        %v1128 = vld [vmem:[#allocation2 + $0x118] sm:$0xff]
        %v1129 = vld [vmem:[#allocation2 + $0x120] sm:$0xff]
        %v1130 = vld [vmem:[#allocation2 + $0x128] sm:$0xff]
        %v1131 = vld [vmem:[#allocation2 + $0x130] sm:$0xff]
        %v1132 = vld [vmem:[#allocation2 + $0x138] sm:$0xff]
        %v1133 = vld [vmem:[#allocation2 + $0x140] sm:$0xff]
        %v1134 = vld [vmem:[#allocation2 + $0x148] sm:$0xff]
        %v1135 = vld [vmem:[#allocation2 + $0x150] sm:$0xff]
        %v1136 = vld [vmem:[#allocation2 + $0x158] sm:$0xff]
        %v1137 = vld [vmem:[#allocation2 + $0x160] sm:$0xff]
        %v1138 = vld [vmem:[#allocation2 + $0x168] sm:$0xff]
        %v1139 = vld [vmem:[#allocation2 + $0x170] sm:$0xff]
        %v1140 = vld [vmem:[#allocation2 + $0x178] sm:$0xff]
        %v1141 = vld [vmem:[#allocation2 + $0x180] sm:$0xff]
        %v1142 = vld [vmem:[#allocation2 + $0x188] sm:$0xff]
        %v1143 = vld [vmem:[#allocation2 + $0x190] sm:$0xff]
        %v1144 = vld [vmem:[#allocation2 + $0x198] sm:$0xff]
        %v1145 = vld [vmem:[#allocation2 + $0x1a0] sm:$0xff]
        %v1146 = vld [vmem:[#allocation2 + $0x1a8] sm:$0xff]
        %v1147 = vld [vmem:[#allocation2 + $0x1b0] sm:$0xff]
        %v1148 = vld [vmem:[#allocation2 + $0x1b8] sm:$0xff]
        %v1149 = vld [vmem:[#allocation2 + $0x1c0] sm:$0xff]
        %v1150 = vld [vmem:[#allocation2 + $0x1c8] sm:$0xff]
        %v1151 = vld [vmem:[#allocation2 + $0x1d0] sm:$0xff]
        %v1152 = vld [vmem:[#allocation2 + $0x1d8] sm:$0xff]
        %v1153 = vld [vmem:[#allocation2 + $0x1e0] sm:$0xff]
        %v1154 = vld [vmem:[#allocation2 + $0x1e8] sm:$0xff]
        %v1155 = vld [vmem:[#allocation2 + $0x1f0] sm:$0xff]
        %v1156 = vld [vmem:[#allocation2 + $0x1f8] sm:$0xff]
        %v1158 = vlaneseq
        %v1159 = vshrl.u32 %v1158, 7
        %v1160 = vsub.s32 0, %v1159
        %v1161 = vrot.slane %v1089, %v1160
        %v1163 = vmul.f32 %v1093, %v1161
        %v1164 = vmul.f32 %v1094, %v1161
        %v1165 = vmul.f32 %v1095, %v1161
        %v1166 = vmul.f32 %v1096, %v1161
        %v1167 = vmul.f32 %v1097, %v1161
        %v1168 = vmul.f32 %v1098, %v1161
        %v1169 = vmul.f32 %v1099, %v1161
        %v1170 = vmul.f32 %v1100, %v1161
        %v1171 = vmul.f32 %v1101, %v1161
        %v1172 = vmul.f32 %v1102, %v1161
        %v1173 = vmul.f32 %v1103, %v1161
        %v1174 = vmul.f32 %v1104, %v1161
        %v1175 = vmul.f32 %v1105, %v1161
        %v1176 = vmul.f32 %v1106, %v1161
        %v1177 = vmul.f32 %v1107, %v1161
        %v1178 = vmul.f32 %v1108, %v1161
        %v1179 = vmul.f32 %v1109, %v1161
        %v1180 = vmul.f32 %v1110, %v1161
        %v1181 = vmul.f32 %v1111, %v1161
        %v1182 = vmul.f32 %v1112, %v1161
        %v1183 = vmul.f32 %v1113, %v1161
        %v1184 = vmul.f32 %v1114, %v1161
        %v1185 = vmul.f32 %v1115, %v1161
        %v1186 = vmul.f32 %v1116, %v1161
        %v1187 = vmul.f32 %v1117, %v1161
        %v1188 = vmul.f32 %v1118, %v1161
        %v1189 = vmul.f32 %v1119, %v1161
        %v1190 = vmul.f32 %v1120, %v1161
        %v1191 = vmul.f32 %v1121, %v1161
        %v1192 = vmul.f32 %v1122, %v1161
        %v1193 = vmul.f32 %v1123, %v1161
        %v1194 = vmul.f32 %v1124, %v1161
        %v1195 = vmul.f32 %v1125, %v1161
        %v1196 = vmul.f32 %v1126, %v1161
        %v1197 = vmul.f32 %v1127, %v1161
        %v1198 = vmul.f32 %v1128, %v1161
        %v1199 = vmul.f32 %v1129, %v1161
        %v1200 = vmul.f32 %v1130, %v1161
        %v1201 = vmul.f32 %v1131, %v1161
        %v1202 = vmul.f32 %v1132, %v1161
        %v1203 = vmul.f32 %v1133, %v1161
        %v1204 = vmul.f32 %v1134, %v1161
        %v1205 = vmul.f32 %v1135, %v1161
        %v1206 = vmul.f32 %v1136, %v1161
        %v1207 = vmul.f32 %v1137, %v1161
        %v1208 = vmul.f32 %v1138, %v1161
        %v1209 = vmul.f32 %v1139, %v1161
        %v1210 = vmul.f32 %v1140, %v1161
        %v1211 = vmul.f32 %v1141, %v1161
        %v1212 = vmul.f32 %v1142, %v1161
        %v1213 = vmul.f32 %v1143, %v1161
        %v1214 = vmul.f32 %v1144, %v1161
        %v1215 = vmul.f32 %v1145, %v1161
        %v1216 = vmul.f32 %v1146, %v1161
        %v1217 = vmul.f32 %v1147, %v1161
        %v1218 = vmul.f32 %v1148, %v1161
        %v1219 = vmul.f32 %v1149, %v1161
        %v1220 = vmul.f32 %v1150, %v1161
        %v1221 = vmul.f32 %v1151, %v1161
        %v1222 = vmul.f32 %v1152, %v1161
        %v1223 = vmul.f32 %v1153, %v1161
        %v1224 = vmul.f32 %v1154, %v1161
        %v1225 = vmul.f32 %v1155, %v1161
        %v1226 = vmul.f32 %v1156, %v1161
        %v1228 = vlaneseq
        %v1229 = vshrl.u32 %v1228, 7
        %v1230 = vsub.s32 0, %v1229
        %v1231 = vrot.slane %v1092, %v1230
        %v1233 = vadd.f32 %v1163, %v1231
        %v1234 = vadd.f32 %v1164, %v1231
        %v1235 = vadd.f32 %v1165, %v1231
        %v1236 = vadd.f32 %v1166, %v1231
        %v1237 = vadd.f32 %v1167, %v1231
        %v1238 = vadd.f32 %v1168, %v1231
        %v1239 = vadd.f32 %v1169, %v1231
        %v1240 = vadd.f32 %v1170, %v1231
        %v1241 = vadd.f32 %v1171, %v1231
        %v1242 = vadd.f32 %v1172, %v1231
        %v1243 = vadd.f32 %v1173, %v1231
        %v1244 = vadd.f32 %v1174, %v1231
        %v1245 = vadd.f32 %v1175, %v1231
        %v1246 = vadd.f32 %v1176, %v1231
        %v1247 = vadd.f32 %v1177, %v1231
        %v1248 = vadd.f32 %v1178, %v1231
        %v1249 = vadd.f32 %v1179, %v1231
        %v1250 = vadd.f32 %v1180, %v1231
        %v1251 = vadd.f32 %v1181, %v1231
        %v1252 = vadd.f32 %v1182, %v1231
        %v1253 = vadd.f32 %v1183, %v1231
        %v1254 = vadd.f32 %v1184, %v1231
        %v1255 = vadd.f32 %v1185, %v1231
        %v1256 = vadd.f32 %v1186, %v1231
        %v1257 = vadd.f32 %v1187, %v1231
        %v1258 = vadd.f32 %v1188, %v1231
        %v1259 = vadd.f32 %v1189, %v1231
        %v1260 = vadd.f32 %v1190, %v1231
        %v1261 = vadd.f32 %v1191, %v1231
        %v1262 = vadd.f32 %v1192, %v1231
        %v1263 = vadd.f32 %v1193, %v1231
        %v1264 = vadd.f32 %v1194, %v1231
        %v1265 = vadd.f32 %v1195, %v1231
        %v1266 = vadd.f32 %v1196, %v1231
        %v1267 = vadd.f32 %v1197, %v1231
        %v1268 = vadd.f32 %v1198, %v1231
        %v1269 = vadd.f32 %v1199, %v1231
        %v1270 = vadd.f32 %v1200, %v1231
        %v1271 = vadd.f32 %v1201, %v1231
        %v1272 = vadd.f32 %v1202, %v1231
        %v1273 = vadd.f32 %v1203, %v1231
        %v1274 = vadd.f32 %v1204, %v1231
        %v1275 = vadd.f32 %v1205, %v1231
        %v1276 = vadd.f32 %v1206, %v1231
        %v1277 = vadd.f32 %v1207, %v1231
        %v1278 = vadd.f32 %v1208, %v1231
        %v1279 = vadd.f32 %v1209, %v1231
        %v1280 = vadd.f32 %v1210, %v1231
        %v1281 = vadd.f32 %v1211, %v1231
        %v1282 = vadd.f32 %v1212, %v1231
        %v1283 = vadd.f32 %v1213, %v1231
        %v1284 = vadd.f32 %v1214, %v1231
        %v1285 = vadd.f32 %v1215, %v1231
        %v1286 = vadd.f32 %v1216, %v1231
        %v1287 = vadd.f32 %v1217, %v1231
        %v1288 = vadd.f32 %v1218, %v1231
        %v1289 = vadd.f32 %v1219, %v1231
        %v1290 = vadd.f32 %v1220, %v1231
        %v1291 = vadd.f32 %v1221, %v1231
        %v1292 = vadd.f32 %v1222, %v1231
        %v1293 = vadd.f32 %v1223, %v1231
        %v1294 = vadd.f32 %v1224, %v1231
        %v1295 = vadd.f32 %v1225, %v1231
        %v1296 = vadd.f32 %v1226, %v1231
        %vm1297 = vcmp.gt.f32.partialorder %v1233, 0.0
        %vm1298 = vcmp.gt.f32.partialorder %v1234, 0.0
        %vm1299 = vcmp.gt.f32.partialorder %v1235, 0.0
        %vm1300 = vcmp.gt.f32.partialorder %v1236, 0.0
        %vm1301 = vcmp.gt.f32.partialorder %v1237, 0.0
        %vm1302 = vcmp.gt.f32.partialorder %v1238, 0.0
        %vm1303 = vcmp.gt.f32.partialorder %v1239, 0.0
        %vm1304 = vcmp.gt.f32.partialorder %v1240, 0.0
        %vm1305 = vcmp.gt.f32.partialorder %v1241, 0.0
        %vm1306 = vcmp.gt.f32.partialorder %v1242, 0.0
        %vm1307 = vcmp.gt.f32.partialorder %v1243, 0.0
        %vm1308 = vcmp.gt.f32.partialorder %v1244, 0.0
        %vm1309 = vcmp.gt.f32.partialorder %v1245, 0.0
        %vm1310 = vcmp.gt.f32.partialorder %v1246, 0.0
        %vm1311 = vcmp.gt.f32.partialorder %v1247, 0.0
        %vm1312 = vcmp.gt.f32.partialorder %v1248, 0.0
        %vm1313 = vcmp.gt.f32.partialorder %v1249, 0.0
        %vm1314 = vcmp.gt.f32.partialorder %v1250, 0.0
        %vm1315 = vcmp.gt.f32.partialorder %v1251, 0.0
        %vm1316 = vcmp.gt.f32.partialorder %v1252, 0.0
        %vm1317 = vcmp.gt.f32.partialorder %v1253, 0.0
        %vm1318 = vcmp.gt.f32.partialorder %v1254, 0.0
        %vm1319 = vcmp.gt.f32.partialorder %v1255, 0.0
        %vm1320 = vcmp.gt.f32.partialorder %v1256, 0.0
        %vm1321 = vcmp.gt.f32.partialorder %v1257, 0.0
        %vm1322 = vcmp.gt.f32.partialorder %v1258, 0.0
        %vm1323 = vcmp.gt.f32.partialorder %v1259, 0.0
        %vm1324 = vcmp.gt.f32.partialorder %v1260, 0.0
        %vm1325 = vcmp.gt.f32.partialorder %v1261, 0.0
        %vm1326 = vcmp.gt.f32.partialorder %v1262, 0.0
        %vm1327 = vcmp.gt.f32.partialorder %v1263, 0.0
        %vm1328 = vcmp.gt.f32.partialorder %v1264, 0.0
        %vm1329 = vcmp.gt.f32.partialorder %v1265, 0.0
        %vm1330 = vcmp.gt.f32.partialorder %v1266, 0.0
        %vm1331 = vcmp.gt.f32.partialorder %v1267, 0.0
        %vm1332 = vcmp.gt.f32.partialorder %v1268, 0.0
        %vm1333 = vcmp.gt.f32.partialorder %v1269, 0.0
        %vm1334 = vcmp.gt.f32.partialorder %v1270, 0.0
        %vm1335 = vcmp.gt.f32.partialorder %v1271, 0.0
        %vm1336 = vcmp.gt.f32.partialorder %v1272, 0.0
        %vm1337 = vcmp.gt.f32.partialorder %v1273, 0.0
        %vm1338 = vcmp.gt.f32.partialorder %v1274, 0.0
        %vm1339 = vcmp.gt.f32.partialorder %v1275, 0.0
        %vm1340 = vcmp.gt.f32.partialorder %v1276, 0.0
        %vm1341 = vcmp.gt.f32.partialorder %v1277, 0.0
        %vm1342 = vcmp.gt.f32.partialorder %v1278, 0.0
        %vm1343 = vcmp.gt.f32.partialorder %v1279, 0.0
        %vm1344 = vcmp.gt.f32.partialorder %v1280, 0.0
        %vm1345 = vcmp.gt.f32.partialorder %v1281, 0.0
        %vm1346 = vcmp.gt.f32.partialorder %v1282, 0.0
        %vm1347 = vcmp.gt.f32.partialorder %v1283, 0.0
        %vm1348 = vcmp.gt.f32.partialorder %v1284, 0.0
        %vm1349 = vcmp.gt.f32.partialorder %v1285, 0.0
        %vm1350 = vcmp.gt.f32.partialorder %v1286, 0.0
        %vm1351 = vcmp.gt.f32.partialorder %v1287, 0.0
        %vm1352 = vcmp.gt.f32.partialorder %v1288, 0.0
        %vm1353 = vcmp.gt.f32.partialorder %v1289, 0.0
        %vm1354 = vcmp.gt.f32.partialorder %v1290, 0.0
        %vm1355 = vcmp.gt.f32.partialorder %v1291, 0.0
        %vm1356 = vcmp.gt.f32.partialorder %v1292, 0.0
        %vm1357 = vcmp.gt.f32.partialorder %v1293, 0.0
        %vm1358 = vcmp.gt.f32.partialorder %v1294, 0.0
        %vm1359 = vcmp.gt.f32.partialorder %v1295, 0.0
        %vm1360 = vcmp.gt.f32.partialorder %v1296, 0.0
        %v1361 = vmul.f32 %v1233, 0.2
        %v1362 = vmul.f32 %v1234, 0.2
        %v1363 = vmul.f32 %v1235, 0.2
        %v1364 = vmul.f32 %v1236, 0.2
        %v1365 = vmul.f32 %v1237, 0.2
        %v1366 = vmul.f32 %v1238, 0.2
        %v1367 = vmul.f32 %v1239, 0.2
        %v1368 = vmul.f32 %v1240, 0.2
        %v1369 = vmul.f32 %v1241, 0.2
        %v1370 = vmul.f32 %v1242, 0.2
        %v1371 = vmul.f32 %v1243, 0.2
        %v1372 = vmul.f32 %v1244, 0.2
        %v1373 = vmul.f32 %v1245, 0.2
        %v1374 = vmul.f32 %v1246, 0.2
        %v1375 = vmul.f32 %v1247, 0.2
        %v1376 = vmul.f32 %v1248, 0.2
        %v1377 = vmul.f32 %v1249, 0.2
        %v1378 = vmul.f32 %v1250, 0.2
        %v1379 = vmul.f32 %v1251, 0.2
        %v1380 = vmul.f32 %v1252, 0.2
        %v1381 = vmul.f32 %v1253, 0.2
        %v1382 = vmul.f32 %v1254, 0.2
        %v1383 = vmul.f32 %v1255, 0.2
        %v1384 = vmul.f32 %v1256, 0.2
        %v1385 = vmul.f32 %v1257, 0.2
        %v1386 = vmul.f32 %v1258, 0.2
        %v1387 = vmul.f32 %v1259, 0.2
        %v1388 = vmul.f32 %v1260, 0.2
        %v1389 = vmul.f32 %v1261, 0.2
        %v1390 = vmul.f32 %v1262, 0.2
        %v1391 = vmul.f32 %v1263, 0.2
        %v1392 = vmul.f32 %v1264, 0.2
        %v1393 = vmul.f32 %v1265, 0.2
        %v1394 = vmul.f32 %v1266, 0.2
        %v1395 = vmul.f32 %v1267, 0.2
        %v1396 = vmul.f32 %v1268, 0.2
        %v1397 = vmul.f32 %v1269, 0.2
        %v1398 = vmul.f32 %v1270, 0.2
        %v1399 = vmul.f32 %v1271, 0.2
        %v1400 = vmul.f32 %v1272, 0.2
        %v1401 = vmul.f32 %v1273, 0.2
        %v1402 = vmul.f32 %v1274, 0.2
        %v1403 = vmul.f32 %v1275, 0.2
        %v1404 = vmul.f32 %v1276, 0.2
        %v1405 = vmul.f32 %v1277, 0.2
        %v1406 = vmul.f32 %v1278, 0.2
        %v1407 = vmul.f32 %v1279, 0.2
        %v1408 = vmul.f32 %v1280, 0.2
        %v1409 = vmul.f32 %v1281, 0.2
        %v1410 = vmul.f32 %v1282, 0.2
        %v1411 = vmul.f32 %v1283, 0.2
        %v1412 = vmul.f32 %v1284, 0.2
        %v1413 = vmul.f32 %v1285, 0.2
        %v1414 = vmul.f32 %v1286, 0.2
        %v1415 = vmul.f32 %v1287, 0.2
        %v1416 = vmul.f32 %v1288, 0.2
        %v1417 = vmul.f32 %v1289, 0.2
        %v1418 = vmul.f32 %v1290, 0.2
        %v1419 = vmul.f32 %v1291, 0.2
        %v1420 = vmul.f32 %v1292, 0.2
        %v1421 = vmul.f32 %v1293, 0.2
        %v1422 = vmul.f32 %v1294, 0.2
        %v1423 = vmul.f32 %v1295, 0.2
        %v1424 = vmul.f32 %v1296, 0.2
        %v1425 = vsel %vm1297, %v1233, %v1361
        %v1426 = vsel %vm1298, %v1234, %v1362
        %v1427 = vsel %vm1299, %v1235, %v1363
        %v1428 = vsel %vm1300, %v1236, %v1364
        %v1429 = vsel %vm1301, %v1237, %v1365
        %v1430 = vsel %vm1302, %v1238, %v1366
        %v1431 = vsel %vm1303, %v1239, %v1367
        %v1432 = vsel %vm1304, %v1240, %v1368
        %v1433 = vsel %vm1305, %v1241, %v1369
        %v1434 = vsel %vm1306, %v1242, %v1370
        %v1435 = vsel %vm1307, %v1243, %v1371
        %v1436 = vsel %vm1308, %v1244, %v1372
        %v1437 = vsel %vm1309, %v1245, %v1373
        %v1438 = vsel %vm1310, %v1246, %v1374
        %v1439 = vsel %vm1311, %v1247, %v1375
        %v1440 = vsel %vm1312, %v1248, %v1376
        %v1441 = vsel %vm1313, %v1249, %v1377
        %v1442 = vsel %vm1314, %v1250, %v1378
        %v1443 = vsel %vm1315, %v1251, %v1379
        %v1444 = vsel %vm1316, %v1252, %v1380
        %v1445 = vsel %vm1317, %v1253, %v1381
        %v1446 = vsel %vm1318, %v1254, %v1382
        %v1447 = vsel %vm1319, %v1255, %v1383
        %v1448 = vsel %vm1320, %v1256, %v1384
        %v1449 = vsel %vm1321, %v1257, %v1385
        %v1450 = vsel %vm1322, %v1258, %v1386
        %v1451 = vsel %vm1323, %v1259, %v1387
        %v1452 = vsel %vm1324, %v1260, %v1388
        %v1453 = vsel %vm1325, %v1261, %v1389
        %v1454 = vsel %vm1326, %v1262, %v1390
        %v1455 = vsel %vm1327, %v1263, %v1391
        %v1456 = vsel %vm1328, %v1264, %v1392
        %v1457 = vsel %vm1329, %v1265, %v1393
        %v1458 = vsel %vm1330, %v1266, %v1394
        %v1459 = vsel %vm1331, %v1267, %v1395
        %v1460 = vsel %vm1332, %v1268, %v1396
        %v1461 = vsel %vm1333, %v1269, %v1397
        %v1462 = vsel %vm1334, %v1270, %v1398
        %v1463 = vsel %vm1335, %v1271, %v1399
        %v1464 = vsel %vm1336, %v1272, %v1400
        %v1465 = vsel %vm1337, %v1273, %v1401
        %v1466 = vsel %vm1338, %v1274, %v1402
        %v1467 = vsel %vm1339, %v1275, %v1403
        %v1468 = vsel %vm1340, %v1276, %v1404
        %v1469 = vsel %vm1341, %v1277, %v1405
        %v1470 = vsel %vm1342, %v1278, %v1406
        %v1471 = vsel %vm1343, %v1279, %v1407
        %v1472 = vsel %vm1344, %v1280, %v1408
        %v1473 = vsel %vm1345, %v1281, %v1409
        %v1474 = vsel %vm1346, %v1282, %v1410
        %v1475 = vsel %vm1347, %v1283, %v1411
        %v1476 = vsel %vm1348, %v1284, %v1412
        %v1477 = vsel %vm1349, %v1285, %v1413
        %v1478 = vsel %vm1350, %v1286, %v1414
        %v1479 = vsel %vm1351, %v1287, %v1415
        %v1480 = vsel %vm1352, %v1288, %v1416
        %v1481 = vsel %vm1353, %v1289, %v1417
        %v1482 = vsel %vm1354, %v1290, %v1418
        %v1483 = vsel %vm1355, %v1291, %v1419
        %v1484 = vsel %vm1356, %v1292, %v1420
        %v1485 = vsel %vm1357, %v1293, %v1421
        %v1486 = vsel %vm1358, %v1294, %v1422
        %v1487 = vsel %vm1359, %v1295, %v1423
        %v1488 = vsel %vm1360, %v1296, %v1424
        %vm1489 = vcmask 130048
        %1490 = vst.msk [vmem:[%s4] sm:$0xff] %vm1489, %v1425
        %1491 = vst.msk [vmem:[%s4 + $0x8] sm:$0xff] %vm1489, %v1426
        %1492 = vst.msk [vmem:[%s4 + $0x10] sm:$0xff] %vm1489, %v1427
        %1493 = vst.msk [vmem:[%s4 + $0x18] sm:$0xff] %vm1489, %v1428
        %1494 = vst.msk [vmem:[%s4 + $0x20] sm:$0xff] %vm1489, %v1429
        %1495 = vst.msk [vmem:[%s4 + $0x28] sm:$0xff] %vm1489, %v1430
        %1496 = vst.msk [vmem:[%s4 + $0x30] sm:$0xff] %vm1489, %v1431
        %1497 = vst.msk [vmem:[%s4 + $0x38] sm:$0xff] %vm1489, %v1432
        %1498 = vst.msk [vmem:[%s4 + $0x40] sm:$0xff] %vm1489, %v1433
        %1499 = vst.msk [vmem:[%s4 + $0x48] sm:$0xff] %vm1489, %v1434
        %1500 = vst.msk [vmem:[%s4 + $0x50] sm:$0xff] %vm1489, %v1435
        %1501 = vst.msk [vmem:[%s4 + $0x58] sm:$0xff] %vm1489, %v1436
        %1502 = vst.msk [vmem:[%s4 + $0x60] sm:$0xff] %vm1489, %v1437
        %1503 = vst.msk [vmem:[%s4 + $0x68] sm:$0xff] %vm1489, %v1438
        %1504 = vst.msk [vmem:[%s4 + $0x70] sm:$0xff] %vm1489, %v1439
        %1505 = vst.msk [vmem:[%s4 + $0x78] sm:$0xff] %vm1489, %v1440
        %1506 = vst.msk [vmem:[%s4 + $0x80] sm:$0xff] %vm1489, %v1441
        %1507 = vst.msk [vmem:[%s4 + $0x88] sm:$0xff] %vm1489, %v1442
        %1508 = vst.msk [vmem:[%s4 + $0x90] sm:$0xff] %vm1489, %v1443
        %1509 = vst.msk [vmem:[%s4 + $0x98] sm:$0xff] %vm1489, %v1444
        %1510 = vst.msk [vmem:[%s4 + $0xa0] sm:$0xff] %vm1489, %v1445
        %1511 = vst.msk [vmem:[%s4 + $0xa8] sm:$0xff] %vm1489, %v1446
        %1512 = vst.msk [vmem:[%s4 + $0xb0] sm:$0xff] %vm1489, %v1447
        %1513 = vst.msk [vmem:[%s4 + $0xb8] sm:$0xff] %vm1489, %v1448
        %1514 = vst.msk [vmem:[%s4 + $0xc0] sm:$0xff] %vm1489, %v1449
        %1515 = vst.msk [vmem:[%s4 + $0xc8] sm:$0xff] %vm1489, %v1450
        %1516 = vst.msk [vmem:[%s4 + $0xd0] sm:$0xff] %vm1489, %v1451
        %1517 = vst.msk [vmem:[%s4 + $0xd8] sm:$0xff] %vm1489, %v1452
        %1518 = vst.msk [vmem:[%s4 + $0xe0] sm:$0xff] %vm1489, %v1453
        %1519 = vst.msk [vmem:[%s4 + $0xe8] sm:$0xff] %vm1489, %v1454
        %1520 = vst.msk [vmem:[%s4 + $0xf0] sm:$0xff] %vm1489, %v1455
        %1521 = vst.msk [vmem:[%s4 + $0xf8] sm:$0xff] %vm1489, %v1456
        %1522 = vst.msk [vmem:[%s4 + $0x100] sm:$0xff] %vm1489, %v1457
        %1523 = vst.msk [vmem:[%s4 + $0x108] sm:$0xff] %vm1489, %v1458
        %1524 = vst.msk [vmem:[%s4 + $0x110] sm:$0xff] %vm1489, %v1459
        %1525 = vst.msk [vmem:[%s4 + $0x118] sm:$0xff] %vm1489, %v1460
        %1526 = vst.msk [vmem:[%s4 + $0x120] sm:$0xff] %vm1489, %v1461
        %1527 = vst.msk [vmem:[%s4 + $0x128] sm:$0xff] %vm1489, %v1462
        %1528 = vst.msk [vmem:[%s4 + $0x130] sm:$0xff] %vm1489, %v1463
        %1529 = vst.msk [vmem:[%s4 + $0x138] sm:$0xff] %vm1489, %v1464
        %1530 = vst.msk [vmem:[%s4 + $0x140] sm:$0xff] %vm1489, %v1465
        %1531 = vst.msk [vmem:[%s4 + $0x148] sm:$0xff] %vm1489, %v1466
        %1532 = vst.msk [vmem:[%s4 + $0x150] sm:$0xff] %vm1489, %v1467
        %1533 = vst.msk [vmem:[%s4 + $0x158] sm:$0xff] %vm1489, %v1468
        %1534 = vst.msk [vmem:[%s4 + $0x160] sm:$0xff] %vm1489, %v1469
        %1535 = vst.msk [vmem:[%s4 + $0x168] sm:$0xff] %vm1489, %v1470
        %1536 = vst.msk [vmem:[%s4 + $0x170] sm:$0xff] %vm1489, %v1471
        %1537 = vst.msk [vmem:[%s4 + $0x178] sm:$0xff] %vm1489, %v1472
        %1538 = vst.msk [vmem:[%s4 + $0x180] sm:$0xff] %vm1489, %v1473
        %1539 = vst.msk [vmem:[%s4 + $0x188] sm:$0xff] %vm1489, %v1474
        %1540 = vst.msk [vmem:[%s4 + $0x190] sm:$0xff] %vm1489, %v1475
        %1541 = vst.msk [vmem:[%s4 + $0x198] sm:$0xff] %vm1489, %v1476
        %1542 = vst.msk [vmem:[%s4 + $0x1a0] sm:$0xff] %vm1489, %v1477
        %1543 = vst.msk [vmem:[%s4 + $0x1a8] sm:$0xff] %vm1489, %v1478
        %1544 = vst.msk [vmem:[%s4 + $0x1b0] sm:$0xff] %vm1489, %v1479
        %1545 = vst.msk [vmem:[%s4 + $0x1b8] sm:$0xff] %vm1489, %v1480
        %1546 = vst.msk [vmem:[%s4 + $0x1c0] sm:$0xff] %vm1489, %v1481
        %1547 = vst.msk [vmem:[%s4 + $0x1c8] sm:$0xff] %vm1489, %v1482
        %1548 = vst.msk [vmem:[%s4 + $0x1d0] sm:$0xff] %vm1489, %v1483
        %1549 = vst.msk [vmem:[%s4 + $0x1d8] sm:$0xff] %vm1489, %v1484
        %1550 = vst.msk [vmem:[%s4 + $0x1e0] sm:$0xff] %vm1489, %v1485
        %1551 = vst.msk [vmem:[%s4 + $0x1e8] sm:$0xff] %vm1489, %v1486
        %1552 = vst.msk [vmem:[%s4 + $0x1f0] sm:$0xff] %vm1489, %v1487
        %1553 = vst.msk [vmem:[%s4 + $0x1f8] sm:$0xff] %vm1489, %v1488
        %s1554 = scalar_lea.vmem [#allocation2], 512
        %v1555 = vld [vmem:[%s1554] sm:$0xff]
        %v1556 = vld [vmem:[%s1554 + $0x8] sm:$0xff]
        %v1557 = vld [vmem:[%s1554 + $0x10] sm:$0xff]
        %v1558 = vld [vmem:[%s1554 + $0x18] sm:$0xff]
        %v1559 = vld [vmem:[%s1554 + $0x20] sm:$0xff]
        %v1560 = vld [vmem:[%s1554 + $0x28] sm:$0xff]
        %v1561 = vld [vmem:[%s1554 + $0x30] sm:$0xff]
        %v1562 = vld [vmem:[%s1554 + $0x38] sm:$0xff]
        %v1563 = vld [vmem:[%s1554 + $0x40] sm:$0xff]
        %v1564 = vld [vmem:[%s1554 + $0x48] sm:$0xff]
        %v1565 = vld [vmem:[%s1554 + $0x50] sm:$0xff]
        %v1566 = vld [vmem:[%s1554 + $0x58] sm:$0xff]
        %v1567 = vld [vmem:[%s1554 + $0x60] sm:$0xff]
        %v1568 = vld [vmem:[%s1554 + $0x68] sm:$0xff]
        %v1569 = vld [vmem:[%s1554 + $0x70] sm:$0xff]
        %v1570 = vld [vmem:[%s1554 + $0x78] sm:$0xff]
        %v1571 = vld [vmem:[%s1554 + $0x80] sm:$0xff]
        %v1572 = vld [vmem:[%s1554 + $0x88] sm:$0xff]
        %v1573 = vld [vmem:[%s1554 + $0x90] sm:$0xff]
        %v1574 = vld [vmem:[%s1554 + $0x98] sm:$0xff]
        %v1575 = vld [vmem:[%s1554 + $0xa0] sm:$0xff]
        %v1576 = vld [vmem:[%s1554 + $0xa8] sm:$0xff]
        %v1577 = vld [vmem:[%s1554 + $0xb0] sm:$0xff]
        %v1578 = vld [vmem:[%s1554 + $0xb8] sm:$0xff]
        %v1579 = vld [vmem:[%s1554 + $0xc0] sm:$0xff]
        %v1580 = vld [vmem:[%s1554 + $0xc8] sm:$0xff]
        %v1581 = vld [vmem:[%s1554 + $0xd0] sm:$0xff]
        %v1582 = vld [vmem:[%s1554 + $0xd8] sm:$0xff]
        %v1583 = vld [vmem:[%s1554 + $0xe0] sm:$0xff]
        %v1584 = vld [vmem:[%s1554 + $0xe8] sm:$0xff]
        %v1585 = vld [vmem:[%s1554 + $0xf0] sm:$0xff]
        %v1586 = vld [vmem:[%s1554 + $0xf8] sm:$0xff]
        %v1587 = vld [vmem:[%s1554 + $0x100] sm:$0xff]
        %v1588 = vld [vmem:[%s1554 + $0x108] sm:$0xff]
        %v1589 = vld [vmem:[%s1554 + $0x110] sm:$0xff]
        %v1590 = vld [vmem:[%s1554 + $0x118] sm:$0xff]
        %v1591 = vld [vmem:[%s1554 + $0x120] sm:$0xff]
        %v1592 = vld [vmem:[%s1554 + $0x128] sm:$0xff]
        %v1593 = vld [vmem:[%s1554 + $0x130] sm:$0xff]
        %v1594 = vld [vmem:[%s1554 + $0x138] sm:$0xff]
        %v1595 = vld [vmem:[%s1554 + $0x140] sm:$0xff]
        %v1596 = vld [vmem:[%s1554 + $0x148] sm:$0xff]
        %v1597 = vld [vmem:[%s1554 + $0x150] sm:$0xff]
        %v1598 = vld [vmem:[%s1554 + $0x158] sm:$0xff]
        %v1599 = vld [vmem:[%s1554 + $0x160] sm:$0xff]
        %v1600 = vld [vmem:[%s1554 + $0x168] sm:$0xff]
        %v1601 = vld [vmem:[%s1554 + $0x170] sm:$0xff]
        %v1602 = vld [vmem:[%s1554 + $0x178] sm:$0xff]
        %v1603 = vld [vmem:[%s1554 + $0x180] sm:$0xff]
        %v1604 = vld [vmem:[%s1554 + $0x188] sm:$0xff]
        %v1605 = vld [vmem:[%s1554 + $0x190] sm:$0xff]
        %v1606 = vld [vmem:[%s1554 + $0x198] sm:$0xff]
        %v1607 = vld [vmem:[%s1554 + $0x1a0] sm:$0xff]
        %v1608 = vld [vmem:[%s1554 + $0x1a8] sm:$0xff]
        %v1609 = vld [vmem:[%s1554 + $0x1b0] sm:$0xff]
        %v1610 = vld [vmem:[%s1554 + $0x1b8] sm:$0xff]
        %v1611 = vld [vmem:[%s1554 + $0x1c0] sm:$0xff]
        %v1612 = vld [vmem:[%s1554 + $0x1c8] sm:$0xff]
        %v1613 = vld [vmem:[%s1554 + $0x1d0] sm:$0xff]
        %v1614 = vld [vmem:[%s1554 + $0x1d8] sm:$0xff]
        %v1615 = vld [vmem:[%s1554 + $0x1e0] sm:$0xff]
        %v1616 = vld [vmem:[%s1554 + $0x1e8] sm:$0xff]
        %v1617 = vld [vmem:[%s1554 + $0x1f0] sm:$0xff]
        %v1618 = vld [vmem:[%s1554 + $0x1f8] sm:$0xff]
        %v1619 = vmul.f32 %v1555, %v1161
        %v1620 = vmul.f32 %v1556, %v1161
        %v1621 = vmul.f32 %v1557, %v1161
        %v1622 = vmul.f32 %v1558, %v1161
        %v1623 = vmul.f32 %v1559, %v1161
        %v1624 = vmul.f32 %v1560, %v1161
        %v1625 = vmul.f32 %v1561, %v1161
        %v1626 = vmul.f32 %v1562, %v1161
        %v1627 = vmul.f32 %v1563, %v1161
        %v1628 = vmul.f32 %v1564, %v1161
        %v1629 = vmul.f32 %v1565, %v1161
        %v1630 = vmul.f32 %v1566, %v1161
        %v1631 = vmul.f32 %v1567, %v1161
        %v1632 = vmul.f32 %v1568, %v1161
        %v1633 = vmul.f32 %v1569, %v1161
        %v1634 = vmul.f32 %v1570, %v1161
        %v1635 = vmul.f32 %v1571, %v1161
        %v1636 = vmul.f32 %v1572, %v1161
        %v1637 = vmul.f32 %v1573, %v1161
        %v1638 = vmul.f32 %v1574, %v1161
        %v1639 = vmul.f32 %v1575, %v1161
        %v1640 = vmul.f32 %v1576, %v1161
        %v1641 = vmul.f32 %v1577, %v1161
        %v1642 = vmul.f32 %v1578, %v1161
        %v1643 = vmul.f32 %v1579, %v1161
        %v1644 = vmul.f32 %v1580, %v1161
        %v1645 = vmul.f32 %v1581, %v1161
        %v1646 = vmul.f32 %v1582, %v1161
        %v1647 = vmul.f32 %v1583, %v1161
        %v1648 = vmul.f32 %v1584, %v1161
        %v1649 = vmul.f32 %v1585, %v1161
        %v1650 = vmul.f32 %v1586, %v1161
        %v1651 = vmul.f32 %v1587, %v1161
        %v1652 = vmul.f32 %v1588, %v1161
        %v1653 = vmul.f32 %v1589, %v1161
        %v1654 = vmul.f32 %v1590, %v1161
        %v1655 = vmul.f32 %v1591, %v1161
        %v1656 = vmul.f32 %v1592, %v1161
        %v1657 = vmul.f32 %v1593, %v1161
        %v1658 = vmul.f32 %v1594, %v1161
        %v1659 = vmul.f32 %v1595, %v1161
        %v1660 = vmul.f32 %v1596, %v1161
        %v1661 = vmul.f32 %v1597, %v1161
        %v1662 = vmul.f32 %v1598, %v1161
        %v1663 = vmul.f32 %v1599, %v1161
        %v1664 = vmul.f32 %v1600, %v1161
        %v1665 = vmul.f32 %v1601, %v1161
        %v1666 = vmul.f32 %v1602, %v1161
        %v1667 = vmul.f32 %v1603, %v1161
        %v1668 = vmul.f32 %v1604, %v1161
        %v1669 = vmul.f32 %v1605, %v1161
        %v1670 = vmul.f32 %v1606, %v1161
        %v1671 = vmul.f32 %v1607, %v1161
        %v1672 = vmul.f32 %v1608, %v1161
        %v1673 = vmul.f32 %v1609, %v1161
        %v1674 = vmul.f32 %v1610, %v1161
        %v1675 = vmul.f32 %v1611, %v1161
        %v1676 = vmul.f32 %v1612, %v1161
        %v1677 = vmul.f32 %v1613, %v1161
        %v1678 = vmul.f32 %v1614, %v1161
        %v1679 = vmul.f32 %v1615, %v1161
        %v1680 = vmul.f32 %v1616, %v1161
        %v1681 = vmul.f32 %v1617, %v1161
        %v1682 = vmul.f32 %v1618, %v1161
        %v1683 = vadd.f32 %v1619, %v1231
        %v1684 = vadd.f32 %v1620, %v1231
        %v1685 = vadd.f32 %v1621, %v1231
        %v1686 = vadd.f32 %v1622, %v1231
        %v1687 = vadd.f32 %v1623, %v1231
        %v1688 = vadd.f32 %v1624, %v1231
        %v1689 = vadd.f32 %v1625, %v1231
        %v1690 = vadd.f32 %v1626, %v1231
        %v1691 = vadd.f32 %v1627, %v1231
        %v1692 = vadd.f32 %v1628, %v1231
        %v1693 = vadd.f32 %v1629, %v1231
        %v1694 = vadd.f32 %v1630, %v1231
        %v1695 = vadd.f32 %v1631, %v1231
        %v1696 = vadd.f32 %v1632, %v1231
        %v1697 = vadd.f32 %v1633, %v1231
        %v1698 = vadd.f32 %v1634, %v1231
        %v1699 = vadd.f32 %v1635, %v1231
        %v1700 = vadd.f32 %v1636, %v1231
        %v1701 = vadd.f32 %v1637, %v1231
        %v1702 = vadd.f32 %v1638, %v1231
        %v1703 = vadd.f32 %v1639, %v1231
        %v1704 = vadd.f32 %v1640, %v1231
        %v1705 = vadd.f32 %v1641, %v1231
        %v1706 = vadd.f32 %v1642, %v1231
        %v1707 = vadd.f32 %v1643, %v1231
        %v1708 = vadd.f32 %v1644, %v1231
        %v1709 = vadd.f32 %v1645, %v1231
        %v1710 = vadd.f32 %v1646, %v1231
        %v1711 = vadd.f32 %v1647, %v1231
        %v1712 = vadd.f32 %v1648, %v1231
        %v1713 = vadd.f32 %v1649, %v1231
        %v1714 = vadd.f32 %v1650, %v1231
        %v1715 = vadd.f32 %v1651, %v1231
        %v1716 = vadd.f32 %v1652, %v1231
        %v1717 = vadd.f32 %v1653, %v1231
        %v1718 = vadd.f32 %v1654, %v1231
        %v1719 = vadd.f32 %v1655, %v1231
        %v1720 = vadd.f32 %v1656, %v1231
        %v1721 = vadd.f32 %v1657, %v1231
        %v1722 = vadd.f32 %v1658, %v1231
        %v1723 = vadd.f32 %v1659, %v1231
        %v1724 = vadd.f32 %v1660, %v1231
        %v1725 = vadd.f32 %v1661, %v1231
        %v1726 = vadd.f32 %v1662, %v1231
        %v1727 = vadd.f32 %v1663, %v1231
        %v1728 = vadd.f32 %v1664, %v1231
        %v1729 = vadd.f32 %v1665, %v1231
        %v1730 = vadd.f32 %v1666, %v1231
        %v1731 = vadd.f32 %v1667, %v1231
        %v1732 = vadd.f32 %v1668, %v1231
        %v1733 = vadd.f32 %v1669, %v1231
        %v1734 = vadd.f32 %v1670, %v1231
        %v1735 = vadd.f32 %v1671, %v1231
        %v1736 = vadd.f32 %v1672, %v1231
        %v1737 = vadd.f32 %v1673, %v1231
        %v1738 = vadd.f32 %v1674, %v1231
        %v1739 = vadd.f32 %v1675, %v1231
        %v1740 = vadd.f32 %v1676, %v1231
        %v1741 = vadd.f32 %v1677, %v1231
        %v1742 = vadd.f32 %v1678, %v1231
        %v1743 = vadd.f32 %v1679, %v1231
        %v1744 = vadd.f32 %v1680, %v1231
        %v1745 = vadd.f32 %v1681, %v1231
        %v1746 = vadd.f32 %v1682, %v1231
        %vm1747 = vcmp.gt.f32.partialorder %v1683, 0.0
        %vm1748 = vcmp.gt.f32.partialorder %v1684, 0.0
        %vm1749 = vcmp.gt.f32.partialorder %v1685, 0.0
        %vm1750 = vcmp.gt.f32.partialorder %v1686, 0.0
        %vm1751 = vcmp.gt.f32.partialorder %v1687, 0.0
        %vm1752 = vcmp.gt.f32.partialorder %v1688, 0.0
        %vm1753 = vcmp.gt.f32.partialorder %v1689, 0.0
        %vm1754 = vcmp.gt.f32.partialorder %v1690, 0.0
        %vm1755 = vcmp.gt.f32.partialorder %v1691, 0.0
        %vm1756 = vcmp.gt.f32.partialorder %v1692, 0.0
        %vm1757 = vcmp.gt.f32.partialorder %v1693, 0.0
        %vm1758 = vcmp.gt.f32.partialorder %v1694, 0.0
        %vm1759 = vcmp.gt.f32.partialorder %v1695, 0.0
        %vm1760 = vcmp.gt.f32.partialorder %v1696, 0.0
        %vm1761 = vcmp.gt.f32.partialorder %v1697, 0.0
        %vm1762 = vcmp.gt.f32.partialorder %v1698, 0.0
        %vm1763 = vcmp.gt.f32.partialorder %v1699, 0.0
        %vm1764 = vcmp.gt.f32.partialorder %v1700, 0.0
        %vm1765 = vcmp.gt.f32.partialorder %v1701, 0.0
        %vm1766 = vcmp.gt.f32.partialorder %v1702, 0.0
        %vm1767 = vcmp.gt.f32.partialorder %v1703, 0.0
        %vm1768 = vcmp.gt.f32.partialorder %v1704, 0.0
        %vm1769 = vcmp.gt.f32.partialorder %v1705, 0.0
        %vm1770 = vcmp.gt.f32.partialorder %v1706, 0.0
        %vm1771 = vcmp.gt.f32.partialorder %v1707, 0.0
        %vm1772 = vcmp.gt.f32.partialorder %v1708, 0.0
        %vm1773 = vcmp.gt.f32.partialorder %v1709, 0.0
        %vm1774 = vcmp.gt.f32.partialorder %v1710, 0.0
        %vm1775 = vcmp.gt.f32.partialorder %v1711, 0.0
        %vm1776 = vcmp.gt.f32.partialorder %v1712, 0.0
        %vm1777 = vcmp.gt.f32.partialorder %v1713, 0.0
        %vm1778 = vcmp.gt.f32.partialorder %v1714, 0.0
        %vm1779 = vcmp.gt.f32.partialorder %v1715, 0.0
        %vm1780 = vcmp.gt.f32.partialorder %v1716, 0.0
        %vm1781 = vcmp.gt.f32.partialorder %v1717, 0.0
        %vm1782 = vcmp.gt.f32.partialorder %v1718, 0.0
        %vm1783 = vcmp.gt.f32.partialorder %v1719, 0.0
        %vm1784 = vcmp.gt.f32.partialorder %v1720, 0.0
        %vm1785 = vcmp.gt.f32.partialorder %v1721, 0.0
        %vm1786 = vcmp.gt.f32.partialorder %v1722, 0.0
        %vm1787 = vcmp.gt.f32.partialorder %v1723, 0.0
        %vm1788 = vcmp.gt.f32.partialorder %v1724, 0.0
        %vm1789 = vcmp.gt.f32.partialorder %v1725, 0.0
        %vm1790 = vcmp.gt.f32.partialorder %v1726, 0.0
        %vm1791 = vcmp.gt.f32.partialorder %v1727, 0.0
        %vm1792 = vcmp.gt.f32.partialorder %v1728, 0.0
        %vm1793 = vcmp.gt.f32.partialorder %v1729, 0.0
        %vm1794 = vcmp.gt.f32.partialorder %v1730, 0.0
        %vm1795 = vcmp.gt.f32.partialorder %v1731, 0.0
        %vm1796 = vcmp.gt.f32.partialorder %v1732, 0.0
        %vm1797 = vcmp.gt.f32.partialorder %v1733, 0.0
        %vm1798 = vcmp.gt.f32.partialorder %v1734, 0.0
        %vm1799 = vcmp.gt.f32.partialorder %v1735, 0.0
        %vm1800 = vcmp.gt.f32.partialorder %v1736, 0.0
        %vm1801 = vcmp.gt.f32.partialorder %v1737, 0.0
        %vm1802 = vcmp.gt.f32.partialorder %v1738, 0.0
        %vm1803 = vcmp.gt.f32.partialorder %v1739, 0.0
        %vm1804 = vcmp.gt.f32.partialorder %v1740, 0.0
        %vm1805 = vcmp.gt.f32.partialorder %v1741, 0.0
        %vm1806 = vcmp.gt.f32.partialorder %v1742, 0.0
        %vm1807 = vcmp.gt.f32.partialorder %v1743, 0.0
        %vm1808 = vcmp.gt.f32.partialorder %v1744, 0.0
        %vm1809 = vcmp.gt.f32.partialorder %v1745, 0.0
        %vm1810 = vcmp.gt.f32.partialorder %v1746, 0.0
        %v1811 = vmul.f32 %v1683, 0.2
        %v1812 = vmul.f32 %v1684, 0.2
        %v1813 = vmul.f32 %v1685, 0.2
        %v1814 = vmul.f32 %v1686, 0.2
        %v1815 = vmul.f32 %v1687, 0.2
        %v1816 = vmul.f32 %v1688, 0.2
        %v1817 = vmul.f32 %v1689, 0.2
        %v1818 = vmul.f32 %v1690, 0.2
        %v1819 = vmul.f32 %v1691, 0.2
        %v1820 = vmul.f32 %v1692, 0.2
        %v1821 = vmul.f32 %v1693, 0.2
        %v1822 = vmul.f32 %v1694, 0.2
        %v1823 = vmul.f32 %v1695, 0.2
        %v1824 = vmul.f32 %v1696, 0.2
        %v1825 = vmul.f32 %v1697, 0.2
        %v1826 = vmul.f32 %v1698, 0.2
        %v1827 = vmul.f32 %v1699, 0.2
        %v1828 = vmul.f32 %v1700, 0.2
        %v1829 = vmul.f32 %v1701, 0.2
        %v1830 = vmul.f32 %v1702, 0.2
        %v1831 = vmul.f32 %v1703, 0.2
        %v1832 = vmul.f32 %v1704, 0.2
        %v1833 = vmul.f32 %v1705, 0.2
        %v1834 = vmul.f32 %v1706, 0.2
        %v1835 = vmul.f32 %v1707, 0.2
        %v1836 = vmul.f32 %v1708, 0.2
        %v1837 = vmul.f32 %v1709, 0.2
        %v1838 = vmul.f32 %v1710, 0.2
        %v1839 = vmul.f32 %v1711, 0.2
        %v1840 = vmul.f32 %v1712, 0.2
        %v1841 = vmul.f32 %v1713, 0.2
        %v1842 = vmul.f32 %v1714, 0.2
        %v1843 = vmul.f32 %v1715, 0.2
        %v1844 = vmul.f32 %v1716, 0.2
        %v1845 = vmul.f32 %v1717, 0.2
        %v1846 = vmul.f32 %v1718, 0.2
        %v1847 = vmul.f32 %v1719, 0.2
        %v1848 = vmul.f32 %v1720, 0.2
        %v1849 = vmul.f32 %v1721, 0.2
        %v1850 = vmul.f32 %v1722, 0.2
        %v1851 = vmul.f32 %v1723, 0.2
        %v1852 = vmul.f32 %v1724, 0.2
        %v1853 = vmul.f32 %v1725, 0.2
        %v1854 = vmul.f32 %v1726, 0.2
        %v1855 = vmul.f32 %v1727, 0.2
        %v1856 = vmul.f32 %v1728, 0.2
        %v1857 = vmul.f32 %v1729, 0.2
        %v1858 = vmul.f32 %v1730, 0.2
        %v1859 = vmul.f32 %v1731, 0.2
        %v1860 = vmul.f32 %v1732, 0.2
        %v1861 = vmul.f32 %v1733, 0.2
        %v1862 = vmul.f32 %v1734, 0.2
        %v1863 = vmul.f32 %v1735, 0.2
        %v1864 = vmul.f32 %v1736, 0.2
        %v1865 = vmul.f32 %v1737, 0.2
        %v1866 = vmul.f32 %v1738, 0.2
        %v1867 = vmul.f32 %v1739, 0.2
        %v1868 = vmul.f32 %v1740, 0.2
        %v1869 = vmul.f32 %v1741, 0.2
        %v1870 = vmul.f32 %v1742, 0.2
        %v1871 = vmul.f32 %v1743, 0.2
        %v1872 = vmul.f32 %v1744, 0.2
        %v1873 = vmul.f32 %v1745, 0.2
        %v1874 = vmul.f32 %v1746, 0.2
        %v1875 = vsel %vm1747, %v1683, %v1811
        %v1876 = vsel %vm1748, %v1684, %v1812
        %v1877 = vsel %vm1749, %v1685, %v1813
        %v1878 = vsel %vm1750, %v1686, %v1814
        %v1879 = vsel %vm1751, %v1687, %v1815
        %v1880 = vsel %vm1752, %v1688, %v1816
        %v1881 = vsel %vm1753, %v1689, %v1817
        %v1882 = vsel %vm1754, %v1690, %v1818
        %v1883 = vsel %vm1755, %v1691, %v1819
        %v1884 = vsel %vm1756, %v1692, %v1820
        %v1885 = vsel %vm1757, %v1693, %v1821
        %v1886 = vsel %vm1758, %v1694, %v1822
        %v1887 = vsel %vm1759, %v1695, %v1823
        %v1888 = vsel %vm1760, %v1696, %v1824
        %v1889 = vsel %vm1761, %v1697, %v1825
        %v1890 = vsel %vm1762, %v1698, %v1826
        %v1891 = vsel %vm1763, %v1699, %v1827
        %v1892 = vsel %vm1764, %v1700, %v1828
        %v1893 = vsel %vm1765, %v1701, %v1829
        %v1894 = vsel %vm1766, %v1702, %v1830
        %v1895 = vsel %vm1767, %v1703, %v1831
        %v1896 = vsel %vm1768, %v1704, %v1832
        %v1897 = vsel %vm1769, %v1705, %v1833
        %v1898 = vsel %vm1770, %v1706, %v1834
        %v1899 = vsel %vm1771, %v1707, %v1835
        %v1900 = vsel %vm1772, %v1708, %v1836
        %v1901 = vsel %vm1773, %v1709, %v1837
        %v1902 = vsel %vm1774, %v1710, %v1838
        %v1903 = vsel %vm1775, %v1711, %v1839
        %v1904 = vsel %vm1776, %v1712, %v1840
        %v1905 = vsel %vm1777, %v1713, %v1841
        %v1906 = vsel %vm1778, %v1714, %v1842
        %v1907 = vsel %vm1779, %v1715, %v1843
        %v1908 = vsel %vm1780, %v1716, %v1844
        %v1909 = vsel %vm1781, %v1717, %v1845
        %v1910 = vsel %vm1782, %v1718, %v1846
        %v1911 = vsel %vm1783, %v1719, %v1847
        %v1912 = vsel %vm1784, %v1720, %v1848
        %v1913 = vsel %vm1785, %v1721, %v1849
        %v1914 = vsel %vm1786, %v1722, %v1850
        %v1915 = vsel %vm1787, %v1723, %v1851
        %v1916 = vsel %vm1788, %v1724, %v1852
        %v1917 = vsel %vm1789, %v1725, %v1853
        %v1918 = vsel %vm1790, %v1726, %v1854
        %v1919 = vsel %vm1791, %v1727, %v1855
        %v1920 = vsel %vm1792, %v1728, %v1856
        %v1921 = vsel %vm1793, %v1729, %v1857
        %v1922 = vsel %vm1794, %v1730, %v1858
        %v1923 = vsel %vm1795, %v1731, %v1859
        %v1924 = vsel %vm1796, %v1732, %v1860
        %v1925 = vsel %vm1797, %v1733, %v1861
        %v1926 = vsel %vm1798, %v1734, %v1862
        %v1927 = vsel %vm1799, %v1735, %v1863
        %v1928 = vsel %vm1800, %v1736, %v1864
        %v1929 = vsel %vm1801, %v1737, %v1865
        %v1930 = vsel %vm1802, %v1738, %v1866
        %v1931 = vsel %vm1803, %v1739, %v1867
        %v1932 = vsel %vm1804, %v1740, %v1868
        %v1933 = vsel %vm1805, %v1741, %v1869
        %v1934 = vsel %vm1806, %v1742, %v1870
        %v1935 = vsel %vm1807, %v1743, %v1871
        %v1936 = vsel %vm1808, %v1744, %v1872
        %v1937 = vsel %vm1809, %v1745, %v1873
        %v1938 = vsel %vm1810, %v1746, %v1874
        %s1939 = scalar_lea.vmem %s4, 512
        %1940 = vst.msk [vmem:[%s1939] sm:$0xff] %vm1489, %v1875
        %1941 = vst.msk [vmem:[%s1939 + $0x8] sm:$0xff] %vm1489, %v1876
        %1942 = vst.msk [vmem:[%s1939 + $0x10] sm:$0xff] %vm1489, %v1877
        %1943 = vst.msk [vmem:[%s1939 + $0x18] sm:$0xff] %vm1489, %v1878
        %1944 = vst.msk [vmem:[%s1939 + $0x20] sm:$0xff] %vm1489, %v1879
        %1945 = vst.msk [vmem:[%s1939 + $0x28] sm:$0xff] %vm1489, %v1880
        %1946 = vst.msk [vmem:[%s1939 + $0x30] sm:$0xff] %vm1489, %v1881
        %1947 = vst.msk [vmem:[%s1939 + $0x38] sm:$0xff] %vm1489, %v1882
        %1948 = vst.msk [vmem:[%s1939 + $0x40] sm:$0xff] %vm1489, %v1883
        %1949 = vst.msk [vmem:[%s1939 + $0x48] sm:$0xff] %vm1489, %v1884
        %1950 = vst.msk [vmem:[%s1939 + $0x50] sm:$0xff] %vm1489, %v1885
        %1951 = vst.msk [vmem:[%s1939 + $0x58] sm:$0xff] %vm1489, %v1886
        %1952 = vst.msk [vmem:[%s1939 + $0x60] sm:$0xff] %vm1489, %v1887
        %1953 = vst.msk [vmem:[%s1939 + $0x68] sm:$0xff] %vm1489, %v1888
        %1954 = vst.msk [vmem:[%s1939 + $0x70] sm:$0xff] %vm1489, %v1889
        %1955 = vst.msk [vmem:[%s1939 + $0x78] sm:$0xff] %vm1489, %v1890
        %1956 = vst.msk [vmem:[%s1939 + $0x80] sm:$0xff] %vm1489, %v1891
        %1957 = vst.msk [vmem:[%s1939 + $0x88] sm:$0xff] %vm1489, %v1892
        %1958 = vst.msk [vmem:[%s1939 + $0x90] sm:$0xff] %vm1489, %v1893
        %1959 = vst.msk [vmem:[%s1939 + $0x98] sm:$0xff] %vm1489, %v1894
        %1960 = vst.msk [vmem:[%s1939 + $0xa0] sm:$0xff] %vm1489, %v1895
        %1961 = vst.msk [vmem:[%s1939 + $0xa8] sm:$0xff] %vm1489, %v1896
        %1962 = vst.msk [vmem:[%s1939 + $0xb0] sm:$0xff] %vm1489, %v1897
        %1963 = vst.msk [vmem:[%s1939 + $0xb8] sm:$0xff] %vm1489, %v1898
        %1964 = vst.msk [vmem:[%s1939 + $0xc0] sm:$0xff] %vm1489, %v1899
        %1965 = vst.msk [vmem:[%s1939 + $0xc8] sm:$0xff] %vm1489, %v1900
        %1966 = vst.msk [vmem:[%s1939 + $0xd0] sm:$0xff] %vm1489, %v1901
        %1967 = vst.msk [vmem:[%s1939 + $0xd8] sm:$0xff] %vm1489, %v1902
        %1968 = vst.msk [vmem:[%s1939 + $0xe0] sm:$0xff] %vm1489, %v1903
        %1969 = vst.msk [vmem:[%s1939 + $0xe8] sm:$0xff] %vm1489, %v1904
        %1970 = vst.msk [vmem:[%s1939 + $0xf0] sm:$0xff] %vm1489, %v1905
        %1971 = vst.msk [vmem:[%s1939 + $0xf8] sm:$0xff] %vm1489, %v1906
        %1972 = vst.msk [vmem:[%s1939 + $0x100] sm:$0xff] %vm1489, %v1907
        %1973 = vst.msk [vmem:[%s1939 + $0x108] sm:$0xff] %vm1489, %v1908
        %1974 = vst.msk [vmem:[%s1939 + $0x110] sm:$0xff] %vm1489, %v1909
        %1975 = vst.msk [vmem:[%s1939 + $0x118] sm:$0xff] %vm1489, %v1910
        %1976 = vst.msk [vmem:[%s1939 + $0x120] sm:$0xff] %vm1489, %v1911
        %1977 = vst.msk [vmem:[%s1939 + $0x128] sm:$0xff] %vm1489, %v1912
        %1978 = vst.msk [vmem:[%s1939 + $0x130] sm:$0xff] %vm1489, %v1913
        %1979 = vst.msk [vmem:[%s1939 + $0x138] sm:$0xff] %vm1489, %v1914
        %1980 = vst.msk [vmem:[%s1939 + $0x140] sm:$0xff] %vm1489, %v1915
        %1981 = vst.msk [vmem:[%s1939 + $0x148] sm:$0xff] %vm1489, %v1916
        %1982 = vst.msk [vmem:[%s1939 + $0x150] sm:$0xff] %vm1489, %v1917
        %1983 = vst.msk [vmem:[%s1939 + $0x158] sm:$0xff] %vm1489, %v1918
        %1984 = vst.msk [vmem:[%s1939 + $0x160] sm:$0xff] %vm1489, %v1919
        %1985 = vst.msk [vmem:[%s1939 + $0x168] sm:$0xff] %vm1489, %v1920
        %1986 = vst.msk [vmem:[%s1939 + $0x170] sm:$0xff] %vm1489, %v1921
        %1987 = vst.msk [vmem:[%s1939 + $0x178] sm:$0xff] %vm1489, %v1922
        %1988 = vst.msk [vmem:[%s1939 + $0x180] sm:$0xff] %vm1489, %v1923
        %1989 = vst.msk [vmem:[%s1939 + $0x188] sm:$0xff] %vm1489, %v1924
        %1990 = vst.msk [vmem:[%s1939 + $0x190] sm:$0xff] %vm1489, %v1925
        %1991 = vst.msk [vmem:[%s1939 + $0x198] sm:$0xff] %vm1489, %v1926
        %1992 = vst.msk [vmem:[%s1939 + $0x1a0] sm:$0xff] %vm1489, %v1927
        %1993 = vst.msk [vmem:[%s1939 + $0x1a8] sm:$0xff] %vm1489, %v1928
        %1994 = vst.msk [vmem:[%s1939 + $0x1b0] sm:$0xff] %vm1489, %v1929
        %1995 = vst.msk [vmem:[%s1939 + $0x1b8] sm:$0xff] %vm1489, %v1930
        %1996 = vst.msk [vmem:[%s1939 + $0x1c0] sm:$0xff] %vm1489, %v1931
        %1997 = vst.msk [vmem:[%s1939 + $0x1c8] sm:$0xff] %vm1489, %v1932
        %1998 = vst.msk [vmem:[%s1939 + $0x1d0] sm:$0xff] %vm1489, %v1933
        %1999 = vst.msk [vmem:[%s1939 + $0x1d8] sm:$0xff] %vm1489, %v1934
        %2000 = vst.msk [vmem:[%s1939 + $0x1e0] sm:$0xff] %vm1489, %v1935
        %2001 = vst.msk [vmem:[%s1939 + $0x1e8] sm:$0xff] %vm1489, %v1936
        %2002 = vst.msk [vmem:[%s1939 + $0x1f0] sm:$0xff] %vm1489, %v1937
        %2003 = vst.msk [vmem:[%s1939 + $0x1f8] sm:$0xff] %vm1489, %v1938
        %s2004 = scalar_lea.vmem [#allocation2], 1024
        %v2005 = vld [vmem:[%s2004] sm:$0xff]
        %v2006 = vld [vmem:[%s2004 + $0x8] sm:$0xff]
        %v2007 = vld [vmem:[%s2004 + $0x10] sm:$0xff]
        %v2008 = vld [vmem:[%s2004 + $0x18] sm:$0xff]
        %v2009 = vld [vmem:[%s2004 + $0x20] sm:$0xff]
        %v2010 = vld [vmem:[%s2004 + $0x28] sm:$0xff]
        %v2011 = vld [vmem:[%s2004 + $0x30] sm:$0xff]
        %v2012 = vld [vmem:[%s2004 + $0x38] sm:$0xff]
        %v2013 = vld [vmem:[%s2004 + $0x40] sm:$0xff]
        %v2014 = vld [vmem:[%s2004 + $0x48] sm:$0xff]
        %v2015 = vld [vmem:[%s2004 + $0x50] sm:$0xff]
        %v2016 = vld [vmem:[%s2004 + $0x58] sm:$0xff]
        %v2017 = vld [vmem:[%s2004 + $0x60] sm:$0xff]
        %v2018 = vld [vmem:[%s2004 + $0x68] sm:$0xff]
        %v2019 = vld [vmem:[%s2004 + $0x70] sm:$0xff]
        %v2020 = vld [vmem:[%s2004 + $0x78] sm:$0xff]
        %v2021 = vld [vmem:[%s2004 + $0x80] sm:$0xff]
        %v2022 = vld [vmem:[%s2004 + $0x88] sm:$0xff]
        %v2023 = vld [vmem:[%s2004 + $0x90] sm:$0xff]
        %v2024 = vld [vmem:[%s2004 + $0x98] sm:$0xff]
        %v2025 = vld [vmem:[%s2004 + $0xa0] sm:$0xff]
        %v2026 = vld [vmem:[%s2004 + $0xa8] sm:$0xff]
        %v2027 = vld [vmem:[%s2004 + $0xb0] sm:$0xff]
        %v2028 = vld [vmem:[%s2004 + $0xb8] sm:$0xff]
        %v2029 = vld [vmem:[%s2004 + $0xc0] sm:$0xff]
        %v2030 = vld [vmem:[%s2004 + $0xc8] sm:$0xff]
        %v2031 = vld [vmem:[%s2004 + $0xd0] sm:$0xff]
        %v2032 = vld [vmem:[%s2004 + $0xd8] sm:$0xff]
        %v2033 = vld [vmem:[%s2004 + $0xe0] sm:$0xff]
        %v2034 = vld [vmem:[%s2004 + $0xe8] sm:$0xff]
        %v2035 = vld [vmem:[%s2004 + $0xf0] sm:$0xff]
        %v2036 = vld [vmem:[%s2004 + $0xf8] sm:$0xff]
        %v2037 = vld [vmem:[%s2004 + $0x100] sm:$0xff]
        %v2038 = vld [vmem:[%s2004 + $0x108] sm:$0xff]
        %v2039 = vld [vmem:[%s2004 + $0x110] sm:$0xff]
        %v2040 = vld [vmem:[%s2004 + $0x118] sm:$0xff]
        %v2041 = vld [vmem:[%s2004 + $0x120] sm:$0xff]
        %v2042 = vld [vmem:[%s2004 + $0x128] sm:$0xff]
        %v2043 = vld [vmem:[%s2004 + $0x130] sm:$0xff]
        %v2044 = vld [vmem:[%s2004 + $0x138] sm:$0xff]
        %v2045 = vld [vmem:[%s2004 + $0x140] sm:$0xff]
        %v2046 = vld [vmem:[%s2004 + $0x148] sm:$0xff]
        %v2047 = vld [vmem:[%s2004 + $0x150] sm:$0xff]
        %v2048 = vld [vmem:[%s2004 + $0x158] sm:$0xff]
        %v2049 = vld [vmem:[%s2004 + $0x160] sm:$0xff]
        %v2050 = vld [vmem:[%s2004 + $0x168] sm:$0xff]
        %v2051 = vld [vmem:[%s2004 + $0x170] sm:$0xff]
        %v2052 = vld [vmem:[%s2004 + $0x178] sm:$0xff]
        %v2053 = vld [vmem:[%s2004 + $0x180] sm:$0xff]
        %v2054 = vld [vmem:[%s2004 + $0x188] sm:$0xff]
        %v2055 = vld [vmem:[%s2004 + $0x190] sm:$0xff]
        %v2056 = vld [vmem:[%s2004 + $0x198] sm:$0xff]
        %v2057 = vld [vmem:[%s2004 + $0x1a0] sm:$0xff]
        %v2058 = vld [vmem:[%s2004 + $0x1a8] sm:$0xff]
        %v2059 = vld [vmem:[%s2004 + $0x1b0] sm:$0xff]
        %v2060 = vld [vmem:[%s2004 + $0x1b8] sm:$0xff]
        %v2061 = vld [vmem:[%s2004 + $0x1c0] sm:$0xff]
        %v2062 = vld [vmem:[%s2004 + $0x1c8] sm:$0xff]
        %v2063 = vld [vmem:[%s2004 + $0x1d0] sm:$0xff]
        %v2064 = vld [vmem:[%s2004 + $0x1d8] sm:$0xff]
        %v2065 = vld [vmem:[%s2004 + $0x1e0] sm:$0xff]
        %v2066 = vld [vmem:[%s2004 + $0x1e8] sm:$0xff]
        %v2067 = vld [vmem:[%s2004 + $0x1f0] sm:$0xff]
        %v2068 = vld [vmem:[%s2004 + $0x1f8] sm:$0xff]
        %v2069 = vmul.f32 %v2005, %v1161
        %v2070 = vmul.f32 %v2006, %v1161
        %v2071 = vmul.f32 %v2007, %v1161
        %v2072 = vmul.f32 %v2008, %v1161
        %v2073 = vmul.f32 %v2009, %v1161
        %v2074 = vmul.f32 %v2010, %v1161
        %v2075 = vmul.f32 %v2011, %v1161
        %v2076 = vmul.f32 %v2012, %v1161
        %v2077 = vmul.f32 %v2013, %v1161
        %v2078 = vmul.f32 %v2014, %v1161
        %v2079 = vmul.f32 %v2015, %v1161
        %v2080 = vmul.f32 %v2016, %v1161
        %v2081 = vmul.f32 %v2017, %v1161
        %v2082 = vmul.f32 %v2018, %v1161
        %v2083 = vmul.f32 %v2019, %v1161
        %v2084 = vmul.f32 %v2020, %v1161
        %v2085 = vmul.f32 %v2021, %v1161
        %v2086 = vmul.f32 %v2022, %v1161
        %v2087 = vmul.f32 %v2023, %v1161
        %v2088 = vmul.f32 %v2024, %v1161
        %v2089 = vmul.f32 %v2025, %v1161
        %v2090 = vmul.f32 %v2026, %v1161
        %v2091 = vmul.f32 %v2027, %v1161
        %v2092 = vmul.f32 %v2028, %v1161
        %v2093 = vmul.f32 %v2029, %v1161
        %v2094 = vmul.f32 %v2030, %v1161
        %v2095 = vmul.f32 %v2031, %v1161
        %v2096 = vmul.f32 %v2032, %v1161
        %v2097 = vmul.f32 %v2033, %v1161
        %v2098 = vmul.f32 %v2034, %v1161
        %v2099 = vmul.f32 %v2035, %v1161
        %v2100 = vmul.f32 %v2036, %v1161
        %v2101 = vmul.f32 %v2037, %v1161
        %v2102 = vmul.f32 %v2038, %v1161
        %v2103 = vmul.f32 %v2039, %v1161
        %v2104 = vmul.f32 %v2040, %v1161
        %v2105 = vmul.f32 %v2041, %v1161
        %v2106 = vmul.f32 %v2042, %v1161
        %v2107 = vmul.f32 %v2043, %v1161
        %v2108 = vmul.f32 %v2044, %v1161
        %v2109 = vmul.f32 %v2045, %v1161
        %v2110 = vmul.f32 %v2046, %v1161
        %v2111 = vmul.f32 %v2047, %v1161
        %v2112 = vmul.f32 %v2048, %v1161
        %v2113 = vmul.f32 %v2049, %v1161
        %v2114 = vmul.f32 %v2050, %v1161
        %v2115 = vmul.f32 %v2051, %v1161
        %v2116 = vmul.f32 %v2052, %v1161
        %v2117 = vmul.f32 %v2053, %v1161
        %v2118 = vmul.f32 %v2054, %v1161
        %v2119 = vmul.f32 %v2055, %v1161
        %v2120 = vmul.f32 %v2056, %v1161
        %v2121 = vmul.f32 %v2057, %v1161
        %v2122 = vmul.f32 %v2058, %v1161
        %v2123 = vmul.f32 %v2059, %v1161
        %v2124 = vmul.f32 %v2060, %v1161
        %v2125 = vmul.f32 %v2061, %v1161
        %v2126 = vmul.f32 %v2062, %v1161
        %v2127 = vmul.f32 %v2063, %v1161
        %v2128 = vmul.f32 %v2064, %v1161
        %v2129 = vmul.f32 %v2065, %v1161
        %v2130 = vmul.f32 %v2066, %v1161
        %v2131 = vmul.f32 %v2067, %v1161
        %v2132 = vmul.f32 %v2068, %v1161
        %v2133 = vadd.f32 %v2069, %v1231
        %v2134 = vadd.f32 %v2070, %v1231
        %v2135 = vadd.f32 %v2071, %v1231
        %v2136 = vadd.f32 %v2072, %v1231
        %v2137 = vadd.f32 %v2073, %v1231
        %v2138 = vadd.f32 %v2074, %v1231
        %v2139 = vadd.f32 %v2075, %v1231
        %v2140 = vadd.f32 %v2076, %v1231
        %v2141 = vadd.f32 %v2077, %v1231
        %v2142 = vadd.f32 %v2078, %v1231
        %v2143 = vadd.f32 %v2079, %v1231
        %v2144 = vadd.f32 %v2080, %v1231
        %v2145 = vadd.f32 %v2081, %v1231
        %v2146 = vadd.f32 %v2082, %v1231
        %v2147 = vadd.f32 %v2083, %v1231
        %v2148 = vadd.f32 %v2084, %v1231
        %v2149 = vadd.f32 %v2085, %v1231
        %v2150 = vadd.f32 %v2086, %v1231
        %v2151 = vadd.f32 %v2087, %v1231
        %v2152 = vadd.f32 %v2088, %v1231
        %v2153 = vadd.f32 %v2089, %v1231
        %v2154 = vadd.f32 %v2090, %v1231
        %v2155 = vadd.f32 %v2091, %v1231
        %v2156 = vadd.f32 %v2092, %v1231
        %v2157 = vadd.f32 %v2093, %v1231
        %v2158 = vadd.f32 %v2094, %v1231
        %v2159 = vadd.f32 %v2095, %v1231
        %v2160 = vadd.f32 %v2096, %v1231
        %v2161 = vadd.f32 %v2097, %v1231
        %v2162 = vadd.f32 %v2098, %v1231
        %v2163 = vadd.f32 %v2099, %v1231
        %v2164 = vadd.f32 %v2100, %v1231
        %v2165 = vadd.f32 %v2101, %v1231
        %v2166 = vadd.f32 %v2102, %v1231
        %v2167 = vadd.f32 %v2103, %v1231
        %v2168 = vadd.f32 %v2104, %v1231
        %v2169 = vadd.f32 %v2105, %v1231
        %v2170 = vadd.f32 %v2106, %v1231
        %v2171 = vadd.f32 %v2107, %v1231
        %v2172 = vadd.f32 %v2108, %v1231
        %v2173 = vadd.f32 %v2109, %v1231
        %v2174 = vadd.f32 %v2110, %v1231
        %v2175 = vadd.f32 %v2111, %v1231
        %v2176 = vadd.f32 %v2112, %v1231
        %v2177 = vadd.f32 %v2113, %v1231
        %v2178 = vadd.f32 %v2114, %v1231
        %v2179 = vadd.f32 %v2115, %v1231
        %v2180 = vadd.f32 %v2116, %v1231
        %v2181 = vadd.f32 %v2117, %v1231
        %v2182 = vadd.f32 %v2118, %v1231
        %v2183 = vadd.f32 %v2119, %v1231
        %v2184 = vadd.f32 %v2120, %v1231
        %v2185 = vadd.f32 %v2121, %v1231
        %v2186 = vadd.f32 %v2122, %v1231
        %v2187 = vadd.f32 %v2123, %v1231
        %v2188 = vadd.f32 %v2124, %v1231
        %v2189 = vadd.f32 %v2125, %v1231
        %v2190 = vadd.f32 %v2126, %v1231
        %v2191 = vadd.f32 %v2127, %v1231
        %v2192 = vadd.f32 %v2128, %v1231
        %v2193 = vadd.f32 %v2129, %v1231
        %v2194 = vadd.f32 %v2130, %v1231
        %v2195 = vadd.f32 %v2131, %v1231
        %v2196 = vadd.f32 %v2132, %v1231
        %vm2197 = vcmp.gt.f32.partialorder %v2133, 0.0
        %vm2198 = vcmp.gt.f32.partialorder %v2134, 0.0
        %vm2199 = vcmp.gt.f32.partialorder %v2135, 0.0
        %vm2200 = vcmp.gt.f32.partialorder %v2136, 0.0
        %vm2201 = vcmp.gt.f32.partialorder %v2137, 0.0
        %vm2202 = vcmp.gt.f32.partialorder %v2138, 0.0
        %vm2203 = vcmp.gt.f32.partialorder %v2139, 0.0
        %vm2204 = vcmp.gt.f32.partialorder %v2140, 0.0
        %vm2205 = vcmp.gt.f32.partialorder %v2141, 0.0
        %vm2206 = vcmp.gt.f32.partialorder %v2142, 0.0
        %vm2207 = vcmp.gt.f32.partialorder %v2143, 0.0
        %vm2208 = vcmp.gt.f32.partialorder %v2144, 0.0
        %vm2209 = vcmp.gt.f32.partialorder %v2145, 0.0
        %vm2210 = vcmp.gt.f32.partialorder %v2146, 0.0
        %vm2211 = vcmp.gt.f32.partialorder %v2147, 0.0
        %vm2212 = vcmp.gt.f32.partialorder %v2148, 0.0
        %vm2213 = vcmp.gt.f32.partialorder %v2149, 0.0
        %vm2214 = vcmp.gt.f32.partialorder %v2150, 0.0
        %vm2215 = vcmp.gt.f32.partialorder %v2151, 0.0
        %vm2216 = vcmp.gt.f32.partialorder %v2152, 0.0
        %vm2217 = vcmp.gt.f32.partialorder %v2153, 0.0
        %vm2218 = vcmp.gt.f32.partialorder %v2154, 0.0
        %vm2219 = vcmp.gt.f32.partialorder %v2155, 0.0
        %vm2220 = vcmp.gt.f32.partialorder %v2156, 0.0
        %vm2221 = vcmp.gt.f32.partialorder %v2157, 0.0
        %vm2222 = vcmp.gt.f32.partialorder %v2158, 0.0
        %vm2223 = vcmp.gt.f32.partialorder %v2159, 0.0
        %vm2224 = vcmp.gt.f32.partialorder %v2160, 0.0
        %vm2225 = vcmp.gt.f32.partialorder %v2161, 0.0
        %vm2226 = vcmp.gt.f32.partialorder %v2162, 0.0
        %vm2227 = vcmp.gt.f32.partialorder %v2163, 0.0
        %vm2228 = vcmp.gt.f32.partialorder %v2164, 0.0
        %vm2229 = vcmp.gt.f32.partialorder %v2165, 0.0
        %vm2230 = vcmp.gt.f32.partialorder %v2166, 0.0
        %vm2231 = vcmp.gt.f32.partialorder %v2167, 0.0
        %vm2232 = vcmp.gt.f32.partialorder %v2168, 0.0
        %vm2233 = vcmp.gt.f32.partialorder %v2169, 0.0
        %vm2234 = vcmp.gt.f32.partialorder %v2170, 0.0
        %vm2235 = vcmp.gt.f32.partialorder %v2171, 0.0
        %vm2236 = vcmp.gt.f32.partialorder %v2172, 0.0
        %vm2237 = vcmp.gt.f32.partialorder %v2173, 0.0
        %vm2238 = vcmp.gt.f32.partialorder %v2174, 0.0
        %vm2239 = vcmp.gt.f32.partialorder %v2175, 0.0
        %vm2240 = vcmp.gt.f32.partialorder %v2176, 0.0
        %vm2241 = vcmp.gt.f32.partialorder %v2177, 0.0
        %vm2242 = vcmp.gt.f32.partialorder %v2178, 0.0
        %vm2243 = vcmp.gt.f32.partialorder %v2179, 0.0
        %vm2244 = vcmp.gt.f32.partialorder %v2180, 0.0
        %vm2245 = vcmp.gt.f32.partialorder %v2181, 0.0
        %vm2246 = vcmp.gt.f32.partialorder %v2182, 0.0
        %vm2247 = vcmp.gt.f32.partialorder %v2183, 0.0
        %vm2248 = vcmp.gt.f32.partialorder %v2184, 0.0
        %vm2249 = vcmp.gt.f32.partialorder %v2185, 0.0
        %vm2250 = vcmp.gt.f32.partialorder %v2186, 0.0
        %vm2251 = vcmp.gt.f32.partialorder %v2187, 0.0
        %vm2252 = vcmp.gt.f32.partialorder %v2188, 0.0
        %vm2253 = vcmp.gt.f32.partialorder %v2189, 0.0
        %vm2254 = vcmp.gt.f32.partialorder %v2190, 0.0
        %vm2255 = vcmp.gt.f32.partialorder %v2191, 0.0
        %vm2256 = vcmp.gt.f32.partialorder %v2192, 0.0
        %vm2257 = vcmp.gt.f32.partialorder %v2193, 0.0
        %vm2258 = vcmp.gt.f32.partialorder %v2194, 0.0
        %vm2259 = vcmp.gt.f32.partialorder %v2195, 0.0
        %vm2260 = vcmp.gt.f32.partialorder %v2196, 0.0
        %v2261 = vmul.f32 %v2133, 0.2
        %v2262 = vmul.f32 %v2134, 0.2
        %v2263 = vmul.f32 %v2135, 0.2
        %v2264 = vmul.f32 %v2136, 0.2
        %v2265 = vmul.f32 %v2137, 0.2
        %v2266 = vmul.f32 %v2138, 0.2
        %v2267 = vmul.f32 %v2139, 0.2
        %v2268 = vmul.f32 %v2140, 0.2
        %v2269 = vmul.f32 %v2141, 0.2
        %v2270 = vmul.f32 %v2142, 0.2
        %v2271 = vmul.f32 %v2143, 0.2
        %v2272 = vmul.f32 %v2144, 0.2
        %v2273 = vmul.f32 %v2145, 0.2
        %v2274 = vmul.f32 %v2146, 0.2
        %v2275 = vmul.f32 %v2147, 0.2
        %v2276 = vmul.f32 %v2148, 0.2
        %v2277 = vmul.f32 %v2149, 0.2
        %v2278 = vmul.f32 %v2150, 0.2
        %v2279 = vmul.f32 %v2151, 0.2
        %v2280 = vmul.f32 %v2152, 0.2
        %v2281 = vmul.f32 %v2153, 0.2
        %v2282 = vmul.f32 %v2154, 0.2
        %v2283 = vmul.f32 %v2155, 0.2
        %v2284 = vmul.f32 %v2156, 0.2
        %v2285 = vmul.f32 %v2157, 0.2
        %v2286 = vmul.f32 %v2158, 0.2
        %v2287 = vmul.f32 %v2159, 0.2
        %v2288 = vmul.f32 %v2160, 0.2
        %v2289 = vmul.f32 %v2161, 0.2
        %v2290 = vmul.f32 %v2162, 0.2
        %v2291 = vmul.f32 %v2163, 0.2
        %v2292 = vmul.f32 %v2164, 0.2
        %v2293 = vmul.f32 %v2165, 0.2
        %v2294 = vmul.f32 %v2166, 0.2
        %v2295 = vmul.f32 %v2167, 0.2
        %v2296 = vmul.f32 %v2168, 0.2
        %v2297 = vmul.f32 %v2169, 0.2
        %v2298 = vmul.f32 %v2170, 0.2
        %v2299 = vmul.f32 %v2171, 0.2
        %v2300 = vmul.f32 %v2172, 0.2
        %v2301 = vmul.f32 %v2173, 0.2
        %v2302 = vmul.f32 %v2174, 0.2
        %v2303 = vmul.f32 %v2175, 0.2
        %v2304 = vmul.f32 %v2176, 0.2
        %v2305 = vmul.f32 %v2177, 0.2
        %v2306 = vmul.f32 %v2178, 0.2
        %v2307 = vmul.f32 %v2179, 0.2
        %v2308 = vmul.f32 %v2180, 0.2
        %v2309 = vmul.f32 %v2181, 0.2
        %v2310 = vmul.f32 %v2182, 0.2
        %v2311 = vmul.f32 %v2183, 0.2
        %v2312 = vmul.f32 %v2184, 0.2
        %v2313 = vmul.f32 %v2185, 0.2
        %v2314 = vmul.f32 %v2186, 0.2
        %v2315 = vmul.f32 %v2187, 0.2
        %v2316 = vmul.f32 %v2188, 0.2
        %v2317 = vmul.f32 %v2189, 0.2
        %v2318 = vmul.f32 %v2190, 0.2
        %v2319 = vmul.f32 %v2191, 0.2
        %v2320 = vmul.f32 %v2192, 0.2
        %v2321 = vmul.f32 %v2193, 0.2
        %v2322 = vmul.f32 %v2194, 0.2
        %v2323 = vmul.f32 %v2195, 0.2
        %v2324 = vmul.f32 %v2196, 0.2
        %v2325 = vsel %vm2197, %v2133, %v2261
        %v2326 = vsel %vm2198, %v2134, %v2262
        %v2327 = vsel %vm2199, %v2135, %v2263
        %v2328 = vsel %vm2200, %v2136, %v2264
        %v2329 = vsel %vm2201, %v2137, %v2265
        %v2330 = vsel %vm2202, %v2138, %v2266
        %v2331 = vsel %vm2203, %v2139, %v2267
        %v2332 = vsel %vm2204, %v2140, %v2268
        %v2333 = vsel %vm2205, %v2141, %v2269
        %v2334 = vsel %vm2206, %v2142, %v2270
        %v2335 = vsel %vm2207, %v2143, %v2271
        %v2336 = vsel %vm2208, %v2144, %v2272
        %v2337 = vsel %vm2209, %v2145, %v2273
        %v2338 = vsel %vm2210, %v2146, %v2274
        %v2339 = vsel %vm2211, %v2147, %v2275
        %v2340 = vsel %vm2212, %v2148, %v2276
        %v2341 = vsel %vm2213, %v2149, %v2277
        %v2342 = vsel %vm2214, %v2150, %v2278
        %v2343 = vsel %vm2215, %v2151, %v2279
        %v2344 = vsel %vm2216, %v2152, %v2280
        %v2345 = vsel %vm2217, %v2153, %v2281
        %v2346 = vsel %vm2218, %v2154, %v2282
        %v2347 = vsel %vm2219, %v2155, %v2283
        %v2348 = vsel %vm2220, %v2156, %v2284
        %v2349 = vsel %vm2221, %v2157, %v2285
        %v2350 = vsel %vm2222, %v2158, %v2286
        %v2351 = vsel %vm2223, %v2159, %v2287
        %v2352 = vsel %vm2224, %v2160, %v2288
        %v2353 = vsel %vm2225, %v2161, %v2289
        %v2354 = vsel %vm2226, %v2162, %v2290
        %v2355 = vsel %vm2227, %v2163, %v2291
        %v2356 = vsel %vm2228, %v2164, %v2292
        %v2357 = vsel %vm2229, %v2165, %v2293
        %v2358 = vsel %vm2230, %v2166, %v2294
        %v2359 = vsel %vm2231, %v2167, %v2295
        %v2360 = vsel %vm2232, %v2168, %v2296
        %v2361 = vsel %vm2233, %v2169, %v2297
        %v2362 = vsel %vm2234, %v2170, %v2298
        %v2363 = vsel %vm2235, %v2171, %v2299
        %v2364 = vsel %vm2236, %v2172, %v2300
        %v2365 = vsel %vm2237, %v2173, %v2301
        %v2366 = vsel %vm2238, %v2174, %v2302
        %v2367 = vsel %vm2239, %v2175, %v2303
        %v2368 = vsel %vm2240, %v2176, %v2304
        %v2369 = vsel %vm2241, %v2177, %v2305
        %v2370 = vsel %vm2242, %v2178, %v2306
        %v2371 = vsel %vm2243, %v2179, %v2307
        %v2372 = vsel %vm2244, %v2180, %v2308
        %v2373 = vsel %vm2245, %v2181, %v2309
        %v2374 = vsel %vm2246, %v2182, %v2310
        %v2375 = vsel %vm2247, %v2183, %v2311
        %v2376 = vsel %vm2248, %v2184, %v2312
        %v2377 = vsel %vm2249, %v2185, %v2313
        %v2378 = vsel %vm2250, %v2186, %v2314
        %v2379 = vsel %vm2251, %v2187, %v2315
        %v2380 = vsel %vm2252, %v2188, %v2316
        %v2381 = vsel %vm2253, %v2189, %v2317
        %v2382 = vsel %vm2254, %v2190, %v2318
        %v2383 = vsel %vm2255, %v2191, %v2319
        %v2384 = vsel %vm2256, %v2192, %v2320
        %v2385 = vsel %vm2257, %v2193, %v2321
        %v2386 = vsel %vm2258, %v2194, %v2322
        %v2387 = vsel %vm2259, %v2195, %v2323
        %v2388 = vsel %vm2260, %v2196, %v2324
        %s2389 = scalar_lea.vmem %s4, 1024
        %2390 = vst.msk [vmem:[%s2389] sm:$0xff] %vm1489, %v2325
        %2391 = vst.msk [vmem:[%s2389 + $0x8] sm:$0xff] %vm1489, %v2326
        %2392 = vst.msk [vmem:[%s2389 + $0x10] sm:$0xff] %vm1489, %v2327
        %2393 = vst.msk [vmem:[%s2389 + $0x18] sm:$0xff] %vm1489, %v2328
        %2394 = vst.msk [vmem:[%s2389 + $0x20] sm:$0xff] %vm1489, %v2329
        %2395 = vst.msk [vmem:[%s2389 + $0x28] sm:$0xff] %vm1489, %v2330
        %2396 = vst.msk [vmem:[%s2389 + $0x30] sm:$0xff] %vm1489, %v2331
        %2397 = vst.msk [vmem:[%s2389 + $0x38] sm:$0xff] %vm1489, %v2332
        %2398 = vst.msk [vmem:[%s2389 + $0x40] sm:$0xff] %vm1489, %v2333
        %2399 = vst.msk [vmem:[%s2389 + $0x48] sm:$0xff] %vm1489, %v2334
        %2400 = vst.msk [vmem:[%s2389 + $0x50] sm:$0xff] %vm1489, %v2335
        %2401 = vst.msk [vmem:[%s2389 + $0x58] sm:$0xff] %vm1489, %v2336
        %2402 = vst.msk [vmem:[%s2389 + $0x60] sm:$0xff] %vm1489, %v2337
        %2403 = vst.msk [vmem:[%s2389 + $0x68] sm:$0xff] %vm1489, %v2338
        %2404 = vst.msk [vmem:[%s2389 + $0x70] sm:$0xff] %vm1489, %v2339
        %2405 = vst.msk [vmem:[%s2389 + $0x78] sm:$0xff] %vm1489, %v2340
        %2406 = vst.msk [vmem:[%s2389 + $0x80] sm:$0xff] %vm1489, %v2341
        %2407 = vst.msk [vmem:[%s2389 + $0x88] sm:$0xff] %vm1489, %v2342
        %2408 = vst.msk [vmem:[%s2389 + $0x90] sm:$0xff] %vm1489, %v2343
        %2409 = vst.msk [vmem:[%s2389 + $0x98] sm:$0xff] %vm1489, %v2344
        %2410 = vst.msk [vmem:[%s2389 + $0xa0] sm:$0xff] %vm1489, %v2345
        %2411 = vst.msk [vmem:[%s2389 + $0xa8] sm:$0xff] %vm1489, %v2346
        %2412 = vst.msk [vmem:[%s2389 + $0xb0] sm:$0xff] %vm1489, %v2347
        %2413 = vst.msk [vmem:[%s2389 + $0xb8] sm:$0xff] %vm1489, %v2348
        %2414 = vst.msk [vmem:[%s2389 + $0xc0] sm:$0xff] %vm1489, %v2349
        %2415 = vst.msk [vmem:[%s2389 + $0xc8] sm:$0xff] %vm1489, %v2350
        %2416 = vst.msk [vmem:[%s2389 + $0xd0] sm:$0xff] %vm1489, %v2351
        %2417 = vst.msk [vmem:[%s2389 + $0xd8] sm:$0xff] %vm1489, %v2352
        %2418 = vst.msk [vmem:[%s2389 + $0xe0] sm:$0xff] %vm1489, %v2353
        %2419 = vst.msk [vmem:[%s2389 + $0xe8] sm:$0xff] %vm1489, %v2354
        %2420 = vst.msk [vmem:[%s2389 + $0xf0] sm:$0xff] %vm1489, %v2355
        %2421 = vst.msk [vmem:[%s2389 + $0xf8] sm:$0xff] %vm1489, %v2356
        %2422 = vst.msk [vmem:[%s2389 + $0x100] sm:$0xff] %vm1489, %v2357
        %2423 = vst.msk [vmem:[%s2389 + $0x108] sm:$0xff] %vm1489, %v2358
        %2424 = vst.msk [vmem:[%s2389 + $0x110] sm:$0xff] %vm1489, %v2359
        %2425 = vst.msk [vmem:[%s2389 + $0x118] sm:$0xff] %vm1489, %v2360
        %2426 = vst.msk [vmem:[%s2389 + $0x120] sm:$0xff] %vm1489, %v2361
        %2427 = vst.msk [vmem:[%s2389 + $0x128] sm:$0xff] %vm1489, %v2362
        %2428 = vst.msk [vmem:[%s2389 + $0x130] sm:$0xff] %vm1489, %v2363
        %2429 = vst.msk [vmem:[%s2389 + $0x138] sm:$0xff] %vm1489, %v2364
        %2430 = vst.msk [vmem:[%s2389 + $0x140] sm:$0xff] %vm1489, %v2365
        %2431 = vst.msk [vmem:[%s2389 + $0x148] sm:$0xff] %vm1489, %v2366
        %2432 = vst.msk [vmem:[%s2389 + $0x150] sm:$0xff] %vm1489, %v2367
        %2433 = vst.msk [vmem:[%s2389 + $0x158] sm:$0xff] %vm1489, %v2368
        %2434 = vst.msk [vmem:[%s2389 + $0x160] sm:$0xff] %vm1489, %v2369
        %2435 = vst.msk [vmem:[%s2389 + $0x168] sm:$0xff] %vm1489, %v2370
        %2436 = vst.msk [vmem:[%s2389 + $0x170] sm:$0xff] %vm1489, %v2371
        %2437 = vst.msk [vmem:[%s2389 + $0x178] sm:$0xff] %vm1489, %v2372
        %2438 = vst.msk [vmem:[%s2389 + $0x180] sm:$0xff] %vm1489, %v2373
        %2439 = vst.msk [vmem:[%s2389 + $0x188] sm:$0xff] %vm1489, %v2374
        %2440 = vst.msk [vmem:[%s2389 + $0x190] sm:$0xff] %vm1489, %v2375
        %2441 = vst.msk [vmem:[%s2389 + $0x198] sm:$0xff] %vm1489, %v2376
        %2442 = vst.msk [vmem:[%s2389 + $0x1a0] sm:$0xff] %vm1489, %v2377
        %2443 = vst.msk [vmem:[%s2389 + $0x1a8] sm:$0xff] %vm1489, %v2378
        %2444 = vst.msk [vmem:[%s2389 + $0x1b0] sm:$0xff] %vm1489, %v2379
        %2445 = vst.msk [vmem:[%s2389 + $0x1b8] sm:$0xff] %vm1489, %v2380
        %2446 = vst.msk [vmem:[%s2389 + $0x1c0] sm:$0xff] %vm1489, %v2381
        %2447 = vst.msk [vmem:[%s2389 + $0x1c8] sm:$0xff] %vm1489, %v2382
        %2448 = vst.msk [vmem:[%s2389 + $0x1d0] sm:$0xff] %vm1489, %v2383
        %2449 = vst.msk [vmem:[%s2389 + $0x1d8] sm:$0xff] %vm1489, %v2384
        %2450 = vst.msk [vmem:[%s2389 + $0x1e0] sm:$0xff] %vm1489, %v2385
        %2451 = vst.msk [vmem:[%s2389 + $0x1e8] sm:$0xff] %vm1489, %v2386
        %2452 = vst.msk [vmem:[%s2389 + $0x1f0] sm:$0xff] %vm1489, %v2387
        %2453 = vst.msk [vmem:[%s2389 + $0x1f8] sm:$0xff] %vm1489, %v2388
        %s2454 = scalar_lea.vmem [#allocation2], 1536
        %v2455 = vld [vmem:[%s2454] sm:$0xff]
        %v2456 = vld [vmem:[%s2454 + $0x8] sm:$0xff]
        %v2457 = vld [vmem:[%s2454 + $0x10] sm:$0xff]
        %v2458 = vld [vmem:[%s2454 + $0x18] sm:$0xff]
        %v2459 = vld [vmem:[%s2454 + $0x20] sm:$0xff]
        %v2460 = vld [vmem:[%s2454 + $0x28] sm:$0xff]
        %v2461 = vld [vmem:[%s2454 + $0x30] sm:$0xff]
        %v2462 = vld [vmem:[%s2454 + $0x38] sm:$0xff]
        %v2463 = vld [vmem:[%s2454 + $0x40] sm:$0xff]
        %v2464 = vld [vmem:[%s2454 + $0x48] sm:$0xff]
        %v2465 = vld [vmem:[%s2454 + $0x50] sm:$0xff]
        %v2466 = vld [vmem:[%s2454 + $0x58] sm:$0xff]
        %v2467 = vld [vmem:[%s2454 + $0x60] sm:$0xff]
        %v2468 = vld [vmem:[%s2454 + $0x68] sm:$0xff]
        %v2469 = vld [vmem:[%s2454 + $0x70] sm:$0xff]
        %v2470 = vld [vmem:[%s2454 + $0x78] sm:$0xff]
        %v2471 = vld [vmem:[%s2454 + $0x80] sm:$0xff]
        %v2472 = vld [vmem:[%s2454 + $0x88] sm:$0xff]
        %v2473 = vld [vmem:[%s2454 + $0x90] sm:$0xff]
        %v2474 = vld [vmem:[%s2454 + $0x98] sm:$0xff]
        %v2475 = vld [vmem:[%s2454 + $0xa0] sm:$0xff]
        %v2476 = vld [vmem:[%s2454 + $0xa8] sm:$0xff]
        %v2477 = vld [vmem:[%s2454 + $0xb0] sm:$0xff]
        %v2478 = vld [vmem:[%s2454 + $0xb8] sm:$0xff]
        %v2479 = vld [vmem:[%s2454 + $0xc0] sm:$0xff]
        %v2480 = vld [vmem:[%s2454 + $0xc8] sm:$0xff]
        %v2481 = vld [vmem:[%s2454 + $0xd0] sm:$0xff]
        %v2482 = vld [vmem:[%s2454 + $0xd8] sm:$0xff]
        %v2483 = vld [vmem:[%s2454 + $0xe0] sm:$0xff]
        %v2484 = vld [vmem:[%s2454 + $0xe8] sm:$0xff]
        %v2485 = vld [vmem:[%s2454 + $0xf0] sm:$0xff]
        %v2486 = vld [vmem:[%s2454 + $0xf8] sm:$0xff]
        %v2487 = vld [vmem:[%s2454 + $0x100] sm:$0xff]
        %v2488 = vld [vmem:[%s2454 + $0x108] sm:$0xff]
        %v2489 = vld [vmem:[%s2454 + $0x110] sm:$0xff]
        %v2490 = vld [vmem:[%s2454 + $0x118] sm:$0xff]
        %v2491 = vld [vmem:[%s2454 + $0x120] sm:$0xff]
        %v2492 = vld [vmem:[%s2454 + $0x128] sm:$0xff]
        %v2493 = vld [vmem:[%s2454 + $0x130] sm:$0xff]
        %v2494 = vld [vmem:[%s2454 + $0x138] sm:$0xff]
        %v2495 = vld [vmem:[%s2454 + $0x140] sm:$0xff]
        %v2496 = vld [vmem:[%s2454 + $0x148] sm:$0xff]
        %v2497 = vld [vmem:[%s2454 + $0x150] sm:$0xff]
        %v2498 = vld [vmem:[%s2454 + $0x158] sm:$0xff]
        %v2499 = vld [vmem:[%s2454 + $0x160] sm:$0xff]
        %v2500 = vld [vmem:[%s2454 + $0x168] sm:$0xff]
        %v2501 = vld [vmem:[%s2454 + $0x170] sm:$0xff]
        %v2502 = vld [vmem:[%s2454 + $0x178] sm:$0xff]
        %v2503 = vld [vmem:[%s2454 + $0x180] sm:$0xff]
        %v2504 = vld [vmem:[%s2454 + $0x188] sm:$0xff]
        %v2505 = vld [vmem:[%s2454 + $0x190] sm:$0xff]
        %v2506 = vld [vmem:[%s2454 + $0x198] sm:$0xff]
        %v2507 = vld [vmem:[%s2454 + $0x1a0] sm:$0xff]
        %v2508 = vld [vmem:[%s2454 + $0x1a8] sm:$0xff]
        %v2509 = vld [vmem:[%s2454 + $0x1b0] sm:$0xff]
        %v2510 = vld [vmem:[%s2454 + $0x1b8] sm:$0xff]
        %v2511 = vld [vmem:[%s2454 + $0x1c0] sm:$0xff]
        %v2512 = vld [vmem:[%s2454 + $0x1c8] sm:$0xff]
        %v2513 = vld [vmem:[%s2454 + $0x1d0] sm:$0xff]
        %v2514 = vld [vmem:[%s2454 + $0x1d8] sm:$0xff]
        %v2515 = vld [vmem:[%s2454 + $0x1e0] sm:$0xff]
        %v2516 = vld [vmem:[%s2454 + $0x1e8] sm:$0xff]
        %v2517 = vld [vmem:[%s2454 + $0x1f0] sm:$0xff]
        %v2518 = vld [vmem:[%s2454 + $0x1f8] sm:$0xff]
        %v2519 = vmul.f32 %v2455, %v1161
        %v2520 = vmul.f32 %v2456, %v1161
        %v2521 = vmul.f32 %v2457, %v1161
        %v2522 = vmul.f32 %v2458, %v1161
        %v2523 = vmul.f32 %v2459, %v1161
        %v2524 = vmul.f32 %v2460, %v1161
        %v2525 = vmul.f32 %v2461, %v1161
        %v2526 = vmul.f32 %v2462, %v1161
        %v2527 = vmul.f32 %v2463, %v1161
        %v2528 = vmul.f32 %v2464, %v1161
        %v2529 = vmul.f32 %v2465, %v1161
        %v2530 = vmul.f32 %v2466, %v1161
        %v2531 = vmul.f32 %v2467, %v1161
        %v2532 = vmul.f32 %v2468, %v1161
        %v2533 = vmul.f32 %v2469, %v1161
        %v2534 = vmul.f32 %v2470, %v1161
        %v2535 = vmul.f32 %v2471, %v1161
        %v2536 = vmul.f32 %v2472, %v1161
        %v2537 = vmul.f32 %v2473, %v1161
        %v2538 = vmul.f32 %v2474, %v1161
        %v2539 = vmul.f32 %v2475, %v1161
        %v2540 = vmul.f32 %v2476, %v1161
        %v2541 = vmul.f32 %v2477, %v1161
        %v2542 = vmul.f32 %v2478, %v1161
        %v2543 = vmul.f32 %v2479, %v1161
        %v2544 = vmul.f32 %v2480, %v1161
        %v2545 = vmul.f32 %v2481, %v1161
        %v2546 = vmul.f32 %v2482, %v1161
        %v2547 = vmul.f32 %v2483, %v1161
        %v2548 = vmul.f32 %v2484, %v1161
        %v2549 = vmul.f32 %v2485, %v1161
        %v2550 = vmul.f32 %v2486, %v1161
        %v2551 = vmul.f32 %v2487, %v1161
        %v2552 = vmul.f32 %v2488, %v1161
        %v2553 = vmul.f32 %v2489, %v1161
        %v2554 = vmul.f32 %v2490, %v1161
        %v2555 = vmul.f32 %v2491, %v1161
        %v2556 = vmul.f32 %v2492, %v1161
        %v2557 = vmul.f32 %v2493, %v1161
        %v2558 = vmul.f32 %v2494, %v1161
        %v2559 = vmul.f32 %v2495, %v1161
        %v2560 = vmul.f32 %v2496, %v1161
        %v2561 = vmul.f32 %v2497, %v1161
        %v2562 = vmul.f32 %v2498, %v1161
        %v2563 = vmul.f32 %v2499, %v1161
        %v2564 = vmul.f32 %v2500, %v1161
        %v2565 = vmul.f32 %v2501, %v1161
        %v2566 = vmul.f32 %v2502, %v1161
        %v2567 = vmul.f32 %v2503, %v1161
        %v2568 = vmul.f32 %v2504, %v1161
        %v2569 = vmul.f32 %v2505, %v1161
        %v2570 = vmul.f32 %v2506, %v1161
        %v2571 = vmul.f32 %v2507, %v1161
        %v2572 = vmul.f32 %v2508, %v1161
        %v2573 = vmul.f32 %v2509, %v1161
        %v2574 = vmul.f32 %v2510, %v1161
        %v2575 = vmul.f32 %v2511, %v1161
        %v2576 = vmul.f32 %v2512, %v1161
        %v2577 = vmul.f32 %v2513, %v1161
        %v2578 = vmul.f32 %v2514, %v1161
        %v2579 = vmul.f32 %v2515, %v1161
        %v2580 = vmul.f32 %v2516, %v1161
        %v2581 = vmul.f32 %v2517, %v1161
        %v2582 = vmul.f32 %v2518, %v1161
        %v2583 = vadd.f32 %v2519, %v1231
        %v2584 = vadd.f32 %v2520, %v1231
        %v2585 = vadd.f32 %v2521, %v1231
        %v2586 = vadd.f32 %v2522, %v1231
        %v2587 = vadd.f32 %v2523, %v1231
        %v2588 = vadd.f32 %v2524, %v1231
        %v2589 = vadd.f32 %v2525, %v1231
        %v2590 = vadd.f32 %v2526, %v1231
        %v2591 = vadd.f32 %v2527, %v1231
        %v2592 = vadd.f32 %v2528, %v1231
        %v2593 = vadd.f32 %v2529, %v1231
        %v2594 = vadd.f32 %v2530, %v1231
        %v2595 = vadd.f32 %v2531, %v1231
        %v2596 = vadd.f32 %v2532, %v1231
        %v2597 = vadd.f32 %v2533, %v1231
        %v2598 = vadd.f32 %v2534, %v1231
        %v2599 = vadd.f32 %v2535, %v1231
        %v2600 = vadd.f32 %v2536, %v1231
        %v2601 = vadd.f32 %v2537, %v1231
        %v2602 = vadd.f32 %v2538, %v1231
        %v2603 = vadd.f32 %v2539, %v1231
        %v2604 = vadd.f32 %v2540, %v1231
        %v2605 = vadd.f32 %v2541, %v1231
        %v2606 = vadd.f32 %v2542, %v1231
        %v2607 = vadd.f32 %v2543, %v1231
        %v2608 = vadd.f32 %v2544, %v1231
        %v2609 = vadd.f32 %v2545, %v1231
        %v2610 = vadd.f32 %v2546, %v1231
        %v2611 = vadd.f32 %v2547, %v1231
        %v2612 = vadd.f32 %v2548, %v1231
        %v2613 = vadd.f32 %v2549, %v1231
        %v2614 = vadd.f32 %v2550, %v1231
        %v2615 = vadd.f32 %v2551, %v1231
        %v2616 = vadd.f32 %v2552, %v1231
        %v2617 = vadd.f32 %v2553, %v1231
        %v2618 = vadd.f32 %v2554, %v1231
        %v2619 = vadd.f32 %v2555, %v1231
        %v2620 = vadd.f32 %v2556, %v1231
        %v2621 = vadd.f32 %v2557, %v1231
        %v2622 = vadd.f32 %v2558, %v1231
        %v2623 = vadd.f32 %v2559, %v1231
        %v2624 = vadd.f32 %v2560, %v1231
        %v2625 = vadd.f32 %v2561, %v1231
        %v2626 = vadd.f32 %v2562, %v1231
        %v2627 = vadd.f32 %v2563, %v1231
        %v2628 = vadd.f32 %v2564, %v1231
        %v2629 = vadd.f32 %v2565, %v1231
        %v2630 = vadd.f32 %v2566, %v1231
        %v2631 = vadd.f32 %v2567, %v1231
        %v2632 = vadd.f32 %v2568, %v1231
        %v2633 = vadd.f32 %v2569, %v1231
        %v2634 = vadd.f32 %v2570, %v1231
        %v2635 = vadd.f32 %v2571, %v1231
        %v2636 = vadd.f32 %v2572, %v1231
        %v2637 = vadd.f32 %v2573, %v1231
        %v2638 = vadd.f32 %v2574, %v1231
        %v2639 = vadd.f32 %v2575, %v1231
        %v2640 = vadd.f32 %v2576, %v1231
        %v2641 = vadd.f32 %v2577, %v1231
        %v2642 = vadd.f32 %v2578, %v1231
        %v2643 = vadd.f32 %v2579, %v1231
        %v2644 = vadd.f32 %v2580, %v1231
        %v2645 = vadd.f32 %v2581, %v1231
        %v2646 = vadd.f32 %v2582, %v1231
        %vm2647 = vcmp.gt.f32.partialorder %v2583, 0.0
        %vm2648 = vcmp.gt.f32.partialorder %v2584, 0.0
        %vm2649 = vcmp.gt.f32.partialorder %v2585, 0.0
        %vm2650 = vcmp.gt.f32.partialorder %v2586, 0.0
        %vm2651 = vcmp.gt.f32.partialorder %v2587, 0.0
        %vm2652 = vcmp.gt.f32.partialorder %v2588, 0.0
        %vm2653 = vcmp.gt.f32.partialorder %v2589, 0.0
        %vm2654 = vcmp.gt.f32.partialorder %v2590, 0.0
        %vm2655 = vcmp.gt.f32.partialorder %v2591, 0.0
        %vm2656 = vcmp.gt.f32.partialorder %v2592, 0.0
        %vm2657 = vcmp.gt.f32.partialorder %v2593, 0.0
        %vm2658 = vcmp.gt.f32.partialorder %v2594, 0.0
        %vm2659 = vcmp.gt.f32.partialorder %v2595, 0.0
        %vm2660 = vcmp.gt.f32.partialorder %v2596, 0.0
        %vm2661 = vcmp.gt.f32.partialorder %v2597, 0.0
        %vm2662 = vcmp.gt.f32.partialorder %v2598, 0.0
        %vm2663 = vcmp.gt.f32.partialorder %v2599, 0.0
        %vm2664 = vcmp.gt.f32.partialorder %v2600, 0.0
        %vm2665 = vcmp.gt.f32.partialorder %v2601, 0.0
        %vm2666 = vcmp.gt.f32.partialorder %v2602, 0.0
        %vm2667 = vcmp.gt.f32.partialorder %v2603, 0.0
        %vm2668 = vcmp.gt.f32.partialorder %v2604, 0.0
        %vm2669 = vcmp.gt.f32.partialorder %v2605, 0.0
        %vm2670 = vcmp.gt.f32.partialorder %v2606, 0.0
        %vm2671 = vcmp.gt.f32.partialorder %v2607, 0.0
        %vm2672 = vcmp.gt.f32.partialorder %v2608, 0.0
        %vm2673 = vcmp.gt.f32.partialorder %v2609, 0.0
        %vm2674 = vcmp.gt.f32.partialorder %v2610, 0.0
        %vm2675 = vcmp.gt.f32.partialorder %v2611, 0.0
        %vm2676 = vcmp.gt.f32.partialorder %v2612, 0.0
        %vm2677 = vcmp.gt.f32.partialorder %v2613, 0.0
        %vm2678 = vcmp.gt.f32.partialorder %v2614, 0.0
        %vm2679 = vcmp.gt.f32.partialorder %v2615, 0.0
        %vm2680 = vcmp.gt.f32.partialorder %v2616, 0.0
        %vm2681 = vcmp.gt.f32.partialorder %v2617, 0.0
        %vm2682 = vcmp.gt.f32.partialorder %v2618, 0.0
        %vm2683 = vcmp.gt.f32.partialorder %v2619, 0.0
        %vm2684 = vcmp.gt.f32.partialorder %v2620, 0.0
        %vm2685 = vcmp.gt.f32.partialorder %v2621, 0.0
        %vm2686 = vcmp.gt.f32.partialorder %v2622, 0.0
        %vm2687 = vcmp.gt.f32.partialorder %v2623, 0.0
        %vm2688 = vcmp.gt.f32.partialorder %v2624, 0.0
        %vm2689 = vcmp.gt.f32.partialorder %v2625, 0.0
        %vm2690 = vcmp.gt.f32.partialorder %v2626, 0.0
        %vm2691 = vcmp.gt.f32.partialorder %v2627, 0.0
        %vm2692 = vcmp.gt.f32.partialorder %v2628, 0.0
        %vm2693 = vcmp.gt.f32.partialorder %v2629, 0.0
        %vm2694 = vcmp.gt.f32.partialorder %v2630, 0.0
        %vm2695 = vcmp.gt.f32.partialorder %v2631, 0.0
        %vm2696 = vcmp.gt.f32.partialorder %v2632, 0.0
        %vm2697 = vcmp.gt.f32.partialorder %v2633, 0.0
        %vm2698 = vcmp.gt.f32.partialorder %v2634, 0.0
        %vm2699 = vcmp.gt.f32.partialorder %v2635, 0.0
        %vm2700 = vcmp.gt.f32.partialorder %v2636, 0.0
        %vm2701 = vcmp.gt.f32.partialorder %v2637, 0.0
        %vm2702 = vcmp.gt.f32.partialorder %v2638, 0.0
        %vm2703 = vcmp.gt.f32.partialorder %v2639, 0.0
        %vm2704 = vcmp.gt.f32.partialorder %v2640, 0.0
        %vm2705 = vcmp.gt.f32.partialorder %v2641, 0.0
        %vm2706 = vcmp.gt.f32.partialorder %v2642, 0.0
        %vm2707 = vcmp.gt.f32.partialorder %v2643, 0.0
        %vm2708 = vcmp.gt.f32.partialorder %v2644, 0.0
        %vm2709 = vcmp.gt.f32.partialorder %v2645, 0.0
        %vm2710 = vcmp.gt.f32.partialorder %v2646, 0.0
        %v2711 = vmul.f32 %v2583, 0.2
        %v2712 = vmul.f32 %v2584, 0.2
        %v2713 = vmul.f32 %v2585, 0.2
        %v2714 = vmul.f32 %v2586, 0.2
        %v2715 = vmul.f32 %v2587, 0.2
        %v2716 = vmul.f32 %v2588, 0.2
        %v2717 = vmul.f32 %v2589, 0.2
        %v2718 = vmul.f32 %v2590, 0.2
        %v2719 = vmul.f32 %v2591, 0.2
        %v2720 = vmul.f32 %v2592, 0.2
        %v2721 = vmul.f32 %v2593, 0.2
        %v2722 = vmul.f32 %v2594, 0.2
        %v2723 = vmul.f32 %v2595, 0.2
        %v2724 = vmul.f32 %v2596, 0.2
        %v2725 = vmul.f32 %v2597, 0.2
        %v2726 = vmul.f32 %v2598, 0.2
        %v2727 = vmul.f32 %v2599, 0.2
        %v2728 = vmul.f32 %v2600, 0.2
        %v2729 = vmul.f32 %v2601, 0.2
        %v2730 = vmul.f32 %v2602, 0.2
        %v2731 = vmul.f32 %v2603, 0.2
        %v2732 = vmul.f32 %v2604, 0.2
        %v2733 = vmul.f32 %v2605, 0.2
        %v2734 = vmul.f32 %v2606, 0.2
        %v2735 = vmul.f32 %v2607, 0.2
        %v2736 = vmul.f32 %v2608, 0.2
        %v2737 = vmul.f32 %v2609, 0.2
        %v2738 = vmul.f32 %v2610, 0.2
        %v2739 = vmul.f32 %v2611, 0.2
        %v2740 = vmul.f32 %v2612, 0.2
        %v2741 = vmul.f32 %v2613, 0.2
        %v2742 = vmul.f32 %v2614, 0.2
        %v2743 = vmul.f32 %v2615, 0.2
        %v2744 = vmul.f32 %v2616, 0.2
        %v2745 = vmul.f32 %v2617, 0.2
        %v2746 = vmul.f32 %v2618, 0.2
        %v2747 = vmul.f32 %v2619, 0.2
        %v2748 = vmul.f32 %v2620, 0.2
        %v2749 = vmul.f32 %v2621, 0.2
        %v2750 = vmul.f32 %v2622, 0.2
        %v2751 = vmul.f32 %v2623, 0.2
        %v2752 = vmul.f32 %v2624, 0.2
        %v2753 = vmul.f32 %v2625, 0.2
        %v2754 = vmul.f32 %v2626, 0.2
        %v2755 = vmul.f32 %v2627, 0.2
        %v2756 = vmul.f32 %v2628, 0.2
        %v2757 = vmul.f32 %v2629, 0.2
        %v2758 = vmul.f32 %v2630, 0.2
        %v2759 = vmul.f32 %v2631, 0.2
        %v2760 = vmul.f32 %v2632, 0.2
        %v2761 = vmul.f32 %v2633, 0.2
        %v2762 = vmul.f32 %v2634, 0.2
        %v2763 = vmul.f32 %v2635, 0.2
        %v2764 = vmul.f32 %v2636, 0.2
        %v2765 = vmul.f32 %v2637, 0.2
        %v2766 = vmul.f32 %v2638, 0.2
        %v2767 = vmul.f32 %v2639, 0.2
        %v2768 = vmul.f32 %v2640, 0.2
        %v2769 = vmul.f32 %v2641, 0.2
        %v2770 = vmul.f32 %v2642, 0.2
        %v2771 = vmul.f32 %v2643, 0.2
        %v2772 = vmul.f32 %v2644, 0.2
        %v2773 = vmul.f32 %v2645, 0.2
        %v2774 = vmul.f32 %v2646, 0.2
        %v2775 = vsel %vm2647, %v2583, %v2711
        %v2776 = vsel %vm2648, %v2584, %v2712
        %v2777 = vsel %vm2649, %v2585, %v2713
        %v2778 = vsel %vm2650, %v2586, %v2714
        %v2779 = vsel %vm2651, %v2587, %v2715
        %v2780 = vsel %vm2652, %v2588, %v2716
        %v2781 = vsel %vm2653, %v2589, %v2717
        %v2782 = vsel %vm2654, %v2590, %v2718
        %v2783 = vsel %vm2655, %v2591, %v2719
        %v2784 = vsel %vm2656, %v2592, %v2720
        %v2785 = vsel %vm2657, %v2593, %v2721
        %v2786 = vsel %vm2658, %v2594, %v2722
        %v2787 = vsel %vm2659, %v2595, %v2723
        %v2788 = vsel %vm2660, %v2596, %v2724
        %v2789 = vsel %vm2661, %v2597, %v2725
        %v2790 = vsel %vm2662, %v2598, %v2726
        %v2791 = vsel %vm2663, %v2599, %v2727
        %v2792 = vsel %vm2664, %v2600, %v2728
        %v2793 = vsel %vm2665, %v2601, %v2729
        %v2794 = vsel %vm2666, %v2602, %v2730
        %v2795 = vsel %vm2667, %v2603, %v2731
        %v2796 = vsel %vm2668, %v2604, %v2732
        %v2797 = vsel %vm2669, %v2605, %v2733
        %v2798 = vsel %vm2670, %v2606, %v2734
        %v2799 = vsel %vm2671, %v2607, %v2735
        %v2800 = vsel %vm2672, %v2608, %v2736
        %v2801 = vsel %vm2673, %v2609, %v2737
        %v2802 = vsel %vm2674, %v2610, %v2738
        %v2803 = vsel %vm2675, %v2611, %v2739
        %v2804 = vsel %vm2676, %v2612, %v2740
        %v2805 = vsel %vm2677, %v2613, %v2741
        %v2806 = vsel %vm2678, %v2614, %v2742
        %v2807 = vsel %vm2679, %v2615, %v2743
        %v2808 = vsel %vm2680, %v2616, %v2744
        %v2809 = vsel %vm2681, %v2617, %v2745
        %v2810 = vsel %vm2682, %v2618, %v2746
        %v2811 = vsel %vm2683, %v2619, %v2747
        %v2812 = vsel %vm2684, %v2620, %v2748
        %v2813 = vsel %vm2685, %v2621, %v2749
        %v2814 = vsel %vm2686, %v2622, %v2750
        %v2815 = vsel %vm2687, %v2623, %v2751
        %v2816 = vsel %vm2688, %v2624, %v2752
        %v2817 = vsel %vm2689, %v2625, %v2753
        %v2818 = vsel %vm2690, %v2626, %v2754
        %v2819 = vsel %vm2691, %v2627, %v2755
        %v2820 = vsel %vm2692, %v2628, %v2756
        %v2821 = vsel %vm2693, %v2629, %v2757
        %v2822 = vsel %vm2694, %v2630, %v2758
        %v2823 = vsel %vm2695, %v2631, %v2759
        %v2824 = vsel %vm2696, %v2632, %v2760
        %v2825 = vsel %vm2697, %v2633, %v2761
        %v2826 = vsel %vm2698, %v2634, %v2762
        %v2827 = vsel %vm2699, %v2635, %v2763
        %v2828 = vsel %vm2700, %v2636, %v2764
        %v2829 = vsel %vm2701, %v2637, %v2765
        %v2830 = vsel %vm2702, %v2638, %v2766
        %v2831 = vsel %vm2703, %v2639, %v2767
        %v2832 = vsel %vm2704, %v2640, %v2768
        %v2833 = vsel %vm2705, %v2641, %v2769
        %v2834 = vsel %vm2706, %v2642, %v2770
        %v2835 = vsel %vm2707, %v2643, %v2771
        %v2836 = vsel %vm2708, %v2644, %v2772
        %v2837 = vsel %vm2709, %v2645, %v2773
        %v2838 = vsel %vm2710, %v2646, %v2774
        %s2839 = scalar_lea.vmem %s4, 1536
        %2840 = vst.msk [vmem:[%s2839] sm:$0xff] %vm1489, %v2775
        %2841 = vst.msk [vmem:[%s2839 + $0x8] sm:$0xff] %vm1489, %v2776
        %2842 = vst.msk [vmem:[%s2839 + $0x10] sm:$0xff] %vm1489, %v2777
        %2843 = vst.msk [vmem:[%s2839 + $0x18] sm:$0xff] %vm1489, %v2778
        %2844 = vst.msk [vmem:[%s2839 + $0x20] sm:$0xff] %vm1489, %v2779
        %2845 = vst.msk [vmem:[%s2839 + $0x28] sm:$0xff] %vm1489, %v2780
        %2846 = vst.msk [vmem:[%s2839 + $0x30] sm:$0xff] %vm1489, %v2781
        %2847 = vst.msk [vmem:[%s2839 + $0x38] sm:$0xff] %vm1489, %v2782
        %2848 = vst.msk [vmem:[%s2839 + $0x40] sm:$0xff] %vm1489, %v2783
        %2849 = vst.msk [vmem:[%s2839 + $0x48] sm:$0xff] %vm1489, %v2784
        %2850 = vst.msk [vmem:[%s2839 + $0x50] sm:$0xff] %vm1489, %v2785
        %2851 = vst.msk [vmem:[%s2839 + $0x58] sm:$0xff] %vm1489, %v2786
        %2852 = vst.msk [vmem:[%s2839 + $0x60] sm:$0xff] %vm1489, %v2787
        %2853 = vst.msk [vmem:[%s2839 + $0x68] sm:$0xff] %vm1489, %v2788
        %2854 = vst.msk [vmem:[%s2839 + $0x70] sm:$0xff] %vm1489, %v2789
        %2855 = vst.msk [vmem:[%s2839 + $0x78] sm:$0xff] %vm1489, %v2790
        %2856 = vst.msk [vmem:[%s2839 + $0x80] sm:$0xff] %vm1489, %v2791
        %2857 = vst.msk [vmem:[%s2839 + $0x88] sm:$0xff] %vm1489, %v2792
        %2858 = vst.msk [vmem:[%s2839 + $0x90] sm:$0xff] %vm1489, %v2793
        %2859 = vst.msk [vmem:[%s2839 + $0x98] sm:$0xff] %vm1489, %v2794
        %2860 = vst.msk [vmem:[%s2839 + $0xa0] sm:$0xff] %vm1489, %v2795
        %2861 = vst.msk [vmem:[%s2839 + $0xa8] sm:$0xff] %vm1489, %v2796
        %2862 = vst.msk [vmem:[%s2839 + $0xb0] sm:$0xff] %vm1489, %v2797
        %2863 = vst.msk [vmem:[%s2839 + $0xb8] sm:$0xff] %vm1489, %v2798
        %2864 = vst.msk [vmem:[%s2839 + $0xc0] sm:$0xff] %vm1489, %v2799
        %2865 = vst.msk [vmem:[%s2839 + $0xc8] sm:$0xff] %vm1489, %v2800
        %2866 = vst.msk [vmem:[%s2839 + $0xd0] sm:$0xff] %vm1489, %v2801
        %2867 = vst.msk [vmem:[%s2839 + $0xd8] sm:$0xff] %vm1489, %v2802
        %2868 = vst.msk [vmem:[%s2839 + $0xe0] sm:$0xff] %vm1489, %v2803
        %2869 = vst.msk [vmem:[%s2839 + $0xe8] sm:$0xff] %vm1489, %v2804
        %2870 = vst.msk [vmem:[%s2839 + $0xf0] sm:$0xff] %vm1489, %v2805
        %2871 = vst.msk [vmem:[%s2839 + $0xf8] sm:$0xff] %vm1489, %v2806
        %2872 = vst.msk [vmem:[%s2839 + $0x100] sm:$0xff] %vm1489, %v2807
        %2873 = vst.msk [vmem:[%s2839 + $0x108] sm:$0xff] %vm1489, %v2808
        %2874 = vst.msk [vmem:[%s2839 + $0x110] sm:$0xff] %vm1489, %v2809
        %2875 = vst.msk [vmem:[%s2839 + $0x118] sm:$0xff] %vm1489, %v2810
        %2876 = vst.msk [vmem:[%s2839 + $0x120] sm:$0xff] %vm1489, %v2811
        %2877 = vst.msk [vmem:[%s2839 + $0x128] sm:$0xff] %vm1489, %v2812
        %2878 = vst.msk [vmem:[%s2839 + $0x130] sm:$0xff] %vm1489, %v2813
        %2879 = vst.msk [vmem:[%s2839 + $0x138] sm:$0xff] %vm1489, %v2814
        %2880 = vst.msk [vmem:[%s2839 + $0x140] sm:$0xff] %vm1489, %v2815
        %2881 = vst.msk [vmem:[%s2839 + $0x148] sm:$0xff] %vm1489, %v2816
        %2882 = vst.msk [vmem:[%s2839 + $0x150] sm:$0xff] %vm1489, %v2817
        %2883 = vst.msk [vmem:[%s2839 + $0x158] sm:$0xff] %vm1489, %v2818
        %2884 = vst.msk [vmem:[%s2839 + $0x160] sm:$0xff] %vm1489, %v2819
        %2885 = vst.msk [vmem:[%s2839 + $0x168] sm:$0xff] %vm1489, %v2820
        %2886 = vst.msk [vmem:[%s2839 + $0x170] sm:$0xff] %vm1489, %v2821
        %2887 = vst.msk [vmem:[%s2839 + $0x178] sm:$0xff] %vm1489, %v2822
        %2888 = vst.msk [vmem:[%s2839 + $0x180] sm:$0xff] %vm1489, %v2823
        %2889 = vst.msk [vmem:[%s2839 + $0x188] sm:$0xff] %vm1489, %v2824
        %2890 = vst.msk [vmem:[%s2839 + $0x190] sm:$0xff] %vm1489, %v2825
        %2891 = vst.msk [vmem:[%s2839 + $0x198] sm:$0xff] %vm1489, %v2826
        %2892 = vst.msk [vmem:[%s2839 + $0x1a0] sm:$0xff] %vm1489, %v2827
        %2893 = vst.msk [vmem:[%s2839 + $0x1a8] sm:$0xff] %vm1489, %v2828
        %2894 = vst.msk [vmem:[%s2839 + $0x1b0] sm:$0xff] %vm1489, %v2829
        %2895 = vst.msk [vmem:[%s2839 + $0x1b8] sm:$0xff] %vm1489, %v2830
        %2896 = vst.msk [vmem:[%s2839 + $0x1c0] sm:$0xff] %vm1489, %v2831
        %2897 = vst.msk [vmem:[%s2839 + $0x1c8] sm:$0xff] %vm1489, %v2832
        %2898 = vst.msk [vmem:[%s2839 + $0x1d0] sm:$0xff] %vm1489, %v2833
        %2899 = vst.msk [vmem:[%s2839 + $0x1d8] sm:$0xff] %vm1489, %v2834
        %2900 = vst.msk [vmem:[%s2839 + $0x1e0] sm:$0xff] %vm1489, %v2835
        %2901 = vst.msk [vmem:[%s2839 + $0x1e8] sm:$0xff] %vm1489, %v2836
        %2902 = vst.msk [vmem:[%s2839 + $0x1f0] sm:$0xff] %vm1489, %v2837
        %2903 = vst.msk [vmem:[%s2839 + $0x1f8] sm:$0xff] %vm1489, %v2838
      $region44: #{_lambda_.7} parent=35 // pred_fallthru
        _
      // Predicated region
      $region45: #{_lambda_.7} parent=35 // pred_check
        %p2904 = pneg %p117
      $region46: #{_lambda_.7} parent=35 // pred_check_branch
        %2906 = sbr.rel (%p2904) target = $region48
      $region47: #{_lambda_.7} parent=35 // pred_region
        _
      $region48: #{_lambda_.7} parent=35 // pred_fallthru
        _
      // Predicated region
      $region49: #{_lambda_.7} parent=35 // pred_check
        %p2907 = pneg %p117
      $region50: #{_lambda_.7} parent=35 // pred_check_branch
        %2909 = sbr.rel (%p2907) target = $region52
      $region51: #{_lambda_.7} parent=35 // pred_region
        _
      $region52: #{_lambda_.7} parent=35 // pred_fallthru
        _
    $region36: #{_lambda_.7} parent=5 // pred_fallthru
      _
    %p2910 = scmp.le.s32.totalorder 2, %s10
    // Predicated region
    $region53: #{_lambda_.7} parent=5 // pred_check
      %p2911 = pneg %p2910
    $region54: #{_lambda_.7} parent=5 // pred_check_branch
      %2913 = sbr.rel (%p2911) target = $region56
    $region55: #{_lambda_.7} parent=5 // pred_region
      %s2914 = ssub.s32 %s10, 2
    $region56: #{_lambda_.7} parent=5 // pred_fallthru
      _
  $region6: #{_lambda_.7} parent=0 // loop_footer
    %s14 = sadd.s32 1, %s10
  $region7: #{_lambda_.7} parent=0 // loop_footer_branch
    %9 = sbr.rel target = $region3
  $region8: #{_lambda_.7} parent=0 // loop_exit
    _

// kernel: _lambda_.8
$region0: #{_lambda_.8}
  #allocation0 [shape = 'u32[]', space=smem, size = 0x4, offset = 0x4, fixed_abs, tag = 'smem constant byte address 0x4 - core index']
  #allocation1 [shape = 'u32[144,128]{1,0:T(1,128)}', space=vmem, size = 0x12000, scoped, tag = 'internal scratch']
  %s0 = inlined_call_operand.vmem [shape: bf16[512,256], index: 0, kind: input, shape index: {}]
  %s1 = inlined_call_operand.vmem [shape: bf16[256,128], index: 1, kind: input, shape index: {}]
  %s2 = inlined_call_operand.vmem [shape: f32[1,128], index: 2, kind: input, shape index: {}]
  %s3 = inlined_call_operand.vmem [shape: f32[1,128], index: 3, kind: input, shape index: {}]
  %s4 = inlined_call_operand.vmem [shape: f32[512,32], index: 4, kind: output, shape index: {}]
  %s5 = sld [smem:[#allocation0]]
  $region26: #{_lambda_.8} parent=0
    _
  %s7 = ssub.s32 1, %s5
  %s8 = scalar_select 0, %s7, %s5
  // Predicated region
  $region2: #{_lambda_.8} parent=0 // pred_check
    _
  $region3: #{_lambda_.8} parent=0 // pred_check_branch
    %10 = sbr.rel (0) target = $region5
  $region4: #{_lambda_.8} parent=0 // pred_region
    _
  $region5: #{_lambda_.8} parent=0 // pred_fallthru
    _
  // Predicated region
  $region6: #{_lambda_.8} parent=0 // pred_check
    _
  $region7: #{_lambda_.8} parent=0 // pred_check_branch
    %12 = sbr.rel (0) target = $region9
  $region8: #{_lambda_.8} parent=0 // pred_region
    _
  $region9: #{_lambda_.8} parent=0 // pred_fallthru
    _
  // Predicated region
  $region10: #{_lambda_.8} parent=0 // pred_check
    _
  $region11: #{_lambda_.8} parent=0 // pred_check_branch
    %14 = sbr.rel (0) target = $region13
  $region12: #{_lambda_.8} parent=0 // pred_region
    _
  $region13: #{_lambda_.8} parent=0 // pred_fallthru
    _
  // Predicated region
  $region14: #{_lambda_.8} parent=0 // pred_check
    _
  $region15: #{_lambda_.8} parent=0 // pred_check_branch
    %16 = sbr.rel (0) target = $region17
  $region16: #{_lambda_.8} parent=0 // pred_region
    _
  $region17: #{_lambda_.8} parent=0 // pred_fallthru
    _
  %v18 = vld [vmem:[%s0] sm:$0xff]
  %v19 = vld [vmem:[%s0 + $0x8] sm:$0xff]
  %v20 = vld [vmem:[%s0 + $0x10] sm:$0xff]
  %v21 = vld [vmem:[%s0 + $0x18] sm:$0xff]
  %v22 = vld [vmem:[%s0 + $0x20] sm:$0xff]
  %v23 = vld [vmem:[%s0 + $0x28] sm:$0xff]
  %v24 = vld [vmem:[%s0 + $0x30] sm:$0xff]
  %v25 = vld [vmem:[%s0 + $0x38] sm:$0xff]
  %v26 = vld [vmem:[%s0 + $0x40] sm:$0xff]
  %v27 = vld [vmem:[%s0 + $0x48] sm:$0xff]
  %v28 = vld [vmem:[%s0 + $0x50] sm:$0xff]
  %v29 = vld [vmem:[%s0 + $0x58] sm:$0xff]
  %v30 = vld [vmem:[%s0 + $0x60] sm:$0xff]
  %v31 = vld [vmem:[%s0 + $0x68] sm:$0xff]
  %v32 = vld [vmem:[%s0 + $0x70] sm:$0xff]
  %v33 = vld [vmem:[%s0 + $0x78] sm:$0xff]
  %v34 = vld [vmem:[%s0 + $0x80] sm:$0xff]
  %v35 = vld [vmem:[%s0 + $0x88] sm:$0xff]
  %v36 = vld [vmem:[%s0 + $0x90] sm:$0xff]
  %v37 = vld [vmem:[%s0 + $0x98] sm:$0xff]
  %v38 = vld [vmem:[%s0 + $0xa0] sm:$0xff]
  %v39 = vld [vmem:[%s0 + $0xa8] sm:$0xff]
  %v40 = vld [vmem:[%s0 + $0xb0] sm:$0xff]
  %v41 = vld [vmem:[%s0 + $0xb8] sm:$0xff]
  %v42 = vld [vmem:[%s0 + $0xc0] sm:$0xff]
  %v43 = vld [vmem:[%s0 + $0xc8] sm:$0xff]
  %v44 = vld [vmem:[%s0 + $0xd0] sm:$0xff]
  %v45 = vld [vmem:[%s0 + $0xd8] sm:$0xff]
  %v46 = vld [vmem:[%s0 + $0xe0] sm:$0xff]
  %v47 = vld [vmem:[%s0 + $0xe8] sm:$0xff]
  %v48 = vld [vmem:[%s0 + $0xf0] sm:$0xff]
  %v49 = vld [vmem:[%s0 + $0xf8] sm:$0xff]
  %v50 = vld [vmem:[%s0 + $0x100] sm:$0xff]
  %v51 = vld [vmem:[%s0 + $0x108] sm:$0xff]
  %v52 = vld [vmem:[%s0 + $0x110] sm:$0xff]
  %v53 = vld [vmem:[%s0 + $0x118] sm:$0xff]
  %v54 = vld [vmem:[%s0 + $0x120] sm:$0xff]
  %v55 = vld [vmem:[%s0 + $0x128] sm:$0xff]
  %v56 = vld [vmem:[%s0 + $0x130] sm:$0xff]
  %v57 = vld [vmem:[%s0 + $0x138] sm:$0xff]
  %v58 = vld [vmem:[%s0 + $0x140] sm:$0xff]
  %v59 = vld [vmem:[%s0 + $0x148] sm:$0xff]
  %v60 = vld [vmem:[%s0 + $0x150] sm:$0xff]
  %v61 = vld [vmem:[%s0 + $0x158] sm:$0xff]
  %v62 = vld [vmem:[%s0 + $0x160] sm:$0xff]
  %v63 = vld [vmem:[%s0 + $0x168] sm:$0xff]
  %v64 = vld [vmem:[%s0 + $0x170] sm:$0xff]
  %v65 = vld [vmem:[%s0 + $0x178] sm:$0xff]
  %v66 = vld [vmem:[%s0 + $0x180] sm:$0xff]
  %v67 = vld [vmem:[%s0 + $0x188] sm:$0xff]
  %v68 = vld [vmem:[%s0 + $0x190] sm:$0xff]
  %v69 = vld [vmem:[%s0 + $0x198] sm:$0xff]
  %v70 = vld [vmem:[%s0 + $0x1a0] sm:$0xff]
  %v71 = vld [vmem:[%s0 + $0x1a8] sm:$0xff]
  %v72 = vld [vmem:[%s0 + $0x1b0] sm:$0xff]
  %v73 = vld [vmem:[%s0 + $0x1b8] sm:$0xff]
  %v74 = vld [vmem:[%s0 + $0x1c0] sm:$0xff]
  %v75 = vld [vmem:[%s0 + $0x1c8] sm:$0xff]
  %v76 = vld [vmem:[%s0 + $0x1d0] sm:$0xff]
  %v77 = vld [vmem:[%s0 + $0x1d8] sm:$0xff]
  %v78 = vld [vmem:[%s0 + $0x1e0] sm:$0xff]
  %v79 = vld [vmem:[%s0 + $0x1e8] sm:$0xff]
  %v80 = vld [vmem:[%s0 + $0x1f0] sm:$0xff]
  %v81 = vld [vmem:[%s0 + $0x1f8] sm:$0xff]
  %v82 = vld [vmem:[%s1] sm:$0xf]
  %v83 = vld [vmem:[%s1 + $0x4] sm:$0xf]
  %v84 = vld [vmem:[%s1 + $0x8] sm:$0xf]
  %v85 = vld [vmem:[%s1 + $0xc] sm:$0xf]
  %v86 = vld [vmem:[%s1 + $0x10] sm:$0xf]
  %v87 = vld [vmem:[%s1 + $0x14] sm:$0xf]
  %v88 = vld [vmem:[%s1 + $0x18] sm:$0xf]
  %v89 = vld [vmem:[%s1 + $0x1c] sm:$0xf]
  %v90 = vld [vmem:[%s1 + $0x20] sm:$0xf]
  %v91 = vld [vmem:[%s1 + $0x24] sm:$0xf]
  %v92 = vld [vmem:[%s1 + $0x28] sm:$0xf]
  %v93 = vld [vmem:[%s1 + $0x2c] sm:$0xf]
  %v94 = vld [vmem:[%s1 + $0x30] sm:$0xf]
  %v95 = vld [vmem:[%s1 + $0x34] sm:$0xf]
  %v96 = vld [vmem:[%s1 + $0x38] sm:$0xf]
  %v97 = vld [vmem:[%s1 + $0x3c] sm:$0xf]
  %v98 = vld [vmem:[%s1 + $0x40] sm:$0xf]
  %v99 = vld [vmem:[%s1 + $0x44] sm:$0xf]
  %v100 = vld [vmem:[%s1 + $0x48] sm:$0xf]
  %v101 = vld [vmem:[%s1 + $0x4c] sm:$0xf]
  %v102 = vld [vmem:[%s1 + $0x50] sm:$0xf]
  %v103 = vld [vmem:[%s1 + $0x54] sm:$0xf]
  %v104 = vld [vmem:[%s1 + $0x58] sm:$0xf]
  %v105 = vld [vmem:[%s1 + $0x5c] sm:$0xf]
  %v106 = vld [vmem:[%s1 + $0x60] sm:$0xf]
  %v107 = vld [vmem:[%s1 + $0x64] sm:$0xf]
  %v108 = vld [vmem:[%s1 + $0x68] sm:$0xf]
  %v109 = vld [vmem:[%s1 + $0x6c] sm:$0xf]
  %v110 = vld [vmem:[%s1 + $0x70] sm:$0xf]
  %v111 = vld [vmem:[%s1 + $0x74] sm:$0xf]
  %v112 = vld [vmem:[%s1 + $0x78] sm:$0xf]
  %v113 = vld [vmem:[%s1 + $0x7c] sm:$0xf]
  %v178 = vunpack.c.l.b16 %v18
  %v179 = vunpack.c.h.b16 %v18
  %v180 = vunpack.c.l.b16 %v19
  %v181 = vunpack.c.h.b16 %v19
  %v182 = vunpack.c.l.b16 %v20
  %v183 = vunpack.c.h.b16 %v20
  %v184 = vunpack.c.l.b16 %v21
  %v185 = vunpack.c.h.b16 %v21
  %v186 = vunpack.c.l.b16 %v22
  %v187 = vunpack.c.h.b16 %v22
  %v188 = vunpack.c.l.b16 %v23
  %v189 = vunpack.c.h.b16 %v23
  %v190 = vunpack.c.l.b16 %v24
  %v191 = vunpack.c.h.b16 %v24
  %v192 = vunpack.c.l.b16 %v25
  %v193 = vunpack.c.h.b16 %v25
  %v194 = vunpack.c.l.b16 %v26
  %v195 = vunpack.c.h.b16 %v26
  %v196 = vunpack.c.l.b16 %v27
  %v197 = vunpack.c.h.b16 %v27
  %v198 = vunpack.c.l.b16 %v28
  %v199 = vunpack.c.h.b16 %v28
  %v200 = vunpack.c.l.b16 %v29
  %v201 = vunpack.c.h.b16 %v29
  %v202 = vunpack.c.l.b16 %v30
  %v203 = vunpack.c.h.b16 %v30
  %v204 = vunpack.c.l.b16 %v31
  %v205 = vunpack.c.h.b16 %v31
  %v206 = vunpack.c.l.b16 %v32
  %v207 = vunpack.c.h.b16 %v32
  %v208 = vunpack.c.l.b16 %v33
  %v209 = vunpack.c.h.b16 %v33
  %v210 = vunpack.c.l.b16 %v34
  %v211 = vunpack.c.h.b16 %v34
  %v212 = vunpack.c.l.b16 %v35
  %v213 = vunpack.c.h.b16 %v35
  %v214 = vunpack.c.l.b16 %v36
  %v215 = vunpack.c.h.b16 %v36
  %v216 = vunpack.c.l.b16 %v37
  %v217 = vunpack.c.h.b16 %v37
  %v218 = vunpack.c.l.b16 %v38
  %v219 = vunpack.c.h.b16 %v38
  %v220 = vunpack.c.l.b16 %v39
  %v221 = vunpack.c.h.b16 %v39
  %v222 = vunpack.c.l.b16 %v40
  %v223 = vunpack.c.h.b16 %v40
  %v224 = vunpack.c.l.b16 %v41
  %v225 = vunpack.c.h.b16 %v41
  %v226 = vunpack.c.l.b16 %v42
  %v227 = vunpack.c.h.b16 %v42
  %v228 = vunpack.c.l.b16 %v43
  %v229 = vunpack.c.h.b16 %v43
  %v230 = vunpack.c.l.b16 %v44
  %v231 = vunpack.c.h.b16 %v44
  %v232 = vunpack.c.l.b16 %v45
  %v233 = vunpack.c.h.b16 %v45
  %v234 = vunpack.c.l.b16 %v46
  %v235 = vunpack.c.h.b16 %v46
  %v236 = vunpack.c.l.b16 %v47
  %v237 = vunpack.c.h.b16 %v47
  %v238 = vunpack.c.l.b16 %v48
  %v239 = vunpack.c.h.b16 %v48
  %v240 = vunpack.c.l.b16 %v49
  %v241 = vunpack.c.h.b16 %v49
  %v242 = vunpack.c.l.b16 %v50
  %v243 = vunpack.c.h.b16 %v50
  %v244 = vunpack.c.l.b16 %v51
  %v245 = vunpack.c.h.b16 %v51
  %v246 = vunpack.c.l.b16 %v52
  %v247 = vunpack.c.h.b16 %v52
  %v248 = vunpack.c.l.b16 %v53
  %v249 = vunpack.c.h.b16 %v53
  %v250 = vunpack.c.l.b16 %v54
  %v251 = vunpack.c.h.b16 %v54
  %v252 = vunpack.c.l.b16 %v55
  %v253 = vunpack.c.h.b16 %v55
  %v254 = vunpack.c.l.b16 %v56
  %v255 = vunpack.c.h.b16 %v56
  %v256 = vunpack.c.l.b16 %v57
  %v257 = vunpack.c.h.b16 %v57
  %v258 = vunpack.c.l.b16 %v58
  %v259 = vunpack.c.h.b16 %v58
  %v260 = vunpack.c.l.b16 %v59
  %v261 = vunpack.c.h.b16 %v59
  %v262 = vunpack.c.l.b16 %v60
  %v263 = vunpack.c.h.b16 %v60
  %v264 = vunpack.c.l.b16 %v61
  %v265 = vunpack.c.h.b16 %v61
  %v266 = vunpack.c.l.b16 %v62
  %v267 = vunpack.c.h.b16 %v62
  %v268 = vunpack.c.l.b16 %v63
  %v269 = vunpack.c.h.b16 %v63
  %v270 = vunpack.c.l.b16 %v64
  %v271 = vunpack.c.h.b16 %v64
  %v272 = vunpack.c.l.b16 %v65
  %v273 = vunpack.c.h.b16 %v65
  %v274 = vunpack.c.l.b16 %v66
  %v275 = vunpack.c.h.b16 %v66
  %v276 = vunpack.c.l.b16 %v67
  %v277 = vunpack.c.h.b16 %v67
  %v278 = vunpack.c.l.b16 %v68
  %v279 = vunpack.c.h.b16 %v68
  %v280 = vunpack.c.l.b16 %v69
  %v281 = vunpack.c.h.b16 %v69
  %v282 = vunpack.c.l.b16 %v70
  %v283 = vunpack.c.h.b16 %v70
  %v284 = vunpack.c.l.b16 %v71
  %v285 = vunpack.c.h.b16 %v71
  %v286 = vunpack.c.l.b16 %v72
  %v287 = vunpack.c.h.b16 %v72
  %v288 = vunpack.c.l.b16 %v73
  %v289 = vunpack.c.h.b16 %v73
  %v290 = vunpack.c.l.b16 %v74
  %v291 = vunpack.c.h.b16 %v74
  %v292 = vunpack.c.l.b16 %v75
  %v293 = vunpack.c.h.b16 %v75
  %v294 = vunpack.c.l.b16 %v76
  %v295 = vunpack.c.h.b16 %v76
  %v296 = vunpack.c.l.b16 %v77
  %v297 = vunpack.c.h.b16 %v77
  %v298 = vunpack.c.l.b16 %v78
  %v299 = vunpack.c.h.b16 %v78
  %v300 = vunpack.c.l.b16 %v79
  %v301 = vunpack.c.h.b16 %v79
  %v302 = vunpack.c.l.b16 %v80
  %v303 = vunpack.c.h.b16 %v80
  %v304 = vunpack.c.l.b16 %v81
  %v305 = vunpack.c.h.b16 %v81
  %v306 = vpack.c.b16 %v180, %v178
  %v307 = vpack.c.b16 %v181, %v179
  %v308 = vpack.c.b16 %v184, %v182
  %v309 = vpack.c.b16 %v185, %v183
  %v310 = vpack.c.b16 %v188, %v186
  %v311 = vpack.c.b16 %v189, %v187
  %v312 = vpack.c.b16 %v192, %v190
  %v313 = vpack.c.b16 %v193, %v191
  %v314 = vpack.c.b16 %v196, %v194
  %v315 = vpack.c.b16 %v197, %v195
  %v316 = vpack.c.b16 %v200, %v198
  %v317 = vpack.c.b16 %v201, %v199
  %v318 = vpack.c.b16 %v204, %v202
  %v319 = vpack.c.b16 %v205, %v203
  %v320 = vpack.c.b16 %v208, %v206
  %v321 = vpack.c.b16 %v209, %v207
  %v322 = vpack.c.b16 %v212, %v210
  %v323 = vpack.c.b16 %v213, %v211
  %v324 = vpack.c.b16 %v216, %v214
  %v325 = vpack.c.b16 %v217, %v215
  %v326 = vpack.c.b16 %v220, %v218
  %v327 = vpack.c.b16 %v221, %v219
  %v328 = vpack.c.b16 %v224, %v222
  %v329 = vpack.c.b16 %v225, %v223
  %v330 = vpack.c.b16 %v228, %v226
  %v331 = vpack.c.b16 %v229, %v227
  %v332 = vpack.c.b16 %v232, %v230
  %v333 = vpack.c.b16 %v233, %v231
  %v334 = vpack.c.b16 %v236, %v234
  %v335 = vpack.c.b16 %v237, %v235
  %v336 = vpack.c.b16 %v240, %v238
  %v337 = vpack.c.b16 %v241, %v239
  %v338 = vpack.c.b16 %v244, %v242
  %v339 = vpack.c.b16 %v245, %v243
  %v340 = vpack.c.b16 %v248, %v246
  %v341 = vpack.c.b16 %v249, %v247
  %v342 = vpack.c.b16 %v252, %v250
  %v343 = vpack.c.b16 %v253, %v251
  %v344 = vpack.c.b16 %v256, %v254
  %v345 = vpack.c.b16 %v257, %v255
  %v346 = vpack.c.b16 %v260, %v258
  %v347 = vpack.c.b16 %v261, %v259
  %v348 = vpack.c.b16 %v264, %v262
  %v349 = vpack.c.b16 %v265, %v263
  %v350 = vpack.c.b16 %v268, %v266
  %v351 = vpack.c.b16 %v269, %v267
  %v352 = vpack.c.b16 %v272, %v270
  %v353 = vpack.c.b16 %v273, %v271
  %v354 = vpack.c.b16 %v276, %v274
  %v355 = vpack.c.b16 %v277, %v275
  %v356 = vpack.c.b16 %v280, %v278
  %v357 = vpack.c.b16 %v281, %v279
  %v358 = vpack.c.b16 %v284, %v282
  %v359 = vpack.c.b16 %v285, %v283
  %v360 = vpack.c.b16 %v288, %v286
  %v361 = vpack.c.b16 %v289, %v287
  %v362 = vpack.c.b16 %v292, %v290
  %v363 = vpack.c.b16 %v293, %v291
  %v364 = vpack.c.b16 %v296, %v294
  %v365 = vpack.c.b16 %v297, %v295
  %v366 = vpack.c.b16 %v300, %v298
  %v367 = vpack.c.b16 %v301, %v299
  %v368 = vpack.c.b16 %v304, %v302
  %v369 = vpack.c.b16 %v305, %v303
  %v466 = vunpack.c.l.b16 %v82
  %v467 = vunpack.c.l.b16 %v83
  %v468 = vunpack.c.l.b16 %v84
  %v469 = vunpack.c.l.b16 %v85
  %v470 = vunpack.c.l.b16 %v86
  %v471 = vunpack.c.l.b16 %v87
  %v472 = vunpack.c.l.b16 %v88
  %v473 = vunpack.c.l.b16 %v89
  %v474 = vunpack.c.l.b16 %v90
  %v475 = vunpack.c.l.b16 %v91
  %v476 = vunpack.c.l.b16 %v92
  %v477 = vunpack.c.l.b16 %v93
  %v478 = vunpack.c.l.b16 %v94
  %v479 = vunpack.c.l.b16 %v95
  %v480 = vunpack.c.l.b16 %v96
  %v481 = vunpack.c.l.b16 %v97
  %v482 = vunpack.c.l.b16 %v98
  %v483 = vunpack.c.l.b16 %v99
  %v484 = vunpack.c.l.b16 %v100
  %v485 = vunpack.c.l.b16 %v101
  %v486 = vunpack.c.l.b16 %v102
  %v487 = vunpack.c.l.b16 %v103
  %v488 = vunpack.c.l.b16 %v104
  %v489 = vunpack.c.l.b16 %v105
  %v490 = vunpack.c.l.b16 %v106
  %v491 = vunpack.c.l.b16 %v107
  %v492 = vunpack.c.l.b16 %v108
  %v493 = vunpack.c.l.b16 %v109
  %v494 = vunpack.c.l.b16 %v110
  %v495 = vunpack.c.l.b16 %v111
  %v496 = vunpack.c.l.b16 %v112
  %v497 = vunpack.c.l.b16 %v113
  %v498 = vpack.c.b16 %v467, %v466
  %v499 = vpack.c.b16 %v469, %v468
  %v500 = vpack.c.b16 %v471, %v470
  %v501 = vpack.c.b16 %v473, %v472
  %v502 = vpack.c.b16 %v475, %v474
  %v503 = vpack.c.b16 %v477, %v476
  %v504 = vpack.c.b16 %v479, %v478
  %v505 = vpack.c.b16 %v481, %v480
  %v506 = vpack.c.b16 %v483, %v482
  %v507 = vpack.c.b16 %v485, %v484
  %v508 = vpack.c.b16 %v487, %v486
  %v509 = vpack.c.b16 %v489, %v488
  %v510 = vpack.c.b16 %v491, %v490
  %v511 = vpack.c.b16 %v493, %v492
  %v512 = vpack.c.b16 %v495, %v494
  %v513 = vpack.c.b16 %v497, %v496
  %530 = vmatprep.subr.bf16.mxu0 0
  %531 = vmatpush1.bf16.msra.mxu0 %v498
  %532 = vmatprep.subr.bf16.mxu0 0
  %533 = vmatpush1.bf16.msra.mxu0 %v499
  %534 = vmatprep.subr.bf16.mxu0 0
  %535 = vmatpush1.bf16.msra.mxu0 %v500
  %536 = vmatprep.subr.bf16.mxu0 0
  %537 = vmatpush1.bf16.msra.mxu0 %v501
  %538 = vmatprep.subr.bf16.mxu0 0
  %539 = vmatpush1.bf16.msra.mxu0 %v502
  %540 = vmatprep.subr.bf16.mxu0 0
  %541 = vmatpush1.bf16.msra.mxu0 %v503
  %542 = vmatprep.subr.bf16.mxu0 0
  %543 = vmatpush1.bf16.msra.mxu0 %v504
  %544 = vmatprep.subr.bf16.mxu0 0
  %545 = vmatpush1.bf16.msra.mxu0 %v505
  %546 = vmatprep.subr.bf16.mxu0 0
  %547 = vmatpush1.bf16.msra.mxu0 %v506
  %548 = vmatprep.subr.bf16.mxu0 0
  %549 = vmatpush1.bf16.msra.mxu0 %v507
  %550 = vmatprep.subr.bf16.mxu0 0
  %551 = vmatpush1.bf16.msra.mxu0 %v508
  %552 = vmatprep.subr.bf16.mxu0 0
  %553 = vmatpush1.bf16.msra.mxu0 %v509
  %554 = vmatprep.subr.bf16.mxu0 0
  %555 = vmatpush1.bf16.msra.mxu0 %v510
  %556 = vmatprep.subr.bf16.mxu0 0
  %557 = vmatpush1.bf16.msra.mxu0 %v511
  %558 = vmatprep.subr.bf16.mxu0 0
  %559 = vmatpush1.bf16.msra.mxu0 %v512
  %560 = vmatprep.subr.bf16.mxu0 0
  %561 = vmatpush1.bf16.msra.mxu0 %v513
  %562 = vmatprep.mubr.bf16.mxu0 %v307
  %563 = vmatmul.mubr.bf16.gmra.mrb[0].mxu0 %v306
  %v564 = vpop.f32.mrb[0].mxu0
  %v565 = vadd.f32 0.0, %v564
  %v566 = vpop.f32.mrb[0].mxu0
  %v567 = vpop.f32.mrb[0].mxu0
  %v568 = vadd.f32 0.0, %v567
  %v569 = vpop.f32.mrb[0].mxu0
  %570 = vmatprep.mubr.bf16.mxu0 %v309
  %571 = vmatmul.mubr.bf16.gmra.mrb[0].mxu0 %v308
  %v572 = vpop.f32.mrb[0].mxu0
  %v573 = vadd.f32 0.0, %v572
  %v574 = vpop.f32.mrb[0].mxu0
  %v575 = vpop.f32.mrb[0].mxu0
  %v576 = vadd.f32 0.0, %v575
  %v577 = vpop.f32.mrb[0].mxu0
  %578 = vmatprep.mubr.bf16.mxu0 %v311
  %579 = vmatmul.mubr.bf16.gmra.mrb[0].mxu0 %v310
  %v580 = vpop.f32.mrb[0].mxu0
  %v581 = vadd.f32 0.0, %v580
  %v582 = vpop.f32.mrb[0].mxu0
  %v583 = vpop.f32.mrb[0].mxu0
  %v584 = vadd.f32 0.0, %v583
  %v585 = vpop.f32.mrb[0].mxu0
  %586 = vmatprep.mubr.bf16.mxu0 %v313
  %587 = vmatmul.mubr.bf16.gmra.mrb[0].mxu0 %v312
  %v588 = vpop.f32.mrb[0].mxu0
  %v589 = vadd.f32 0.0, %v588
  %v590 = vpop.f32.mrb[0].mxu0
  %v591 = vpop.f32.mrb[0].mxu0
  %v592 = vadd.f32 0.0, %v591
  %v593 = vpop.f32.mrb[0].mxu0
  %594 = vmatprep.mubr.bf16.mxu0 %v315
  %595 = vmatmul.mubr.bf16.gmra.mrb[0].mxu0 %v314
  %v596 = vpop.f32.mrb[0].mxu0
  %v597 = vadd.f32 0.0, %v596
  %v598 = vpop.f32.mrb[0].mxu0
  %v599 = vpop.f32.mrb[0].mxu0
  %v600 = vadd.f32 0.0, %v599
  %v601 = vpop.f32.mrb[0].mxu0
  %602 = vmatprep.mubr.bf16.mxu0 %v317
  %603 = vmatmul.mubr.bf16.gmra.mrb[0].mxu0 %v316
  %v604 = vpop.f32.mrb[0].mxu0
  %v605 = vadd.f32 0.0, %v604
  %v606 = vpop.f32.mrb[0].mxu0
  %v607 = vpop.f32.mrb[0].mxu0
  %v608 = vadd.f32 0.0, %v607
  %v609 = vpop.f32.mrb[0].mxu0
  %610 = vmatprep.mubr.bf16.mxu0 %v319
  %611 = vmatmul.mubr.bf16.gmra.mrb[0].mxu0 %v318
  %v612 = vpop.f32.mrb[0].mxu0
  %v613 = vadd.f32 0.0, %v612
  %v614 = vpop.f32.mrb[0].mxu0
  %v615 = vpop.f32.mrb[0].mxu0
  %v616 = vadd.f32 0.0, %v615
  %v617 = vpop.f32.mrb[0].mxu0
  %618 = vmatprep.mubr.bf16.mxu0 %v321
  %619 = vmatmul.mubr.bf16.gmra.mrb[0].mxu0 %v320
  %v620 = vpop.f32.mrb[0].mxu0
  %v621 = vadd.f32 0.0, %v620
  %v622 = vpop.f32.mrb[0].mxu0
  %v623 = vpop.f32.mrb[0].mxu0
  %v624 = vadd.f32 0.0, %v623
  %v625 = vpop.f32.mrb[0].mxu0
  %626 = vmatprep.mubr.bf16.mxu0 %v323
  %627 = vmatmul.mubr.bf16.gmra.mrb[0].mxu0 %v322
  %v628 = vpop.f32.mrb[0].mxu0
  %v629 = vadd.f32 0.0, %v628
  %v630 = vpop.f32.mrb[0].mxu0
  %v631 = vpop.f32.mrb[0].mxu0
  %v632 = vadd.f32 0.0, %v631
  %v633 = vpop.f32.mrb[0].mxu0
  %634 = vmatprep.mubr.bf16.mxu0 %v325
  %635 = vmatmul.mubr.bf16.gmra.mrb[0].mxu0 %v324
  %v636 = vpop.f32.mrb[0].mxu0
  %v637 = vadd.f32 0.0, %v636
  %v638 = vpop.f32.mrb[0].mxu0
  %v639 = vpop.f32.mrb[0].mxu0
  %v640 = vadd.f32 0.0, %v639
  %v641 = vpop.f32.mrb[0].mxu0
  %642 = vmatprep.mubr.bf16.mxu0 %v327
  %643 = vmatmul.mubr.bf16.gmra.mrb[0].mxu0 %v326
  %v644 = vpop.f32.mrb[0].mxu0
  %v645 = vadd.f32 0.0, %v644
  %v646 = vpop.f32.mrb[0].mxu0
  %v647 = vpop.f32.mrb[0].mxu0
  %v648 = vadd.f32 0.0, %v647
  %v649 = vpop.f32.mrb[0].mxu0
  %650 = vmatprep.mubr.bf16.mxu0 %v329
  %651 = vmatmul.mubr.bf16.gmra.mrb[0].mxu0 %v328
  %v652 = vpop.f32.mrb[0].mxu0
  %v653 = vadd.f32 0.0, %v652
  %v654 = vpop.f32.mrb[0].mxu0
  %v655 = vpop.f32.mrb[0].mxu0
  %v656 = vadd.f32 0.0, %v655
  %v657 = vpop.f32.mrb[0].mxu0
  %658 = vmatprep.mubr.bf16.mxu0 %v331
  %659 = vmatmul.mubr.bf16.gmra.mrb[0].mxu0 %v330
  %v660 = vpop.f32.mrb[0].mxu0
  %v661 = vadd.f32 0.0, %v660
  %v662 = vpop.f32.mrb[0].mxu0
  %v663 = vpop.f32.mrb[0].mxu0
  %v664 = vadd.f32 0.0, %v663
  %v665 = vpop.f32.mrb[0].mxu0
  %666 = vmatprep.mubr.bf16.mxu0 %v333
  %667 = vmatmul.mubr.bf16.gmra.mrb[0].mxu0 %v332
  %v668 = vpop.f32.mrb[0].mxu0
  %v669 = vadd.f32 0.0, %v668
  %v670 = vpop.f32.mrb[0].mxu0
  %v671 = vpop.f32.mrb[0].mxu0
  %v672 = vadd.f32 0.0, %v671
  %v673 = vpop.f32.mrb[0].mxu0
  %674 = vmatprep.mubr.bf16.mxu0 %v335
  %675 = vmatmul.mubr.bf16.gmra.mrb[0].mxu0 %v334
  %v676 = vpop.f32.mrb[0].mxu0
  %v677 = vadd.f32 0.0, %v676
  %v678 = vpop.f32.mrb[0].mxu0
  %v679 = vpop.f32.mrb[0].mxu0
  %v680 = vadd.f32 0.0, %v679
  %v681 = vpop.f32.mrb[0].mxu0
  %682 = vmatprep.mubr.bf16.mxu0 %v337
  %683 = vmatmul.mubr.bf16.gmra.mrb[0].mxu0 %v336
  %v684 = vpop.f32.mrb[0].mxu0
  %v685 = vadd.f32 0.0, %v684
  %v686 = vpop.f32.mrb[0].mxu0
  %v687 = vpop.f32.mrb[0].mxu0
  %v688 = vadd.f32 0.0, %v687
  %v689 = vpop.f32.mrb[0].mxu0
  %690 = vmatprep.mubr.bf16.mxu0 %v339
  %691 = vmatmul.mubr.bf16.gmra.mrb[0].mxu0 %v338
  %v692 = vpop.f32.mrb[0].mxu0
  %v693 = vadd.f32 0.0, %v692
  %v694 = vpop.f32.mrb[0].mxu0
  %v695 = vpop.f32.mrb[0].mxu0
  %v696 = vadd.f32 0.0, %v695
  %v697 = vpop.f32.mrb[0].mxu0
  %698 = vmatprep.mubr.bf16.mxu0 %v341
  %699 = vmatmul.mubr.bf16.gmra.mrb[0].mxu0 %v340
  %v700 = vpop.f32.mrb[0].mxu0
  %v701 = vadd.f32 0.0, %v700
  %v702 = vpop.f32.mrb[0].mxu0
  %v703 = vpop.f32.mrb[0].mxu0
  %v704 = vadd.f32 0.0, %v703
  %v705 = vpop.f32.mrb[0].mxu0
  %706 = vmatprep.mubr.bf16.mxu0 %v343
  %707 = vmatmul.mubr.bf16.gmra.mrb[0].mxu0 %v342
  %v708 = vpop.f32.mrb[0].mxu0
  %v709 = vadd.f32 0.0, %v708
  %v710 = vpop.f32.mrb[0].mxu0
  %v711 = vpop.f32.mrb[0].mxu0
  %v712 = vadd.f32 0.0, %v711
  %v713 = vpop.f32.mrb[0].mxu0
  %714 = vmatprep.mubr.bf16.mxu0 %v345
  %715 = vmatmul.mubr.bf16.gmra.mrb[0].mxu0 %v344
  %v716 = vpop.f32.mrb[0].mxu0
  %v717 = vadd.f32 0.0, %v716
  %v718 = vpop.f32.mrb[0].mxu0
  %v719 = vpop.f32.mrb[0].mxu0
  %v720 = vadd.f32 0.0, %v719
  %v721 = vpop.f32.mrb[0].mxu0
  %722 = vmatprep.mubr.bf16.mxu0 %v347
  %723 = vmatmul.mubr.bf16.gmra.mrb[0].mxu0 %v346
  %v724 = vpop.f32.mrb[0].mxu0
  %v725 = vadd.f32 0.0, %v724
  %v726 = vpop.f32.mrb[0].mxu0
  %v727 = vpop.f32.mrb[0].mxu0
  %v728 = vadd.f32 0.0, %v727
  %v729 = vpop.f32.mrb[0].mxu0
  %730 = vmatprep.mubr.bf16.mxu0 %v349
  %731 = vmatmul.mubr.bf16.gmra.mrb[0].mxu0 %v348
  %v732 = vpop.f32.mrb[0].mxu0
  %v733 = vadd.f32 0.0, %v732
  %v734 = vpop.f32.mrb[0].mxu0
  %v735 = vpop.f32.mrb[0].mxu0
  %v736 = vadd.f32 0.0, %v735
  %v737 = vpop.f32.mrb[0].mxu0
  %738 = vmatprep.mubr.bf16.mxu0 %v351
  %739 = vmatmul.mubr.bf16.gmra.mrb[0].mxu0 %v350
  %v740 = vpop.f32.mrb[0].mxu0
  %v741 = vadd.f32 0.0, %v740
  %v742 = vpop.f32.mrb[0].mxu0
  %v743 = vpop.f32.mrb[0].mxu0
  %v744 = vadd.f32 0.0, %v743
  %v745 = vpop.f32.mrb[0].mxu0
  %746 = vmatprep.mubr.bf16.mxu0 %v353
  %747 = vmatmul.mubr.bf16.gmra.mrb[0].mxu0 %v352
  %v748 = vpop.f32.mrb[0].mxu0
  %v749 = vadd.f32 0.0, %v748
  %v750 = vpop.f32.mrb[0].mxu0
  %v751 = vpop.f32.mrb[0].mxu0
  %v752 = vadd.f32 0.0, %v751
  %v753 = vpop.f32.mrb[0].mxu0
  %754 = vmatprep.mubr.bf16.mxu0 %v355
  %755 = vmatmul.mubr.bf16.gmra.mrb[0].mxu0 %v354
  %v756 = vpop.f32.mrb[0].mxu0
  %v757 = vadd.f32 0.0, %v756
  %v758 = vpop.f32.mrb[0].mxu0
  %v759 = vpop.f32.mrb[0].mxu0
  %v760 = vadd.f32 0.0, %v759
  %v761 = vpop.f32.mrb[0].mxu0
  %762 = vmatprep.mubr.bf16.mxu0 %v357
  %763 = vmatmul.mubr.bf16.gmra.mrb[0].mxu0 %v356
  %v764 = vpop.f32.mrb[0].mxu0
  %v765 = vadd.f32 0.0, %v764
  %v766 = vpop.f32.mrb[0].mxu0
  %v767 = vpop.f32.mrb[0].mxu0
  %v768 = vadd.f32 0.0, %v767
  %v769 = vpop.f32.mrb[0].mxu0
  %770 = vmatprep.mubr.bf16.mxu0 %v359
  %771 = vmatmul.mubr.bf16.gmra.mrb[0].mxu0 %v358
  %v772 = vpop.f32.mrb[0].mxu0
  %v773 = vadd.f32 0.0, %v772
  %v774 = vpop.f32.mrb[0].mxu0
  %v775 = vpop.f32.mrb[0].mxu0
  %v776 = vadd.f32 0.0, %v775
  %v777 = vpop.f32.mrb[0].mxu0
  %778 = vmatprep.mubr.bf16.mxu0 %v361
  %779 = vmatmul.mubr.bf16.gmra.mrb[0].mxu0 %v360
  %v780 = vpop.f32.mrb[0].mxu0
  %v781 = vadd.f32 0.0, %v780
  %v782 = vpop.f32.mrb[0].mxu0
  %v783 = vpop.f32.mrb[0].mxu0
  %v784 = vadd.f32 0.0, %v783
  %v785 = vpop.f32.mrb[0].mxu0
  %786 = vmatprep.mubr.bf16.mxu0 %v363
  %787 = vmatmul.mubr.bf16.gmra.mrb[0].mxu0 %v362
  %v788 = vpop.f32.mrb[0].mxu0
  %v789 = vadd.f32 0.0, %v788
  %v790 = vpop.f32.mrb[0].mxu0
  %v791 = vpop.f32.mrb[0].mxu0
  %v792 = vadd.f32 0.0, %v791
  %v793 = vpop.f32.mrb[0].mxu0
  %794 = vmatprep.mubr.bf16.mxu0 %v365
  %795 = vmatmul.mubr.bf16.gmra.mrb[0].mxu0 %v364
  %v796 = vpop.f32.mrb[0].mxu0
  %v797 = vadd.f32 0.0, %v796
  %v798 = vpop.f32.mrb[0].mxu0
  %v799 = vpop.f32.mrb[0].mxu0
  %v800 = vadd.f32 0.0, %v799
  %v801 = vpop.f32.mrb[0].mxu0
  %802 = vmatprep.mubr.bf16.mxu0 %v367
  %803 = vmatmul.mubr.bf16.gmra.mrb[0].mxu0 %v366
  %v804 = vpop.f32.mrb[0].mxu0
  %v805 = vadd.f32 0.0, %v804
  %v806 = vpop.f32.mrb[0].mxu0
  %v807 = vpop.f32.mrb[0].mxu0
  %v808 = vadd.f32 0.0, %v807
  %v809 = vpop.f32.mrb[0].mxu0
  %810 = vmatprep.mubr.bf16.mxu0 %v369
  %811 = vmatmul.mubr.bf16.gmra.mrb[0].mxu0 %v368
  %v812 = vpop.f32.mrb[0].mxu0
  %v813 = vadd.f32 0.0, %v812
  %v814 = vpop.f32.mrb[0].mxu0
  %v815 = vpop.f32.mrb[0].mxu0
  %v816 = vadd.f32 0.0, %v815
  %v817 = vpop.f32.mrb[0].mxu0
  %818 = vdwg.mxu0
  %v819 = vadd.f32 %v565, %v568
  %v820 = vadd.f32 %v819, %v573
  %v821 = vadd.f32 %v820, %v576
  %v822 = vadd.f32 %v821, %v581
  %v823 = vadd.f32 %v822, %v584
  %v824 = vadd.f32 %v823, %v589
  %v825 = vadd.f32 %v824, %v592
  %v826 = vadd.f32 %v825, %v597
  %v827 = vadd.f32 %v826, %v600
  %v828 = vadd.f32 %v827, %v605
  %v829 = vadd.f32 %v828, %v608
  %v830 = vadd.f32 %v829, %v613
  %v831 = vadd.f32 %v830, %v616
  %v832 = vadd.f32 %v831, %v621
  %v833 = vadd.f32 %v832, %v624
  %v834 = vadd.f32 %v833, %v629
  %v835 = vadd.f32 %v834, %v632
  %v836 = vadd.f32 %v835, %v637
  %v837 = vadd.f32 %v836, %v640
  %v838 = vadd.f32 %v837, %v645
  %v839 = vadd.f32 %v838, %v648
  %v840 = vadd.f32 %v839, %v653
  %v841 = vadd.f32 %v840, %v656
  %v842 = vadd.f32 %v841, %v661
  %v843 = vadd.f32 %v842, %v664
  %v844 = vadd.f32 %v843, %v669
  %v845 = vadd.f32 %v844, %v672
  %v846 = vadd.f32 %v845, %v677
  %v847 = vadd.f32 %v846, %v680
  %v848 = vadd.f32 %v847, %v685
  %v849 = vadd.f32 %v848, %v688
  %v850 = vadd.f32 %v849, %v693
  %v851 = vadd.f32 %v850, %v696
  %v852 = vadd.f32 %v851, %v701
  %v853 = vadd.f32 %v852, %v704
  %v854 = vadd.f32 %v853, %v709
  %v855 = vadd.f32 %v854, %v712
  %v856 = vadd.f32 %v855, %v717
  %v857 = vadd.f32 %v856, %v720
  %v858 = vadd.f32 %v857, %v725
  %v859 = vadd.f32 %v858, %v728
  %v860 = vadd.f32 %v859, %v733
  %v861 = vadd.f32 %v860, %v736
  %v862 = vadd.f32 %v861, %v741
  %v863 = vadd.f32 %v862, %v744
  %v864 = vadd.f32 %v863, %v749
  %v865 = vadd.f32 %v864, %v752
  %v866 = vadd.f32 %v865, %v757
  %v867 = vadd.f32 %v866, %v760
  %v868 = vadd.f32 %v867, %v765
  %v869 = vadd.f32 %v868, %v768
  %v870 = vadd.f32 %v869, %v773
  %v871 = vadd.f32 %v870, %v776
  %v872 = vadd.f32 %v871, %v781
  %v873 = vadd.f32 %v872, %v784
  %v874 = vadd.f32 %v873, %v789
  %v875 = vadd.f32 %v874, %v792
  %v876 = vadd.f32 %v875, %v797
  %v877 = vadd.f32 %v876, %v800
  %v878 = vadd.f32 %v877, %v805
  %v879 = vadd.f32 %v878, %v808
  %v880 = vadd.f32 %v879, %v813
  %v881 = vadd.f32 %v880, %v816
  %v882 = vrot.slane %v881, 4
  %v883 = vadd.f32 %v881, %v882
  %v884 = vrot.slane %v883, 2
  %v885 = vadd.f32 %v883, %v884
  %v886 = vrot.slane %v885, 1
  %v887 = vadd.f32 %v885, %v886
  %v888 = vmul.f32 %v887, 0.001953125
  %v889 = vmul.f32 %v565, %v565
  %v890 = vmul.f32 %v568, %v568
  %v891 = vmul.f32 %v573, %v573
  %v892 = vmul.f32 %v576, %v576
  %v893 = vmul.f32 %v581, %v581
  %v894 = vmul.f32 %v584, %v584
  %v895 = vmul.f32 %v589, %v589
  %v896 = vmul.f32 %v592, %v592
  %v897 = vmul.f32 %v597, %v597
  %v898 = vmul.f32 %v600, %v600
  %v899 = vmul.f32 %v605, %v605
  %v900 = vmul.f32 %v608, %v608
  %v901 = vmul.f32 %v613, %v613
  %v902 = vmul.f32 %v616, %v616
  %v903 = vmul.f32 %v621, %v621
  %v904 = vmul.f32 %v624, %v624
  %v905 = vmul.f32 %v629, %v629
  %v906 = vmul.f32 %v632, %v632
  %v907 = vmul.f32 %v637, %v637
  %v908 = vmul.f32 %v640, %v640
  %v909 = vmul.f32 %v645, %v645
  %v910 = vmul.f32 %v648, %v648
  %v911 = vmul.f32 %v653, %v653
  %v912 = vmul.f32 %v656, %v656
  %v913 = vmul.f32 %v661, %v661
  %v914 = vmul.f32 %v664, %v664
  %v915 = vmul.f32 %v669, %v669
  %v916 = vmul.f32 %v672, %v672
  %v917 = vmul.f32 %v677, %v677
  %v918 = vmul.f32 %v680, %v680
  %v919 = vmul.f32 %v685, %v685
  %v920 = vmul.f32 %v688, %v688
  %v921 = vmul.f32 %v693, %v693
  %v922 = vmul.f32 %v696, %v696
  %v923 = vmul.f32 %v701, %v701
  %v924 = vmul.f32 %v704, %v704
  %v925 = vmul.f32 %v709, %v709
  %v926 = vmul.f32 %v712, %v712
  %v927 = vmul.f32 %v717, %v717
  %v928 = vmul.f32 %v720, %v720
  %v929 = vmul.f32 %v725, %v725
  %v930 = vmul.f32 %v728, %v728
  %v931 = vmul.f32 %v733, %v733
  %v932 = vmul.f32 %v736, %v736
  %v933 = vmul.f32 %v741, %v741
  %v934 = vmul.f32 %v744, %v744
  %v935 = vmul.f32 %v749, %v749
  %v936 = vmul.f32 %v752, %v752
  %v937 = vmul.f32 %v757, %v757
  %v938 = vmul.f32 %v760, %v760
  %v939 = vmul.f32 %v765, %v765
  %v940 = vmul.f32 %v768, %v768
  %v941 = vmul.f32 %v773, %v773
  %v942 = vmul.f32 %v776, %v776
  %v943 = vmul.f32 %v781, %v781
  %v944 = vmul.f32 %v784, %v784
  %v945 = vmul.f32 %v789, %v789
  %v946 = vmul.f32 %v792, %v792
  %v947 = vmul.f32 %v797, %v797
  %v948 = vmul.f32 %v800, %v800
  %v949 = vmul.f32 %v805, %v805
  %v950 = vmul.f32 %v808, %v808
  %v951 = vmul.f32 %v813, %v813
  %v952 = vmul.f32 %v816, %v816
  %v953 = vadd.f32 %v889, %v890
  %v954 = vadd.f32 %v953, %v891
  %v955 = vadd.f32 %v954, %v892
  %v956 = vadd.f32 %v955, %v893
  %v957 = vadd.f32 %v956, %v894
  %v958 = vadd.f32 %v957, %v895
  %v959 = vadd.f32 %v958, %v896
  %v960 = vadd.f32 %v959, %v897
  %v961 = vadd.f32 %v960, %v898
  %v962 = vadd.f32 %v961, %v899
  %v963 = vadd.f32 %v962, %v900
  %v964 = vadd.f32 %v963, %v901
  %v965 = vadd.f32 %v964, %v902
  %v966 = vadd.f32 %v965, %v903
  %v967 = vadd.f32 %v966, %v904
  %v968 = vadd.f32 %v967, %v905
  %v969 = vadd.f32 %v968, %v906
  %v970 = vadd.f32 %v969, %v907
  %v971 = vadd.f32 %v970, %v908
  %v972 = vadd.f32 %v971, %v909
  %v973 = vadd.f32 %v972, %v910
  %v974 = vadd.f32 %v973, %v911
  %v975 = vadd.f32 %v974, %v912
  %v976 = vadd.f32 %v975, %v913
  %v977 = vadd.f32 %v976, %v914
  %v978 = vadd.f32 %v977, %v915
  %v979 = vadd.f32 %v978, %v916
  %v980 = vadd.f32 %v979, %v917
  %v981 = vadd.f32 %v980, %v918
  %v982 = vadd.f32 %v981, %v919
  %v983 = vadd.f32 %v982, %v920
  %v984 = vadd.f32 %v983, %v921
  %v985 = vadd.f32 %v984, %v922
  %v986 = vadd.f32 %v985, %v923
  %v987 = vadd.f32 %v986, %v924
  %v988 = vadd.f32 %v987, %v925
  %v989 = vadd.f32 %v988, %v926
  %v990 = vadd.f32 %v989, %v927
  %v991 = vadd.f32 %v990, %v928
  %v992 = vadd.f32 %v991, %v929
  %v993 = vadd.f32 %v992, %v930
  %v994 = vadd.f32 %v993, %v931
  %v995 = vadd.f32 %v994, %v932
  %v996 = vadd.f32 %v995, %v933
  %v997 = vadd.f32 %v996, %v934
  %v998 = vadd.f32 %v997, %v935
  %v999 = vadd.f32 %v998, %v936
  %v1000 = vadd.f32 %v999, %v937
  %v1001 = vadd.f32 %v1000, %v938
  %v1002 = vadd.f32 %v1001, %v939
  %v1003 = vadd.f32 %v1002, %v940
  %v1004 = vadd.f32 %v1003, %v941
  %v1005 = vadd.f32 %v1004, %v942
  %v1006 = vadd.f32 %v1005, %v943
  %v1007 = vadd.f32 %v1006, %v944
  %v1008 = vadd.f32 %v1007, %v945
  %v1009 = vadd.f32 %v1008, %v946
  %v1010 = vadd.f32 %v1009, %v947
  %v1011 = vadd.f32 %v1010, %v948
  %v1012 = vadd.f32 %v1011, %v949
  %v1013 = vadd.f32 %v1012, %v950
  %v1014 = vadd.f32 %v1013, %v951
  %v1015 = vadd.f32 %v1014, %v952
  %v1016 = vrot.slane %v1015, 4
  %v1017 = vadd.f32 %v1015, %v1016
  %v1018 = vrot.slane %v1017, 2
  %v1019 = vadd.f32 %v1017, %v1018
  %v1020 = vrot.slane %v1019, 1
  %v1021 = vadd.f32 %v1019, %v1020
  %v1022 = vmul.f32 %v1021, 0.001953125
  %v1023 = vmul.f32 %v888, %v888
  %v1024 = vsub.f32 %v1022, %v1023
  %v1025 = vmax.f32 %v1024, 0.0
  %v1026 = vld [vmem:[%s2] sm:$0x1]
  %v1027 = vadd.f32 %v1025, 1e-05
  %v1028 = vrsqrt.pop %v1027
  %v1029 = vmul.f32 %v1026, %v1028
  %v1030 = vld [vmem:[%s3] sm:$0x1]
  %v1031 = vmul.f32 %v888, %v1029
  %v1032 = vsub.f32 %v1030, %v1031
  %v1034 = vlaneseq
  %v1035 = vshrl.u32 %v1034, 7
  %v1036 = vsub.s32 0, %v1035
  %v1037 = vrot.slane %v1029, %v1036
  %v1039 = vmul.f32 %v565, %v1037
  %v1040 = vmul.f32 %v568, %v1037
  %v1041 = vmul.f32 %v573, %v1037
  %v1042 = vmul.f32 %v576, %v1037
  %v1043 = vmul.f32 %v581, %v1037
  %v1044 = vmul.f32 %v584, %v1037
  %v1045 = vmul.f32 %v589, %v1037
  %v1046 = vmul.f32 %v592, %v1037
  %v1047 = vmul.f32 %v597, %v1037
  %v1048 = vmul.f32 %v600, %v1037
  %v1049 = vmul.f32 %v605, %v1037
  %v1050 = vmul.f32 %v608, %v1037
  %v1051 = vmul.f32 %v613, %v1037
  %v1052 = vmul.f32 %v616, %v1037
  %v1053 = vmul.f32 %v621, %v1037
  %v1054 = vmul.f32 %v624, %v1037
  %v1055 = vmul.f32 %v629, %v1037
  %v1056 = vmul.f32 %v632, %v1037
  %v1057 = vmul.f32 %v637, %v1037
  %v1058 = vmul.f32 %v640, %v1037
  %v1059 = vmul.f32 %v645, %v1037
  %v1060 = vmul.f32 %v648, %v1037
  %v1061 = vmul.f32 %v653, %v1037
  %v1062 = vmul.f32 %v656, %v1037
  %v1063 = vmul.f32 %v661, %v1037
  %v1064 = vmul.f32 %v664, %v1037
  %v1065 = vmul.f32 %v669, %v1037
  %v1066 = vmul.f32 %v672, %v1037
  %v1067 = vmul.f32 %v677, %v1037
  %v1068 = vmul.f32 %v680, %v1037
  %v1069 = vmul.f32 %v685, %v1037
  %v1070 = vmul.f32 %v688, %v1037
  %v1071 = vmul.f32 %v693, %v1037
  %v1072 = vmul.f32 %v696, %v1037
  %v1073 = vmul.f32 %v701, %v1037
  %v1074 = vmul.f32 %v704, %v1037
  %v1075 = vmul.f32 %v709, %v1037
  %v1076 = vmul.f32 %v712, %v1037
  %v1077 = vmul.f32 %v717, %v1037
  %v1078 = vmul.f32 %v720, %v1037
  %v1079 = vmul.f32 %v725, %v1037
  %v1080 = vmul.f32 %v728, %v1037
  %v1081 = vmul.f32 %v733, %v1037
  %v1082 = vmul.f32 %v736, %v1037
  %v1083 = vmul.f32 %v741, %v1037
  %v1084 = vmul.f32 %v744, %v1037
  %v1085 = vmul.f32 %v749, %v1037
  %v1086 = vmul.f32 %v752, %v1037
  %v1087 = vmul.f32 %v757, %v1037
  %v1088 = vmul.f32 %v760, %v1037
  %v1089 = vmul.f32 %v765, %v1037
  %v1090 = vmul.f32 %v768, %v1037
  %v1091 = vmul.f32 %v773, %v1037
  %v1092 = vmul.f32 %v776, %v1037
  %v1093 = vmul.f32 %v781, %v1037
  %v1094 = vmul.f32 %v784, %v1037
  %v1095 = vmul.f32 %v789, %v1037
  %v1096 = vmul.f32 %v792, %v1037
  %v1097 = vmul.f32 %v797, %v1037
  %v1098 = vmul.f32 %v800, %v1037
  %v1099 = vmul.f32 %v805, %v1037
  %v1100 = vmul.f32 %v808, %v1037
  %v1101 = vmul.f32 %v813, %v1037
  %v1102 = vmul.f32 %v816, %v1037
  %v1104 = vlaneseq
  %v1105 = vshrl.u32 %v1104, 7
  %v1106 = vsub.s32 0, %v1105
  %v1107 = vrot.slane %v1032, %v1106
  %v1109 = vadd.f32 %v1039, %v1107
  %v1110 = vadd.f32 %v1040, %v1107
  %v1111 = vadd.f32 %v1041, %v1107
  %v1112 = vadd.f32 %v1042, %v1107
  %v1113 = vadd.f32 %v1043, %v1107
  %v1114 = vadd.f32 %v1044, %v1107
  %v1115 = vadd.f32 %v1045, %v1107
  %v1116 = vadd.f32 %v1046, %v1107
  %v1117 = vadd.f32 %v1047, %v1107
  %v1118 = vadd.f32 %v1048, %v1107
  %v1119 = vadd.f32 %v1049, %v1107
  %v1120 = vadd.f32 %v1050, %v1107
  %v1121 = vadd.f32 %v1051, %v1107
  %v1122 = vadd.f32 %v1052, %v1107
  %v1123 = vadd.f32 %v1053, %v1107
  %v1124 = vadd.f32 %v1054, %v1107
  %v1125 = vadd.f32 %v1055, %v1107
  %v1126 = vadd.f32 %v1056, %v1107
  %v1127 = vadd.f32 %v1057, %v1107
  %v1128 = vadd.f32 %v1058, %v1107
  %v1129 = vadd.f32 %v1059, %v1107
  %v1130 = vadd.f32 %v1060, %v1107
  %v1131 = vadd.f32 %v1061, %v1107
  %v1132 = vadd.f32 %v1062, %v1107
  %v1133 = vadd.f32 %v1063, %v1107
  %v1134 = vadd.f32 %v1064, %v1107
  %v1135 = vadd.f32 %v1065, %v1107
  %v1136 = vadd.f32 %v1066, %v1107
  %v1137 = vadd.f32 %v1067, %v1107
  %v1138 = vadd.f32 %v1068, %v1107
  %v1139 = vadd.f32 %v1069, %v1107
  %v1140 = vadd.f32 %v1070, %v1107
  %v1141 = vadd.f32 %v1071, %v1107
  %v1142 = vadd.f32 %v1072, %v1107
  %v1143 = vadd.f32 %v1073, %v1107
  %v1144 = vadd.f32 %v1074, %v1107
  %v1145 = vadd.f32 %v1075, %v1107
  %v1146 = vadd.f32 %v1076, %v1107
  %v1147 = vadd.f32 %v1077, %v1107
  %v1148 = vadd.f32 %v1078, %v1107
  %v1149 = vadd.f32 %v1079, %v1107
  %v1150 = vadd.f32 %v1080, %v1107
  %v1151 = vadd.f32 %v1081, %v1107
  %v1152 = vadd.f32 %v1082, %v1107
  %v1153 = vadd.f32 %v1083, %v1107
  %v1154 = vadd.f32 %v1084, %v1107
  %v1155 = vadd.f32 %v1085, %v1107
  %v1156 = vadd.f32 %v1086, %v1107
  %v1157 = vadd.f32 %v1087, %v1107
  %v1158 = vadd.f32 %v1088, %v1107
  %v1159 = vadd.f32 %v1089, %v1107
  %v1160 = vadd.f32 %v1090, %v1107
  %v1161 = vadd.f32 %v1091, %v1107
  %v1162 = vadd.f32 %v1092, %v1107
  %v1163 = vadd.f32 %v1093, %v1107
  %v1164 = vadd.f32 %v1094, %v1107
  %v1165 = vadd.f32 %v1095, %v1107
  %v1166 = vadd.f32 %v1096, %v1107
  %v1167 = vadd.f32 %v1097, %v1107
  %v1168 = vadd.f32 %v1098, %v1107
  %v1169 = vadd.f32 %v1099, %v1107
  %v1170 = vadd.f32 %v1100, %v1107
  %v1171 = vadd.f32 %v1101, %v1107
  %v1172 = vadd.f32 %v1102, %v1107
  %vm1173 = vcmp.gt.f32.partialorder %v1109, 0.0
  %vm1174 = vcmp.gt.f32.partialorder %v1110, 0.0
  %vm1175 = vcmp.gt.f32.partialorder %v1111, 0.0
  %vm1176 = vcmp.gt.f32.partialorder %v1112, 0.0
  %vm1177 = vcmp.gt.f32.partialorder %v1113, 0.0
  %vm1178 = vcmp.gt.f32.partialorder %v1114, 0.0
  %vm1179 = vcmp.gt.f32.partialorder %v1115, 0.0
  %vm1180 = vcmp.gt.f32.partialorder %v1116, 0.0
  %vm1181 = vcmp.gt.f32.partialorder %v1117, 0.0
  %vm1182 = vcmp.gt.f32.partialorder %v1118, 0.0
  %vm1183 = vcmp.gt.f32.partialorder %v1119, 0.0
  %vm1184 = vcmp.gt.f32.partialorder %v1120, 0.0
  %vm1185 = vcmp.gt.f32.partialorder %v1121, 0.0
  %vm1186 = vcmp.gt.f32.partialorder %v1122, 0.0
  %vm1187 = vcmp.gt.f32.partialorder %v1123, 0.0
  %vm1188 = vcmp.gt.f32.partialorder %v1124, 0.0
  %vm1189 = vcmp.gt.f32.partialorder %v1125, 0.0
  %vm1190 = vcmp.gt.f32.partialorder %v1126, 0.0
  %vm1191 = vcmp.gt.f32.partialorder %v1127, 0.0
  %vm1192 = vcmp.gt.f32.partialorder %v1128, 0.0
  %vm1193 = vcmp.gt.f32.partialorder %v1129, 0.0
  %vm1194 = vcmp.gt.f32.partialorder %v1130, 0.0
  %vm1195 = vcmp.gt.f32.partialorder %v1131, 0.0
  %vm1196 = vcmp.gt.f32.partialorder %v1132, 0.0
  %vm1197 = vcmp.gt.f32.partialorder %v1133, 0.0
  %vm1198 = vcmp.gt.f32.partialorder %v1134, 0.0
  %vm1199 = vcmp.gt.f32.partialorder %v1135, 0.0
  %vm1200 = vcmp.gt.f32.partialorder %v1136, 0.0
  %vm1201 = vcmp.gt.f32.partialorder %v1137, 0.0
  %vm1202 = vcmp.gt.f32.partialorder %v1138, 0.0
  %vm1203 = vcmp.gt.f32.partialorder %v1139, 0.0
  %vm1204 = vcmp.gt.f32.partialorder %v1140, 0.0
  %vm1205 = vcmp.gt.f32.partialorder %v1141, 0.0
  %vm1206 = vcmp.gt.f32.partialorder %v1142, 0.0
  %vm1207 = vcmp.gt.f32.partialorder %v1143, 0.0
  %vm1208 = vcmp.gt.f32.partialorder %v1144, 0.0
  %vm1209 = vcmp.gt.f32.partialorder %v1145, 0.0
  %vm1210 = vcmp.gt.f32.partialorder %v1146, 0.0
  %vm1211 = vcmp.gt.f32.partialorder %v1147, 0.0
  %vm1212 = vcmp.gt.f32.partialorder %v1148, 0.0
  %vm1213 = vcmp.gt.f32.partialorder %v1149, 0.0
  %vm1214 = vcmp.gt.f32.partialorder %v1150, 0.0
  %vm1215 = vcmp.gt.f32.partialorder %v1151, 0.0
  %vm1216 = vcmp.gt.f32.partialorder %v1152, 0.0
  %vm1217 = vcmp.gt.f32.partialorder %v1153, 0.0
  %vm1218 = vcmp.gt.f32.partialorder %v1154, 0.0
  %vm1219 = vcmp.gt.f32.partialorder %v1155, 0.0
  %vm1220 = vcmp.gt.f32.partialorder %v1156, 0.0
  %vm1221 = vcmp.gt.f32.partialorder %v1157, 0.0
  %vm1222 = vcmp.gt.f32.partialorder %v1158, 0.0
  %vm1223 = vcmp.gt.f32.partialorder %v1159, 0.0
  %vm1224 = vcmp.gt.f32.partialorder %v1160, 0.0
  %vm1225 = vcmp.gt.f32.partialorder %v1161, 0.0
  %vm1226 = vcmp.gt.f32.partialorder %v1162, 0.0
  %vm1227 = vcmp.gt.f32.partialorder %v1163, 0.0
  %vm1228 = vcmp.gt.f32.partialorder %v1164, 0.0
  %vm1229 = vcmp.gt.f32.partialorder %v1165, 0.0
  %vm1230 = vcmp.gt.f32.partialorder %v1166, 0.0
  %vm1231 = vcmp.gt.f32.partialorder %v1167, 0.0
  %vm1232 = vcmp.gt.f32.partialorder %v1168, 0.0
  %vm1233 = vcmp.gt.f32.partialorder %v1169, 0.0
  %vm1234 = vcmp.gt.f32.partialorder %v1170, 0.0
  %vm1235 = vcmp.gt.f32.partialorder %v1171, 0.0
  %vm1236 = vcmp.gt.f32.partialorder %v1172, 0.0
  %v1237 = vmul.f32 %v1109, 0.2
  %v1238 = vmul.f32 %v1110, 0.2
  %v1239 = vmul.f32 %v1111, 0.2
  %v1240 = vmul.f32 %v1112, 0.2
  %v1241 = vmul.f32 %v1113, 0.2
  %v1242 = vmul.f32 %v1114, 0.2
  %v1243 = vmul.f32 %v1115, 0.2
  %v1244 = vmul.f32 %v1116, 0.2
  %v1245 = vmul.f32 %v1117, 0.2
  %v1246 = vmul.f32 %v1118, 0.2
  %v1247 = vmul.f32 %v1119, 0.2
  %v1248 = vmul.f32 %v1120, 0.2
  %v1249 = vmul.f32 %v1121, 0.2
  %v1250 = vmul.f32 %v1122, 0.2
  %v1251 = vmul.f32 %v1123, 0.2
  %v1252 = vmul.f32 %v1124, 0.2
  %v1253 = vmul.f32 %v1125, 0.2
  %v1254 = vmul.f32 %v1126, 0.2
  %v1255 = vmul.f32 %v1127, 0.2
  %v1256 = vmul.f32 %v1128, 0.2
  %v1257 = vmul.f32 %v1129, 0.2
  %v1258 = vmul.f32 %v1130, 0.2
  %v1259 = vmul.f32 %v1131, 0.2
  %v1260 = vmul.f32 %v1132, 0.2
  %v1261 = vmul.f32 %v1133, 0.2
  %v1262 = vmul.f32 %v1134, 0.2
  %v1263 = vmul.f32 %v1135, 0.2
  %v1264 = vmul.f32 %v1136, 0.2
  %v1265 = vmul.f32 %v1137, 0.2
  %v1266 = vmul.f32 %v1138, 0.2
  %v1267 = vmul.f32 %v1139, 0.2
  %v1268 = vmul.f32 %v1140, 0.2
  %v1269 = vmul.f32 %v1141, 0.2
  %v1270 = vmul.f32 %v1142, 0.2
  %v1271 = vmul.f32 %v1143, 0.2
  %v1272 = vmul.f32 %v1144, 0.2
  %v1273 = vmul.f32 %v1145, 0.2
  %v1274 = vmul.f32 %v1146, 0.2
  %v1275 = vmul.f32 %v1147, 0.2
  %v1276 = vmul.f32 %v1148, 0.2
  %v1277 = vmul.f32 %v1149, 0.2
  %v1278 = vmul.f32 %v1150, 0.2
  %v1279 = vmul.f32 %v1151, 0.2
  %v1280 = vmul.f32 %v1152, 0.2
  %v1281 = vmul.f32 %v1153, 0.2
  %v1282 = vmul.f32 %v1154, 0.2
  %v1283 = vmul.f32 %v1155, 0.2
  %v1284 = vmul.f32 %v1156, 0.2
  %v1285 = vmul.f32 %v1157, 0.2
  %v1286 = vmul.f32 %v1158, 0.2
  %v1287 = vmul.f32 %v1159, 0.2
  %v1288 = vmul.f32 %v1160, 0.2
  %v1289 = vmul.f32 %v1161, 0.2
  %v1290 = vmul.f32 %v1162, 0.2
  %v1291 = vmul.f32 %v1163, 0.2
  %v1292 = vmul.f32 %v1164, 0.2
  %v1293 = vmul.f32 %v1165, 0.2
  %v1294 = vmul.f32 %v1166, 0.2
  %v1295 = vmul.f32 %v1167, 0.2
  %v1296 = vmul.f32 %v1168, 0.2
  %v1297 = vmul.f32 %v1169, 0.2
  %v1298 = vmul.f32 %v1170, 0.2
  %v1299 = vmul.f32 %v1171, 0.2
  %v1300 = vmul.f32 %v1172, 0.2
  %v1301 = vsel %vm1173, %v1109, %v1237
  %v1302 = vsel %vm1174, %v1110, %v1238
  %v1303 = vsel %vm1175, %v1111, %v1239
  %v1304 = vsel %vm1176, %v1112, %v1240
  %v1305 = vsel %vm1177, %v1113, %v1241
  %v1306 = vsel %vm1178, %v1114, %v1242
  %v1307 = vsel %vm1179, %v1115, %v1243
  %v1308 = vsel %vm1180, %v1116, %v1244
  %v1309 = vsel %vm1181, %v1117, %v1245
  %v1310 = vsel %vm1182, %v1118, %v1246
  %v1311 = vsel %vm1183, %v1119, %v1247
  %v1312 = vsel %vm1184, %v1120, %v1248
  %v1313 = vsel %vm1185, %v1121, %v1249
  %v1314 = vsel %vm1186, %v1122, %v1250
  %v1315 = vsel %vm1187, %v1123, %v1251
  %v1316 = vsel %vm1188, %v1124, %v1252
  %v1317 = vsel %vm1189, %v1125, %v1253
  %v1318 = vsel %vm1190, %v1126, %v1254
  %v1319 = vsel %vm1191, %v1127, %v1255
  %v1320 = vsel %vm1192, %v1128, %v1256
  %v1321 = vsel %vm1193, %v1129, %v1257
  %v1322 = vsel %vm1194, %v1130, %v1258
  %v1323 = vsel %vm1195, %v1131, %v1259
  %v1324 = vsel %vm1196, %v1132, %v1260
  %v1325 = vsel %vm1197, %v1133, %v1261
  %v1326 = vsel %vm1198, %v1134, %v1262
  %v1327 = vsel %vm1199, %v1135, %v1263
  %v1328 = vsel %vm1200, %v1136, %v1264
  %v1329 = vsel %vm1201, %v1137, %v1265
  %v1330 = vsel %vm1202, %v1138, %v1266
  %v1331 = vsel %vm1203, %v1139, %v1267
  %v1332 = vsel %vm1204, %v1140, %v1268
  %v1333 = vsel %vm1205, %v1141, %v1269
  %v1334 = vsel %vm1206, %v1142, %v1270
  %v1335 = vsel %vm1207, %v1143, %v1271
  %v1336 = vsel %vm1208, %v1144, %v1272
  %v1337 = vsel %vm1209, %v1145, %v1273
  %v1338 = vsel %vm1210, %v1146, %v1274
  %v1339 = vsel %vm1211, %v1147, %v1275
  %v1340 = vsel %vm1212, %v1148, %v1276
  %v1341 = vsel %vm1213, %v1149, %v1277
  %v1342 = vsel %vm1214, %v1150, %v1278
  %v1343 = vsel %vm1215, %v1151, %v1279
  %v1344 = vsel %vm1216, %v1152, %v1280
  %v1345 = vsel %vm1217, %v1153, %v1281
  %v1346 = vsel %vm1218, %v1154, %v1282
  %v1347 = vsel %vm1219, %v1155, %v1283
  %v1348 = vsel %vm1220, %v1156, %v1284
  %v1349 = vsel %vm1221, %v1157, %v1285
  %v1350 = vsel %vm1222, %v1158, %v1286
  %v1351 = vsel %vm1223, %v1159, %v1287
  %v1352 = vsel %vm1224, %v1160, %v1288
  %v1353 = vsel %vm1225, %v1161, %v1289
  %v1354 = vsel %vm1226, %v1162, %v1290
  %v1355 = vsel %vm1227, %v1163, %v1291
  %v1356 = vsel %vm1228, %v1164, %v1292
  %v1357 = vsel %vm1229, %v1165, %v1293
  %v1358 = vsel %vm1230, %v1166, %v1294
  %v1359 = vsel %vm1231, %v1167, %v1295
  %v1360 = vsel %vm1232, %v1168, %v1296
  %v1361 = vsel %vm1233, %v1169, %v1297
  %v1362 = vsel %vm1234, %v1170, %v1298
  %v1363 = vsel %vm1235, %v1171, %v1299
  %v1364 = vsel %vm1236, %v1172, %v1300
  %vm1365 = vcmask 261120
  %1366 = vst.msk [vmem:[%s4] sm:$0xff] %vm1365, %v1301
  %1367 = vst.msk [vmem:[%s4 + $0x8] sm:$0xff] %vm1365, %v1302
  %1368 = vst.msk [vmem:[%s4 + $0x10] sm:$0xff] %vm1365, %v1303
  %1369 = vst.msk [vmem:[%s4 + $0x18] sm:$0xff] %vm1365, %v1304
  %1370 = vst.msk [vmem:[%s4 + $0x20] sm:$0xff] %vm1365, %v1305
  %1371 = vst.msk [vmem:[%s4 + $0x28] sm:$0xff] %vm1365, %v1306
  %1372 = vst.msk [vmem:[%s4 + $0x30] sm:$0xff] %vm1365, %v1307
  %1373 = vst.msk [vmem:[%s4 + $0x38] sm:$0xff] %vm1365, %v1308
  %1374 = vst.msk [vmem:[%s4 + $0x40] sm:$0xff] %vm1365, %v1309
  %1375 = vst.msk [vmem:[%s4 + $0x48] sm:$0xff] %vm1365, %v1310
  %1376 = vst.msk [vmem:[%s4 + $0x50] sm:$0xff] %vm1365, %v1311
  %1377 = vst.msk [vmem:[%s4 + $0x58] sm:$0xff] %vm1365, %v1312
  %1378 = vst.msk [vmem:[%s4 + $0x60] sm:$0xff] %vm1365, %v1313
  %1379 = vst.msk [vmem:[%s4 + $0x68] sm:$0xff] %vm1365, %v1314
  %1380 = vst.msk [vmem:[%s4 + $0x70] sm:$0xff] %vm1365, %v1315
  %1381 = vst.msk [vmem:[%s4 + $0x78] sm:$0xff] %vm1365, %v1316
  %1382 = vst.msk [vmem:[%s4 + $0x80] sm:$0xff] %vm1365, %v1317
  %1383 = vst.msk [vmem:[%s4 + $0x88] sm:$0xff] %vm1365, %v1318
  %1384 = vst.msk [vmem:[%s4 + $0x90] sm:$0xff] %vm1365, %v1319
  %1385 = vst.msk [vmem:[%s4 + $0x98] sm:$0xff] %vm1365, %v1320
  %1386 = vst.msk [vmem:[%s4 + $0xa0] sm:$0xff] %vm1365, %v1321
  %1387 = vst.msk [vmem:[%s4 + $0xa8] sm:$0xff] %vm1365, %v1322
  %1388 = vst.msk [vmem:[%s4 + $0xb0] sm:$0xff] %vm1365, %v1323
  %1389 = vst.msk [vmem:[%s4 + $0xb8] sm:$0xff] %vm1365, %v1324
  %1390 = vst.msk [vmem:[%s4 + $0xc0] sm:$0xff] %vm1365, %v1325
  %1391 = vst.msk [vmem:[%s4 + $0xc8] sm:$0xff] %vm1365, %v1326
  %1392 = vst.msk [vmem:[%s4 + $0xd0] sm:$0xff] %vm1365, %v1327
  %1393 = vst.msk [vmem:[%s4 + $0xd8] sm:$0xff] %vm1365, %v1328
  %1394 = vst.msk [vmem:[%s4 + $0xe0] sm:$0xff] %vm1365, %v1329
  %1395 = vst.msk [vmem:[%s4 + $0xe8] sm:$0xff] %vm1365, %v1330
  %1396 = vst.msk [vmem:[%s4 + $0xf0] sm:$0xff] %vm1365, %v1331
  %1397 = vst.msk [vmem:[%s4 + $0xf8] sm:$0xff] %vm1365, %v1332
  %1398 = vst.msk [vmem:[%s4 + $0x100] sm:$0xff] %vm1365, %v1333
  %1399 = vst.msk [vmem:[%s4 + $0x108] sm:$0xff] %vm1365, %v1334
  %1400 = vst.msk [vmem:[%s4 + $0x110] sm:$0xff] %vm1365, %v1335
  %1401 = vst.msk [vmem:[%s4 + $0x118] sm:$0xff] %vm1365, %v1336
  %1402 = vst.msk [vmem:[%s4 + $0x120] sm:$0xff] %vm1365, %v1337
  %1403 = vst.msk [vmem:[%s4 + $0x128] sm:$0xff] %vm1365, %v1338
  %1404 = vst.msk [vmem:[%s4 + $0x130] sm:$0xff] %vm1365, %v1339
  %1405 = vst.msk [vmem:[%s4 + $0x138] sm:$0xff] %vm1365, %v1340
  %1406 = vst.msk [vmem:[%s4 + $0x140] sm:$0xff] %vm1365, %v1341
  %1407 = vst.msk [vmem:[%s4 + $0x148] sm:$0xff] %vm1365, %v1342
  %1408 = vst.msk [vmem:[%s4 + $0x150] sm:$0xff] %vm1365, %v1343
  %1409 = vst.msk [vmem:[%s4 + $0x158] sm:$0xff] %vm1365, %v1344
  %1410 = vst.msk [vmem:[%s4 + $0x160] sm:$0xff] %vm1365, %v1345
  %1411 = vst.msk [vmem:[%s4 + $0x168] sm:$0xff] %vm1365, %v1346
  %1412 = vst.msk [vmem:[%s4 + $0x170] sm:$0xff] %vm1365, %v1347
  %1413 = vst.msk [vmem:[%s4 + $0x178] sm:$0xff] %vm1365, %v1348
  %1414 = vst.msk [vmem:[%s4 + $0x180] sm:$0xff] %vm1365, %v1349
  %1415 = vst.msk [vmem:[%s4 + $0x188] sm:$0xff] %vm1365, %v1350
  %1416 = vst.msk [vmem:[%s4 + $0x190] sm:$0xff] %vm1365, %v1351
  %1417 = vst.msk [vmem:[%s4 + $0x198] sm:$0xff] %vm1365, %v1352
  %1418 = vst.msk [vmem:[%s4 + $0x1a0] sm:$0xff] %vm1365, %v1353
  %1419 = vst.msk [vmem:[%s4 + $0x1a8] sm:$0xff] %vm1365, %v1354
  %1420 = vst.msk [vmem:[%s4 + $0x1b0] sm:$0xff] %vm1365, %v1355
  %1421 = vst.msk [vmem:[%s4 + $0x1b8] sm:$0xff] %vm1365, %v1356
  %1422 = vst.msk [vmem:[%s4 + $0x1c0] sm:$0xff] %vm1365, %v1357
  %1423 = vst.msk [vmem:[%s4 + $0x1c8] sm:$0xff] %vm1365, %v1358
  %1424 = vst.msk [vmem:[%s4 + $0x1d0] sm:$0xff] %vm1365, %v1359
  %1425 = vst.msk [vmem:[%s4 + $0x1d8] sm:$0xff] %vm1365, %v1360
  %1426 = vst.msk [vmem:[%s4 + $0x1e0] sm:$0xff] %vm1365, %v1361
  %1427 = vst.msk [vmem:[%s4 + $0x1e8] sm:$0xff] %vm1365, %v1362
  %1428 = vst.msk [vmem:[%s4 + $0x1f0] sm:$0xff] %vm1365, %v1363
  %1429 = vst.msk [vmem:[%s4 + $0x1f8] sm:$0xff] %vm1365, %v1364
  // Predicated region
  $region18: #{_lambda_.8} parent=0 // pred_check
    _
  $region19: #{_lambda_.8} parent=0 // pred_check_branch
    %1431 = sbr.rel (0) target = $region21
  $region20: #{_lambda_.8} parent=0 // pred_region
    _
  $region21: #{_lambda_.8} parent=0 // pred_fallthru
    _
  // Predicated region
  $region22: #{_lambda_.8} parent=0 // pred_check
    _
  $region23: #{_lambda_.8} parent=0 // pred_check_branch
    %1433 = sbr.rel (0) target = $region25
  $region24: #{_lambda_.8} parent=0 // pred_region
    _
  $region25: #{_lambda_.8} parent=0 // pred_fallthru
    _

// kernel: _lambda_.9
$region0: #{_lambda_.9}
  #allocation0 [shape = 'u32[]', space=smem, size = 0x4, offset = 0x4, fixed_abs, tag = 'smem constant byte address 0x4 - core index']
  #allocation1 [shape = 'u32[144,128]{1,0:T(1,128)}', space=vmem, size = 0x12000, scoped, tag = 'internal scratch']
  %s0 = inlined_call_operand.vmem [shape: bf16[128,512], index: 0, kind: input, shape index: {}]
  %s1 = inlined_call_operand.vmem [shape: bf16[512,128], index: 1, kind: input, shape index: {}]
  %s2 = inlined_call_operand.vmem [shape: f32[1,128], index: 2, kind: input, shape index: {}]
  %s3 = inlined_call_operand.vmem [shape: f32[1,128], index: 3, kind: input, shape index: {}]
  %s4 = inlined_call_operand.vmem [shape: f32[128,64], index: 4, kind: output, shape index: {}]
  %s5 = sld [smem:[#allocation0]]
  $region26: #{_lambda_.9} parent=0
    _
  %s7 = ssub.s32 1, %s5
  %s8 = scalar_select 0, %s7, %s5
  // Predicated region
  $region2: #{_lambda_.9} parent=0 // pred_check
    _
  $region3: #{_lambda_.9} parent=0 // pred_check_branch
    %10 = sbr.rel (0) target = $region5
  $region4: #{_lambda_.9} parent=0 // pred_region
    _
  $region5: #{_lambda_.9} parent=0 // pred_fallthru
    _
  // Predicated region
  $region6: #{_lambda_.9} parent=0 // pred_check
    _
  $region7: #{_lambda_.9} parent=0 // pred_check_branch
    %12 = sbr.rel (0) target = $region9
  $region8: #{_lambda_.9} parent=0 // pred_region
    _
  $region9: #{_lambda_.9} parent=0 // pred_fallthru
    _
  // Predicated region
  $region10: #{_lambda_.9} parent=0 // pred_check
    _
  $region11: #{_lambda_.9} parent=0 // pred_check_branch
    %14 = sbr.rel (0) target = $region13
  $region12: #{_lambda_.9} parent=0 // pred_region
    _
  $region13: #{_lambda_.9} parent=0 // pred_fallthru
    _
  // Predicated region
  $region14: #{_lambda_.9} parent=0 // pred_check
    _
  $region15: #{_lambda_.9} parent=0 // pred_check_branch
    %16 = sbr.rel (0) target = $region17
  $region16: #{_lambda_.9} parent=0 // pred_region
    _
  $region17: #{_lambda_.9} parent=0 // pred_fallthru
    _
  %v18 = vld [vmem:[%s0] sm:$0xff]
  %v19 = vld [vmem:[%s0 + $0x8] sm:$0xff]
  %v20 = vld [vmem:[%s0 + $0x10] sm:$0xff]
  %v21 = vld [vmem:[%s0 + $0x18] sm:$0xff]
  %v22 = vld [vmem:[%s0 + $0x20] sm:$0xff]
  %v23 = vld [vmem:[%s0 + $0x28] sm:$0xff]
  %v24 = vld [vmem:[%s0 + $0x30] sm:$0xff]
  %v25 = vld [vmem:[%s0 + $0x38] sm:$0xff]
  %v26 = vld [vmem:[%s0 + $0x40] sm:$0xff]
  %v27 = vld [vmem:[%s0 + $0x48] sm:$0xff]
  %v28 = vld [vmem:[%s0 + $0x50] sm:$0xff]
  %v29 = vld [vmem:[%s0 + $0x58] sm:$0xff]
  %v30 = vld [vmem:[%s0 + $0x60] sm:$0xff]
  %v31 = vld [vmem:[%s0 + $0x68] sm:$0xff]
  %v32 = vld [vmem:[%s0 + $0x70] sm:$0xff]
  %v33 = vld [vmem:[%s0 + $0x78] sm:$0xff]
  %v34 = vld [vmem:[%s0 + $0x80] sm:$0xff]
  %v35 = vld [vmem:[%s0 + $0x88] sm:$0xff]
  %v36 = vld [vmem:[%s0 + $0x90] sm:$0xff]
  %v37 = vld [vmem:[%s0 + $0x98] sm:$0xff]
  %v38 = vld [vmem:[%s0 + $0xa0] sm:$0xff]
  %v39 = vld [vmem:[%s0 + $0xa8] sm:$0xff]
  %v40 = vld [vmem:[%s0 + $0xb0] sm:$0xff]
  %v41 = vld [vmem:[%s0 + $0xb8] sm:$0xff]
  %v42 = vld [vmem:[%s0 + $0xc0] sm:$0xff]
  %v43 = vld [vmem:[%s0 + $0xc8] sm:$0xff]
  %v44 = vld [vmem:[%s0 + $0xd0] sm:$0xff]
  %v45 = vld [vmem:[%s0 + $0xd8] sm:$0xff]
  %v46 = vld [vmem:[%s0 + $0xe0] sm:$0xff]
  %v47 = vld [vmem:[%s0 + $0xe8] sm:$0xff]
  %v48 = vld [vmem:[%s0 + $0xf0] sm:$0xff]
  %v49 = vld [vmem:[%s0 + $0xf8] sm:$0xff]
  %v50 = vld [vmem:[%s1] sm:$0xf]
  %v51 = vld [vmem:[%s1 + $0x4] sm:$0xf]
  %v52 = vld [vmem:[%s1 + $0x8] sm:$0xf]
  %v53 = vld [vmem:[%s1 + $0xc] sm:$0xf]
  %v54 = vld [vmem:[%s1 + $0x10] sm:$0xf]
  %v55 = vld [vmem:[%s1 + $0x14] sm:$0xf]
  %v56 = vld [vmem:[%s1 + $0x18] sm:$0xf]
  %v57 = vld [vmem:[%s1 + $0x1c] sm:$0xf]
  %v58 = vld [vmem:[%s1 + $0x20] sm:$0xf]
  %v59 = vld [vmem:[%s1 + $0x24] sm:$0xf]
  %v60 = vld [vmem:[%s1 + $0x28] sm:$0xf]
  %v61 = vld [vmem:[%s1 + $0x2c] sm:$0xf]
  %v62 = vld [vmem:[%s1 + $0x30] sm:$0xf]
  %v63 = vld [vmem:[%s1 + $0x34] sm:$0xf]
  %v64 = vld [vmem:[%s1 + $0x38] sm:$0xf]
  %v65 = vld [vmem:[%s1 + $0x3c] sm:$0xf]
  %v66 = vld [vmem:[%s1 + $0x40] sm:$0xf]
  %v67 = vld [vmem:[%s1 + $0x44] sm:$0xf]
  %v68 = vld [vmem:[%s1 + $0x48] sm:$0xf]
  %v69 = vld [vmem:[%s1 + $0x4c] sm:$0xf]
  %v70 = vld [vmem:[%s1 + $0x50] sm:$0xf]
  %v71 = vld [vmem:[%s1 + $0x54] sm:$0xf]
  %v72 = vld [vmem:[%s1 + $0x58] sm:$0xf]
  %v73 = vld [vmem:[%s1 + $0x5c] sm:$0xf]
  %v74 = vld [vmem:[%s1 + $0x60] sm:$0xf]
  %v75 = vld [vmem:[%s1 + $0x64] sm:$0xf]
  %v76 = vld [vmem:[%s1 + $0x68] sm:$0xf]
  %v77 = vld [vmem:[%s1 + $0x6c] sm:$0xf]
  %v78 = vld [vmem:[%s1 + $0x70] sm:$0xf]
  %v79 = vld [vmem:[%s1 + $0x74] sm:$0xf]
  %v80 = vld [vmem:[%s1 + $0x78] sm:$0xf]
  %v81 = vld [vmem:[%s1 + $0x7c] sm:$0xf]
  %v82 = vld [vmem:[%s1 + $0x80] sm:$0xf]
  %v83 = vld [vmem:[%s1 + $0x84] sm:$0xf]
  %v84 = vld [vmem:[%s1 + $0x88] sm:$0xf]
  %v85 = vld [vmem:[%s1 + $0x8c] sm:$0xf]
  %v86 = vld [vmem:[%s1 + $0x90] sm:$0xf]
  %v87 = vld [vmem:[%s1 + $0x94] sm:$0xf]
  %v88 = vld [vmem:[%s1 + $0x98] sm:$0xf]
  %v89 = vld [vmem:[%s1 + $0x9c] sm:$0xf]
  %v90 = vld [vmem:[%s1 + $0xa0] sm:$0xf]
  %v91 = vld [vmem:[%s1 + $0xa4] sm:$0xf]
  %v92 = vld [vmem:[%s1 + $0xa8] sm:$0xf]
  %v93 = vld [vmem:[%s1 + $0xac] sm:$0xf]
  %v94 = vld [vmem:[%s1 + $0xb0] sm:$0xf]
  %v95 = vld [vmem:[%s1 + $0xb4] sm:$0xf]
  %v96 = vld [vmem:[%s1 + $0xb8] sm:$0xf]
  %v97 = vld [vmem:[%s1 + $0xbc] sm:$0xf]
  %v98 = vld [vmem:[%s1 + $0xc0] sm:$0xf]
  %v99 = vld [vmem:[%s1 + $0xc4] sm:$0xf]
  %v100 = vld [vmem:[%s1 + $0xc8] sm:$0xf]
  %v101 = vld [vmem:[%s1 + $0xcc] sm:$0xf]
  %v102 = vld [vmem:[%s1 + $0xd0] sm:$0xf]
  %v103 = vld [vmem:[%s1 + $0xd4] sm:$0xf]
  %v104 = vld [vmem:[%s1 + $0xd8] sm:$0xf]
  %v105 = vld [vmem:[%s1 + $0xdc] sm:$0xf]
  %v106 = vld [vmem:[%s1 + $0xe0] sm:$0xf]
  %v107 = vld [vmem:[%s1 + $0xe4] sm:$0xf]
  %v108 = vld [vmem:[%s1 + $0xe8] sm:$0xf]
  %v109 = vld [vmem:[%s1 + $0xec] sm:$0xf]
  %v110 = vld [vmem:[%s1 + $0xf0] sm:$0xf]
  %v111 = vld [vmem:[%s1 + $0xf4] sm:$0xf]
  %v112 = vld [vmem:[%s1 + $0xf8] sm:$0xf]
  %v113 = vld [vmem:[%s1 + $0xfc] sm:$0xf]
  %v146 = vunpack.c.l.b16 %v18
  %v147 = vunpack.c.h.b16 %v18
  %v148 = vunpack.c.l.b16 %v19
  %v149 = vunpack.c.h.b16 %v19
  %v150 = vunpack.c.l.b16 %v20
  %v151 = vunpack.c.h.b16 %v20
  %v152 = vunpack.c.l.b16 %v21
  %v153 = vunpack.c.h.b16 %v21
  %v154 = vunpack.c.l.b16 %v22
  %v155 = vunpack.c.h.b16 %v22
  %v156 = vunpack.c.l.b16 %v23
  %v157 = vunpack.c.h.b16 %v23
  %v158 = vunpack.c.l.b16 %v24
  %v159 = vunpack.c.h.b16 %v24
  %v160 = vunpack.c.l.b16 %v25
  %v161 = vunpack.c.h.b16 %v25
  %v162 = vunpack.c.l.b16 %v26
  %v163 = vunpack.c.h.b16 %v26
  %v164 = vunpack.c.l.b16 %v27
  %v165 = vunpack.c.h.b16 %v27
  %v166 = vunpack.c.l.b16 %v28
  %v167 = vunpack.c.h.b16 %v28
  %v168 = vunpack.c.l.b16 %v29
  %v169 = vunpack.c.h.b16 %v29
  %v170 = vunpack.c.l.b16 %v30
  %v171 = vunpack.c.h.b16 %v30
  %v172 = vunpack.c.l.b16 %v31
  %v173 = vunpack.c.h.b16 %v31
  %v174 = vunpack.c.l.b16 %v32
  %v175 = vunpack.c.h.b16 %v32
  %v176 = vunpack.c.l.b16 %v33
  %v177 = vunpack.c.h.b16 %v33
  %v178 = vunpack.c.l.b16 %v34
  %v179 = vunpack.c.h.b16 %v34
  %v180 = vunpack.c.l.b16 %v35
  %v181 = vunpack.c.h.b16 %v35
  %v182 = vunpack.c.l.b16 %v36
  %v183 = vunpack.c.h.b16 %v36
  %v184 = vunpack.c.l.b16 %v37
  %v185 = vunpack.c.h.b16 %v37
  %v186 = vunpack.c.l.b16 %v38
  %v187 = vunpack.c.h.b16 %v38
  %v188 = vunpack.c.l.b16 %v39
  %v189 = vunpack.c.h.b16 %v39
  %v190 = vunpack.c.l.b16 %v40
  %v191 = vunpack.c.h.b16 %v40
  %v192 = vunpack.c.l.b16 %v41
  %v193 = vunpack.c.h.b16 %v41
  %v194 = vunpack.c.l.b16 %v42
  %v195 = vunpack.c.h.b16 %v42
  %v196 = vunpack.c.l.b16 %v43
  %v197 = vunpack.c.h.b16 %v43
  %v198 = vunpack.c.l.b16 %v44
  %v199 = vunpack.c.h.b16 %v44
  %v200 = vunpack.c.l.b16 %v45
  %v201 = vunpack.c.h.b16 %v45
  %v202 = vunpack.c.l.b16 %v46
  %v203 = vunpack.c.h.b16 %v46
  %v204 = vunpack.c.l.b16 %v47
  %v205 = vunpack.c.h.b16 %v47
  %v206 = vunpack.c.l.b16 %v48
  %v207 = vunpack.c.h.b16 %v48
  %v208 = vunpack.c.l.b16 %v49
  %v209 = vunpack.c.h.b16 %v49
  %v210 = vpack.c.b16 %v150, %v146
  %v211 = vpack.c.b16 %v151, %v147
  %v212 = vpack.c.b16 %v152, %v148
  %v213 = vpack.c.b16 %v153, %v149
  %v214 = vpack.c.b16 %v158, %v154
  %v215 = vpack.c.b16 %v159, %v155
  %v216 = vpack.c.b16 %v160, %v156
  %v217 = vpack.c.b16 %v161, %v157
  %v218 = vpack.c.b16 %v166, %v162
  %v219 = vpack.c.b16 %v167, %v163
  %v220 = vpack.c.b16 %v168, %v164
  %v221 = vpack.c.b16 %v169, %v165
  %v222 = vpack.c.b16 %v174, %v170
  %v223 = vpack.c.b16 %v175, %v171
  %v224 = vpack.c.b16 %v176, %v172
  %v225 = vpack.c.b16 %v177, %v173
  %v226 = vpack.c.b16 %v182, %v178
  %v227 = vpack.c.b16 %v183, %v179
  %v228 = vpack.c.b16 %v184, %v180
  %v229 = vpack.c.b16 %v185, %v181
  %v230 = vpack.c.b16 %v190, %v186
  %v231 = vpack.c.b16 %v191, %v187
  %v232 = vpack.c.b16 %v192, %v188
  %v233 = vpack.c.b16 %v193, %v189
  %v234 = vpack.c.b16 %v198, %v194
  %v235 = vpack.c.b16 %v199, %v195
  %v236 = vpack.c.b16 %v200, %v196
  %v237 = vpack.c.b16 %v201, %v197
  %v238 = vpack.c.b16 %v206, %v202
  %v239 = vpack.c.b16 %v207, %v203
  %v240 = vpack.c.b16 %v208, %v204
  %v241 = vpack.c.b16 %v209, %v205
  %v338 = vunpack.c.l.b16 %v50
  %v339 = vunpack.c.l.b16 %v51
  %v340 = vunpack.c.l.b16 %v52
  %v341 = vunpack.c.l.b16 %v53
  %v342 = vunpack.c.l.b16 %v54
  %v343 = vunpack.c.l.b16 %v55
  %v344 = vunpack.c.l.b16 %v56
  %v345 = vunpack.c.l.b16 %v57
  %v346 = vunpack.c.l.b16 %v58
  %v347 = vunpack.c.l.b16 %v59
  %v348 = vunpack.c.l.b16 %v60
  %v349 = vunpack.c.l.b16 %v61
  %v350 = vunpack.c.l.b16 %v62
  %v351 = vunpack.c.l.b16 %v63
  %v352 = vunpack.c.l.b16 %v64
  %v353 = vunpack.c.l.b16 %v65
  %v354 = vunpack.c.l.b16 %v66
  %v355 = vunpack.c.l.b16 %v67
  %v356 = vunpack.c.l.b16 %v68
  %v357 = vunpack.c.l.b16 %v69
  %v358 = vunpack.c.l.b16 %v70
  %v359 = vunpack.c.l.b16 %v71
  %v360 = vunpack.c.l.b16 %v72
  %v361 = vunpack.c.l.b16 %v73
  %v362 = vunpack.c.l.b16 %v74
  %v363 = vunpack.c.l.b16 %v75
  %v364 = vunpack.c.l.b16 %v76
  %v365 = vunpack.c.l.b16 %v77
  %v366 = vunpack.c.l.b16 %v78
  %v367 = vunpack.c.l.b16 %v79
  %v368 = vunpack.c.l.b16 %v80
  %v369 = vunpack.c.l.b16 %v81
  %v370 = vunpack.c.l.b16 %v82
  %v371 = vunpack.c.l.b16 %v83
  %v372 = vunpack.c.l.b16 %v84
  %v373 = vunpack.c.l.b16 %v85
  %v374 = vunpack.c.l.b16 %v86
  %v375 = vunpack.c.l.b16 %v87
  %v376 = vunpack.c.l.b16 %v88
  %v377 = vunpack.c.l.b16 %v89
  %v378 = vunpack.c.l.b16 %v90
  %v379 = vunpack.c.l.b16 %v91
  %v380 = vunpack.c.l.b16 %v92
  %v381 = vunpack.c.l.b16 %v93
  %v382 = vunpack.c.l.b16 %v94
  %v383 = vunpack.c.l.b16 %v95
  %v384 = vunpack.c.l.b16 %v96
  %v385 = vunpack.c.l.b16 %v97
  %v386 = vunpack.c.l.b16 %v98
  %v387 = vunpack.c.l.b16 %v99
  %v388 = vunpack.c.l.b16 %v100
  %v389 = vunpack.c.l.b16 %v101
  %v390 = vunpack.c.l.b16 %v102
  %v391 = vunpack.c.l.b16 %v103
  %v392 = vunpack.c.l.b16 %v104
  %v393 = vunpack.c.l.b16 %v105
  %v394 = vunpack.c.l.b16 %v106
  %v395 = vunpack.c.l.b16 %v107
  %v396 = vunpack.c.l.b16 %v108
  %v397 = vunpack.c.l.b16 %v109
  %v398 = vunpack.c.l.b16 %v110
  %v399 = vunpack.c.l.b16 %v111
  %v400 = vunpack.c.l.b16 %v112
  %v401 = vunpack.c.l.b16 %v113
  %v402 = vpack.c.b16 %v339, %v338
  %v403 = vpack.c.b16 %v341, %v340
  %v404 = vpack.c.b16 %v343, %v342
  %v405 = vpack.c.b16 %v345, %v344
  %v406 = vpack.c.b16 %v347, %v346
  %v407 = vpack.c.b16 %v349, %v348
  %v408 = vpack.c.b16 %v351, %v350
  %v409 = vpack.c.b16 %v353, %v352
  %v410 = vpack.c.b16 %v355, %v354
  %v411 = vpack.c.b16 %v357, %v356
  %v412 = vpack.c.b16 %v359, %v358
  %v413 = vpack.c.b16 %v361, %v360
  %v414 = vpack.c.b16 %v363, %v362
  %v415 = vpack.c.b16 %v365, %v364
  %v416 = vpack.c.b16 %v367, %v366
  %v417 = vpack.c.b16 %v369, %v368
  %v418 = vpack.c.b16 %v371, %v370
  %v419 = vpack.c.b16 %v373, %v372
  %v420 = vpack.c.b16 %v375, %v374
  %v421 = vpack.c.b16 %v377, %v376
  %v422 = vpack.c.b16 %v379, %v378
  %v423 = vpack.c.b16 %v381, %v380
  %v424 = vpack.c.b16 %v383, %v382
  %v425 = vpack.c.b16 %v385, %v384
  %v426 = vpack.c.b16 %v387, %v386
  %v427 = vpack.c.b16 %v389, %v388
  %v428 = vpack.c.b16 %v391, %v390
  %v429 = vpack.c.b16 %v393, %v392
  %v430 = vpack.c.b16 %v395, %v394
  %v431 = vpack.c.b16 %v397, %v396
  %v432 = vpack.c.b16 %v399, %v398
  %v433 = vpack.c.b16 %v401, %v400
  %466 = vmatprep.subr.bf16.mxu0 0
  %467 = vmatpush1.bf16.msra.mxu0 %v402
  %468 = vmatprep.subr.bf16.mxu0 0
  %469 = vmatpush1.bf16.msra.mxu0 %v403
  %470 = vmatprep.subr.bf16.mxu0 0
  %471 = vmatpush1.bf16.msra.mxu0 %v404
  %472 = vmatprep.subr.bf16.mxu0 0
  %473 = vmatpush1.bf16.msra.mxu0 %v405
  %474 = vmatprep.subr.bf16.mxu0 0
  %475 = vmatpush1.bf16.msra.mxu0 %v406
  %476 = vmatprep.subr.bf16.mxu0 0
  %477 = vmatpush1.bf16.msra.mxu0 %v407
  %478 = vmatprep.subr.bf16.mxu0 0
  %479 = vmatpush1.bf16.msra.mxu0 %v408
  %480 = vmatprep.subr.bf16.mxu0 0
  %481 = vmatpush1.bf16.msra.mxu0 %v409
  %482 = vmatprep.subr.bf16.mxu0 0
  %483 = vmatpush1.bf16.msra.mxu0 %v410
  %484 = vmatprep.subr.bf16.mxu0 0
  %485 = vmatpush1.bf16.msra.mxu0 %v411
  %486 = vmatprep.subr.bf16.mxu0 0
  %487 = vmatpush1.bf16.msra.mxu0 %v412
  %488 = vmatprep.subr.bf16.mxu0 0
  %489 = vmatpush1.bf16.msra.mxu0 %v413
  %490 = vmatprep.subr.bf16.mxu0 0
  %491 = vmatpush1.bf16.msra.mxu0 %v414
  %492 = vmatprep.subr.bf16.mxu0 0
  %493 = vmatpush1.bf16.msra.mxu0 %v415
  %494 = vmatprep.subr.bf16.mxu0 0
  %495 = vmatpush1.bf16.msra.mxu0 %v416
  %496 = vmatprep.subr.bf16.mxu0 0
  %497 = vmatpush1.bf16.msra.mxu0 %v417
  %498 = vmatprep.mubr.bf16.mxu0 %v211
  %499 = vmatmul.mubr.bf16.gmra.mrb[0].mxu0 %v210
  %v500 = vpop.f32.mrb[0].mxu0
  %v501 = vadd.f32 0.0, %v500
  %v502 = vpop.f32.mrb[0].mxu0
  %v503 = vpop.f32.mrb[0].mxu0
  %v504 = vadd.f32 0.0, %v503
  %v505 = vpop.f32.mrb[0].mxu0
  %506 = vmatprep.mubr.bf16.mxu0 %v215
  %507 = vmatmul.mubr.bf16.gmra.mrb[0].mxu0 %v214
  %v508 = vpop.f32.mrb[0].mxu0
  %v509 = vadd.f32 0.0, %v508
  %v510 = vpop.f32.mrb[0].mxu0
  %v511 = vpop.f32.mrb[0].mxu0
  %v512 = vadd.f32 0.0, %v511
  %v513 = vpop.f32.mrb[0].mxu0
  %514 = vmatprep.mubr.bf16.mxu0 %v219
  %515 = vmatmul.mubr.bf16.gmra.mrb[0].mxu0 %v218
  %v516 = vpop.f32.mrb[0].mxu0
  %v517 = vadd.f32 0.0, %v516
  %v518 = vpop.f32.mrb[0].mxu0
  %v519 = vpop.f32.mrb[0].mxu0
  %v520 = vadd.f32 0.0, %v519
  %v521 = vpop.f32.mrb[0].mxu0
  %522 = vmatprep.mubr.bf16.mxu0 %v223
  %523 = vmatmul.mubr.bf16.gmra.mrb[0].mxu0 %v222
  %v524 = vpop.f32.mrb[0].mxu0
  %v525 = vadd.f32 0.0, %v524
  %v526 = vpop.f32.mrb[0].mxu0
  %v527 = vpop.f32.mrb[0].mxu0
  %v528 = vadd.f32 0.0, %v527
  %v529 = vpop.f32.mrb[0].mxu0
  %530 = vmatprep.mubr.bf16.mxu0 %v227
  %531 = vmatmul.mubr.bf16.gmra.mrb[0].mxu0 %v226
  %v532 = vpop.f32.mrb[0].mxu0
  %v533 = vadd.f32 0.0, %v532
  %v534 = vpop.f32.mrb[0].mxu0
  %v535 = vpop.f32.mrb[0].mxu0
  %v536 = vadd.f32 0.0, %v535
  %v537 = vpop.f32.mrb[0].mxu0
  %538 = vmatprep.mubr.bf16.mxu0 %v231
  %539 = vmatmul.mubr.bf16.gmra.mrb[0].mxu0 %v230
  %v540 = vpop.f32.mrb[0].mxu0
  %v541 = vadd.f32 0.0, %v540
  %v542 = vpop.f32.mrb[0].mxu0
  %v543 = vpop.f32.mrb[0].mxu0
  %v544 = vadd.f32 0.0, %v543
  %v545 = vpop.f32.mrb[0].mxu0
  %546 = vmatprep.mubr.bf16.mxu0 %v235
  %547 = vmatmul.mubr.bf16.gmra.mrb[0].mxu0 %v234
  %v548 = vpop.f32.mrb[0].mxu0
  %v549 = vadd.f32 0.0, %v548
  %v550 = vpop.f32.mrb[0].mxu0
  %v551 = vpop.f32.mrb[0].mxu0
  %v552 = vadd.f32 0.0, %v551
  %v553 = vpop.f32.mrb[0].mxu0
  %554 = vmatprep.mubr.bf16.mxu0 %v239
  %555 = vmatmul.mubr.bf16.gmra.mrb[0].mxu0 %v238
  %v556 = vpop.f32.mrb[0].mxu0
  %v557 = vadd.f32 0.0, %v556
  %v558 = vpop.f32.mrb[0].mxu0
  %v559 = vpop.f32.mrb[0].mxu0
  %v560 = vadd.f32 0.0, %v559
  %v561 = vpop.f32.mrb[0].mxu0
  %562 = vdwg.mxu0
  %563 = vmatprep.subr.bf16.mxu0 0
  %564 = vmatpush1.bf16.msra.mxu0 %v418
  %565 = vmatprep.subr.bf16.mxu0 0
  %566 = vmatpush1.bf16.msra.mxu0 %v419
  %567 = vmatprep.subr.bf16.mxu0 0
  %568 = vmatpush1.bf16.msra.mxu0 %v420
  %569 = vmatprep.subr.bf16.mxu0 0
  %570 = vmatpush1.bf16.msra.mxu0 %v421
  %571 = vmatprep.subr.bf16.mxu0 0
  %572 = vmatpush1.bf16.msra.mxu0 %v422
  %573 = vmatprep.subr.bf16.mxu0 0
  %574 = vmatpush1.bf16.msra.mxu0 %v423
  %575 = vmatprep.subr.bf16.mxu0 0
  %576 = vmatpush1.bf16.msra.mxu0 %v424
  %577 = vmatprep.subr.bf16.mxu0 0
  %578 = vmatpush1.bf16.msra.mxu0 %v425
  %579 = vmatprep.subr.bf16.mxu0 0
  %580 = vmatpush1.bf16.msra.mxu0 %v426
  %581 = vmatprep.subr.bf16.mxu0 0
  %582 = vmatpush1.bf16.msra.mxu0 %v427
  %583 = vmatprep.subr.bf16.mxu0 0
  %584 = vmatpush1.bf16.msra.mxu0 %v428
  %585 = vmatprep.subr.bf16.mxu0 0
  %586 = vmatpush1.bf16.msra.mxu0 %v429
  %587 = vmatprep.subr.bf16.mxu0 0
  %588 = vmatpush1.bf16.msra.mxu0 %v430
  %589 = vmatprep.subr.bf16.mxu0 0
  %590 = vmatpush1.bf16.msra.mxu0 %v431
  %591 = vmatprep.subr.bf16.mxu0 0
  %592 = vmatpush1.bf16.msra.mxu0 %v432
  %593 = vmatprep.subr.bf16.mxu0 0
  %594 = vmatpush1.bf16.msra.mxu0 %v433
  %595 = vmatprep.mubr.bf16.mxu0 %v213
  %596 = vmatmul.mubr.bf16.gmra.mrb[0].mxu0 %v212
  %v597 = vpop.f32.mrb[0].mxu0
  %v598 = vadd.f32 %v501, %v597
  %v599 = vpop.f32.mrb[0].mxu0
  %v600 = vpop.f32.mrb[0].mxu0
  %v601 = vadd.f32 %v504, %v600
  %v602 = vpop.f32.mrb[0].mxu0
  %603 = vmatprep.mubr.bf16.mxu0 %v217
  %604 = vmatmul.mubr.bf16.gmra.mrb[0].mxu0 %v216
  %v605 = vpop.f32.mrb[0].mxu0
  %v606 = vadd.f32 %v509, %v605
  %v607 = vpop.f32.mrb[0].mxu0
  %v608 = vpop.f32.mrb[0].mxu0
  %v609 = vadd.f32 %v512, %v608
  %v610 = vpop.f32.mrb[0].mxu0
  %611 = vmatprep.mubr.bf16.mxu0 %v221
  %612 = vmatmul.mubr.bf16.gmra.mrb[0].mxu0 %v220
  %v613 = vpop.f32.mrb[0].mxu0
  %v614 = vadd.f32 %v517, %v613
  %v615 = vpop.f32.mrb[0].mxu0
  %v616 = vpop.f32.mrb[0].mxu0
  %v617 = vadd.f32 %v520, %v616
  %v618 = vpop.f32.mrb[0].mxu0
  %619 = vmatprep.mubr.bf16.mxu0 %v225
  %620 = vmatmul.mubr.bf16.gmra.mrb[0].mxu0 %v224
  %v621 = vpop.f32.mrb[0].mxu0
  %v622 = vadd.f32 %v525, %v621
  %v623 = vpop.f32.mrb[0].mxu0
  %v624 = vpop.f32.mrb[0].mxu0
  %v625 = vadd.f32 %v528, %v624
  %v626 = vpop.f32.mrb[0].mxu0
  %627 = vmatprep.mubr.bf16.mxu0 %v229
  %628 = vmatmul.mubr.bf16.gmra.mrb[0].mxu0 %v228
  %v629 = vpop.f32.mrb[0].mxu0
  %v630 = vadd.f32 %v533, %v629
  %v631 = vpop.f32.mrb[0].mxu0
  %v632 = vpop.f32.mrb[0].mxu0
  %v633 = vadd.f32 %v536, %v632
  %v634 = vpop.f32.mrb[0].mxu0
  %635 = vmatprep.mubr.bf16.mxu0 %v233
  %636 = vmatmul.mubr.bf16.gmra.mrb[0].mxu0 %v232
  %v637 = vpop.f32.mrb[0].mxu0
  %v638 = vadd.f32 %v541, %v637
  %v639 = vpop.f32.mrb[0].mxu0
  %v640 = vpop.f32.mrb[0].mxu0
  %v641 = vadd.f32 %v544, %v640
  %v642 = vpop.f32.mrb[0].mxu0
  %643 = vmatprep.mubr.bf16.mxu0 %v237
  %644 = vmatmul.mubr.bf16.gmra.mrb[0].mxu0 %v236
  %v645 = vpop.f32.mrb[0].mxu0
  %v646 = vadd.f32 %v549, %v645
  %v647 = vpop.f32.mrb[0].mxu0
  %v648 = vpop.f32.mrb[0].mxu0
  %v649 = vadd.f32 %v552, %v648
  %v650 = vpop.f32.mrb[0].mxu0
  %651 = vmatprep.mubr.bf16.mxu0 %v241
  %652 = vmatmul.mubr.bf16.gmra.mrb[0].mxu0 %v240
  %v653 = vpop.f32.mrb[0].mxu0
  %v654 = vadd.f32 %v557, %v653
  %v655 = vpop.f32.mrb[0].mxu0
  %v656 = vpop.f32.mrb[0].mxu0
  %v657 = vadd.f32 %v560, %v656
  %v658 = vpop.f32.mrb[0].mxu0
  %659 = vdwg.mxu0
  %v660 = vadd.f32 %v598, %v601
  %v661 = vadd.f32 %v660, %v606
  %v662 = vadd.f32 %v661, %v609
  %v663 = vadd.f32 %v662, %v614
  %v664 = vadd.f32 %v663, %v617
  %v665 = vadd.f32 %v664, %v622
  %v666 = vadd.f32 %v665, %v625
  %v667 = vadd.f32 %v666, %v630
  %v668 = vadd.f32 %v667, %v633
  %v669 = vadd.f32 %v668, %v638
  %v670 = vadd.f32 %v669, %v641
  %v671 = vadd.f32 %v670, %v646
  %v672 = vadd.f32 %v671, %v649
  %v673 = vadd.f32 %v672, %v654
  %v674 = vadd.f32 %v673, %v657
  %v675 = vrot.slane %v674, 4
  %v676 = vadd.f32 %v674, %v675
  %v677 = vrot.slane %v676, 2
  %v678 = vadd.f32 %v676, %v677
  %v679 = vrot.slane %v678, 1
  %v680 = vadd.f32 %v678, %v679
  %v681 = vmul.f32 %v680, 0.0078125
  %v682 = vmul.f32 %v598, %v598
  %v683 = vmul.f32 %v601, %v601
  %v684 = vmul.f32 %v606, %v606
  %v685 = vmul.f32 %v609, %v609
  %v686 = vmul.f32 %v614, %v614
  %v687 = vmul.f32 %v617, %v617
  %v688 = vmul.f32 %v622, %v622
  %v689 = vmul.f32 %v625, %v625
  %v690 = vmul.f32 %v630, %v630
  %v691 = vmul.f32 %v633, %v633
  %v692 = vmul.f32 %v638, %v638
  %v693 = vmul.f32 %v641, %v641
  %v694 = vmul.f32 %v646, %v646
  %v695 = vmul.f32 %v649, %v649
  %v696 = vmul.f32 %v654, %v654
  %v697 = vmul.f32 %v657, %v657
  %v698 = vadd.f32 %v682, %v683
  %v699 = vadd.f32 %v698, %v684
  %v700 = vadd.f32 %v699, %v685
  %v701 = vadd.f32 %v700, %v686
  %v702 = vadd.f32 %v701, %v687
  %v703 = vadd.f32 %v702, %v688
  %v704 = vadd.f32 %v703, %v689
  %v705 = vadd.f32 %v704, %v690
  %v706 = vadd.f32 %v705, %v691
  %v707 = vadd.f32 %v706, %v692
  %v708 = vadd.f32 %v707, %v693
  %v709 = vadd.f32 %v708, %v694
  %v710 = vadd.f32 %v709, %v695
  %v711 = vadd.f32 %v710, %v696
  %v712 = vadd.f32 %v711, %v697
  %v713 = vrot.slane %v712, 4
  %v714 = vadd.f32 %v712, %v713
  %v715 = vrot.slane %v714, 2
  %v716 = vadd.f32 %v714, %v715
  %v717 = vrot.slane %v716, 1
  %v718 = vadd.f32 %v716, %v717
  %v719 = vmul.f32 %v718, 0.0078125
  %v720 = vmul.f32 %v681, %v681
  %v721 = vsub.f32 %v719, %v720
  %v722 = vmax.f32 %v721, 0.0
  %v723 = vld [vmem:[%s2] sm:$0x1]
  %v724 = vadd.f32 %v722, 1e-05
  %v725 = vrsqrt.pop %v724
  %v726 = vmul.f32 %v723, %v725
  %v727 = vld [vmem:[%s3] sm:$0x1]
  %v728 = vmul.f32 %v681, %v726
  %v729 = vsub.f32 %v727, %v728
  %v731 = vlaneseq
  %v732 = vshrl.u32 %v731, 7
  %v733 = vsub.s32 0, %v732
  %v734 = vrot.slane %v726, %v733
  %v736 = vmul.f32 %v598, %v734
  %v737 = vmul.f32 %v601, %v734
  %v738 = vmul.f32 %v606, %v734
  %v739 = vmul.f32 %v609, %v734
  %v740 = vmul.f32 %v614, %v734
  %v741 = vmul.f32 %v617, %v734
  %v742 = vmul.f32 %v622, %v734
  %v743 = vmul.f32 %v625, %v734
  %v744 = vmul.f32 %v630, %v734
  %v745 = vmul.f32 %v633, %v734
  %v746 = vmul.f32 %v638, %v734
  %v747 = vmul.f32 %v641, %v734
  %v748 = vmul.f32 %v646, %v734
  %v749 = vmul.f32 %v649, %v734
  %v750 = vmul.f32 %v654, %v734
  %v751 = vmul.f32 %v657, %v734
  %v753 = vlaneseq
  %v754 = vshrl.u32 %v753, 7
  %v755 = vsub.s32 0, %v754
  %v756 = vrot.slane %v729, %v755
  %v758 = vadd.f32 %v736, %v756
  %v759 = vadd.f32 %v737, %v756
  %v760 = vadd.f32 %v738, %v756
  %v761 = vadd.f32 %v739, %v756
  %v762 = vadd.f32 %v740, %v756
  %v763 = vadd.f32 %v741, %v756
  %v764 = vadd.f32 %v742, %v756
  %v765 = vadd.f32 %v743, %v756
  %v766 = vadd.f32 %v744, %v756
  %v767 = vadd.f32 %v745, %v756
  %v768 = vadd.f32 %v746, %v756
  %v769 = vadd.f32 %v747, %v756
  %v770 = vadd.f32 %v748, %v756
  %v771 = vadd.f32 %v749, %v756
  %v772 = vadd.f32 %v750, %v756
  %v773 = vadd.f32 %v751, %v756
  %vm774 = vcmp.gt.f32.partialorder %v758, 0.0
  %vm775 = vcmp.gt.f32.partialorder %v759, 0.0
  %vm776 = vcmp.gt.f32.partialorder %v760, 0.0
  %vm777 = vcmp.gt.f32.partialorder %v761, 0.0
  %vm778 = vcmp.gt.f32.partialorder %v762, 0.0
  %vm779 = vcmp.gt.f32.partialorder %v763, 0.0
  %vm780 = vcmp.gt.f32.partialorder %v764, 0.0
  %vm781 = vcmp.gt.f32.partialorder %v765, 0.0
  %vm782 = vcmp.gt.f32.partialorder %v766, 0.0
  %vm783 = vcmp.gt.f32.partialorder %v767, 0.0
  %vm784 = vcmp.gt.f32.partialorder %v768, 0.0
  %vm785 = vcmp.gt.f32.partialorder %v769, 0.0
  %vm786 = vcmp.gt.f32.partialorder %v770, 0.0
  %vm787 = vcmp.gt.f32.partialorder %v771, 0.0
  %vm788 = vcmp.gt.f32.partialorder %v772, 0.0
  %vm789 = vcmp.gt.f32.partialorder %v773, 0.0
  %v790 = vmul.f32 %v758, 0.2
  %v791 = vmul.f32 %v759, 0.2
  %v792 = vmul.f32 %v760, 0.2
  %v793 = vmul.f32 %v761, 0.2
  %v794 = vmul.f32 %v762, 0.2
  %v795 = vmul.f32 %v763, 0.2
  %v796 = vmul.f32 %v764, 0.2
  %v797 = vmul.f32 %v765, 0.2
  %v798 = vmul.f32 %v766, 0.2
  %v799 = vmul.f32 %v767, 0.2
  %v800 = vmul.f32 %v768, 0.2
  %v801 = vmul.f32 %v769, 0.2
  %v802 = vmul.f32 %v770, 0.2
  %v803 = vmul.f32 %v771, 0.2
  %v804 = vmul.f32 %v772, 0.2
  %v805 = vmul.f32 %v773, 0.2
  %v806 = vsel %vm774, %v758, %v790
  %v807 = vsel %vm775, %v759, %v791
  %v808 = vsel %vm776, %v760, %v792
  %v809 = vsel %vm777, %v761, %v793
  %v810 = vsel %vm778, %v762, %v794
  %v811 = vsel %vm779, %v763, %v795
  %v812 = vsel %vm780, %v764, %v796
  %v813 = vsel %vm781, %v765, %v797
  %v814 = vsel %vm782, %v766, %v798
  %v815 = vsel %vm783, %v767, %v799
  %v816 = vsel %vm784, %v768, %v800
  %v817 = vsel %vm785, %v769, %v801
  %v818 = vsel %vm786, %v770, %v802
  %v819 = vsel %vm787, %v771, %v803
  %v820 = vsel %vm788, %v772, %v804
  %v821 = vsel %vm789, %v773, %v805
  %vm822 = vcmask 523264
  %823 = vst.msk [vmem:[%s4] sm:$0xff] %vm822, %v806
  %824 = vst.msk [vmem:[%s4 + $0x8] sm:$0xff] %vm822, %v807
  %825 = vst.msk [vmem:[%s4 + $0x10] sm:$0xff] %vm822, %v808
  %826 = vst.msk [vmem:[%s4 + $0x18] sm:$0xff] %vm822, %v809
  %827 = vst.msk [vmem:[%s4 + $0x20] sm:$0xff] %vm822, %v810
  %828 = vst.msk [vmem:[%s4 + $0x28] sm:$0xff] %vm822, %v811
  %829 = vst.msk [vmem:[%s4 + $0x30] sm:$0xff] %vm822, %v812
  %830 = vst.msk [vmem:[%s4 + $0x38] sm:$0xff] %vm822, %v813
  %831 = vst.msk [vmem:[%s4 + $0x40] sm:$0xff] %vm822, %v814
  %832 = vst.msk [vmem:[%s4 + $0x48] sm:$0xff] %vm822, %v815
  %833 = vst.msk [vmem:[%s4 + $0x50] sm:$0xff] %vm822, %v816
  %834 = vst.msk [vmem:[%s4 + $0x58] sm:$0xff] %vm822, %v817
  %835 = vst.msk [vmem:[%s4 + $0x60] sm:$0xff] %vm822, %v818
  %836 = vst.msk [vmem:[%s4 + $0x68] sm:$0xff] %vm822, %v819
  %837 = vst.msk [vmem:[%s4 + $0x70] sm:$0xff] %vm822, %v820
  %838 = vst.msk [vmem:[%s4 + $0x78] sm:$0xff] %vm822, %v821
  // Predicated region
  $region18: #{_lambda_.9} parent=0 // pred_check
    _
  $region19: #{_lambda_.9} parent=0 // pred_check_branch
    %840 = sbr.rel (0) target = $region21
  $region20: #{_lambda_.9} parent=0 // pred_region
    _
  $region21: #{_lambda_.9} parent=0 // pred_fallthru
    _
  // Predicated region
  $region22: #{_lambda_.9} parent=0 // pred_check
    _
  $region23: #{_lambda_.9} parent=0 // pred_check_branch
    %842 = sbr.rel (0) target = $region25
  $region24: #{_lambda_.9} parent=0 // pred_region
    _
  $region25: #{_lambda_.9} parent=0 // pred_fallthru
    _

// kernel: _lambda_.10
$region0: #{_lambda_.10}
  #allocation0 [shape = 'u32[]', space=smem, size = 0x4, offset = 0x4, fixed_abs, tag = 'smem constant byte address 0x4 - core index']
  #allocation1 [shape = 'u32[144,128]{1,0:T(1,128)}', space=vmem, size = 0x12000, scoped, tag = 'internal scratch']
  %s0 = inlined_call_operand.vmem [shape: bf16[32,1024], index: 0, kind: input, shape index: {}]
  %s1 = inlined_call_operand.vmem [shape: bf16[1024,128], index: 1, kind: input, shape index: {}]
  %s2 = inlined_call_operand.vmem [shape: f32[1,128], index: 2, kind: input, shape index: {}]
  %s3 = inlined_call_operand.vmem [shape: f32[1,128], index: 3, kind: input, shape index: {}]
  %s4 = inlined_call_operand.vmem [shape: f32[32,128], index: 4, kind: output, shape index: {}]
  %s5 = sld [smem:[#allocation0]]
  $region26: #{_lambda_.10} parent=0
    _
  %s7 = ssub.s32 1, %s5
  %s8 = scalar_select 0, %s7, %s5
  // Predicated region
  $region2: #{_lambda_.10} parent=0 // pred_check
    _
  $region3: #{_lambda_.10} parent=0 // pred_check_branch
    %10 = sbr.rel (0) target = $region5
  $region4: #{_lambda_.10} parent=0 // pred_region
    _
  $region5: #{_lambda_.10} parent=0 // pred_fallthru
    _
  // Predicated region
  $region6: #{_lambda_.10} parent=0 // pred_check
    _
  $region7: #{_lambda_.10} parent=0 // pred_check_branch
    %12 = sbr.rel (0) target = $region9
  $region8: #{_lambda_.10} parent=0 // pred_region
    _
  $region9: #{_lambda_.10} parent=0 // pred_fallthru
    _
  // Predicated region
  $region10: #{_lambda_.10} parent=0 // pred_check
    _
  $region11: #{_lambda_.10} parent=0 // pred_check_branch
    %14 = sbr.rel (0) target = $region13
  $region12: #{_lambda_.10} parent=0 // pred_region
    _
  $region13: #{_lambda_.10} parent=0 // pred_fallthru
    _
  // Predicated region
  $region14: #{_lambda_.10} parent=0 // pred_check
    _
  $region15: #{_lambda_.10} parent=0 // pred_check_branch
    %16 = sbr.rel (0) target = $region17
  $region16: #{_lambda_.10} parent=0 // pred_region
    _
  $region17: #{_lambda_.10} parent=0 // pred_fallthru
    _
  %v18 = vld [vmem:[%s0] sm:$0xff]
  %v19 = vld [vmem:[%s0 + $0x8] sm:$0xff]
  %v20 = vld [vmem:[%s0 + $0x10] sm:$0xff]
  %v21 = vld [vmem:[%s0 + $0x18] sm:$0xff]
  %v22 = vld [vmem:[%s0 + $0x20] sm:$0xff]
  %v23 = vld [vmem:[%s0 + $0x28] sm:$0xff]
  %v24 = vld [vmem:[%s0 + $0x30] sm:$0xff]
  %v25 = vld [vmem:[%s0 + $0x38] sm:$0xff]
  %v26 = vld [vmem:[%s0 + $0x40] sm:$0xff]
  %v27 = vld [vmem:[%s0 + $0x48] sm:$0xff]
  %v28 = vld [vmem:[%s0 + $0x50] sm:$0xff]
  %v29 = vld [vmem:[%s0 + $0x58] sm:$0xff]
  %v30 = vld [vmem:[%s0 + $0x60] sm:$0xff]
  %v31 = vld [vmem:[%s0 + $0x68] sm:$0xff]
  %v32 = vld [vmem:[%s0 + $0x70] sm:$0xff]
  %v33 = vld [vmem:[%s0 + $0x78] sm:$0xff]
  %v34 = vld [vmem:[%s1] sm:$0xf]
  %v35 = vld [vmem:[%s1 + $0x4] sm:$0xf]
  %v36 = vld [vmem:[%s1 + $0x8] sm:$0xf]
  %v37 = vld [vmem:[%s1 + $0xc] sm:$0xf]
  %v38 = vld [vmem:[%s1 + $0x10] sm:$0xf]
  %v39 = vld [vmem:[%s1 + $0x14] sm:$0xf]
  %v40 = vld [vmem:[%s1 + $0x18] sm:$0xf]
  %v41 = vld [vmem:[%s1 + $0x1c] sm:$0xf]
  %v42 = vld [vmem:[%s1 + $0x20] sm:$0xf]
  %v43 = vld [vmem:[%s1 + $0x24] sm:$0xf]
  %v44 = vld [vmem:[%s1 + $0x28] sm:$0xf]
  %v45 = vld [vmem:[%s1 + $0x2c] sm:$0xf]
  %v46 = vld [vmem:[%s1 + $0x30] sm:$0xf]
  %v47 = vld [vmem:[%s1 + $0x34] sm:$0xf]
  %v48 = vld [vmem:[%s1 + $0x38] sm:$0xf]
  %v49 = vld [vmem:[%s1 + $0x3c] sm:$0xf]
  %v50 = vld [vmem:[%s1 + $0x40] sm:$0xf]
  %v51 = vld [vmem:[%s1 + $0x44] sm:$0xf]
  %v52 = vld [vmem:[%s1 + $0x48] sm:$0xf]
  %v53 = vld [vmem:[%s1 + $0x4c] sm:$0xf]
  %v54 = vld [vmem:[%s1 + $0x50] sm:$0xf]
  %v55 = vld [vmem:[%s1 + $0x54] sm:$0xf]
  %v56 = vld [vmem:[%s1 + $0x58] sm:$0xf]
  %v57 = vld [vmem:[%s1 + $0x5c] sm:$0xf]
  %v58 = vld [vmem:[%s1 + $0x60] sm:$0xf]
  %v59 = vld [vmem:[%s1 + $0x64] sm:$0xf]
  %v60 = vld [vmem:[%s1 + $0x68] sm:$0xf]
  %v61 = vld [vmem:[%s1 + $0x6c] sm:$0xf]
  %v62 = vld [vmem:[%s1 + $0x70] sm:$0xf]
  %v63 = vld [vmem:[%s1 + $0x74] sm:$0xf]
  %v64 = vld [vmem:[%s1 + $0x78] sm:$0xf]
  %v65 = vld [vmem:[%s1 + $0x7c] sm:$0xf]
  %v66 = vld [vmem:[%s1 + $0x80] sm:$0xf]
  %v67 = vld [vmem:[%s1 + $0x84] sm:$0xf]
  %v68 = vld [vmem:[%s1 + $0x88] sm:$0xf]
  %v69 = vld [vmem:[%s1 + $0x8c] sm:$0xf]
  %v70 = vld [vmem:[%s1 + $0x90] sm:$0xf]
  %v71 = vld [vmem:[%s1 + $0x94] sm:$0xf]
  %v72 = vld [vmem:[%s1 + $0x98] sm:$0xf]
  %v73 = vld [vmem:[%s1 + $0x9c] sm:$0xf]
  %v74 = vld [vmem:[%s1 + $0xa0] sm:$0xf]
  %v75 = vld [vmem:[%s1 + $0xa4] sm:$0xf]
  %v76 = vld [vmem:[%s1 + $0xa8] sm:$0xf]
  %v77 = vld [vmem:[%s1 + $0xac] sm:$0xf]
  %v78 = vld [vmem:[%s1 + $0xb0] sm:$0xf]
  %v79 = vld [vmem:[%s1 + $0xb4] sm:$0xf]
  %v80 = vld [vmem:[%s1 + $0xb8] sm:$0xf]
  %v81 = vld [vmem:[%s1 + $0xbc] sm:$0xf]
  %v82 = vld [vmem:[%s1 + $0xc0] sm:$0xf]
  %v83 = vld [vmem:[%s1 + $0xc4] sm:$0xf]
  %v84 = vld [vmem:[%s1 + $0xc8] sm:$0xf]
  %v85 = vld [vmem:[%s1 + $0xcc] sm:$0xf]
  %v86 = vld [vmem:[%s1 + $0xd0] sm:$0xf]
  %v87 = vld [vmem:[%s1 + $0xd4] sm:$0xf]
  %v88 = vld [vmem:[%s1 + $0xd8] sm:$0xf]
  %v89 = vld [vmem:[%s1 + $0xdc] sm:$0xf]
  %v90 = vld [vmem:[%s1 + $0xe0] sm:$0xf]
  %v91 = vld [vmem:[%s1 + $0xe4] sm:$0xf]
  %v92 = vld [vmem:[%s1 + $0xe8] sm:$0xf]
  %v93 = vld [vmem:[%s1 + $0xec] sm:$0xf]
  %v94 = vld [vmem:[%s1 + $0xf0] sm:$0xf]
  %v95 = vld [vmem:[%s1 + $0xf4] sm:$0xf]
  %v96 = vld [vmem:[%s1 + $0xf8] sm:$0xf]
  %v97 = vld [vmem:[%s1 + $0xfc] sm:$0xf]
  %v98 = vld [vmem:[%s1 + $0x100] sm:$0xf]
  %v99 = vld [vmem:[%s1 + $0x104] sm:$0xf]
  %v100 = vld [vmem:[%s1 + $0x108] sm:$0xf]
  %v101 = vld [vmem:[%s1 + $0x10c] sm:$0xf]
  %v102 = vld [vmem:[%s1 + $0x110] sm:$0xf]
  %v103 = vld [vmem:[%s1 + $0x114] sm:$0xf]
  %v104 = vld [vmem:[%s1 + $0x118] sm:$0xf]
  %v105 = vld [vmem:[%s1 + $0x11c] sm:$0xf]
  %v106 = vld [vmem:[%s1 + $0x120] sm:$0xf]
  %v107 = vld [vmem:[%s1 + $0x124] sm:$0xf]
  %v108 = vld [vmem:[%s1 + $0x128] sm:$0xf]
  %v109 = vld [vmem:[%s1 + $0x12c] sm:$0xf]
  %v110 = vld [vmem:[%s1 + $0x130] sm:$0xf]
  %v111 = vld [vmem:[%s1 + $0x134] sm:$0xf]
  %v112 = vld [vmem:[%s1 + $0x138] sm:$0xf]
  %v113 = vld [vmem:[%s1 + $0x13c] sm:$0xf]
  %v114 = vld [vmem:[%s1 + $0x140] sm:$0xf]
  %v115 = vld [vmem:[%s1 + $0x144] sm:$0xf]
  %v116 = vld [vmem:[%s1 + $0x148] sm:$0xf]
  %v117 = vld [vmem:[%s1 + $0x14c] sm:$0xf]
  %v118 = vld [vmem:[%s1 + $0x150] sm:$0xf]
  %v119 = vld [vmem:[%s1 + $0x154] sm:$0xf]
  %v120 = vld [vmem:[%s1 + $0x158] sm:$0xf]
  %v121 = vld [vmem:[%s1 + $0x15c] sm:$0xf]
  %v122 = vld [vmem:[%s1 + $0x160] sm:$0xf]
  %v123 = vld [vmem:[%s1 + $0x164] sm:$0xf]
  %v124 = vld [vmem:[%s1 + $0x168] sm:$0xf]
  %v125 = vld [vmem:[%s1 + $0x16c] sm:$0xf]
  %v126 = vld [vmem:[%s1 + $0x170] sm:$0xf]
  %v127 = vld [vmem:[%s1 + $0x174] sm:$0xf]
  %v128 = vld [vmem:[%s1 + $0x178] sm:$0xf]
  %v129 = vld [vmem:[%s1 + $0x17c] sm:$0xf]
  %v130 = vld [vmem:[%s1 + $0x180] sm:$0xf]
  %v131 = vld [vmem:[%s1 + $0x184] sm:$0xf]
  %v132 = vld [vmem:[%s1 + $0x188] sm:$0xf]
  %v133 = vld [vmem:[%s1 + $0x18c] sm:$0xf]
  %v134 = vld [vmem:[%s1 + $0x190] sm:$0xf]
  %v135 = vld [vmem:[%s1 + $0x194] sm:$0xf]
  %v136 = vld [vmem:[%s1 + $0x198] sm:$0xf]
  %v137 = vld [vmem:[%s1 + $0x19c] sm:$0xf]
  %v138 = vld [vmem:[%s1 + $0x1a0] sm:$0xf]
  %v139 = vld [vmem:[%s1 + $0x1a4] sm:$0xf]
  %v140 = vld [vmem:[%s1 + $0x1a8] sm:$0xf]
  %v141 = vld [vmem:[%s1 + $0x1ac] sm:$0xf]
  %v142 = vld [vmem:[%s1 + $0x1b0] sm:$0xf]
  %v143 = vld [vmem:[%s1 + $0x1b4] sm:$0xf]
  %v144 = vld [vmem:[%s1 + $0x1b8] sm:$0xf]
  %v145 = vld [vmem:[%s1 + $0x1bc] sm:$0xf]
  %v146 = vld [vmem:[%s1 + $0x1c0] sm:$0xf]
  %v147 = vld [vmem:[%s1 + $0x1c4] sm:$0xf]
  %v148 = vld [vmem:[%s1 + $0x1c8] sm:$0xf]
  %v149 = vld [vmem:[%s1 + $0x1cc] sm:$0xf]
  %v150 = vld [vmem:[%s1 + $0x1d0] sm:$0xf]
  %v151 = vld [vmem:[%s1 + $0x1d4] sm:$0xf]
  %v152 = vld [vmem:[%s1 + $0x1d8] sm:$0xf]
  %v153 = vld [vmem:[%s1 + $0x1dc] sm:$0xf]
  %v154 = vld [vmem:[%s1 + $0x1e0] sm:$0xf]
  %v155 = vld [vmem:[%s1 + $0x1e4] sm:$0xf]
  %v156 = vld [vmem:[%s1 + $0x1e8] sm:$0xf]
  %v157 = vld [vmem:[%s1 + $0x1ec] sm:$0xf]
  %v158 = vld [vmem:[%s1 + $0x1f0] sm:$0xf]
  %v159 = vld [vmem:[%s1 + $0x1f4] sm:$0xf]
  %v160 = vld [vmem:[%s1 + $0x1f8] sm:$0xf]
  %v161 = vld [vmem:[%s1 + $0x1fc] sm:$0xf]
  %v178 = vunpack.c.l.b16 %v18
  %v179 = vunpack.c.h.b16 %v18
  %v180 = vunpack.c.l.b16 %v19
  %v181 = vunpack.c.h.b16 %v19
  %v182 = vunpack.c.l.b16 %v20
  %v183 = vunpack.c.h.b16 %v20
  %v184 = vunpack.c.l.b16 %v21
  %v185 = vunpack.c.h.b16 %v21
  %v186 = vunpack.c.l.b16 %v22
  %v187 = vunpack.c.h.b16 %v22
  %v188 = vunpack.c.l.b16 %v23
  %v189 = vunpack.c.h.b16 %v23
  %v190 = vunpack.c.l.b16 %v24
  %v191 = vunpack.c.h.b16 %v24
  %v192 = vunpack.c.l.b16 %v25
  %v193 = vunpack.c.h.b16 %v25
  %v194 = vunpack.c.l.b16 %v26
  %v195 = vunpack.c.h.b16 %v26
  %v196 = vunpack.c.l.b16 %v27
  %v197 = vunpack.c.h.b16 %v27
  %v198 = vunpack.c.l.b16 %v28
  %v199 = vunpack.c.h.b16 %v28
  %v200 = vunpack.c.l.b16 %v29
  %v201 = vunpack.c.h.b16 %v29
  %v202 = vunpack.c.l.b16 %v30
  %v203 = vunpack.c.h.b16 %v30
  %v204 = vunpack.c.l.b16 %v31
  %v205 = vunpack.c.h.b16 %v31
  %v206 = vunpack.c.l.b16 %v32
  %v207 = vunpack.c.h.b16 %v32
  %v208 = vunpack.c.l.b16 %v33
  %v209 = vunpack.c.h.b16 %v33
  %v210 = vpack.c.b16 %v186, %v178
  %v211 = vpack.c.b16 %v187, %v179
  %v212 = vpack.c.b16 %v188, %v180
  %v213 = vpack.c.b16 %v189, %v181
  %v214 = vpack.c.b16 %v190, %v182
  %v215 = vpack.c.b16 %v191, %v183
  %v216 = vpack.c.b16 %v192, %v184
  %v217 = vpack.c.b16 %v193, %v185
  %v218 = vpack.c.b16 %v202, %v194
  %v219 = vpack.c.b16 %v203, %v195
  %v220 = vpack.c.b16 %v204, %v196
  %v221 = vpack.c.b16 %v205, %v197
  %v222 = vpack.c.b16 %v206, %v198
  %v223 = vpack.c.b16 %v207, %v199
  %v224 = vpack.c.b16 %v208, %v200
  %v225 = vpack.c.b16 %v209, %v201
  %v370 = vunpack.c.l.b16 %v34
  %v371 = vunpack.c.l.b16 %v35
  %v372 = vunpack.c.l.b16 %v36
  %v373 = vunpack.c.l.b16 %v37
  %v374 = vunpack.c.l.b16 %v38
  %v375 = vunpack.c.l.b16 %v39
  %v376 = vunpack.c.l.b16 %v40
  %v377 = vunpack.c.l.b16 %v41
  %v378 = vunpack.c.l.b16 %v42
  %v379 = vunpack.c.l.b16 %v43
  %v380 = vunpack.c.l.b16 %v44
  %v381 = vunpack.c.l.b16 %v45
  %v382 = vunpack.c.l.b16 %v46
  %v383 = vunpack.c.l.b16 %v47
  %v384 = vunpack.c.l.b16 %v48
  %v385 = vunpack.c.l.b16 %v49
  %v386 = vunpack.c.l.b16 %v50
  %v387 = vunpack.c.l.b16 %v51
  %v388 = vunpack.c.l.b16 %v52
  %v389 = vunpack.c.l.b16 %v53
  %v390 = vunpack.c.l.b16 %v54
  %v391 = vunpack.c.l.b16 %v55
  %v392 = vunpack.c.l.b16 %v56
  %v393 = vunpack.c.l.b16 %v57
  %v394 = vunpack.c.l.b16 %v58
  %v395 = vunpack.c.l.b16 %v59
  %v396 = vunpack.c.l.b16 %v60
  %v397 = vunpack.c.l.b16 %v61
  %v398 = vunpack.c.l.b16 %v62
  %v399 = vunpack.c.l.b16 %v63
  %v400 = vunpack.c.l.b16 %v64
  %v401 = vunpack.c.l.b16 %v65
  %v402 = vunpack.c.l.b16 %v66
  %v403 = vunpack.c.l.b16 %v67
  %v404 = vunpack.c.l.b16 %v68
  %v405 = vunpack.c.l.b16 %v69
  %v406 = vunpack.c.l.b16 %v70
  %v407 = vunpack.c.l.b16 %v71
  %v408 = vunpack.c.l.b16 %v72
  %v409 = vunpack.c.l.b16 %v73
  %v410 = vunpack.c.l.b16 %v74
  %v411 = vunpack.c.l.b16 %v75
  %v412 = vunpack.c.l.b16 %v76
  %v413 = vunpack.c.l.b16 %v77
  %v414 = vunpack.c.l.b16 %v78
  %v415 = vunpack.c.l.b16 %v79
  %v416 = vunpack.c.l.b16 %v80
  %v417 = vunpack.c.l.b16 %v81
  %v418 = vunpack.c.l.b16 %v82
  %v419 = vunpack.c.l.b16 %v83
  %v420 = vunpack.c.l.b16 %v84
  %v421 = vunpack.c.l.b16 %v85
  %v422 = vunpack.c.l.b16 %v86
  %v423 = vunpack.c.l.b16 %v87
  %v424 = vunpack.c.l.b16 %v88
  %v425 = vunpack.c.l.b16 %v89
  %v426 = vunpack.c.l.b16 %v90
  %v427 = vunpack.c.l.b16 %v91
  %v428 = vunpack.c.l.b16 %v92
  %v429 = vunpack.c.l.b16 %v93
  %v430 = vunpack.c.l.b16 %v94
  %v431 = vunpack.c.l.b16 %v95
  %v432 = vunpack.c.l.b16 %v96
  %v433 = vunpack.c.l.b16 %v97
  %v434 = vunpack.c.l.b16 %v98
  %v435 = vunpack.c.l.b16 %v99
  %v436 = vunpack.c.l.b16 %v100
  %v437 = vunpack.c.l.b16 %v101
  %v438 = vunpack.c.l.b16 %v102
  %v439 = vunpack.c.l.b16 %v103
  %v440 = vunpack.c.l.b16 %v104
  %v441 = vunpack.c.l.b16 %v105
  %v442 = vunpack.c.l.b16 %v106
  %v443 = vunpack.c.l.b16 %v107
  %v444 = vunpack.c.l.b16 %v108
  %v445 = vunpack.c.l.b16 %v109
  %v446 = vunpack.c.l.b16 %v110
  %v447 = vunpack.c.l.b16 %v111
  %v448 = vunpack.c.l.b16 %v112
  %v449 = vunpack.c.l.b16 %v113
  %v450 = vunpack.c.l.b16 %v114
  %v451 = vunpack.c.l.b16 %v115
  %v452 = vunpack.c.l.b16 %v116
  %v453 = vunpack.c.l.b16 %v117
  %v454 = vunpack.c.l.b16 %v118
  %v455 = vunpack.c.l.b16 %v119
  %v456 = vunpack.c.l.b16 %v120
  %v457 = vunpack.c.l.b16 %v121
  %v458 = vunpack.c.l.b16 %v122
  %v459 = vunpack.c.l.b16 %v123
  %v460 = vunpack.c.l.b16 %v124
  %v461 = vunpack.c.l.b16 %v125
  %v462 = vunpack.c.l.b16 %v126
  %v463 = vunpack.c.l.b16 %v127
  %v464 = vunpack.c.l.b16 %v128
  %v465 = vunpack.c.l.b16 %v129
  %v466 = vunpack.c.l.b16 %v130
  %v467 = vunpack.c.l.b16 %v131
  %v468 = vunpack.c.l.b16 %v132
  %v469 = vunpack.c.l.b16 %v133
  %v470 = vunpack.c.l.b16 %v134
  %v471 = vunpack.c.l.b16 %v135
  %v472 = vunpack.c.l.b16 %v136
  %v473 = vunpack.c.l.b16 %v137
  %v474 = vunpack.c.l.b16 %v138
  %v475 = vunpack.c.l.b16 %v139
  %v476 = vunpack.c.l.b16 %v140
  %v477 = vunpack.c.l.b16 %v141
  %v478 = vunpack.c.l.b16 %v142
  %v479 = vunpack.c.l.b16 %v143
  %v480 = vunpack.c.l.b16 %v144
  %v481 = vunpack.c.l.b16 %v145
  %v482 = vunpack.c.l.b16 %v146
  %v483 = vunpack.c.l.b16 %v147
  %v484 = vunpack.c.l.b16 %v148
  %v485 = vunpack.c.l.b16 %v149
  %v486 = vunpack.c.l.b16 %v150
  %v487 = vunpack.c.l.b16 %v151
  %v488 = vunpack.c.l.b16 %v152
  %v489 = vunpack.c.l.b16 %v153
  %v490 = vunpack.c.l.b16 %v154
  %v491 = vunpack.c.l.b16 %v155
  %v492 = vunpack.c.l.b16 %v156
  %v493 = vunpack.c.l.b16 %v157
  %v494 = vunpack.c.l.b16 %v158
  %v495 = vunpack.c.l.b16 %v159
  %v496 = vunpack.c.l.b16 %v160
  %v497 = vunpack.c.l.b16 %v161
  %v498 = vpack.c.b16 %v371, %v370
  %v499 = vpack.c.b16 %v373, %v372
  %v500 = vpack.c.b16 %v375, %v374
  %v501 = vpack.c.b16 %v377, %v376
  %v502 = vpack.c.b16 %v379, %v378
  %v503 = vpack.c.b16 %v381, %v380
  %v504 = vpack.c.b16 %v383, %v382
  %v505 = vpack.c.b16 %v385, %v384
  %v506 = vpack.c.b16 %v387, %v386
  %v507 = vpack.c.b16 %v389, %v388
  %v508 = vpack.c.b16 %v391, %v390
  %v509 = vpack.c.b16 %v393, %v392
  %v510 = vpack.c.b16 %v395, %v394
  %v511 = vpack.c.b16 %v397, %v396
  %v512 = vpack.c.b16 %v399, %v398
  %v513 = vpack.c.b16 %v401, %v400
  %v514 = vpack.c.b16 %v403, %v402
  %v515 = vpack.c.b16 %v405, %v404
  %v516 = vpack.c.b16 %v407, %v406
  %v517 = vpack.c.b16 %v409, %v408
  %v518 = vpack.c.b16 %v411, %v410
  %v519 = vpack.c.b16 %v413, %v412
  %v520 = vpack.c.b16 %v415, %v414
  %v521 = vpack.c.b16 %v417, %v416
  %v522 = vpack.c.b16 %v419, %v418
  %v523 = vpack.c.b16 %v421, %v420
  %v524 = vpack.c.b16 %v423, %v422
  %v525 = vpack.c.b16 %v425, %v424
  %v526 = vpack.c.b16 %v427, %v426
  %v527 = vpack.c.b16 %v429, %v428
  %v528 = vpack.c.b16 %v431, %v430
  %v529 = vpack.c.b16 %v433, %v432
  %v530 = vpack.c.b16 %v435, %v434
  %v531 = vpack.c.b16 %v437, %v436
  %v532 = vpack.c.b16 %v439, %v438
  %v533 = vpack.c.b16 %v441, %v440
  %v534 = vpack.c.b16 %v443, %v442
  %v535 = vpack.c.b16 %v445, %v444
  %v536 = vpack.c.b16 %v447, %v446
  %v537 = vpack.c.b16 %v449, %v448
  %v538 = vpack.c.b16 %v451, %v450
  %v539 = vpack.c.b16 %v453, %v452
  %v540 = vpack.c.b16 %v455, %v454
  %v541 = vpack.c.b16 %v457, %v456
  %v542 = vpack.c.b16 %v459, %v458
  %v543 = vpack.c.b16 %v461, %v460
  %v544 = vpack.c.b16 %v463, %v462
  %v545 = vpack.c.b16 %v465, %v464
  %v546 = vpack.c.b16 %v467, %v466
  %v547 = vpack.c.b16 %v469, %v468
  %v548 = vpack.c.b16 %v471, %v470
  %v549 = vpack.c.b16 %v473, %v472
  %v550 = vpack.c.b16 %v475, %v474
  %v551 = vpack.c.b16 %v477, %v476
  %v552 = vpack.c.b16 %v479, %v478
  %v553 = vpack.c.b16 %v481, %v480
  %v554 = vpack.c.b16 %v483, %v482
  %v555 = vpack.c.b16 %v485, %v484
  %v556 = vpack.c.b16 %v487, %v486
  %v557 = vpack.c.b16 %v489, %v488
  %v558 = vpack.c.b16 %v491, %v490
  %v559 = vpack.c.b16 %v493, %v492
  %v560 = vpack.c.b16 %v495, %v494
  %v561 = vpack.c.b16 %v497, %v496
  %626 = vmatprep.subr.bf16.mxu0 0
  %627 = vmatpush1.bf16.msra.mxu0 %v498
  %628 = vmatprep.subr.bf16.mxu0 0
  %629 = vmatpush1.bf16.msra.mxu0 %v499
  %630 = vmatprep.subr.bf16.mxu0 0
  %631 = vmatpush1.bf16.msra.mxu0 %v500
  %632 = vmatprep.subr.bf16.mxu0 0
  %633 = vmatpush1.bf16.msra.mxu0 %v501
  %634 = vmatprep.subr.bf16.mxu0 0
  %635 = vmatpush1.bf16.msra.mxu0 %v502
  %636 = vmatprep.subr.bf16.mxu0 0
  %637 = vmatpush1.bf16.msra.mxu0 %v503
  %638 = vmatprep.subr.bf16.mxu0 0
  %639 = vmatpush1.bf16.msra.mxu0 %v504
  %640 = vmatprep.subr.bf16.mxu0 0
  %641 = vmatpush1.bf16.msra.mxu0 %v505
  %642 = vmatprep.subr.bf16.mxu0 0
  %643 = vmatpush1.bf16.msra.mxu0 %v506
  %644 = vmatprep.subr.bf16.mxu0 0
  %645 = vmatpush1.bf16.msra.mxu0 %v507
  %646 = vmatprep.subr.bf16.mxu0 0
  %647 = vmatpush1.bf16.msra.mxu0 %v508
  %648 = vmatprep.subr.bf16.mxu0 0
  %649 = vmatpush1.bf16.msra.mxu0 %v509
  %650 = vmatprep.subr.bf16.mxu0 0
  %651 = vmatpush1.bf16.msra.mxu0 %v510
  %652 = vmatprep.subr.bf16.mxu0 0
  %653 = vmatpush1.bf16.msra.mxu0 %v511
  %654 = vmatprep.subr.bf16.mxu0 0
  %655 = vmatpush1.bf16.msra.mxu0 %v512
  %656 = vmatprep.subr.bf16.mxu0 0
  %657 = vmatpush1.bf16.msra.mxu0 %v513
  %658 = vmatprep.mubr.bf16.mxu0 %v211
  %659 = vmatmul.mubr.bf16.gmra.mrb[0].mxu0 %v210
  %v660 = vpop.f32.mrb[0].mxu0
  %v661 = vadd.f32 0.0, %v660
  %v662 = vpop.f32.mrb[0].mxu0
  %v663 = vpop.f32.mrb[0].mxu0
  %v664 = vadd.f32 0.0, %v663
  %v665 = vpop.f32.mrb[0].mxu0
  %666 = vmatprep.mubr.bf16.mxu0 %v219
  %667 = vmatmul.mubr.bf16.gmra.mrb[0].mxu0 %v218
  %v668 = vpop.f32.mrb[0].mxu0
  %v669 = vadd.f32 0.0, %v668
  %v670 = vpop.f32.mrb[0].mxu0
  %v671 = vpop.f32.mrb[0].mxu0
  %v672 = vadd.f32 0.0, %v671
  %v673 = vpop.f32.mrb[0].mxu0
  %674 = vdwg.mxu0
  %675 = vmatprep.subr.bf16.mxu0 0
  %676 = vmatpush1.bf16.msra.mxu0 %v514
  %677 = vmatprep.subr.bf16.mxu0 0
  %678 = vmatpush1.bf16.msra.mxu0 %v515
  %679 = vmatprep.subr.bf16.mxu0 0
  %680 = vmatpush1.bf16.msra.mxu0 %v516
  %681 = vmatprep.subr.bf16.mxu0 0
  %682 = vmatpush1.bf16.msra.mxu0 %v517
  %683 = vmatprep.subr.bf16.mxu0 0
  %684 = vmatpush1.bf16.msra.mxu0 %v518
  %685 = vmatprep.subr.bf16.mxu0 0
  %686 = vmatpush1.bf16.msra.mxu0 %v519
  %687 = vmatprep.subr.bf16.mxu0 0
  %688 = vmatpush1.bf16.msra.mxu0 %v520
  %689 = vmatprep.subr.bf16.mxu0 0
  %690 = vmatpush1.bf16.msra.mxu0 %v521
  %691 = vmatprep.subr.bf16.mxu0 0
  %692 = vmatpush1.bf16.msra.mxu0 %v522
  %693 = vmatprep.subr.bf16.mxu0 0
  %694 = vmatpush1.bf16.msra.mxu0 %v523
  %695 = vmatprep.subr.bf16.mxu0 0
  %696 = vmatpush1.bf16.msra.mxu0 %v524
  %697 = vmatprep.subr.bf16.mxu0 0
  %698 = vmatpush1.bf16.msra.mxu0 %v525
  %699 = vmatprep.subr.bf16.mxu0 0
  %700 = vmatpush1.bf16.msra.mxu0 %v526
  %701 = vmatprep.subr.bf16.mxu0 0
  %702 = vmatpush1.bf16.msra.mxu0 %v527
  %703 = vmatprep.subr.bf16.mxu0 0
  %704 = vmatpush1.bf16.msra.mxu0 %v528
  %705 = vmatprep.subr.bf16.mxu0 0
  %706 = vmatpush1.bf16.msra.mxu0 %v529
  %707 = vmatprep.mubr.bf16.mxu0 %v213
  %708 = vmatmul.mubr.bf16.gmra.mrb[0].mxu0 %v212
  %v709 = vpop.f32.mrb[0].mxu0
  %v710 = vadd.f32 %v661, %v709
  %v711 = vpop.f32.mrb[0].mxu0
  %v712 = vpop.f32.mrb[0].mxu0
  %v713 = vadd.f32 %v664, %v712
  %v714 = vpop.f32.mrb[0].mxu0
  %715 = vmatprep.mubr.bf16.mxu0 %v221
  %716 = vmatmul.mubr.bf16.gmra.mrb[0].mxu0 %v220
  %v717 = vpop.f32.mrb[0].mxu0
  %v718 = vadd.f32 %v669, %v717
  %v719 = vpop.f32.mrb[0].mxu0
  %v720 = vpop.f32.mrb[0].mxu0
  %v721 = vadd.f32 %v672, %v720
  %v722 = vpop.f32.mrb[0].mxu0
  %723 = vdwg.mxu0
  %724 = vmatprep.subr.bf16.mxu0 0
  %725 = vmatpush1.bf16.msra.mxu0 %v530
  %726 = vmatprep.subr.bf16.mxu0 0
  %727 = vmatpush1.bf16.msra.mxu0 %v531
  %728 = vmatprep.subr.bf16.mxu0 0
  %729 = vmatpush1.bf16.msra.mxu0 %v532
  %730 = vmatprep.subr.bf16.mxu0 0
  %731 = vmatpush1.bf16.msra.mxu0 %v533
  %732 = vmatprep.subr.bf16.mxu0 0
  %733 = vmatpush1.bf16.msra.mxu0 %v534
  %734 = vmatprep.subr.bf16.mxu0 0
  %735 = vmatpush1.bf16.msra.mxu0 %v535
  %736 = vmatprep.subr.bf16.mxu0 0
  %737 = vmatpush1.bf16.msra.mxu0 %v536
  %738 = vmatprep.subr.bf16.mxu0 0
  %739 = vmatpush1.bf16.msra.mxu0 %v537
  %740 = vmatprep.subr.bf16.mxu0 0
  %741 = vmatpush1.bf16.msra.mxu0 %v538
  %742 = vmatprep.subr.bf16.mxu0 0
  %743 = vmatpush1.bf16.msra.mxu0 %v539
  %744 = vmatprep.subr.bf16.mxu0 0
  %745 = vmatpush1.bf16.msra.mxu0 %v540
  %746 = vmatprep.subr.bf16.mxu0 0
  %747 = vmatpush1.bf16.msra.mxu0 %v541
  %748 = vmatprep.subr.bf16.mxu0 0
  %749 = vmatpush1.bf16.msra.mxu0 %v542
  %750 = vmatprep.subr.bf16.mxu0 0
  %751 = vmatpush1.bf16.msra.mxu0 %v543
  %752 = vmatprep.subr.bf16.mxu0 0
  %753 = vmatpush1.bf16.msra.mxu0 %v544
  %754 = vmatprep.subr.bf16.mxu0 0
  %755 = vmatpush1.bf16.msra.mxu0 %v545
  %756 = vmatprep.mubr.bf16.mxu0 %v215
  %757 = vmatmul.mubr.bf16.gmra.mrb[0].mxu0 %v214
  %v758 = vpop.f32.mrb[0].mxu0
  %v759 = vadd.f32 %v710, %v758
  %v760 = vpop.f32.mrb[0].mxu0
  %v761 = vpop.f32.mrb[0].mxu0
  %v762 = vadd.f32 %v713, %v761
  %v763 = vpop.f32.mrb[0].mxu0
  %764 = vmatprep.mubr.bf16.mxu0 %v223
  %765 = vmatmul.mubr.bf16.gmra.mrb[0].mxu0 %v222
  %v766 = vpop.f32.mrb[0].mxu0
  %v767 = vadd.f32 %v718, %v766
  %v768 = vpop.f32.mrb[0].mxu0
  %v769 = vpop.f32.mrb[0].mxu0
  %v770 = vadd.f32 %v721, %v769
  %v771 = vpop.f32.mrb[0].mxu0
  %772 = vdwg.mxu0
  %773 = vmatprep.subr.bf16.mxu0 0
  %774 = vmatpush1.bf16.msra.mxu0 %v546
  %775 = vmatprep.subr.bf16.mxu0 0
  %776 = vmatpush1.bf16.msra.mxu0 %v547
  %777 = vmatprep.subr.bf16.mxu0 0
  %778 = vmatpush1.bf16.msra.mxu0 %v548
  %779 = vmatprep.subr.bf16.mxu0 0
  %780 = vmatpush1.bf16.msra.mxu0 %v549
  %781 = vmatprep.subr.bf16.mxu0 0
  %782 = vmatpush1.bf16.msra.mxu0 %v550
  %783 = vmatprep.subr.bf16.mxu0 0
  %784 = vmatpush1.bf16.msra.mxu0 %v551
  %785 = vmatprep.subr.bf16.mxu0 0
  %786 = vmatpush1.bf16.msra.mxu0 %v552
  %787 = vmatprep.subr.bf16.mxu0 0
  %788 = vmatpush1.bf16.msra.mxu0 %v553
  %789 = vmatprep.subr.bf16.mxu0 0
  %790 = vmatpush1.bf16.msra.mxu0 %v554
  %791 = vmatprep.subr.bf16.mxu0 0
  %792 = vmatpush1.bf16.msra.mxu0 %v555
  %793 = vmatprep.subr.bf16.mxu0 0
  %794 = vmatpush1.bf16.msra.mxu0 %v556
  %795 = vmatprep.subr.bf16.mxu0 0
  %796 = vmatpush1.bf16.msra.mxu0 %v557
  %797 = vmatprep.subr.bf16.mxu0 0
  %798 = vmatpush1.bf16.msra.mxu0 %v558
  %799 = vmatprep.subr.bf16.mxu0 0
  %800 = vmatpush1.bf16.msra.mxu0 %v559
  %801 = vmatprep.subr.bf16.mxu0 0
  %802 = vmatpush1.bf16.msra.mxu0 %v560
  %803 = vmatprep.subr.bf16.mxu0 0
  %804 = vmatpush1.bf16.msra.mxu0 %v561
  %805 = vmatprep.mubr.bf16.mxu0 %v217
  %806 = vmatmul.mubr.bf16.gmra.mrb[0].mxu0 %v216
  %v807 = vpop.f32.mrb[0].mxu0
  %v808 = vadd.f32 %v759, %v807
  %v809 = vpop.f32.mrb[0].mxu0
  %v810 = vpop.f32.mrb[0].mxu0
  %v811 = vadd.f32 %v762, %v810
  %v812 = vpop.f32.mrb[0].mxu0
  %813 = vmatprep.mubr.bf16.mxu0 %v225
  %814 = vmatmul.mubr.bf16.gmra.mrb[0].mxu0 %v224
  %v815 = vpop.f32.mrb[0].mxu0
  %v816 = vadd.f32 %v767, %v815
  %v817 = vpop.f32.mrb[0].mxu0
  %v818 = vpop.f32.mrb[0].mxu0
  %v819 = vadd.f32 %v770, %v818
  %v820 = vpop.f32.mrb[0].mxu0
  %821 = vdwg.mxu0
  %v822 = vadd.f32 %v808, %v811
  %v823 = vadd.f32 %v822, %v816
  %v824 = vadd.f32 %v823, %v819
  %v825 = vrot.slane %v824, 4
  %v826 = vadd.f32 %v824, %v825
  %v827 = vrot.slane %v826, 2
  %v828 = vadd.f32 %v826, %v827
  %v829 = vrot.slane %v828, 1
  %v830 = vadd.f32 %v828, %v829
  %v831 = vmul.f32 %v830, 0.03125
  %v832 = vmul.f32 %v808, %v808
  %v833 = vmul.f32 %v811, %v811
  %v834 = vmul.f32 %v816, %v816
  %v835 = vmul.f32 %v819, %v819
  %v836 = vadd.f32 %v832, %v833
  %v837 = vadd.f32 %v836, %v834
  %v838 = vadd.f32 %v837, %v835
  %v839 = vrot.slane %v838, 4
  %v840 = vadd.f32 %v838, %v839
  %v841 = vrot.slane %v840, 2
  %v842 = vadd.f32 %v840, %v841
  %v843 = vrot.slane %v842, 1
  %v844 = vadd.f32 %v842, %v843
  %v845 = vmul.f32 %v844, 0.03125
  %v846 = vmul.f32 %v831, %v831
  %v847 = vsub.f32 %v845, %v846
  %v848 = vmax.f32 %v847, 0.0
  %v849 = vld [vmem:[%s2] sm:$0x1]
  %v850 = vadd.f32 %v848, 1e-05
  %v851 = vrsqrt.pop %v850
  %v852 = vmul.f32 %v849, %v851
  %v853 = vld [vmem:[%s3] sm:$0x1]
  %v854 = vmul.f32 %v831, %v852
  %v855 = vsub.f32 %v853, %v854
  %v857 = vlaneseq
  %v858 = vshrl.u32 %v857, 7
  %v859 = vsub.s32 0, %v858
  %v860 = vrot.slane %v852, %v859
  %v862 = vmul.f32 %v808, %v860
  %v863 = vmul.f32 %v811, %v860
  %v864 = vmul.f32 %v816, %v860
  %v865 = vmul.f32 %v819, %v860
  %v867 = vlaneseq
  %v868 = vshrl.u32 %v867, 7
  %v869 = vsub.s32 0, %v868
  %v870 = vrot.slane %v855, %v869
  %v872 = vadd.f32 %v862, %v870
  %v873 = vadd.f32 %v863, %v870
  %v874 = vadd.f32 %v864, %v870
  %v875 = vadd.f32 %v865, %v870
  %vm876 = vcmp.gt.f32.partialorder %v872, 0.0
  %vm877 = vcmp.gt.f32.partialorder %v873, 0.0
  %vm878 = vcmp.gt.f32.partialorder %v874, 0.0
  %vm879 = vcmp.gt.f32.partialorder %v875, 0.0
  %v880 = vmul.f32 %v872, 0.2
  %v881 = vmul.f32 %v873, 0.2
  %v882 = vmul.f32 %v874, 0.2
  %v883 = vmul.f32 %v875, 0.2
  %v884 = vsel %vm876, %v872, %v880
  %v885 = vsel %vm877, %v873, %v881
  %v886 = vsel %vm878, %v874, %v882
  %v887 = vsel %vm879, %v875, %v883
  %888 = vst [vmem:[%s4] sm:$0xff] %v884
  %889 = vst [vmem:[%s4 + $0x8] sm:$0xff] %v885
  %890 = vst [vmem:[%s4 + $0x10] sm:$0xff] %v886
  %891 = vst [vmem:[%s4 + $0x18] sm:$0xff] %v887
  // Predicated region
  $region18: #{_lambda_.10} parent=0 // pred_check
    _
  $region19: #{_lambda_.10} parent=0 // pred_check_branch
    %893 = sbr.rel (0) target = $region21
  $region20: #{_lambda_.10} parent=0 // pred_region
    _
  $region21: #{_lambda_.10} parent=0 // pred_fallthru
    _
  // Predicated region
  $region22: #{_lambda_.10} parent=0 // pred_check
    _
  $region23: #{_lambda_.10} parent=0 // pred_check_branch
    %895 = sbr.rel (0) target = $region25
  $region24: #{_lambda_.10} parent=0 // pred_region
    _
  $region25: #{_lambda_.10} parent=0 // pred_fallthru
    _

// kernel: _lambda_.11
$region0: #{_lambda_.11}
  #allocation0 [shape = 'u32[]', space=smem, size = 0x4, offset = 0x4, fixed_abs, tag = 'smem constant byte address 0x4 - core index']
  #allocation1 [shape = 'u32[144,128]{1,0:T(1,128)}', space=vmem, size = 0x12000, scoped, tag = 'internal scratch']
  %s0 = inlined_call_operand.vmem [shape: bf16[8,2048], index: 0, kind: input, shape index: {}]
  %s1 = inlined_call_operand.vmem [shape: bf16[2048,128], index: 1, kind: input, shape index: {}]
  %s2 = inlined_call_operand.vmem [shape: f32[8,1], index: 2, kind: output, shape index: {}]
  %s3 = sld [smem:[#allocation0]]
  $region18: #{_lambda_.11} parent=0
    _
  %s5 = ssub.s32 1, %s3
  %s6 = scalar_select 0, %s5, %s3
  // Predicated region
  $region2: #{_lambda_.11} parent=0 // pred_check
    _
  $region3: #{_lambda_.11} parent=0 // pred_check_branch
    %8 = sbr.rel (0) target = $region5
  $region4: #{_lambda_.11} parent=0 // pred_region
    _
  $region5: #{_lambda_.11} parent=0 // pred_fallthru
    _
  // Predicated region
  $region6: #{_lambda_.11} parent=0 // pred_check
    _
  $region7: #{_lambda_.11} parent=0 // pred_check_branch
    %10 = sbr.rel (0) target = $region9
  $region8: #{_lambda_.11} parent=0 // pred_region
    _
  $region9: #{_lambda_.11} parent=0 // pred_fallthru
    _
  %v12 = vld [vmem:[%s0] sm:$0xff]
  %v13 = vld [vmem:[%s0 + $0x8] sm:$0xff]
  %v14 = vld [vmem:[%s0 + $0x10] sm:$0xff]
  %v15 = vld [vmem:[%s0 + $0x18] sm:$0xff]
  %v16 = vld [vmem:[%s0 + $0x20] sm:$0xff]
  %v17 = vld [vmem:[%s0 + $0x28] sm:$0xff]
  %v18 = vld [vmem:[%s0 + $0x30] sm:$0xff]
  %v19 = vld [vmem:[%s0 + $0x38] sm:$0xff]
  %v20 = vld [vmem:[%s1] sm:$0xf]
  %v21 = vld [vmem:[%s1 + $0x4] sm:$0xf]
  %v22 = vld [vmem:[%s1 + $0x8] sm:$0xf]
  %v23 = vld [vmem:[%s1 + $0xc] sm:$0xf]
  %v24 = vld [vmem:[%s1 + $0x10] sm:$0xf]
  %v25 = vld [vmem:[%s1 + $0x14] sm:$0xf]
  %v26 = vld [vmem:[%s1 + $0x18] sm:$0xf]
  %v27 = vld [vmem:[%s1 + $0x1c] sm:$0xf]
  %v28 = vld [vmem:[%s1 + $0x20] sm:$0xf]
  %v29 = vld [vmem:[%s1 + $0x24] sm:$0xf]
  %v30 = vld [vmem:[%s1 + $0x28] sm:$0xf]
  %v31 = vld [vmem:[%s1 + $0x2c] sm:$0xf]
  %v32 = vld [vmem:[%s1 + $0x30] sm:$0xf]
  %v33 = vld [vmem:[%s1 + $0x34] sm:$0xf]
  %v34 = vld [vmem:[%s1 + $0x38] sm:$0xf]
  %v35 = vld [vmem:[%s1 + $0x3c] sm:$0xf]
  %v36 = vld [vmem:[%s1 + $0x40] sm:$0xf]
  %v37 = vld [vmem:[%s1 + $0x44] sm:$0xf]
  %v38 = vld [vmem:[%s1 + $0x48] sm:$0xf]
  %v39 = vld [vmem:[%s1 + $0x4c] sm:$0xf]
  %v40 = vld [vmem:[%s1 + $0x50] sm:$0xf]
  %v41 = vld [vmem:[%s1 + $0x54] sm:$0xf]
  %v42 = vld [vmem:[%s1 + $0x58] sm:$0xf]
  %v43 = vld [vmem:[%s1 + $0x5c] sm:$0xf]
  %v44 = vld [vmem:[%s1 + $0x60] sm:$0xf]
  %v45 = vld [vmem:[%s1 + $0x64] sm:$0xf]
  %v46 = vld [vmem:[%s1 + $0x68] sm:$0xf]
  %v47 = vld [vmem:[%s1 + $0x6c] sm:$0xf]
  %v48 = vld [vmem:[%s1 + $0x70] sm:$0xf]
  %v49 = vld [vmem:[%s1 + $0x74] sm:$0xf]
  %v50 = vld [vmem:[%s1 + $0x78] sm:$0xf]
  %v51 = vld [vmem:[%s1 + $0x7c] sm:$0xf]
  %v52 = vld [vmem:[%s1 + $0x80] sm:$0xf]
  %v53 = vld [vmem:[%s1 + $0x84] sm:$0xf]
  %v54 = vld [vmem:[%s1 + $0x88] sm:$0xf]
  %v55 = vld [vmem:[%s1 + $0x8c] sm:$0xf]
  %v56 = vld [vmem:[%s1 + $0x90] sm:$0xf]
  %v57 = vld [vmem:[%s1 + $0x94] sm:$0xf]
  %v58 = vld [vmem:[%s1 + $0x98] sm:$0xf]
  %v59 = vld [vmem:[%s1 + $0x9c] sm:$0xf]
  %v60 = vld [vmem:[%s1 + $0xa0] sm:$0xf]
  %v61 = vld [vmem:[%s1 + $0xa4] sm:$0xf]
  %v62 = vld [vmem:[%s1 + $0xa8] sm:$0xf]
  %v63 = vld [vmem:[%s1 + $0xac] sm:$0xf]
  %v64 = vld [vmem:[%s1 + $0xb0] sm:$0xf]
  %v65 = vld [vmem:[%s1 + $0xb4] sm:$0xf]
  %v66 = vld [vmem:[%s1 + $0xb8] sm:$0xf]
  %v67 = vld [vmem:[%s1 + $0xbc] sm:$0xf]
  %v68 = vld [vmem:[%s1 + $0xc0] sm:$0xf]
  %v69 = vld [vmem:[%s1 + $0xc4] sm:$0xf]
  %v70 = vld [vmem:[%s1 + $0xc8] sm:$0xf]
  %v71 = vld [vmem:[%s1 + $0xcc] sm:$0xf]
  %v72 = vld [vmem:[%s1 + $0xd0] sm:$0xf]
  %v73 = vld [vmem:[%s1 + $0xd4] sm:$0xf]
  %v74 = vld [vmem:[%s1 + $0xd8] sm:$0xf]
  %v75 = vld [vmem:[%s1 + $0xdc] sm:$0xf]
  %v76 = vld [vmem:[%s1 + $0xe0] sm:$0xf]
  %v77 = vld [vmem:[%s1 + $0xe4] sm:$0xf]
  %v78 = vld [vmem:[%s1 + $0xe8] sm:$0xf]
  %v79 = vld [vmem:[%s1 + $0xec] sm:$0xf]
  %v80 = vld [vmem:[%s1 + $0xf0] sm:$0xf]
  %v81 = vld [vmem:[%s1 + $0xf4] sm:$0xf]
  %v82 = vld [vmem:[%s1 + $0xf8] sm:$0xf]
  %v83 = vld [vmem:[%s1 + $0xfc] sm:$0xf]
  %v84 = vld [vmem:[%s1 + $0x100] sm:$0xf]
  %v85 = vld [vmem:[%s1 + $0x104] sm:$0xf]
  %v86 = vld [vmem:[%s1 + $0x108] sm:$0xf]
  %v87 = vld [vmem:[%s1 + $0x10c] sm:$0xf]
  %v88 = vld [vmem:[%s1 + $0x110] sm:$0xf]
  %v89 = vld [vmem:[%s1 + $0x114] sm:$0xf]
  %v90 = vld [vmem:[%s1 + $0x118] sm:$0xf]
  %v91 = vld [vmem:[%s1 + $0x11c] sm:$0xf]
  %v92 = vld [vmem:[%s1 + $0x120] sm:$0xf]
  %v93 = vld [vmem:[%s1 + $0x124] sm:$0xf]
  %v94 = vld [vmem:[%s1 + $0x128] sm:$0xf]
  %v95 = vld [vmem:[%s1 + $0x12c] sm:$0xf]
  %v96 = vld [vmem:[%s1 + $0x130] sm:$0xf]
  %v97 = vld [vmem:[%s1 + $0x134] sm:$0xf]
  %v98 = vld [vmem:[%s1 + $0x138] sm:$0xf]
  %v99 = vld [vmem:[%s1 + $0x13c] sm:$0xf]
  %v100 = vld [vmem:[%s1 + $0x140] sm:$0xf]
  %v101 = vld [vmem:[%s1 + $0x144] sm:$0xf]
  %v102 = vld [vmem:[%s1 + $0x148] sm:$0xf]
  %v103 = vld [vmem:[%s1 + $0x14c] sm:$0xf]
  %v104 = vld [vmem:[%s1 + $0x150] sm:$0xf]
  %v105 = vld [vmem:[%s1 + $0x154] sm:$0xf]
  %v106 = vld [vmem:[%s1 + $0x158] sm:$0xf]
  %v107 = vld [vmem:[%s1 + $0x15c] sm:$0xf]
  %v108 = vld [vmem:[%s1 + $0x160] sm:$0xf]
  %v109 = vld [vmem:[%s1 + $0x164] sm:$0xf]
  %v110 = vld [vmem:[%s1 + $0x168] sm:$0xf]
  %v111 = vld [vmem:[%s1 + $0x16c] sm:$0xf]
  %v112 = vld [vmem:[%s1 + $0x170] sm:$0xf]
  %v113 = vld [vmem:[%s1 + $0x174] sm:$0xf]
  %v114 = vld [vmem:[%s1 + $0x178] sm:$0xf]
  %v115 = vld [vmem:[%s1 + $0x17c] sm:$0xf]
  %v116 = vld [vmem:[%s1 + $0x180] sm:$0xf]
  %v117 = vld [vmem:[%s1 + $0x184] sm:$0xf]
  %v118 = vld [vmem:[%s1 + $0x188] sm:$0xf]
  %v119 = vld [vmem:[%s1 + $0x18c] sm:$0xf]
  %v120 = vld [vmem:[%s1 + $0x190] sm:$0xf]
  %v121 = vld [vmem:[%s1 + $0x194] sm:$0xf]
  %v122 = vld [vmem:[%s1 + $0x198] sm:$0xf]
  %v123 = vld [vmem:[%s1 + $0x19c] sm:$0xf]
  %v124 = vld [vmem:[%s1 + $0x1a0] sm:$0xf]
  %v125 = vld [vmem:[%s1 + $0x1a4] sm:$0xf]
  %v126 = vld [vmem:[%s1 + $0x1a8] sm:$0xf]
  %v127 = vld [vmem:[%s1 + $0x1ac] sm:$0xf]
  %v128 = vld [vmem:[%s1 + $0x1b0] sm:$0xf]
  %v129 = vld [vmem:[%s1 + $0x1b4] sm:$0xf]
  %v130 = vld [vmem:[%s1 + $0x1b8] sm:$0xf]
  %v131 = vld [vmem:[%s1 + $0x1bc] sm:$0xf]
  %v132 = vld [vmem:[%s1 + $0x1c0] sm:$0xf]
  %v133 = vld [vmem:[%s1 + $0x1c4] sm:$0xf]
  %v134 = vld [vmem:[%s1 + $0x1c8] sm:$0xf]
  %v135 = vld [vmem:[%s1 + $0x1cc] sm:$0xf]
  %v136 = vld [vmem:[%s1 + $0x1d0] sm:$0xf]
  %v137 = vld [vmem:[%s1 + $0x1d4] sm:$0xf]
  %v138 = vld [vmem:[%s1 + $0x1d8] sm:$0xf]
  %v139 = vld [vmem:[%s1 + $0x1dc] sm:$0xf]
  %v140 = vld [vmem:[%s1 + $0x1e0] sm:$0xf]
  %v141 = vld [vmem:[%s1 + $0x1e4] sm:$0xf]
  %v142 = vld [vmem:[%s1 + $0x1e8] sm:$0xf]
  %v143 = vld [vmem:[%s1 + $0x1ec] sm:$0xf]
  %v144 = vld [vmem:[%s1 + $0x1f0] sm:$0xf]
  %v145 = vld [vmem:[%s1 + $0x1f4] sm:$0xf]
  %v146 = vld [vmem:[%s1 + $0x1f8] sm:$0xf]
  %v147 = vld [vmem:[%s1 + $0x1fc] sm:$0xf]
  %v148 = vld [vmem:[%s1 + $0x200] sm:$0xf]
  %v149 = vld [vmem:[%s1 + $0x204] sm:$0xf]
  %v150 = vld [vmem:[%s1 + $0x208] sm:$0xf]
  %v151 = vld [vmem:[%s1 + $0x20c] sm:$0xf]
  %v152 = vld [vmem:[%s1 + $0x210] sm:$0xf]
  %v153 = vld [vmem:[%s1 + $0x214] sm:$0xf]
  %v154 = vld [vmem:[%s1 + $0x218] sm:$0xf]
  %v155 = vld [vmem:[%s1 + $0x21c] sm:$0xf]
  %v156 = vld [vmem:[%s1 + $0x220] sm:$0xf]
  %v157 = vld [vmem:[%s1 + $0x224] sm:$0xf]
  %v158 = vld [vmem:[%s1 + $0x228] sm:$0xf]
  %v159 = vld [vmem:[%s1 + $0x22c] sm:$0xf]
  %v160 = vld [vmem:[%s1 + $0x230] sm:$0xf]
  %v161 = vld [vmem:[%s1 + $0x234] sm:$0xf]
  %v162 = vld [vmem:[%s1 + $0x238] sm:$0xf]
  %v163 = vld [vmem:[%s1 + $0x23c] sm:$0xf]
  %v164 = vld [vmem:[%s1 + $0x240] sm:$0xf]
  %v165 = vld [vmem:[%s1 + $0x244] sm:$0xf]
  %v166 = vld [vmem:[%s1 + $0x248] sm:$0xf]
  %v167 = vld [vmem:[%s1 + $0x24c] sm:$0xf]
  %v168 = vld [vmem:[%s1 + $0x250] sm:$0xf]
  %v169 = vld [vmem:[%s1 + $0x254] sm:$0xf]
  %v170 = vld [vmem:[%s1 + $0x258] sm:$0xf]
  %v171 = vld [vmem:[%s1 + $0x25c] sm:$0xf]
  %v172 = vld [vmem:[%s1 + $0x260] sm:$0xf]
  %v173 = vld [vmem:[%s1 + $0x264] sm:$0xf]
  %v174 = vld [vmem:[%s1 + $0x268] sm:$0xf]
  %v175 = vld [vmem:[%s1 + $0x26c] sm:$0xf]
  %v176 = vld [vmem:[%s1 + $0x270] sm:$0xf]
  %v177 = vld [vmem:[%s1 + $0x274] sm:$0xf]
  %v178 = vld [vmem:[%s1 + $0x278] sm:$0xf]
  %v179 = vld [vmem:[%s1 + $0x27c] sm:$0xf]
  %v180 = vld [vmem:[%s1 + $0x280] sm:$0xf]
  %v181 = vld [vmem:[%s1 + $0x284] sm:$0xf]
  %v182 = vld [vmem:[%s1 + $0x288] sm:$0xf]
  %v183 = vld [vmem:[%s1 + $0x28c] sm:$0xf]
  %v184 = vld [vmem:[%s1 + $0x290] sm:$0xf]
  %v185 = vld [vmem:[%s1 + $0x294] sm:$0xf]
  %v186 = vld [vmem:[%s1 + $0x298] sm:$0xf]
  %v187 = vld [vmem:[%s1 + $0x29c] sm:$0xf]
  %v188 = vld [vmem:[%s1 + $0x2a0] sm:$0xf]
  %v189 = vld [vmem:[%s1 + $0x2a4] sm:$0xf]
  %v190 = vld [vmem:[%s1 + $0x2a8] sm:$0xf]
  %v191 = vld [vmem:[%s1 + $0x2ac] sm:$0xf]
  %v192 = vld [vmem:[%s1 + $0x2b0] sm:$0xf]
  %v193 = vld [vmem:[%s1 + $0x2b4] sm:$0xf]
  %v194 = vld [vmem:[%s1 + $0x2b8] sm:$0xf]
  %v195 = vld [vmem:[%s1 + $0x2bc] sm:$0xf]
  %v196 = vld [vmem:[%s1 + $0x2c0] sm:$0xf]
  %v197 = vld [vmem:[%s1 + $0x2c4] sm:$0xf]
  %v198 = vld [vmem:[%s1 + $0x2c8] sm:$0xf]
  %v199 = vld [vmem:[%s1 + $0x2cc] sm:$0xf]
  %v200 = vld [vmem:[%s1 + $0x2d0] sm:$0xf]
  %v201 = vld [vmem:[%s1 + $0x2d4] sm:$0xf]
  %v202 = vld [vmem:[%s1 + $0x2d8] sm:$0xf]
  %v203 = vld [vmem:[%s1 + $0x2dc] sm:$0xf]
  %v204 = vld [vmem:[%s1 + $0x2e0] sm:$0xf]
  %v205 = vld [vmem:[%s1 + $0x2e4] sm:$0xf]
  %v206 = vld [vmem:[%s1 + $0x2e8] sm:$0xf]
  %v207 = vld [vmem:[%s1 + $0x2ec] sm:$0xf]
  %v208 = vld [vmem:[%s1 + $0x2f0] sm:$0xf]
  %v209 = vld [vmem:[%s1 + $0x2f4] sm:$0xf]
  %v210 = vld [vmem:[%s1 + $0x2f8] sm:$0xf]
  %v211 = vld [vmem:[%s1 + $0x2fc] sm:$0xf]
  %v212 = vld [vmem:[%s1 + $0x300] sm:$0xf]
  %v213 = vld [vmem:[%s1 + $0x304] sm:$0xf]
  %v214 = vld [vmem:[%s1 + $0x308] sm:$0xf]
  %v215 = vld [vmem:[%s1 + $0x30c] sm:$0xf]
  %v216 = vld [vmem:[%s1 + $0x310] sm:$0xf]
  %v217 = vld [vmem:[%s1 + $0x314] sm:$0xf]
  %v218 = vld [vmem:[%s1 + $0x318] sm:$0xf]
  %v219 = vld [vmem:[%s1 + $0x31c] sm:$0xf]
  %v220 = vld [vmem:[%s1 + $0x320] sm:$0xf]
  %v221 = vld [vmem:[%s1 + $0x324] sm:$0xf]
  %v222 = vld [vmem:[%s1 + $0x328] sm:$0xf]
  %v223 = vld [vmem:[%s1 + $0x32c] sm:$0xf]
  %v224 = vld [vmem:[%s1 + $0x330] sm:$0xf]
  %v225 = vld [vmem:[%s1 + $0x334] sm:$0xf]
  %v226 = vld [vmem:[%s1 + $0x338] sm:$0xf]
  %v227 = vld [vmem:[%s1 + $0x33c] sm:$0xf]
  %v228 = vld [vmem:[%s1 + $0x340] sm:$0xf]
  %v229 = vld [vmem:[%s1 + $0x344] sm:$0xf]
  %v230 = vld [vmem:[%s1 + $0x348] sm:$0xf]
  %v231 = vld [vmem:[%s1 + $0x34c] sm:$0xf]
  %v232 = vld [vmem:[%s1 + $0x350] sm:$0xf]
  %v233 = vld [vmem:[%s1 + $0x354] sm:$0xf]
  %v234 = vld [vmem:[%s1 + $0x358] sm:$0xf]
  %v235 = vld [vmem:[%s1 + $0x35c] sm:$0xf]
  %v236 = vld [vmem:[%s1 + $0x360] sm:$0xf]
  %v237 = vld [vmem:[%s1 + $0x364] sm:$0xf]
  %v238 = vld [vmem:[%s1 + $0x368] sm:$0xf]
  %v239 = vld [vmem:[%s1 + $0x36c] sm:$0xf]
  %v240 = vld [vmem:[%s1 + $0x370] sm:$0xf]
  %v241 = vld [vmem:[%s1 + $0x374] sm:$0xf]
  %v242 = vld [vmem:[%s1 + $0x378] sm:$0xf]
  %v243 = vld [vmem:[%s1 + $0x37c] sm:$0xf]
  %v244 = vld [vmem:[%s1 + $0x380] sm:$0xf]
  %v245 = vld [vmem:[%s1 + $0x384] sm:$0xf]
  %v246 = vld [vmem:[%s1 + $0x388] sm:$0xf]
  %v247 = vld [vmem:[%s1 + $0x38c] sm:$0xf]
  %v248 = vld [vmem:[%s1 + $0x390] sm:$0xf]
  %v249 = vld [vmem:[%s1 + $0x394] sm:$0xf]
  %v250 = vld [vmem:[%s1 + $0x398] sm:$0xf]
  %v251 = vld [vmem:[%s1 + $0x39c] sm:$0xf]
  %v252 = vld [vmem:[%s1 + $0x3a0] sm:$0xf]
  %v253 = vld [vmem:[%s1 + $0x3a4] sm:$0xf]
  %v254 = vld [vmem:[%s1 + $0x3a8] sm:$0xf]
  %v255 = vld [vmem:[%s1 + $0x3ac] sm:$0xf]
  %v256 = vld [vmem:[%s1 + $0x3b0] sm:$0xf]
  %v257 = vld [vmem:[%s1 + $0x3b4] sm:$0xf]
  %v258 = vld [vmem:[%s1 + $0x3b8] sm:$0xf]
  %v259 = vld [vmem:[%s1 + $0x3bc] sm:$0xf]
  %v260 = vld [vmem:[%s1 + $0x3c0] sm:$0xf]
  %v261 = vld [vmem:[%s1 + $0x3c4] sm:$0xf]
  %v262 = vld [vmem:[%s1 + $0x3c8] sm:$0xf]
  %v263 = vld [vmem:[%s1 + $0x3cc] sm:$0xf]
  %v264 = vld [vmem:[%s1 + $0x3d0] sm:$0xf]
  %v265 = vld [vmem:[%s1 + $0x3d4] sm:$0xf]
  %v266 = vld [vmem:[%s1 + $0x3d8] sm:$0xf]
  %v267 = vld [vmem:[%s1 + $0x3dc] sm:$0xf]
  %v268 = vld [vmem:[%s1 + $0x3e0] sm:$0xf]
  %v269 = vld [vmem:[%s1 + $0x3e4] sm:$0xf]
  %v270 = vld [vmem:[%s1 + $0x3e8] sm:$0xf]
  %v271 = vld [vmem:[%s1 + $0x3ec] sm:$0xf]
  %v272 = vld [vmem:[%s1 + $0x3f0] sm:$0xf]
  %v273 = vld [vmem:[%s1 + $0x3f4] sm:$0xf]
  %v274 = vld [vmem:[%s1 + $0x3f8] sm:$0xf]
  %v275 = vld [vmem:[%s1 + $0x3fc] sm:$0xf]
  %v284 = vunpack.c.l.b16 %v12
  %v285 = vunpack.c.h.b16 %v12
  %v286 = vunpack.c.l.b16 %v13
  %v287 = vunpack.c.h.b16 %v13
  %v288 = vunpack.c.l.b16 %v14
  %v289 = vunpack.c.h.b16 %v14
  %v290 = vunpack.c.l.b16 %v15
  %v291 = vunpack.c.h.b16 %v15
  %v292 = vunpack.c.l.b16 %v16
  %v293 = vunpack.c.h.b16 %v16
  %v294 = vunpack.c.l.b16 %v17
  %v295 = vunpack.c.h.b16 %v17
  %v296 = vunpack.c.l.b16 %v18
  %v297 = vunpack.c.h.b16 %v18
  %v298 = vunpack.c.l.b16 %v19
  %v299 = vunpack.c.h.b16 %v19
  %v300 = vpack.c.b16 %v284, %v284
  %v301 = vpack.c.b16 %v285, %v285
  %v302 = vpack.c.b16 %v286, %v286
  %v303 = vpack.c.b16 %v287, %v287
  %v304 = vpack.c.b16 %v288, %v288
  %v305 = vpack.c.b16 %v289, %v289
  %v306 = vpack.c.b16 %v290, %v290
  %v307 = vpack.c.b16 %v291, %v291
  %v308 = vpack.c.b16 %v292, %v292
  %v309 = vpack.c.b16 %v293, %v293
  %v310 = vpack.c.b16 %v294, %v294
  %v311 = vpack.c.b16 %v295, %v295
  %v312 = vpack.c.b16 %v296, %v296
  %v313 = vpack.c.b16 %v297, %v297
  %v314 = vpack.c.b16 %v298, %v298
  %v315 = vpack.c.b16 %v299, %v299
  %v588 = vunpack.c.l.b16 %v20
  %v589 = vunpack.c.l.b16 %v21
  %v590 = vunpack.c.l.b16 %v22
  %v591 = vunpack.c.l.b16 %v23
  %v592 = vunpack.c.l.b16 %v24
  %v593 = vunpack.c.l.b16 %v25
  %v594 = vunpack.c.l.b16 %v26
  %v595 = vunpack.c.l.b16 %v27
  %v596 = vunpack.c.l.b16 %v28
  %v597 = vunpack.c.l.b16 %v29
  %v598 = vunpack.c.l.b16 %v30
  %v599 = vunpack.c.l.b16 %v31
  %v600 = vunpack.c.l.b16 %v32
  %v601 = vunpack.c.l.b16 %v33
  %v602 = vunpack.c.l.b16 %v34
  %v603 = vunpack.c.l.b16 %v35
  %v604 = vunpack.c.l.b16 %v36
  %v605 = vunpack.c.l.b16 %v37
  %v606 = vunpack.c.l.b16 %v38
  %v607 = vunpack.c.l.b16 %v39
  %v608 = vunpack.c.l.b16 %v40
  %v609 = vunpack.c.l.b16 %v41
  %v610 = vunpack.c.l.b16 %v42
  %v611 = vunpack.c.l.b16 %v43
  %v612 = vunpack.c.l.b16 %v44
  %v613 = vunpack.c.l.b16 %v45
  %v614 = vunpack.c.l.b16 %v46
  %v615 = vunpack.c.l.b16 %v47
  %v616 = vunpack.c.l.b16 %v48
  %v617 = vunpack.c.l.b16 %v49
  %v618 = vunpack.c.l.b16 %v50
  %v619 = vunpack.c.l.b16 %v51
  %v620 = vunpack.c.l.b16 %v52
  %v621 = vunpack.c.l.b16 %v53
  %v622 = vunpack.c.l.b16 %v54
  %v623 = vunpack.c.l.b16 %v55
  %v624 = vunpack.c.l.b16 %v56
  %v625 = vunpack.c.l.b16 %v57
  %v626 = vunpack.c.l.b16 %v58
  %v627 = vunpack.c.l.b16 %v59
  %v628 = vunpack.c.l.b16 %v60
  %v629 = vunpack.c.l.b16 %v61
  %v630 = vunpack.c.l.b16 %v62
  %v631 = vunpack.c.l.b16 %v63
  %v632 = vunpack.c.l.b16 %v64
  %v633 = vunpack.c.l.b16 %v65
  %v634 = vunpack.c.l.b16 %v66
  %v635 = vunpack.c.l.b16 %v67
  %v636 = vunpack.c.l.b16 %v68
  %v637 = vunpack.c.l.b16 %v69
  %v638 = vunpack.c.l.b16 %v70
  %v639 = vunpack.c.l.b16 %v71
  %v640 = vunpack.c.l.b16 %v72
  %v641 = vunpack.c.l.b16 %v73
  %v642 = vunpack.c.l.b16 %v74
  %v643 = vunpack.c.l.b16 %v75
  %v644 = vunpack.c.l.b16 %v76
  %v645 = vunpack.c.l.b16 %v77
  %v646 = vunpack.c.l.b16 %v78
  %v647 = vunpack.c.l.b16 %v79
  %v648 = vunpack.c.l.b16 %v80
  %v649 = vunpack.c.l.b16 %v81
  %v650 = vunpack.c.l.b16 %v82
  %v651 = vunpack.c.l.b16 %v83
  %v652 = vunpack.c.l.b16 %v84
  %v653 = vunpack.c.l.b16 %v85
  %v654 = vunpack.c.l.b16 %v86
  %v655 = vunpack.c.l.b16 %v87
  %v656 = vunpack.c.l.b16 %v88
  %v657 = vunpack.c.l.b16 %v89
  %v658 = vunpack.c.l.b16 %v90
  %v659 = vunpack.c.l.b16 %v91
  %v660 = vunpack.c.l.b16 %v92
  %v661 = vunpack.c.l.b16 %v93
  %v662 = vunpack.c.l.b16 %v94
  %v663 = vunpack.c.l.b16 %v95
  %v664 = vunpack.c.l.b16 %v96
  %v665 = vunpack.c.l.b16 %v97
  %v666 = vunpack.c.l.b16 %v98
  %v667 = vunpack.c.l.b16 %v99
  %v668 = vunpack.c.l.b16 %v100
  %v669 = vunpack.c.l.b16 %v101
  %v670 = vunpack.c.l.b16 %v102
  %v671 = vunpack.c.l.b16 %v103
  %v672 = vunpack.c.l.b16 %v104
  %v673 = vunpack.c.l.b16 %v105
  %v674 = vunpack.c.l.b16 %v106
  %v675 = vunpack.c.l.b16 %v107
  %v676 = vunpack.c.l.b16 %v108
  %v677 = vunpack.c.l.b16 %v109
  %v678 = vunpack.c.l.b16 %v110
  %v679 = vunpack.c.l.b16 %v111
  %v680 = vunpack.c.l.b16 %v112
  %v681 = vunpack.c.l.b16 %v113
  %v682 = vunpack.c.l.b16 %v114
  %v683 = vunpack.c.l.b16 %v115
  %v684 = vunpack.c.l.b16 %v116
  %v685 = vunpack.c.l.b16 %v117
  %v686 = vunpack.c.l.b16 %v118
  %v687 = vunpack.c.l.b16 %v119
  %v688 = vunpack.c.l.b16 %v120
  %v689 = vunpack.c.l.b16 %v121
  %v690 = vunpack.c.l.b16 %v122
  %v691 = vunpack.c.l.b16 %v123
  %v692 = vunpack.c.l.b16 %v124
  %v693 = vunpack.c.l.b16 %v125
  %v694 = vunpack.c.l.b16 %v126
  %v695 = vunpack.c.l.b16 %v127
  %v696 = vunpack.c.l.b16 %v128
  %v697 = vunpack.c.l.b16 %v129
  %v698 = vunpack.c.l.b16 %v130
  %v699 = vunpack.c.l.b16 %v131
  %v700 = vunpack.c.l.b16 %v132
  %v701 = vunpack.c.l.b16 %v133
  %v702 = vunpack.c.l.b16 %v134
  %v703 = vunpack.c.l.b16 %v135
  %v704 = vunpack.c.l.b16 %v136
  %v705 = vunpack.c.l.b16 %v137
  %v706 = vunpack.c.l.b16 %v138
  %v707 = vunpack.c.l.b16 %v139
  %v708 = vunpack.c.l.b16 %v140
  %v709 = vunpack.c.l.b16 %v141
  %v710 = vunpack.c.l.b16 %v142
  %v711 = vunpack.c.l.b16 %v143
  %v712 = vunpack.c.l.b16 %v144
  %v713 = vunpack.c.l.b16 %v145
  %v714 = vunpack.c.l.b16 %v146
  %v715 = vunpack.c.l.b16 %v147
  %v716 = vunpack.c.l.b16 %v148
  %v717 = vunpack.c.l.b16 %v149
  %v718 = vunpack.c.l.b16 %v150
  %v719 = vunpack.c.l.b16 %v151
  %v720 = vunpack.c.l.b16 %v152
  %v721 = vunpack.c.l.b16 %v153
  %v722 = vunpack.c.l.b16 %v154
  %v723 = vunpack.c.l.b16 %v155
  %v724 = vunpack.c.l.b16 %v156
  %v725 = vunpack.c.l.b16 %v157
  %v726 = vunpack.c.l.b16 %v158
  %v727 = vunpack.c.l.b16 %v159
  %v728 = vunpack.c.l.b16 %v160
  %v729 = vunpack.c.l.b16 %v161
  %v730 = vunpack.c.l.b16 %v162
  %v731 = vunpack.c.l.b16 %v163
  %v732 = vunpack.c.l.b16 %v164
  %v733 = vunpack.c.l.b16 %v165
  %v734 = vunpack.c.l.b16 %v166
  %v735 = vunpack.c.l.b16 %v167
  %v736 = vunpack.c.l.b16 %v168
  %v737 = vunpack.c.l.b16 %v169
  %v738 = vunpack.c.l.b16 %v170
  %v739 = vunpack.c.l.b16 %v171
  %v740 = vunpack.c.l.b16 %v172
  %v741 = vunpack.c.l.b16 %v173
  %v742 = vunpack.c.l.b16 %v174
  %v743 = vunpack.c.l.b16 %v175
  %v744 = vunpack.c.l.b16 %v176
  %v745 = vunpack.c.l.b16 %v177
  %v746 = vunpack.c.l.b16 %v178
  %v747 = vunpack.c.l.b16 %v179
  %v748 = vunpack.c.l.b16 %v180
  %v749 = vunpack.c.l.b16 %v181
  %v750 = vunpack.c.l.b16 %v182
  %v751 = vunpack.c.l.b16 %v183
  %v752 = vunpack.c.l.b16 %v184
  %v753 = vunpack.c.l.b16 %v185
  %v754 = vunpack.c.l.b16 %v186
  %v755 = vunpack.c.l.b16 %v187
  %v756 = vunpack.c.l.b16 %v188
  %v757 = vunpack.c.l.b16 %v189
  %v758 = vunpack.c.l.b16 %v190
  %v759 = vunpack.c.l.b16 %v191
  %v760 = vunpack.c.l.b16 %v192
  %v761 = vunpack.c.l.b16 %v193
  %v762 = vunpack.c.l.b16 %v194
  %v763 = vunpack.c.l.b16 %v195
  %v764 = vunpack.c.l.b16 %v196
  %v765 = vunpack.c.l.b16 %v197
  %v766 = vunpack.c.l.b16 %v198
  %v767 = vunpack.c.l.b16 %v199
  %v768 = vunpack.c.l.b16 %v200
  %v769 = vunpack.c.l.b16 %v201
  %v770 = vunpack.c.l.b16 %v202
  %v771 = vunpack.c.l.b16 %v203
  %v772 = vunpack.c.l.b16 %v204
  %v773 = vunpack.c.l.b16 %v205
  %v774 = vunpack.c.l.b16 %v206
  %v775 = vunpack.c.l.b16 %v207
  %v776 = vunpack.c.l.b16 %v208
  %v777 = vunpack.c.l.b16 %v209
  %v778 = vunpack.c.l.b16 %v210
  %v779 = vunpack.c.l.b16 %v211
  %v780 = vunpack.c.l.b16 %v212
  %v781 = vunpack.c.l.b16 %v213
  %v782 = vunpack.c.l.b16 %v214
  %v783 = vunpack.c.l.b16 %v215
  %v784 = vunpack.c.l.b16 %v216
  %v785 = vunpack.c.l.b16 %v217
  %v786 = vunpack.c.l.b16 %v218
  %v787 = vunpack.c.l.b16 %v219
  %v788 = vunpack.c.l.b16 %v220
  %v789 = vunpack.c.l.b16 %v221
  %v790 = vunpack.c.l.b16 %v222
  %v791 = vunpack.c.l.b16 %v223
  %v792 = vunpack.c.l.b16 %v224
  %v793 = vunpack.c.l.b16 %v225
  %v794 = vunpack.c.l.b16 %v226
  %v795 = vunpack.c.l.b16 %v227
  %v796 = vunpack.c.l.b16 %v228
  %v797 = vunpack.c.l.b16 %v229
  %v798 = vunpack.c.l.b16 %v230
  %v799 = vunpack.c.l.b16 %v231
  %v800 = vunpack.c.l.b16 %v232
  %v801 = vunpack.c.l.b16 %v233
  %v802 = vunpack.c.l.b16 %v234
  %v803 = vunpack.c.l.b16 %v235
  %v804 = vunpack.c.l.b16 %v236
  %v805 = vunpack.c.l.b16 %v237
  %v806 = vunpack.c.l.b16 %v238
  %v807 = vunpack.c.l.b16 %v239
  %v808 = vunpack.c.l.b16 %v240
  %v809 = vunpack.c.l.b16 %v241
  %v810 = vunpack.c.l.b16 %v242
  %v811 = vunpack.c.l.b16 %v243
  %v812 = vunpack.c.l.b16 %v244
  %v813 = vunpack.c.l.b16 %v245
  %v814 = vunpack.c.l.b16 %v246
  %v815 = vunpack.c.l.b16 %v247
  %v816 = vunpack.c.l.b16 %v248
  %v817 = vunpack.c.l.b16 %v249
  %v818 = vunpack.c.l.b16 %v250
  %v819 = vunpack.c.l.b16 %v251
  %v820 = vunpack.c.l.b16 %v252
  %v821 = vunpack.c.l.b16 %v253
  %v822 = vunpack.c.l.b16 %v254
  %v823 = vunpack.c.l.b16 %v255
  %v824 = vunpack.c.l.b16 %v256
  %v825 = vunpack.c.l.b16 %v257
  %v826 = vunpack.c.l.b16 %v258
  %v827 = vunpack.c.l.b16 %v259
  %v828 = vunpack.c.l.b16 %v260
  %v829 = vunpack.c.l.b16 %v261
  %v830 = vunpack.c.l.b16 %v262
  %v831 = vunpack.c.l.b16 %v263
  %v832 = vunpack.c.l.b16 %v264
  %v833 = vunpack.c.l.b16 %v265
  %v834 = vunpack.c.l.b16 %v266
  %v835 = vunpack.c.l.b16 %v267
  %v836 = vunpack.c.l.b16 %v268
  %v837 = vunpack.c.l.b16 %v269
  %v838 = vunpack.c.l.b16 %v270
  %v839 = vunpack.c.l.b16 %v271
  %v840 = vunpack.c.l.b16 %v272
  %v841 = vunpack.c.l.b16 %v273
  %v842 = vunpack.c.l.b16 %v274
  %v843 = vunpack.c.l.b16 %v275
  %v844 = vpack.c.b16 %v589, %v588
  %v845 = vpack.c.b16 %v591, %v590
  %v846 = vpack.c.b16 %v593, %v592
  %v847 = vpack.c.b16 %v595, %v594
  %v848 = vpack.c.b16 %v597, %v596
  %v849 = vpack.c.b16 %v599, %v598
  %v850 = vpack.c.b16 %v601, %v600
  %v851 = vpack.c.b16 %v603, %v602
  %v852 = vpack.c.b16 %v605, %v604
  %v853 = vpack.c.b16 %v607, %v606
  %v854 = vpack.c.b16 %v609, %v608
  %v855 = vpack.c.b16 %v611, %v610
  %v856 = vpack.c.b16 %v613, %v612
  %v857 = vpack.c.b16 %v615, %v614
  %v858 = vpack.c.b16 %v617, %v616
  %v859 = vpack.c.b16 %v619, %v618
  %v860 = vpack.c.b16 %v621, %v620
  %v861 = vpack.c.b16 %v623, %v622
  %v862 = vpack.c.b16 %v625, %v624
  %v863 = vpack.c.b16 %v627, %v626
  %v864 = vpack.c.b16 %v629, %v628
  %v865 = vpack.c.b16 %v631, %v630
  %v866 = vpack.c.b16 %v633, %v632
  %v867 = vpack.c.b16 %v635, %v634
  %v868 = vpack.c.b16 %v637, %v636
  %v869 = vpack.c.b16 %v639, %v638
  %v870 = vpack.c.b16 %v641, %v640
  %v871 = vpack.c.b16 %v643, %v642
  %v872 = vpack.c.b16 %v645, %v644
  %v873 = vpack.c.b16 %v647, %v646
  %v874 = vpack.c.b16 %v649, %v648
  %v875 = vpack.c.b16 %v651, %v650
  %v876 = vpack.c.b16 %v653, %v652
  %v877 = vpack.c.b16 %v655, %v654
  %v878 = vpack.c.b16 %v657, %v656
  %v879 = vpack.c.b16 %v659, %v658
  %v880 = vpack.c.b16 %v661, %v660
  %v881 = vpack.c.b16 %v663, %v662
  %v882 = vpack.c.b16 %v665, %v664
  %v883 = vpack.c.b16 %v667, %v666
  %v884 = vpack.c.b16 %v669, %v668
  %v885 = vpack.c.b16 %v671, %v670
  %v886 = vpack.c.b16 %v673, %v672
  %v887 = vpack.c.b16 %v675, %v674
  %v888 = vpack.c.b16 %v677, %v676
  %v889 = vpack.c.b16 %v679, %v678
  %v890 = vpack.c.b16 %v681, %v680
  %v891 = vpack.c.b16 %v683, %v682
  %v892 = vpack.c.b16 %v685, %v684
  %v893 = vpack.c.b16 %v687, %v686
  %v894 = vpack.c.b16 %v689, %v688
  %v895 = vpack.c.b16 %v691, %v690
  %v896 = vpack.c.b16 %v693, %v692
  %v897 = vpack.c.b16 %v695, %v694
  %v898 = vpack.c.b16 %v697, %v696
  %v899 = vpack.c.b16 %v699, %v698
  %v900 = vpack.c.b16 %v701, %v700
  %v901 = vpack.c.b16 %v703, %v702
  %v902 = vpack.c.b16 %v705, %v704
  %v903 = vpack.c.b16 %v707, %v706
  %v904 = vpack.c.b16 %v709, %v708
  %v905 = vpack.c.b16 %v711, %v710
  %v906 = vpack.c.b16 %v713, %v712
  %v907 = vpack.c.b16 %v715, %v714
  %v908 = vpack.c.b16 %v717, %v716
  %v909 = vpack.c.b16 %v719, %v718
  %v910 = vpack.c.b16 %v721, %v720
  %v911 = vpack.c.b16 %v723, %v722
  %v912 = vpack.c.b16 %v725, %v724
  %v913 = vpack.c.b16 %v727, %v726
  %v914 = vpack.c.b16 %v729, %v728
  %v915 = vpack.c.b16 %v731, %v730
  %v916 = vpack.c.b16 %v733, %v732
  %v917 = vpack.c.b16 %v735, %v734
  %v918 = vpack.c.b16 %v737, %v736
  %v919 = vpack.c.b16 %v739, %v738
  %v920 = vpack.c.b16 %v741, %v740
  %v921 = vpack.c.b16 %v743, %v742
  %v922 = vpack.c.b16 %v745, %v744
  %v923 = vpack.c.b16 %v747, %v746
  %v924 = vpack.c.b16 %v749, %v748
  %v925 = vpack.c.b16 %v751, %v750
  %v926 = vpack.c.b16 %v753, %v752
  %v927 = vpack.c.b16 %v755, %v754
  %v928 = vpack.c.b16 %v757, %v756
  %v929 = vpack.c.b16 %v759, %v758
  %v930 = vpack.c.b16 %v761, %v760
  %v931 = vpack.c.b16 %v763, %v762
  %v932 = vpack.c.b16 %v765, %v764
  %v933 = vpack.c.b16 %v767, %v766
  %v934 = vpack.c.b16 %v769, %v768
  %v935 = vpack.c.b16 %v771, %v770
  %v936 = vpack.c.b16 %v773, %v772
  %v937 = vpack.c.b16 %v775, %v774
  %v938 = vpack.c.b16 %v777, %v776
  %v939 = vpack.c.b16 %v779, %v778
  %v940 = vpack.c.b16 %v781, %v780
  %v941 = vpack.c.b16 %v783, %v782
  %v942 = vpack.c.b16 %v785, %v784
  %v943 = vpack.c.b16 %v787, %v786
  %v944 = vpack.c.b16 %v789, %v788
  %v945 = vpack.c.b16 %v791, %v790
  %v946 = vpack.c.b16 %v793, %v792
  %v947 = vpack.c.b16 %v795, %v794
  %v948 = vpack.c.b16 %v797, %v796
  %v949 = vpack.c.b16 %v799, %v798
  %v950 = vpack.c.b16 %v801, %v800
  %v951 = vpack.c.b16 %v803, %v802
  %v952 = vpack.c.b16 %v805, %v804
  %v953 = vpack.c.b16 %v807, %v806
  %v954 = vpack.c.b16 %v809, %v808
  %v955 = vpack.c.b16 %v811, %v810
  %v956 = vpack.c.b16 %v813, %v812
  %v957 = vpack.c.b16 %v815, %v814
  %v958 = vpack.c.b16 %v817, %v816
  %v959 = vpack.c.b16 %v819, %v818
  %v960 = vpack.c.b16 %v821, %v820
  %v961 = vpack.c.b16 %v823, %v822
  %v962 = vpack.c.b16 %v825, %v824
  %v963 = vpack.c.b16 %v827, %v826
  %v964 = vpack.c.b16 %v829, %v828
  %v965 = vpack.c.b16 %v831, %v830
  %v966 = vpack.c.b16 %v833, %v832
  %v967 = vpack.c.b16 %v835, %v834
  %v968 = vpack.c.b16 %v837, %v836
  %v969 = vpack.c.b16 %v839, %v838
  %v970 = vpack.c.b16 %v841, %v840
  %v971 = vpack.c.b16 %v843, %v842
  %1100 = vmatprep.subr.bf16.mxu0 0
  %1101 = vmatpush1.bf16.msra.mxu0 %v844
  %1102 = vmatprep.subr.bf16.mxu0 0
  %1103 = vmatpush1.bf16.msra.mxu0 %v845
  %1104 = vmatprep.subr.bf16.mxu0 0
  %1105 = vmatpush1.bf16.msra.mxu0 %v846
  %1106 = vmatprep.subr.bf16.mxu0 0
  %1107 = vmatpush1.bf16.msra.mxu0 %v847
  %1108 = vmatprep.subr.bf16.mxu0 0
  %1109 = vmatpush1.bf16.msra.mxu0 %v848
  %1110 = vmatprep.subr.bf16.mxu0 0
  %1111 = vmatpush1.bf16.msra.mxu0 %v849
  %1112 = vmatprep.subr.bf16.mxu0 0
  %1113 = vmatpush1.bf16.msra.mxu0 %v850
  %1114 = vmatprep.subr.bf16.mxu0 0
  %1115 = vmatpush1.bf16.msra.mxu0 %v851
  %1116 = vmatprep.subr.bf16.mxu0 0
  %1117 = vmatpush1.bf16.msra.mxu0 %v852
  %1118 = vmatprep.subr.bf16.mxu0 0
  %1119 = vmatpush1.bf16.msra.mxu0 %v853
  %1120 = vmatprep.subr.bf16.mxu0 0
  %1121 = vmatpush1.bf16.msra.mxu0 %v854
  %1122 = vmatprep.subr.bf16.mxu0 0
  %1123 = vmatpush1.bf16.msra.mxu0 %v855
  %1124 = vmatprep.subr.bf16.mxu0 0
  %1125 = vmatpush1.bf16.msra.mxu0 %v856
  %1126 = vmatprep.subr.bf16.mxu0 0
  %1127 = vmatpush1.bf16.msra.mxu0 %v857
  %1128 = vmatprep.subr.bf16.mxu0 0
  %1129 = vmatpush1.bf16.msra.mxu0 %v858
  %1130 = vmatprep.subr.bf16.mxu0 0
  %1131 = vmatpush1.bf16.msra.mxu0 %v859
  %1132 = vmatprep.mubr.bf16.mxu0 %v301
  %1133 = vmatmul.mubr.bf16.gmra.mrb[0].mxu0 %v300
  %v1134 = vpop.f32.mrb[0].mxu0
  %v1135 = vadd.f32 0.0, %v1134
  %v1136 = vpop.f32.mrb[0].mxu0
  %v1137 = vpop.f32.mrb[0].mxu0
  %v1138 = vpop.f32.mrb[0].mxu0
  %1139 = vdwg.mxu0
  %1140 = vmatprep.subr.bf16.mxu0 0
  %1141 = vmatpush1.bf16.msra.mxu0 %v860
  %1142 = vmatprep.subr.bf16.mxu0 0
  %1143 = vmatpush1.bf16.msra.mxu0 %v861
  %1144 = vmatprep.subr.bf16.mxu0 0
  %1145 = vmatpush1.bf16.msra.mxu0 %v862
  %1146 = vmatprep.subr.bf16.mxu0 0
  %1147 = vmatpush1.bf16.msra.mxu0 %v863
  %1148 = vmatprep.subr.bf16.mxu0 0
  %1149 = vmatpush1.bf16.msra.mxu0 %v864
  %1150 = vmatprep.subr.bf16.mxu0 0
  %1151 = vmatpush1.bf16.msra.mxu0 %v865
  %1152 = vmatprep.subr.bf16.mxu0 0
  %1153 = vmatpush1.bf16.msra.mxu0 %v866
  %1154 = vmatprep.subr.bf16.mxu0 0
  %1155 = vmatpush1.bf16.msra.mxu0 %v867
  %1156 = vmatprep.subr.bf16.mxu0 0
  %1157 = vmatpush1.bf16.msra.mxu0 %v868
  %1158 = vmatprep.subr.bf16.mxu0 0
  %1159 = vmatpush1.bf16.msra.mxu0 %v869
  %1160 = vmatprep.subr.bf16.mxu0 0
  %1161 = vmatpush1.bf16.msra.mxu0 %v870
  %1162 = vmatprep.subr.bf16.mxu0 0
  %1163 = vmatpush1.bf16.msra.mxu0 %v871
  %1164 = vmatprep.subr.bf16.mxu0 0
  %1165 = vmatpush1.bf16.msra.mxu0 %v872
  %1166 = vmatprep.subr.bf16.mxu0 0
  %1167 = vmatpush1.bf16.msra.mxu0 %v873
  %1168 = vmatprep.subr.bf16.mxu0 0
  %1169 = vmatpush1.bf16.msra.mxu0 %v874
  %1170 = vmatprep.subr.bf16.mxu0 0
  %1171 = vmatpush1.bf16.msra.mxu0 %v875
  %1172 = vmatprep.mubr.bf16.mxu0 %v303
  %1173 = vmatmul.mubr.bf16.gmra.mrb[0].mxu0 %v302
  %v1174 = vpop.f32.mrb[0].mxu0
  %v1175 = vadd.f32 %v1135, %v1174
  %v1176 = vpop.f32.mrb[0].mxu0
  %v1177 = vpop.f32.mrb[0].mxu0
  %v1178 = vpop.f32.mrb[0].mxu0
  %1179 = vdwg.mxu0
  %1180 = vmatprep.subr.bf16.mxu0 0
  %1181 = vmatpush1.bf16.msra.mxu0 %v876
  %1182 = vmatprep.subr.bf16.mxu0 0
  %1183 = vmatpush1.bf16.msra.mxu0 %v877
  %1184 = vmatprep.subr.bf16.mxu0 0
  %1185 = vmatpush1.bf16.msra.mxu0 %v878
  %1186 = vmatprep.subr.bf16.mxu0 0
  %1187 = vmatpush1.bf16.msra.mxu0 %v879
  %1188 = vmatprep.subr.bf16.mxu0 0
  %1189 = vmatpush1.bf16.msra.mxu0 %v880
  %1190 = vmatprep.subr.bf16.mxu0 0
  %1191 = vmatpush1.bf16.msra.mxu0 %v881
  %1192 = vmatprep.subr.bf16.mxu0 0
  %1193 = vmatpush1.bf16.msra.mxu0 %v882
  %1194 = vmatprep.subr.bf16.mxu0 0
  %1195 = vmatpush1.bf16.msra.mxu0 %v883
  %1196 = vmatprep.subr.bf16.mxu0 0
  %1197 = vmatpush1.bf16.msra.mxu0 %v884
  %1198 = vmatprep.subr.bf16.mxu0 0
  %1199 = vmatpush1.bf16.msra.mxu0 %v885
  %1200 = vmatprep.subr.bf16.mxu0 0
  %1201 = vmatpush1.bf16.msra.mxu0 %v886
  %1202 = vmatprep.subr.bf16.mxu0 0
  %1203 = vmatpush1.bf16.msra.mxu0 %v887
  %1204 = vmatprep.subr.bf16.mxu0 0
  %1205 = vmatpush1.bf16.msra.mxu0 %v888
  %1206 = vmatprep.subr.bf16.mxu0 0
  %1207 = vmatpush1.bf16.msra.mxu0 %v889
  %1208 = vmatprep.subr.bf16.mxu0 0
  %1209 = vmatpush1.bf16.msra.mxu0 %v890
  %1210 = vmatprep.subr.bf16.mxu0 0
  %1211 = vmatpush1.bf16.msra.mxu0 %v891
  %1212 = vmatprep.mubr.bf16.mxu0 %v305
  %1213 = vmatmul.mubr.bf16.gmra.mrb[0].mxu0 %v304
  %v1214 = vpop.f32.mrb[0].mxu0
  %v1215 = vadd.f32 %v1175, %v1214
  %v1216 = vpop.f32.mrb[0].mxu0
  %v1217 = vpop.f32.mrb[0].mxu0
  %v1218 = vpop.f32.mrb[0].mxu0
  %1219 = vdwg.mxu0
  %1220 = vmatprep.subr.bf16.mxu0 0
  %1221 = vmatpush1.bf16.msra.mxu0 %v892
  %1222 = vmatprep.subr.bf16.mxu0 0
  %1223 = vmatpush1.bf16.msra.mxu0 %v893
  %1224 = vmatprep.subr.bf16.mxu0 0
  %1225 = vmatpush1.bf16.msra.mxu0 %v894
  %1226 = vmatprep.subr.bf16.mxu0 0
  %1227 = vmatpush1.bf16.msra.mxu0 %v895
  %1228 = vmatprep.subr.bf16.mxu0 0
  %1229 = vmatpush1.bf16.msra.mxu0 %v896
  %1230 = vmatprep.subr.bf16.mxu0 0
  %1231 = vmatpush1.bf16.msra.mxu0 %v897
  %1232 = vmatprep.subr.bf16.mxu0 0
  %1233 = vmatpush1.bf16.msra.mxu0 %v898
  %1234 = vmatprep.subr.bf16.mxu0 0
  %1235 = vmatpush1.bf16.msra.mxu0 %v899
  %1236 = vmatprep.subr.bf16.mxu0 0
  %1237 = vmatpush1.bf16.msra.mxu0 %v900
  %1238 = vmatprep.subr.bf16.mxu0 0
  %1239 = vmatpush1.bf16.msra.mxu0 %v901
  %1240 = vmatprep.subr.bf16.mxu0 0
  %1241 = vmatpush1.bf16.msra.mxu0 %v902
  %1242 = vmatprep.subr.bf16.mxu0 0
  %1243 = vmatpush1.bf16.msra.mxu0 %v903
  %1244 = vmatprep.subr.bf16.mxu0 0
  %1245 = vmatpush1.bf16.msra.mxu0 %v904
  %1246 = vmatprep.subr.bf16.mxu0 0
  %1247 = vmatpush1.bf16.msra.mxu0 %v905
  %1248 = vmatprep.subr.bf16.mxu0 0
  %1249 = vmatpush1.bf16.msra.mxu0 %v906
  %1250 = vmatprep.subr.bf16.mxu0 0
  %1251 = vmatpush1.bf16.msra.mxu0 %v907
  %1252 = vmatprep.mubr.bf16.mxu0 %v307
  %1253 = vmatmul.mubr.bf16.gmra.mrb[0].mxu0 %v306
  %v1254 = vpop.f32.mrb[0].mxu0
  %v1255 = vadd.f32 %v1215, %v1254
  %v1256 = vpop.f32.mrb[0].mxu0
  %v1257 = vpop.f32.mrb[0].mxu0
  %v1258 = vpop.f32.mrb[0].mxu0
  %1259 = vdwg.mxu0
  %1260 = vmatprep.subr.bf16.mxu0 0
  %1261 = vmatpush1.bf16.msra.mxu0 %v908
  %1262 = vmatprep.subr.bf16.mxu0 0
  %1263 = vmatpush1.bf16.msra.mxu0 %v909
  %1264 = vmatprep.subr.bf16.mxu0 0
  %1265 = vmatpush1.bf16.msra.mxu0 %v910
  %1266 = vmatprep.subr.bf16.mxu0 0
  %1267 = vmatpush1.bf16.msra.mxu0 %v911
  %1268 = vmatprep.subr.bf16.mxu0 0
  %1269 = vmatpush1.bf16.msra.mxu0 %v912
  %1270 = vmatprep.subr.bf16.mxu0 0
  %1271 = vmatpush1.bf16.msra.mxu0 %v913
  %1272 = vmatprep.subr.bf16.mxu0 0
  %1273 = vmatpush1.bf16.msra.mxu0 %v914
  %1274 = vmatprep.subr.bf16.mxu0 0
  %1275 = vmatpush1.bf16.msra.mxu0 %v915
  %1276 = vmatprep.subr.bf16.mxu0 0
  %1277 = vmatpush1.bf16.msra.mxu0 %v916
  %1278 = vmatprep.subr.bf16.mxu0 0
  %1279 = vmatpush1.bf16.msra.mxu0 %v917
  %1280 = vmatprep.subr.bf16.mxu0 0
  %1281 = vmatpush1.bf16.msra.mxu0 %v918
  %1282 = vmatprep.subr.bf16.mxu0 0
  %1283 = vmatpush1.bf16.msra.mxu0 %v919
  %1284 = vmatprep.subr.bf16.mxu0 0
  %1285 = vmatpush1.bf16.msra.mxu0 %v920
  %1286 = vmatprep.subr.bf16.mxu0 0
  %1287 = vmatpush1.bf16.msra.mxu0 %v921
  %1288 = vmatprep.subr.bf16.mxu0 0
  %1289 = vmatpush1.bf16.msra.mxu0 %v922
  %1290 = vmatprep.subr.bf16.mxu0 0
  %1291 = vmatpush1.bf16.msra.mxu0 %v923
  %1292 = vmatprep.mubr.bf16.mxu0 %v309
  %1293 = vmatmul.mubr.bf16.gmra.mrb[0].mxu0 %v308
  %v1294 = vpop.f32.mrb[0].mxu0
  %v1295 = vadd.f32 %v1255, %v1294
  %v1296 = vpop.f32.mrb[0].mxu0
  %v1297 = vpop.f32.mrb[0].mxu0
  %v1298 = vpop.f32.mrb[0].mxu0
  %1299 = vdwg.mxu0
  %1300 = vmatprep.subr.bf16.mxu0 0
  %1301 = vmatpush1.bf16.msra.mxu0 %v924
  %1302 = vmatprep.subr.bf16.mxu0 0
  %1303 = vmatpush1.bf16.msra.mxu0 %v925
  %1304 = vmatprep.subr.bf16.mxu0 0
  %1305 = vmatpush1.bf16.msra.mxu0 %v926
  %1306 = vmatprep.subr.bf16.mxu0 0
  %1307 = vmatpush1.bf16.msra.mxu0 %v927
  %1308 = vmatprep.subr.bf16.mxu0 0
  %1309 = vmatpush1.bf16.msra.mxu0 %v928
  %1310 = vmatprep.subr.bf16.mxu0 0
  %1311 = vmatpush1.bf16.msra.mxu0 %v929
  %1312 = vmatprep.subr.bf16.mxu0 0
  %1313 = vmatpush1.bf16.msra.mxu0 %v930
  %1314 = vmatprep.subr.bf16.mxu0 0
  %1315 = vmatpush1.bf16.msra.mxu0 %v931
  %1316 = vmatprep.subr.bf16.mxu0 0
  %1317 = vmatpush1.bf16.msra.mxu0 %v932
  %1318 = vmatprep.subr.bf16.mxu0 0
  %1319 = vmatpush1.bf16.msra.mxu0 %v933
  %1320 = vmatprep.subr.bf16.mxu0 0
  %1321 = vmatpush1.bf16.msra.mxu0 %v934
  %1322 = vmatprep.subr.bf16.mxu0 0
  %1323 = vmatpush1.bf16.msra.mxu0 %v935
  %1324 = vmatprep.subr.bf16.mxu0 0
  %1325 = vmatpush1.bf16.msra.mxu0 %v936
  %1326 = vmatprep.subr.bf16.mxu0 0
  %1327 = vmatpush1.bf16.msra.mxu0 %v937
  %1328 = vmatprep.subr.bf16.mxu0 0
  %1329 = vmatpush1.bf16.msra.mxu0 %v938
  %1330 = vmatprep.subr.bf16.mxu0 0
  %1331 = vmatpush1.bf16.msra.mxu0 %v939
  %1332 = vmatprep.mubr.bf16.mxu0 %v311
  %1333 = vmatmul.mubr.bf16.gmra.mrb[0].mxu0 %v310
  %v1334 = vpop.f32.mrb[0].mxu0
  %v1335 = vadd.f32 %v1295, %v1334
  %v1336 = vpop.f32.mrb[0].mxu0
  %v1337 = vpop.f32.mrb[0].mxu0
  %v1338 = vpop.f32.mrb[0].mxu0
  %1339 = vdwg.mxu0
  %1340 = vmatprep.subr.bf16.mxu0 0
  %1341 = vmatpush1.bf16.msra.mxu0 %v940
  %1342 = vmatprep.subr.bf16.mxu0 0
  %1343 = vmatpush1.bf16.msra.mxu0 %v941
  %1344 = vmatprep.subr.bf16.mxu0 0
  %1345 = vmatpush1.bf16.msra.mxu0 %v942
  %1346 = vmatprep.subr.bf16.mxu0 0
  %1347 = vmatpush1.bf16.msra.mxu0 %v943
  %1348 = vmatprep.subr.bf16.mxu0 0
  %1349 = vmatpush1.bf16.msra.mxu0 %v944
  %1350 = vmatprep.subr.bf16.mxu0 0
  %1351 = vmatpush1.bf16.msra.mxu0 %v945
  %1352 = vmatprep.subr.bf16.mxu0 0
  %1353 = vmatpush1.bf16.msra.mxu0 %v946
  %1354 = vmatprep.subr.bf16.mxu0 0
  %1355 = vmatpush1.bf16.msra.mxu0 %v947
  %1356 = vmatprep.subr.bf16.mxu0 0
  %1357 = vmatpush1.bf16.msra.mxu0 %v948
  %1358 = vmatprep.subr.bf16.mxu0 0
  %1359 = vmatpush1.bf16.msra.mxu0 %v949
  %1360 = vmatprep.subr.bf16.mxu0 0
  %1361 = vmatpush1.bf16.msra.mxu0 %v950
  %1362 = vmatprep.subr.bf16.mxu0 0
  %1363 = vmatpush1.bf16.msra.mxu0 %v951
  %1364 = vmatprep.subr.bf16.mxu0 0
  %1365 = vmatpush1.bf16.msra.mxu0 %v952
  %1366 = vmatprep.subr.bf16.mxu0 0
  %1367 = vmatpush1.bf16.msra.mxu0 %v953
  %1368 = vmatprep.subr.bf16.mxu0 0
  %1369 = vmatpush1.bf16.msra.mxu0 %v954
  %1370 = vmatprep.subr.bf16.mxu0 0
  %1371 = vmatpush1.bf16.msra.mxu0 %v955
  %1372 = vmatprep.mubr.bf16.mxu0 %v313
  %1373 = vmatmul.mubr.bf16.gmra.mrb[0].mxu0 %v312
  %v1374 = vpop.f32.mrb[0].mxu0
  %v1375 = vadd.f32 %v1335, %v1374
  %v1376 = vpop.f32.mrb[0].mxu0
  %v1377 = vpop.f32.mrb[0].mxu0
  %v1378 = vpop.f32.mrb[0].mxu0
  %1379 = vdwg.mxu0
  %1380 = vmatprep.subr.bf16.mxu0 0
  %1381 = vmatpush1.bf16.msra.mxu0 %v956
  %1382 = vmatprep.subr.bf16.mxu0 0
  %1383 = vmatpush1.bf16.msra.mxu0 %v957
  %1384 = vmatprep.subr.bf16.mxu0 0
  %1385 = vmatpush1.bf16.msra.mxu0 %v958
  %1386 = vmatprep.subr.bf16.mxu0 0
  %1387 = vmatpush1.bf16.msra.mxu0 %v959
  %1388 = vmatprep.subr.bf16.mxu0 0
  %1389 = vmatpush1.bf16.msra.mxu0 %v960
  %1390 = vmatprep.subr.bf16.mxu0 0
  %1391 = vmatpush1.bf16.msra.mxu0 %v961
  %1392 = vmatprep.subr.bf16.mxu0 0
  %1393 = vmatpush1.bf16.msra.mxu0 %v962
  %1394 = vmatprep.subr.bf16.mxu0 0
  %1395 = vmatpush1.bf16.msra.mxu0 %v963
  %1396 = vmatprep.subr.bf16.mxu0 0
  %1397 = vmatpush1.bf16.msra.mxu0 %v964
  %1398 = vmatprep.subr.bf16.mxu0 0
  %1399 = vmatpush1.bf16.msra.mxu0 %v965
  %1400 = vmatprep.subr.bf16.mxu0 0
  %1401 = vmatpush1.bf16.msra.mxu0 %v966
  %1402 = vmatprep.subr.bf16.mxu0 0
  %1403 = vmatpush1.bf16.msra.mxu0 %v967
  %1404 = vmatprep.subr.bf16.mxu0 0
  %1405 = vmatpush1.bf16.msra.mxu0 %v968
  %1406 = vmatprep.subr.bf16.mxu0 0
  %1407 = vmatpush1.bf16.msra.mxu0 %v969
  %1408 = vmatprep.subr.bf16.mxu0 0
  %1409 = vmatpush1.bf16.msra.mxu0 %v970
  %1410 = vmatprep.subr.bf16.mxu0 0
  %1411 = vmatpush1.bf16.msra.mxu0 %v971
  %1412 = vmatprep.mubr.bf16.mxu0 %v315
  %1413 = vmatmul.mubr.bf16.gmra.mrb[0].mxu0 %v314
  %v1414 = vpop.f32.mrb[0].mxu0
  %v1415 = vadd.f32 %v1375, %v1414
  %v1416 = vpop.f32.mrb[0].mxu0
  %v1417 = vpop.f32.mrb[0].mxu0
  %v1418 = vpop.f32.mrb[0].mxu0
  %1419 = vdwg.mxu0
  %v1420 = vsub.f32 0.0, %v1415
  %v1421 = vmul.f32 %v1420, 1.442695
  %v1422 = vpow.pop %v1421
  %v1423 = vadd.f32 %v1422, 1.0
  %v1424 = vrcp.pop %v1423
  %v1425 = vmul.f32 1.0, %v1424
  %vm1426 = vcmask 7168
  %1427 = vst.msk [vmem:[%s2] sm:$0xff] %vm1426, %v1425
  // Predicated region
  $region10: #{_lambda_.11} parent=0 // pred_check
    _
  $region11: #{_lambda_.11} parent=0 // pred_check_branch
    %1429 = sbr.rel (0) target = $region13
  $region12: #{_lambda_.11} parent=0 // pred_region
    _
  $region13: #{_lambda_.11} parent=0 // pred_fallthru
    _
  // Predicated region
  $region14: #{_lambda_.11} parent=0 // pred_check
    _
  $region15: #{_lambda_.11} parent=0 // pred_check_branch
    %1431 = sbr.rel (0) target = $region17
  $region16: #{_lambda_.11} parent=0 // pred_region
    _
  $region17: #{_lambda_.11} parent=0 // pred_fallthru
    _

</llo_original>
